<compile_context>
chip_gen: v6e
topology: v6e:2x2x1
jax: 0.10.0
libtpu: 0.0.40
codegen_flags: <defaults>
</compile_context>

<pallas_src>
import functools
import numpy as np
import jax
import jax.numpy as jnp
from jax import lax
from jax.experimental import pallas as pl
from jax.experimental.pallas import tpu as pltpu


# ----------------------------------------------------------------------------
# Pallas kernel: per-batch-element fused BF forward
# ----------------------------------------------------------------------------
def _bf_kernel(feat_ref, pred_ref,
               wbf_ref, sbf_ref, bbf_ref,
               wen_ref, sen_ref, ben_ref,
               wout_ref, bout_ref,
               enh_ref, npred_ref,
               xpad_ref, col_ref,
               *, row_chunks):
    """One grid step = one batch element.

    feat_ref : (1, H, W, 32)   f32   input features
    pred_ref : (1, H, W, 1)    f32   upsampled prediction logits (pre-sigmoid)
    wbf_ref  : (288, 32)       bf16  3x3 conv-1 weights, im2col (tap-major) layout
    sbf/bbf  : (1, 32)         f32   folded BN scale / bias (conv bias folded in)
    wen_ref  : (288, 256)      bf16  3x3 conv-2 weights, im2col layout
    sen/ben  : (1, 256)        f32
    wout_ref : (1, 256)        f32   1x1 conv weight (row vector)
    bout_ref : (1, 1)          f32   1x1 conv bias
    enh_ref  : (1, H*W, 256)   f32   output: enhanced features (flattened spatial)
    npred_ref: (1, H*W, 1)     f32   output: new prediction logits
    xpad_ref : (H+2, W+2, 32)  f32   shared zero-padded conv-input scratch
    col_ref  : (H*W, 288)      bf16  shared im2col scratch (K = 9*32)
    """
    H = feat_ref.shape[1]
    W = feat_ref.shape[2]
    C1 = wbf_ref.shape[1]     # 32
    C2 = wen_ref.shape[1]     # 256
    HW = H * W
    f32 = jnp.float32

    # --- elementwise gating (f32, VPU): feat * (1 - sigmoid(pred_up)) ---
    p = jax.nn.sigmoid(pred_ref[0])               # (H, W, 1)
    x = feat_ref[0] * (1.0 - p)                   # (H, W, 32)

    # --- zero only the 1-pixel border of the shared pad scratch; the interior
    #     is fully overwritten below for both convs (cheaper than full fill) ---
    xpad_ref[0:1, :, :] = jnp.zeros((1, W + 2, C1), f32)
    xpad_ref[H + 1:H + 2, :, :] = jnp.zeros((1, W + 2, C1), f32)
    xpad_ref[:, 0:1, :] = jnp.zeros((H + 2, 1, C1), f32)
    xpad_ref[:, W + 1:W + 2, :] = jnp.zeros((H + 2, 1, C1), f32)

    def build_im2col():
        # copy the 9 shifted windows side-by-side on the lane axis (bf16)
        for k in range(9):
            dy, dx = divmod(k, 3)
            win = xpad_ref[dy:dy + H, dx:dx + W, :].reshape(HW, C1)
            col_ref[:, k * C1:(k + 1) * C1] = win.astype(jnp.bfloat16)

    # --- conv1 3x3 (32 -> 32): single im2col matmul (K=288) + BN + ReLU ---
    xpad_ref[1:H + 1, 1:W + 1, :] = x
    build_im2col()
    acc1 = jnp.dot(col_ref[...], wbf_ref[...], preferred_element_type=f32)
    bf = jnp.maximum(acc1 * sbf_ref[...] + bbf_ref[...], 0.0)       # (HW, 32) f32

    # --- conv2 3x3 (32 -> 256): reuse both scratch buffers ---
    xpad_ref[1:H + 1, 1:W + 1, :] = bf.reshape(H, W, C1)
    build_im2col()

    w_out = wout_ref[...]          # (1, 256)
    b_out = bout_ref[0, 0]
    # Chunk the spatial (M) dim so each matmul result + epilogue fits the vreg
    # file instead of spilling an (H*W, 256) f32 value.
    for r0, rs in row_chunks:
        acc2 = jnp.dot(col_ref[r0:r0 + rs, :], wen_ref[...],
                       preferred_element_type=f32)                  # (rs, 256)
        en = jnp.maximum(acc2 * sen_ref[...] + ben_ref[...], 0.0)
        enh_ref[0, r0:r0 + rs, :] = en
        # 1x1 output conv as VPU multiply + lane reduction (avoids N=1 MXU matmul)
        npred_ref[0, r0:r0 + rs, :] = (
            jnp.sum(en * w_out, axis=-1, keepdims=True) + b_out)


# ----------------------------------------------------------------------------
# Bilinear interpolation matrix (align_corners=True), matches F.interpolate
# ----------------------------------------------------------------------------
def _interp_matrix(out_size, in_size):
    M = np.zeros((out_size, in_size), np.float32)
    if in_size == 1 or out_size == 1:
        M[:, 0] = 1.0
        return M
    scale = (in_size - 1) / (out_size - 1)
    for i in range(out_size):
        src = i * scale
        i0 = min(int(np.floor(src)), in_size - 1)
        i1 = min(i0 + 1, in_size - 1)
        f = src - i0
        M[i, i0] += 1.0 - f
        M[i, i1] += f
    return M


# ----------------------------------------------------------------------------
# Wrapper: NCHW in / NCHW out
# ----------------------------------------------------------------------------
def bf_forward(feat_nchw, pred_nchw, params):
    N, C1, H, W = feat_nchw.shape
    _, _, h, w = pred_nchw.shape
    C2 = params["w_en"].shape[1]
    assert (H * W) % 8 == 0, "flattened spatial dim must be a multiple of 8"

    # glue: bilinear upsample of pred logits via precomputed interp matrices
    Wy = jnp.asarray(_interp_matrix(H, h))
    Wx = jnp.asarray(_interp_matrix(W, w))
    pred_up = jnp.einsum("nchw,Hh,Ww->nHWc", pred_nchw, Wy, Wx)   # (N,H,W,1)

    feat = jnp.transpose(feat_nchw, (0, 2, 3, 1))                 # NCHW -> NHWC

    # static spatial row chunks for the conv-2 matmul/epilogue
    TM = 128
    row_chunks, r = [], 0
    while r < H * W:
        rs = min(TM, H * W - r)
        row_chunks.append((r, rs))
        r += rs
    kernel = functools.partial(_bf_kernel, row_chunks=tuple(row_chunks))

    out_shapes = (
        jax.ShapeDtypeStruct((N, H * W, C2), jnp.float32),
        jax.ShapeDtypeStruct((N, H * W, 1), jnp.float32),
    )

    enh_flat, npred_flat = pl.pallas_call(
        kernel,
        out_shape=out_shapes,
        grid=(N,),
        in_specs=[
            pl.BlockSpec((1, H, W, C1), lambda n: (n, 0, 0, 0)),   # feat
            pl.BlockSpec((1, H, W, 1), lambda n: (n, 0, 0, 0)),    # pred_up
            pl.BlockSpec((9 * C1, C1), lambda n: (0, 0)),          # w_bf (im2col)
            pl.BlockSpec((1, C1), lambda n: (0, 0)),               # scale_bf
            pl.BlockSpec((1, C1), lambda n: (0, 0)),               # bias_bf
            pl.BlockSpec((9 * C1, C2), lambda n: (0, 0)),          # w_en (im2col)
            pl.BlockSpec((1, C2), lambda n: (0, 0)),               # scale_en
            pl.BlockSpec((1, C2), lambda n: (0, 0)),               # bias_en
            pl.BlockSpec((1, C2), lambda n: (0, 0)),               # w_out row
            pl.BlockSpec((1, 1), lambda n: (0, 0)),                # b_out
        ],
        out_specs=(
            pl.BlockSpec((1, H * W, C2), lambda n: (n, 0, 0)),
            pl.BlockSpec((1, H * W, 1), lambda n: (n, 0, 0)),
        ),
        scratch_shapes=[
            pltpu.VMEM((H + 2, W + 2, C1), jnp.float32),           # shared pad
            pltpu.VMEM((H * W, 9 * C1), jnp.bfloat16),             # shared im2col
        ],
        compiler_params=pltpu.CompilerParams(
            dimension_semantics=("parallel",)),                    # megacore on v7x
    )(
        feat, pred_up,
        params["w_bf"], params["scale_bf"], params["bias_bf"],
        params["w_en"], params["scale_en"], params["bias_en"],
        params["w_out"], params["b_out"],
    )

    enhanced = jnp.transpose(enh_flat.reshape(N, H, W, C2), (0, 3, 1, 2))  # NCHW
    new_pred = jnp.transpose(npred_flat.reshape(N, H, W, 1), (0, 3, 1, 2))
    return enhanced, new_pred


# ----------------------------------------------------------------------------
# Pure-JAX reference (lax.conv) with the kernel's mixed precision:
# bf16 conv operands, f32 accumulation, f32 elementwise.
# ----------------------------------------------------------------------------
def bf_reference(feat_nchw, pred_nchw, params):
    N, C1, H, W = feat_nchw.shape
    _, _, h, w = pred_nchw.shape
    C2 = params["w_en"].shape[1]
    Wy = jnp.asarray(_interp_matrix(H, h))
    Wx = jnp.asarray(_interp_matrix(W, w))
    pred_up = jnp.einsum("nchw,Hh,Ww->nHWc", pred_nchw, Wy, Wx)
    feat = jnp.transpose(feat_nchw, (0, 2, 3, 1))
    x = feat * (1.0 - jax.nn.sigmoid(pred_up))

    dn = ("NHWC", "HWIO", "NHWC")
    w_bf = params["w_bf"].reshape(3, 3, C1, C1)                 # bf16
    y = lax.conv_general_dilated(x.astype(jnp.bfloat16), w_bf, (1, 1), "SAME",
                                 dimension_numbers=dn,
                                 preferred_element_type=jnp.float32)
    y = jnp.maximum(y * params["scale_bf"][0] + params["bias_bf"][0], 0.0)

    w_en = params["w_en"].reshape(3, 3, C1, C2)                 # bf16
    e = lax.conv_general_dilated(y.astype(jnp.bfloat16), w_en, (1, 1), "SAME",
                                 dimension_numbers=dn,
                                 preferred_element_type=jnp.float32)
    e = jnp.maximum(e * params["scale_en"][0] + params["bias_en"][0], 0.0)

    p = (e * params["w_out"][0]).sum(-1, keepdims=True) + params["b_out"][0, 0]
    return jnp.transpose(e, (0, 3, 1, 2)), jnp.transpose(p, (0, 3, 1, 2))


# ----------------------------------------------------------------------------
# Deterministic parameter construction (fold Conv bias + eval-mode BatchNorm)
# ----------------------------------------------------------------------------
def make_params(key):
    ks = jax.random.split(key, 12)
    eps = 1e-5
    C1, C2 = 32, 256

    def fold(conv_b, gamma, beta, mean, var):
        scale = gamma / jnp.sqrt(var + eps)
        bias = beta + (conv_b - mean) * scale
        return scale[None, :], bias[None, :]

    w_bf = 0.1 * jax.random.normal(ks[0], (9, C1, C1), jnp.float32)
    b_bf = 0.1 * jax.random.normal(ks[1], (C1,), jnp.float32)
    g_bf = 1.0 + 0.1 * jax.random.normal(ks[2], (C1,), jnp.float32)
    be_bf = 0.1 * jax.random.normal(ks[3], (C1,), jnp.float32)
    m_bf = 0.1 * jax.random.normal(ks[4], (C1,), jnp.float32)
    v_bf = 0.5 + jnp.abs(jax.random.normal(ks[5], (C1,), jnp.float32))
    scale_bf, bias_bf = fold(b_bf, g_bf, be_bf, m_bf, v_bf)

    w_en = 0.1 * jax.random.normal(ks[6], (9, C1, C2), jnp.float32)
    b_en = 0.1 * jax.random.normal(ks[7], (C2,), jnp.float32)
    g_en = 1.0 + 0.1 * jax.random.normal(ks[8], (C2,), jnp.float32)
    be_en = 0.1 * jax.random.normal(ks[9], (C2,), jnp.float32)
    m_en = 0.1 * jax.random.normal(ks[10], (C2,), jnp.float32)
    v_en = 0.5 + jnp.abs(jax.random.normal(ks[11], (C2,), jnp.float32))
    scale_en, bias_en = fold(b_en, g_en, be_en, m_en, v_en)

    kw, kb = jax.random.split(ks[0])
    w_out = 0.1 * jax.random.normal(kw, (1, C2), jnp.float32)
    b_out = 0.1 * jax.random.normal(kb, (1, 1), jnp.float32)

    # TODO(synk): self.reduce (Conv2d(in_c*2, 32, 1)) is unused in forward(); omitted.
    return dict(
        w_bf=w_bf.reshape(9 * C1, C1).astype(jnp.bfloat16),   # im2col layout, bf16
        scale_bf=scale_bf, bias_bf=bias_bf,
        w_en=w_en.reshape(9 * C1, C2).astype(jnp.bfloat16),   # im2col layout, bf16
        scale_en=scale_en, bias_en=bias_en,
        w_out=w_out, b_out=b_out)


if __name__ == "__main__":
    key = jax.random.PRNGKey(0)
    k_feat, k_pred, k_par = jax.random.split(key, 3)

    N, C, H, W = 2, 32, 16, 16        # feat must have 32 channels (bf_conv input)
    h, w = 8, 8                       # low-res pred, upsampled to (H, W)

    feat = jax.random.normal(k_feat, (N, C, H, W), jnp.float32)
    pred = jax.random.normal(k_pred, (N, 1, h, w), jnp.float32)
    params = make_params(k_par)

    enhanced, new_pred = bf_forward(feat, pred, params)
    enhanced = jax.block_until_ready(enhanced)
    new_pred = jax.block_until_ready(new_pred)

    ref_e, ref_p = bf_reference(feat, pred, params)
    np.testing.assert_allclose(np.asarray(enhanced), np.asarray(ref_e),
                               rtol=5e-3, atol=5e-3)
    np.testing.assert_allclose(np.asarray(new_pred), np.asarray(ref_p),
                               rtol=5e-3, atol=5e-3)

    assert enhanced.shape == (N, 256, H, W)
    assert new_pred.shape == (N, 1, H, W)
    print("KERNEL_OK")
</pallas_src>

<mosaic_0001>
module attributes {stable_mosaic.version = 11 : i64} {
  func.func @_bf_kernel(%arg0: i32, %arg1: memref<1x16x16x32xf32, #tpu.memory_space<vmem>>, %arg2: memref<1x16x16x1xf32, #tpu.memory_space<vmem>>, %arg3: memref<288x32xbf16, #tpu.memory_space<vmem>>, %arg4: memref<1x32xf32, #tpu.memory_space<vmem>>, %arg5: memref<1x32xf32, #tpu.memory_space<vmem>>, %arg6: memref<288x256xbf16, #tpu.memory_space<vmem>>, %arg7: memref<1x256xf32, #tpu.memory_space<vmem>>, %arg8: memref<1x256xf32, #tpu.memory_space<vmem>>, %arg9: memref<1x256xf32, #tpu.memory_space<vmem>>, %arg10: memref<1x1xf32, #tpu.memory_space<vmem>>, %arg11: memref<1x256x256xf32, #tpu.memory_space<vmem>>, %arg12: memref<1x256x1xf32, #tpu.memory_space<vmem>>, %arg13: memref<18x18x32xf32, #tpu.memory_space<vmem>>, %arg14: memref<256x288xbf16, #tpu.memory_space<vmem>>) attributes {dimension_semantics = [#tpu.dimension_semantics<parallel>], iteration_bounds = array<i64: 2>, scalar_prefetch = 0 : i64, scratch_operands = 2 : i64, tpu.core_type = #tpu.core_type<tc>, window_params = [{transform_indices = @transform_0, window_bounds = array<i64: 1, 16, 16, 32>}, {transform_indices = @transform_1, window_bounds = array<i64: 1, 16, 16, 1>}, {pipeline_mode = #tpu.pipeline_mode<synchronous>, transform_indices = @transform_2, window_bounds = array<i64: 288, 32>}, {pipeline_mode = #tpu.pipeline_mode<synchronous>, transform_indices = @transform_3, window_bounds = array<i64: 1, 32>}, {pipeline_mode = #tpu.pipeline_mode<synchronous>, transform_indices = @transform_4, window_bounds = array<i64: 1, 32>}, {pipeline_mode = #tpu.pipeline_mode<synchronous>, transform_indices = @transform_5, window_bounds = array<i64: 288, 256>}, {pipeline_mode = #tpu.pipeline_mode<synchronous>, transform_indices = @transform_6, window_bounds = array<i64: 1, 256>}, {pipeline_mode = #tpu.pipeline_mode<synchronous>, transform_indices = @transform_7, window_bounds = array<i64: 1, 256>}, {pipeline_mode = #tpu.pipeline_mode<synchronous>, transform_indices = @transform_8, window_bounds = array<i64: 1, 256>}, {pipeline_mode = #tpu.pipeline_mode<synchronous>, transform_indices = @transform_9, window_bounds = array<i64: 1, 1>}, {transform_indices = @transform_10, window_bounds = array<i64: 1, 256, 256>}, {transform_indices = @transform_11, window_bounds = array<i64: 1, 256, 1>}]} {
    %c0 = arith.constant 0 : index
    %c0_0 = arith.constant 0 : index
    %c0_1 = arith.constant 0 : index
    %c0_2 = arith.constant 0 : index
    %0 = vector.load %arg2[%c0, %c0_0, %c0_1, %c0_2] : memref<1x16x16x1xf32, #tpu.memory_space<vmem>>, vector<1x16x16x1xf32>
    %1 = vector.shape_cast %0 : vector<1x16x16x1xf32> to vector<16x16x1xf32>
    %2 = arith.negf %1 : vector<16x16x1xf32>
    %3 = math.exp %2 : vector<16x16x1xf32>
    %cst = arith.constant 1.000000e+00 : f32
    %4 = vector.broadcast %cst : f32 to vector<16x16x1xf32>
    %5 = arith.addf %4, %3 : vector<16x16x1xf32>
    %6 = arith.divf %4, %5 : vector<16x16x1xf32>
    %c0_3 = arith.constant 0 : index
    %c0_4 = arith.constant 0 : index
    %c0_5 = arith.constant 0 : index
    %c0_6 = arith.constant 0 : index
    %7 = vector.load %arg1[%c0_3, %c0_4, %c0_5, %c0_6] : memref<1x16x16x32xf32, #tpu.memory_space<vmem>>, vector<1x16x16x32xf32>
    %8 = vector.shape_cast %7 : vector<1x16x16x32xf32> to vector<16x16x32xf32>
    %cst_7 = arith.constant 1.000000e+00 : f32
    %9 = vector.broadcast %cst_7 : f32 to vector<16x16x1xf32>
    %10 = arith.subf %9, %6 : vector<16x16x1xf32>
    %11 = vector.broadcast %10 : vector<16x16x1xf32> to vector<16x16x32xf32>
    %12 = arith.mulf %8, %11 : vector<16x16x32xf32>
    %cst_8 = arith.constant 0.000000e+00 : f32
    %13 = vector.broadcast %cst_8 : f32 to vector<1x18x32xf32>
    %c0_9 = arith.constant 0 : index
    %c0_10 = arith.constant 0 : index
    %c0_11 = arith.constant 0 : index
    %14 = vector.load %arg13[%c0_9, %c0_10, %c0_11] : memref<18x18x32xf32, #tpu.memory_space<vmem>>, vector<1x18x32xf32>
    tpu.vector_store %arg13[%c0_9, %c0_10, %c0_11], %13 {strides = array<i32>} : memref<18x18x32xf32, #tpu.memory_space<vmem>>, vector<1x18x32xf32>,
    %cst_12 = arith.constant 0.000000e+00 : f32
    %15 = vector.broadcast %cst_12 : f32 to vector<1x18x32xf32>
    %c17 = arith.constant 17 : index
    %c0_13 = arith.constant 0 : index
    %c0_14 = arith.constant 0 : index
    %16 = vector.load %arg13[%c17, %c0_13, %c0_14] : memref<18x18x32xf32, #tpu.memory_space<vmem>>, vector<1x18x32xf32>
    tpu.vector_store %arg13[%c17, %c0_13, %c0_14], %15 {strides = array<i32>} : memref<18x18x32xf32, #tpu.memory_space<vmem>>, vector<1x18x32xf32>,
    %cst_15 = arith.constant 0.000000e+00 : f32
    %17 = vector.broadcast %cst_15 : f32 to vector<18x1x32xf32>
    %c0_16 = arith.constant 0 : index
    %c0_17 = arith.constant 0 : index
    %c0_18 = arith.constant 0 : index
    %18 = vector.load %arg13[%c0_16, %c0_17, %c0_18] : memref<18x18x32xf32, #tpu.memory_space<vmem>>, vector<18x1x32xf32>
    tpu.vector_store %arg13[%c0_16, %c0_17, %c0_18], %17 {strides = array<i32>} : memref<18x18x32xf32, #tpu.memory_space<vmem>>, vector<18x1x32xf32>,
    %cst_19 = arith.constant 0.000000e+00 : f32
    %19 = vector.broadcast %cst_19 : f32 to vector<18x1x32xf32>
    %c0_20 = arith.constant 0 : index
    %c17_21 = arith.constant 17 : index
    %c0_22 = arith.constant 0 : index
    %20 = vector.load %arg13[%c0_20, %c17_21, %c0_22] : memref<18x18x32xf32, #tpu.memory_space<vmem>>, vector<18x1x32xf32>
    tpu.vector_store %arg13[%c0_20, %c17_21, %c0_22], %19 {strides = array<i32>} : memref<18x18x32xf32, #tpu.memory_space<vmem>>, vector<18x1x32xf32>,
    %c1 = arith.constant 1 : index
    %c1_23 = arith.constant 1 : index
    %c0_24 = arith.constant 0 : index
    %21 = vector.load %arg13[%c1, %c1_23, %c0_24] : memref<18x18x32xf32, #tpu.memory_space<vmem>>, vector<16x16x32xf32>
    tpu.vector_store %arg13[%c1, %c1_23, %c0_24], %12 {strides = array<i32>} : memref<18x18x32xf32, #tpu.memory_space<vmem>>, vector<16x16x32xf32>,
    %c0_25 = arith.constant 0 : index
    %c0_26 = arith.constant 0 : index
    %c0_27 = arith.constant 0 : index
    %22 = vector.load %arg13[%c0_25, %c0_26, %c0_27] : memref<18x18x32xf32, #tpu.memory_space<vmem>>, vector<16x16x32xf32>
    %23 = vector.shape_cast %22 : vector<16x16x32xf32> to vector<256x32xf32>
    %24 = arith.truncf %23 : vector<256x32xf32> to vector<256x32xbf16>
    %c0_28 = arith.constant 0 : index
    %c0_29 = arith.constant 0 : index
    %25 = vector.load %arg14[%c0_28, %c0_29] : memref<256x288xbf16, #tpu.memory_space<vmem>>, vector<256x32xbf16>
    tpu.vector_store %arg14[%c0_28, %c0_29], %24 {strides = array<i32>} : memref<256x288xbf16, #tpu.memory_space<vmem>>, vector<256x32xbf16>,
    %c0_30 = arith.constant 0 : index
    %c1_31 = arith.constant 1 : index
    %c0_32 = arith.constant 0 : index
    %26 = vector.load %arg13[%c0_30, %c1_31, %c0_32] : memref<18x18x32xf32, #tpu.memory_space<vmem>>, vector<16x16x32xf32>
    %27 = vector.shape_cast %26 : vector<16x16x32xf32> to vector<256x32xf32>
    %28 = arith.truncf %27 : vector<256x32xf32> to vector<256x32xbf16>
    %c0_33 = arith.constant 0 : index
    %c32 = arith.constant 32 : index
    %29 = vector.load %arg14[%c0_33, %c32] : memref<256x288xbf16, #tpu.memory_space<vmem>>, vector<256x32xbf16>
    tpu.vector_store %arg14[%c0_33, %c32], %28 {strides = array<i32>} : memref<256x288xbf16, #tpu.memory_space<vmem>>, vector<256x32xbf16>,
    %c0_34 = arith.constant 0 : index
    %c2 = arith.constant 2 : index
    %c0_35 = arith.constant 0 : index
    %30 = vector.load %arg13[%c0_34, %c2, %c0_35] : memref<18x18x32xf32, #tpu.memory_space<vmem>>, vector<16x16x32xf32>
    %31 = vector.shape_cast %30 : vector<16x16x32xf32> to vector<256x32xf32>
    %32 = arith.truncf %31 : vector<256x32xf32> to vector<256x32xbf16>
    %c0_36 = arith.constant 0 : index
    %c64 = arith.constant 64 : index
    %33 = vector.load %arg14[%c0_36, %c64] : memref<256x288xbf16, #tpu.memory_space<vmem>>, vector<256x32xbf16>
    tpu.vector_store %arg14[%c0_36, %c64], %32 {strides = array<i32>} : memref<256x288xbf16, #tpu.memory_space<vmem>>, vector<256x32xbf16>,
    %c1_37 = arith.constant 1 : index
    %c0_38 = arith.constant 0 : index
    %c0_39 = arith.constant 0 : index
    %34 = vector.load %arg13[%c1_37, %c0_38, %c0_39] : memref<18x18x32xf32, #tpu.memory_space<vmem>>, vector<16x16x32xf32>
    %35 = vector.shape_cast %34 : vector<16x16x32xf32> to vector<256x32xf32>
    %36 = arith.truncf %35 : vector<256x32xf32> to vector<256x32xbf16>
    %c0_40 = arith.constant 0 : index
    %c96 = arith.constant 96 : index
    %37 = vector.load %arg14[%c0_40, %c96] : memref<256x288xbf16, #tpu.memory_space<vmem>>, vector<256x32xbf16>
    tpu.vector_store %arg14[%c0_40, %c96], %36 {strides = array<i32>} : memref<256x288xbf16, #tpu.memory_space<vmem>>, vector<256x32xbf16>,
    %c1_41 = arith.constant 1 : index
    %c1_42 = arith.constant 1 : index
    %c0_43 = arith.constant 0 : index
    %38 = vector.load %arg13[%c1_41, %c1_42, %c0_43] : memref<18x18x32xf32, #tpu.memory_space<vmem>>, vector<16x16x32xf32>
    %39 = vector.shape_cast %38 : vector<16x16x32xf32> to vector<256x32xf32>
    %40 = arith.truncf %39 : vector<256x32xf32> to vector<256x32xbf16>
    %c0_44 = arith.constant 0 : index
    %c128 = arith.constant 128 : index
    %41 = vector.load %arg14[%c0_44, %c128] : memref<256x288xbf16, #tpu.memory_space<vmem>>, vector<256x32xbf16>
    tpu.vector_store %arg14[%c0_44, %c128], %40 {strides = array<i32>} : memref<256x288xbf16, #tpu.memory_space<vmem>>, vector<256x32xbf16>,
    %c1_45 = arith.constant 1 : index
    %c2_46 = arith.constant 2 : index
    %c0_47 = arith.constant 0 : index
    %42 = vector.load %arg13[%c1_45, %c2_46, %c0_47] : memref<18x18x32xf32, #tpu.memory_space<vmem>>, vector<16x16x32xf32>
    %43 = vector.shape_cast %42 : vector<16x16x32xf32> to vector<256x32xf32>
    %44 = arith.truncf %43 : vector<256x32xf32> to vector<256x32xbf16>
    %c0_48 = arith.constant 0 : index
    %c160 = arith.constant 160 : index
    %45 = vector.load %arg14[%c0_48, %c160] : memref<256x288xbf16, #tpu.memory_space<vmem>>, vector<256x32xbf16>
    tpu.vector_store %arg14[%c0_48, %c160], %44 {strides = array<i32>} : memref<256x288xbf16, #tpu.memory_space<vmem>>, vector<256x32xbf16>,
    %c2_49 = arith.constant 2 : index
    %c0_50 = arith.constant 0 : index
    %c0_51 = arith.constant 0 : index
    %46 = vector.load %arg13[%c2_49, %c0_50, %c0_51] : memref<18x18x32xf32, #tpu.memory_space<vmem>>, vector<16x16x32xf32>
    %47 = vector.shape_cast %46 : vector<16x16x32xf32> to vector<256x32xf32>
    %48 = arith.truncf %47 : vector<256x32xf32> to vector<256x32xbf16>
    %c0_52 = arith.constant 0 : index
    %c192 = arith.constant 192 : index
    %49 = vector.load %arg14[%c0_52, %c192] : memref<256x288xbf16, #tpu.memory_space<vmem>>, vector<256x32xbf16>
    tpu.vector_store %arg14[%c0_52, %c192], %48 {strides = array<i32>} : memref<256x288xbf16, #tpu.memory_space<vmem>>, vector<256x32xbf16>,
    %c2_53 = arith.constant 2 : index
    %c1_54 = arith.constant 1 : index
    %c0_55 = arith.constant 0 : index
    %50 = vector.load %arg13[%c2_53, %c1_54, %c0_55] : memref<18x18x32xf32, #tpu.memory_space<vmem>>, vector<16x16x32xf32>
    %51 = vector.shape_cast %50 : vector<16x16x32xf32> to vector<256x32xf32>
    %52 = arith.truncf %51 : vector<256x32xf32> to vector<256x32xbf16>
    %c0_56 = arith.constant 0 : index
    %c224 = arith.constant 224 : index
    %53 = vector.load %arg14[%c0_56, %c224] : memref<256x288xbf16, #tpu.memory_space<vmem>>, vector<256x32xbf16>
    tpu.vector_store %arg14[%c0_56, %c224], %52 {strides = array<i32>} : memref<256x288xbf16, #tpu.memory_space<vmem>>, vector<256x32xbf16>,
    %c2_57 = arith.constant 2 : index
    %c2_58 = arith.constant 2 : index
    %c0_59 = arith.constant 0 : index
    %54 = vector.load %arg13[%c2_57, %c2_58, %c0_59] : memref<18x18x32xf32, #tpu.memory_space<vmem>>, vector<16x16x32xf32>
    %55 = vector.shape_cast %54 : vector<16x16x32xf32> to vector<256x32xf32>
    %56 = arith.truncf %55 : vector<256x32xf32> to vector<256x32xbf16>
    %c0_60 = arith.constant 0 : index
    %c256 = arith.constant 256 : index
    %57 = vector.load %arg14[%c0_60, %c256] : memref<256x288xbf16, #tpu.memory_space<vmem>>, vector<256x32xbf16>
    tpu.vector_store %arg14[%c0_60, %c256], %56 {strides = array<i32>} : memref<256x288xbf16, #tpu.memory_space<vmem>>, vector<256x32xbf16>,
    %c0_61 = arith.constant 0 : index
    %c0_62 = arith.constant 0 : index
    %58 = vector.load %arg14[%c0_61, %c0_62] : memref<256x288xbf16, #tpu.memory_space<vmem>>, vector<256x288xbf16>
    %c0_63 = arith.constant 0 : index
    %c0_64 = arith.constant 0 : index
    %59 = vector.load %arg3[%c0_63, %c0_64] : memref<288x32xbf16, #tpu.memory_space<vmem>>, vector<288x32xbf16>
    %cst_65 = arith.constant dense<0.000000e+00> : vector<256x32xf32>
    %60 = tpu.matmul %58, %59, %cst_65 {dimension_numbers = #tpu.dot_dimension_numbers<[1], [0], [0], [1], [0, 0, 1, 1], [], []>} : vector<256x288xbf16>, vector<288x32xbf16>, vector<256x32xf32> -> vector<256x32xf32>
    %c0_66 = arith.constant 0 : index
    %c0_67 = arith.constant 0 : index
    %61 = vector.load %arg4[%c0_66, %c0_67] : memref<1x32xf32, #tpu.memory_space<vmem>>, vector<1x32xf32>
    %62 = vector.broadcast %61 : vector<1x32xf32> to vector<256x32xf32>
    %63 = arith.mulf %60, %62 : vector<256x32xf32>
    %c0_68 = arith.constant 0 : index
    %c0_69 = arith.constant 0 : index
    %64 = vector.load %arg5[%c0_68, %c0_69] : memref<1x32xf32, #tpu.memory_space<vmem>>, vector<1x32xf32>
    %65 = vector.broadcast %64 : vector<1x32xf32> to vector<256x32xf32>
    %66 = arith.addf %63, %65 : vector<256x32xf32>
    %cst_70 = arith.constant 0.000000e+00 : f32
    %67 = vector.broadcast %cst_70 : f32 to vector<256x32xf32>
    %68 = arith.maximumf %66, %67 : vector<256x32xf32>
    %69 = vector.shape_cast %68 : vector<256x32xf32> to vector<16x16x32xf32>
    %c1_71 = arith.constant 1 : index
    %c1_72 = arith.constant 1 : index
    %c0_73 = arith.constant 0 : index
    %70 = vector.load %arg13[%c1_71, %c1_72, %c0_73] : memref<18x18x32xf32, #tpu.memory_space<vmem>>, vector<16x16x32xf32>
    tpu.vector_store %arg13[%c1_71, %c1_72, %c0_73], %69 {strides = array<i32>} : memref<18x18x32xf32, #tpu.memory_space<vmem>>, vector<16x16x32xf32>,
    %c0_74 = arith.constant 0 : index
    %c0_75 = arith.constant 0 : index
    %c0_76 = arith.constant 0 : index
    %71 = vector.load %arg13[%c0_74, %c0_75, %c0_76] : memref<18x18x32xf32, #tpu.memory_space<vmem>>, vector<16x16x32xf32>
    %72 = vector.shape_cast %71 : vector<16x16x32xf32> to vector<256x32xf32>
    %73 = arith.truncf %72 : vector<256x32xf32> to vector<256x32xbf16>
    %c0_77 = arith.constant 0 : index
    %c0_78 = arith.constant 0 : index
    %74 = vector.load %arg14[%c0_77, %c0_78] : memref<256x288xbf16, #tpu.memory_space<vmem>>, vector<256x32xbf16>
    tpu.vector_store %arg14[%c0_77, %c0_78], %73 {strides = array<i32>} : memref<256x288xbf16, #tpu.memory_space<vmem>>, vector<256x32xbf16>,
    %c0_79 = arith.constant 0 : index
    %c1_80 = arith.constant 1 : index
    %c0_81 = arith.constant 0 : index
    %75 = vector.load %arg13[%c0_79, %c1_80, %c0_81] : memref<18x18x32xf32, #tpu.memory_space<vmem>>, vector<16x16x32xf32>
    %76 = vector.shape_cast %75 : vector<16x16x32xf32> to vector<256x32xf32>
    %77 = arith.truncf %76 : vector<256x32xf32> to vector<256x32xbf16>
    %c0_82 = arith.constant 0 : index
    %c32_83 = arith.constant 32 : index
    %78 = vector.load %arg14[%c0_82, %c32_83] : memref<256x288xbf16, #tpu.memory_space<vmem>>, vector<256x32xbf16>
    tpu.vector_store %arg14[%c0_82, %c32_83], %77 {strides = array<i32>} : memref<256x288xbf16, #tpu.memory_space<vmem>>, vector<256x32xbf16>,
    %c0_84 = arith.constant 0 : index
    %c2_85 = arith.constant 2 : index
    %c0_86 = arith.constant 0 : index
    %79 = vector.load %arg13[%c0_84, %c2_85, %c0_86] : memref<18x18x32xf32, #tpu.memory_space<vmem>>, vector<16x16x32xf32>
    %80 = vector.shape_cast %79 : vector<16x16x32xf32> to vector<256x32xf32>
    %81 = arith.truncf %80 : vector<256x32xf32> to vector<256x32xbf16>
    %c0_87 = arith.constant 0 : index
    %c64_88 = arith.constant 64 : index
    %82 = vector.load %arg14[%c0_87, %c64_88] : memref<256x288xbf16, #tpu.memory_space<vmem>>, vector<256x32xbf16>
    tpu.vector_store %arg14[%c0_87, %c64_88], %81 {strides = array<i32>} : memref<256x288xbf16, #tpu.memory_space<vmem>>, vector<256x32xbf16>,
    %c1_89 = arith.constant 1 : index
    %c0_90 = arith.constant 0 : index
    %c0_91 = arith.constant 0 : index
    %83 = vector.load %arg13[%c1_89, %c0_90, %c0_91] : memref<18x18x32xf32, #tpu.memory_space<vmem>>, vector<16x16x32xf32>
    %84 = vector.shape_cast %83 : vector<16x16x32xf32> to vector<256x32xf32>
    %85 = arith.truncf %84 : vector<256x32xf32> to vector<256x32xbf16>
    %c0_92 = arith.constant 0 : index
    %c96_93 = arith.constant 96 : index
    %86 = vector.load %arg14[%c0_92, %c96_93] : memref<256x288xbf16, #tpu.memory_space<vmem>>, vector<256x32xbf16>
    tpu.vector_store %arg14[%c0_92, %c96_93], %85 {strides = array<i32>} : memref<256x288xbf16, #tpu.memory_space<vmem>>, vector<256x32xbf16>,
    %c1_94 = arith.constant 1 : index
    %c1_95 = arith.constant 1 : index
    %c0_96 = arith.constant 0 : index
    %87 = vector.load %arg13[%c1_94, %c1_95, %c0_96] : memref<18x18x32xf32, #tpu.memory_space<vmem>>, vector<16x16x32xf32>
    %88 = vector.shape_cast %87 : vector<16x16x32xf32> to vector<256x32xf32>
    %89 = arith.truncf %88 : vector<256x32xf32> to vector<256x32xbf16>
    %c0_97 = arith.constant 0 : index
    %c128_98 = arith.constant 128 : index
    %90 = vector.load %arg14[%c0_97, %c128_98] : memref<256x288xbf16, #tpu.memory_space<vmem>>, vector<256x32xbf16>
    tpu.vector_store %arg14[%c0_97, %c128_98], %89 {strides = array<i32>} : memref<256x288xbf16, #tpu.memory_space<vmem>>, vector<256x32xbf16>,
    %c1_99 = arith.constant 1 : index
    %c2_100 = arith.constant 2 : index
    %c0_101 = arith.constant 0 : index
    %91 = vector.load %arg13[%c1_99, %c2_100, %c0_101] : memref<18x18x32xf32, #tpu.memory_space<vmem>>, vector<16x16x32xf32>
    %92 = vector.shape_cast %91 : vector<16x16x32xf32> to vector<256x32xf32>
    %93 = arith.truncf %92 : vector<256x32xf32> to vector<256x32xbf16>
    %c0_102 = arith.constant 0 : index
    %c160_103 = arith.constant 160 : index
    %94 = vector.load %arg14[%c0_102, %c160_103] : memref<256x288xbf16, #tpu.memory_space<vmem>>, vector<256x32xbf16>
    tpu.vector_store %arg14[%c0_102, %c160_103], %93 {strides = array<i32>} : memref<256x288xbf16, #tpu.memory_space<vmem>>, vector<256x32xbf16>,
    %c2_104 = arith.constant 2 : index
    %c0_105 = arith.constant 0 : index
    %c0_106 = arith.constant 0 : index
    %95 = vector.load %arg13[%c2_104, %c0_105, %c0_106] : memref<18x18x32xf32, #tpu.memory_space<vmem>>, vector<16x16x32xf32>
    %96 = vector.shape_cast %95 : vector<16x16x32xf32> to vector<256x32xf32>
    %97 = arith.truncf %96 : vector<256x32xf32> to vector<256x32xbf16>
    %c0_107 = arith.constant 0 : index
    %c192_108 = arith.constant 192 : index
    %98 = vector.load %arg14[%c0_107, %c192_108] : memref<256x288xbf16, #tpu.memory_space<vmem>>, vector<256x32xbf16>
    tpu.vector_store %arg14[%c0_107, %c192_108], %97 {strides = array<i32>} : memref<256x288xbf16, #tpu.memory_space<vmem>>, vector<256x32xbf16>,
    %c2_109 = arith.constant 2 : index
    %c1_110 = arith.constant 1 : index
    %c0_111 = arith.constant 0 : index
    %99 = vector.load %arg13[%c2_109, %c1_110, %c0_111] : memref<18x18x32xf32, #tpu.memory_space<vmem>>, vector<16x16x32xf32>
    %100 = vector.shape_cast %99 : vector<16x16x32xf32> to vector<256x32xf32>
    %101 = arith.truncf %100 : vector<256x32xf32> to vector<256x32xbf16>
    %c0_112 = arith.constant 0 : index
    %c224_113 = arith.constant 224 : index
    %102 = vector.load %arg14[%c0_112, %c224_113] : memref<256x288xbf16, #tpu.memory_space<vmem>>, vector<256x32xbf16>
    tpu.vector_store %arg14[%c0_112, %c224_113], %101 {strides = array<i32>} : memref<256x288xbf16, #tpu.memory_space<vmem>>, vector<256x32xbf16>,
    %c2_114 = arith.constant 2 : index
    %c2_115 = arith.constant 2 : index
    %c0_116 = arith.constant 0 : index
    %103 = vector.load %arg13[%c2_114, %c2_115, %c0_116] : memref<18x18x32xf32, #tpu.memory_space<vmem>>, vector<16x16x32xf32>
    %104 = vector.shape_cast %103 : vector<16x16x32xf32> to vector<256x32xf32>
    %105 = arith.truncf %104 : vector<256x32xf32> to vector<256x32xbf16>
    %c0_117 = arith.constant 0 : index
    %c256_118 = arith.constant 256 : index
    %106 = vector.load %arg14[%c0_117, %c256_118] : memref<256x288xbf16, #tpu.memory_space<vmem>>, vector<256x32xbf16>
    tpu.vector_store %arg14[%c0_117, %c256_118], %105 {strides = array<i32>} : memref<256x288xbf16, #tpu.memory_space<vmem>>, vector<256x32xbf16>,
    %c0_119 = arith.constant 0 : index
    %c0_120 = arith.constant 0 : index
    %107 = vector.load %arg9[%c0_119, %c0_120] : memref<1x256xf32, #tpu.memory_space<vmem>>, vector<1x256xf32>
    %c0_121 = arith.constant 0 : index
    %c0_122 = arith.constant 0 : index
    %108 = vector.load %arg10[%c0_121, %c0_122] : memref<1x1xf32, #tpu.memory_space<vmem>>, vector<1x1xf32>
    %109 = vector.extract %108[0, 0] : f32 from vector<1x1xf32>
    %c0_123 = arith.constant 0 : index
    %c0_124 = arith.constant 0 : index
    %110 = vector.load %arg14[%c0_123, %c0_124] : memref<256x288xbf16, #tpu.memory_space<vmem>>, vector<128x288xbf16>
    %c0_125 = arith.constant 0 : index
    %c0_126 = arith.constant 0 : index
    %111 = vector.load %arg6[%c0_125, %c0_126] : memref<288x256xbf16, #tpu.memory_space<vmem>>, vector<288x256xbf16>
    %cst_127 = arith.constant dense<0.000000e+00> : vector<128x256xf32>
    %112 = tpu.matmul %110, %111, %cst_127 {dimension_numbers = #tpu.dot_dimension_numbers<[1], [0], [0], [1], [0, 0, 1, 1], [], []>} : vector<128x288xbf16>, vector<288x256xbf16>, vector<128x256xf32> -> vector<128x256xf32>
    %c0_128 = arith.constant 0 : index
    %c0_129 = arith.constant 0 : index
    %113 = vector.load %arg7[%c0_128, %c0_129] : memref<1x256xf32, #tpu.memory_space<vmem>>, vector<1x256xf32>
    %114 = vector.broadcast %113 : vector<1x256xf32> to vector<128x256xf32>
    %115 = arith.mulf %112, %114 : vector<128x256xf32>
    %c0_130 = arith.constant 0 : index
    %c0_131 = arith.constant 0 : index
    %116 = vector.load %arg8[%c0_130, %c0_131] : memref<1x256xf32, #tpu.memory_space<vmem>>, vector<1x256xf32>
    %117 = vector.broadcast %116 : vector<1x256xf32> to vector<128x256xf32>
    %118 = arith.addf %115, %117 : vector<128x256xf32>
    %cst_132 = arith.constant 0.000000e+00 : f32
    %119 = vector.broadcast %cst_132 : f32 to vector<128x256xf32>
    %120 = arith.maximumf %118, %119 : vector<128x256xf32>
    %c0_133 = arith.constant 0 : index
    %c0_134 = arith.constant 0 : index
    %c0_135 = arith.constant 0 : index
    %121 = vector.load %arg11[%c0_133, %c0_134, %c0_135] : memref<1x256x256xf32, #tpu.memory_space<vmem>>, vector<1x128x256xf32>
    %122 = vector.shape_cast %121 : vector<1x128x256xf32> to vector<128x256xf32>
    %123 = vector.shape_cast %120 : vector<128x256xf32> to vector<1x128x256xf32>
    tpu.vector_store %arg11[%c0_133, %c0_134, %c0_135], %123 {strides = array<i32>} : memref<1x256x256xf32, #tpu.memory_space<vmem>>, vector<1x128x256xf32>,
    %124 = vector.broadcast %107 : vector<1x256xf32> to vector<128x256xf32>
    %125 = arith.mulf %120, %124 : vector<128x256xf32>
    %cst_136 = arith.constant dense<0.000000e+00> : vector<128xf32>
    %126 = vector.multi_reduction <add>, %125, %cst_136 [1] : vector<128x256xf32> to vector<128xf32>
    %127 = vector.shape_cast %126 : vector<128xf32> to vector<128x1xf32>
    %128 = vector.broadcast %109 : f32 to vector<128x1xf32>
    %129 = arith.addf %127, %128 : vector<128x1xf32>
    %c0_137 = arith.constant 0 : index
    %c0_138 = arith.constant 0 : index
    %c0_139 = arith.constant 0 : index
    %130 = vector.load %arg12[%c0_137, %c0_138, %c0_139] : memref<1x256x1xf32, #tpu.memory_space<vmem>>, vector<1x128x1xf32>
    %131 = vector.shape_cast %130 : vector<1x128x1xf32> to vector<128x1xf32>
    %132 = vector.shape_cast %129 : vector<128x1xf32> to vector<1x128x1xf32>
    tpu.vector_store %arg12[%c0_137, %c0_138, %c0_139], %132 {strides = array<i32>} : memref<1x256x1xf32, #tpu.memory_space<vmem>>, vector<1x128x1xf32>,
    %c128_140 = arith.constant 128 : index
    %c0_141 = arith.constant 0 : index
    %133 = vector.load %arg14[%c128_140, %c0_141] : memref<256x288xbf16, #tpu.memory_space<vmem>>, vector<128x288xbf16>
    %c0_142 = arith.constant 0 : index
    %c0_143 = arith.constant 0 : index
    %134 = vector.load %arg6[%c0_142, %c0_143] : memref<288x256xbf16, #tpu.memory_space<vmem>>, vector<288x256xbf16>
    %cst_144 = arith.constant dense<0.000000e+00> : vector<128x256xf32>
    %135 = tpu.matmul %133, %134, %cst_144 {dimension_numbers = #tpu.dot_dimension_numbers<[1], [0], [0], [1], [0, 0, 1, 1], [], []>} : vector<128x288xbf16>, vector<288x256xbf16>, vector<128x256xf32> -> vector<128x256xf32>
    %c0_145 = arith.constant 0 : index
    %c0_146 = arith.constant 0 : index
    %136 = vector.load %arg7[%c0_145, %c0_146] : memref<1x256xf32, #tpu.memory_space<vmem>>, vector<1x256xf32>
    %137 = vector.broadcast %136 : vector<1x256xf32> to vector<128x256xf32>
    %138 = arith.mulf %135, %137 : vector<128x256xf32>
    %c0_147 = arith.constant 0 : index
    %c0_148 = arith.constant 0 : index
    %139 = vector.load %arg8[%c0_147, %c0_148] : memref<1x256xf32, #tpu.memory_space<vmem>>, vector<1x256xf32>
    %140 = vector.broadcast %139 : vector<1x256xf32> to vector<128x256xf32>
    %141 = arith.addf %138, %140 : vector<128x256xf32>
    %cst_149 = arith.constant 0.000000e+00 : f32
    %142 = vector.broadcast %cst_149 : f32 to vector<128x256xf32>
    %143 = arith.maximumf %141, %142 : vector<128x256xf32>
    %c0_150 = arith.constant 0 : index
    %c128_151 = arith.constant 128 : index
    %c0_152 = arith.constant 0 : index
    %144 = vector.load %arg11[%c0_150, %c128_151, %c0_152] : memref<1x256x256xf32, #tpu.memory_space<vmem>>, vector<1x128x256xf32>
    %145 = vector.shape_cast %144 : vector<1x128x256xf32> to vector<128x256xf32>
    %146 = vector.shape_cast %143 : vector<128x256xf32> to vector<1x128x256xf32>
    tpu.vector_store %arg11[%c0_150, %c128_151, %c0_152], %146 {strides = array<i32>} : memref<1x256x256xf32, #tpu.memory_space<vmem>>, vector<1x128x256xf32>,
    %147 = vector.broadcast %107 : vector<1x256xf32> to vector<128x256xf32>
    %148 = arith.mulf %143, %147 : vector<128x256xf32>
    %cst_153 = arith.constant dense<0.000000e+00> : vector<128xf32>
    %149 = vector.multi_reduction <add>, %148, %cst_153 [1] : vector<128x256xf32> to vector<128xf32>
    %150 = vector.shape_cast %149 : vector<128xf32> to vector<128x1xf32>
    %151 = vector.broadcast %109 : f32 to vector<128x1xf32>
    %152 = arith.addf %150, %151 : vector<128x1xf32>
    %c0_154 = arith.constant 0 : index
    %c128_155 = arith.constant 128 : index
    %c0_156 = arith.constant 0 : index
    %153 = vector.load %arg12[%c0_154, %c128_155, %c0_156] : memref<1x256x1xf32, #tpu.memory_space<vmem>>, vector<1x128x1xf32>
    %154 = vector.shape_cast %153 : vector<1x128x1xf32> to vector<128x1xf32>
    %155 = vector.shape_cast %152 : vector<128x1xf32> to vector<1x128x1xf32>
    tpu.vector_store %arg12[%c0_154, %c128_155, %c0_156], %155 {strides = array<i32>} : memref<1x256x1xf32, #tpu.memory_space<vmem>>, vector<1x128x1xf32>,
    return
  }
  func.func @transform_0(%arg0: i32) -> (i32, i32, i32, i32) {
    %c0_i32 = arith.constant 0 : i32
    %c0_i32_0 = arith.constant 0 : i32
    %c0_i32_1 = arith.constant 0 : i32
    %c0_i32_2 = arith.constant 0 : i32
    return %arg0, %c0_i32, %c0_i32_0, %c0_i32_1 : i32, i32, i32, i32
  }
  func.func @transform_1(%arg0: i32) -> (i32, i32, i32, i32) {
    %c0_i32 = arith.constant 0 : i32
    %c0_i32_0 = arith.constant 0 : i32
    %c0_i32_1 = arith.constant 0 : i32
    %c0_i32_2 = arith.constant 0 : i32
    return %arg0, %c0_i32, %c0_i32_0, %c0_i32_1 : i32, i32, i32, i32
  }
  func.func @transform_2(%arg0: i32) -> (i32, i32) {
    %c0_i32 = arith.constant 0 : i32
    %c0_i32_0 = arith.constant 0 : i32
    %c0_i32_1 = arith.constant 0 : i32
    return %c0_i32, %c0_i32_0 : i32, i32
  }
  func.func @transform_3(%arg0: i32) -> (i32, i32) {
    %c0_i32 = arith.constant 0 : i32
    %c0_i32_0 = arith.constant 0 : i32
    %c0_i32_1 = arith.constant 0 : i32
    return %c0_i32, %c0_i32_0 : i32, i32
  }
  func.func @transform_4(%arg0: i32) -> (i32, i32) {
    %c0_i32 = arith.constant 0 : i32
    %c0_i32_0 = arith.constant 0 : i32
    %c0_i32_1 = arith.constant 0 : i32
    return %c0_i32, %c0_i32_0 : i32, i32
  }
  func.func @transform_5(%arg0: i32) -> (i32, i32) {
    %c0_i32 = arith.constant 0 : i32
    %c0_i32_0 = arith.constant 0 : i32
    %c0_i32_1 = arith.constant 0 : i32
    return %c0_i32, %c0_i32_0 : i32, i32
  }
  func.func @transform_6(%arg0: i32) -> (i32, i32) {
    %c0_i32 = arith.constant 0 : i32
    %c0_i32_0 = arith.constant 0 : i32
    %c0_i32_1 = arith.constant 0 : i32
    return %c0_i32, %c0_i32_0 : i32, i32
  }
  func.func @transform_7(%arg0: i32) -> (i32, i32) {
    %c0_i32 = arith.constant 0 : i32
    %c0_i32_0 = arith.constant 0 : i32
    %c0_i32_1 = arith.constant 0 : i32
    return %c0_i32, %c0_i32_0 : i32, i32
  }
  func.func @transform_8(%arg0: i32) -> (i32, i32) {
    %c0_i32 = arith.constant 0 : i32
    %c0_i32_0 = arith.constant 0 : i32
    %c0_i32_1 = arith.constant 0 : i32
    return %c0_i32, %c0_i32_0 : i32, i32
  }
  func.func @transform_9(%arg0: i32) -> (i32, i32) {
    %c0_i32 = arith.constant 0 : i32
    %c0_i32_0 = arith.constant 0 : i32
    %c0_i32_1 = arith.constant 0 : i32
    return %c0_i32, %c0_i32_0 : i32, i32
  }
  func.func @transform_10(%arg0: i32) -> (i32, i32, i32) {
    %c0_i32 = arith.constant 0 : i32
    %c0_i32_0 = arith.constant 0 : i32
    %c0_i32_1 = arith.constant 0 : i32
    return %arg0, %c0_i32, %c0_i32_0 : i32, i32, i32
  }
  func.func @transform_11(%arg0: i32) -> (i32, i32, i32) {
    %c0_i32 = arith.constant 0 : i32
    %c0_i32_0 = arith.constant 0 : i32
    %c0_i32_1 = arith.constant 0 : i32
    return %arg0, %c0_i32, %c0_i32_0 : i32, i32, i32
  }
}

</mosaic_0001>

<llo_original>
// kernel: tpu_custom_call.1
$region0: #{tpu_custom_call.1}
  #allocation0 [shape = 'u32[]', space=smem, size = 0x4, offset = 0x4, fixed_abs, tag = 'smem constant byte address 0x4 - core index']
  #allocation1 [shape = 'u32[144,128]{1,0:T(1,128)}', space=vmem, size = 0x12000, scoped, tag = 'internal scratch']
  #allocation2 [shape = 'f32[18,18,32]{2,1,0:T(8,128)}', space=vmem, size = 0x36000, scoped, tag = 'scratch operand']
  #allocation3 [shape = 'bf16[256,288]{1,0:T(8,128)(2,1)}', space=vmem, size = 0x30000, scoped, tag = 'scratch operand']
  #allocation4 [shape = 'f32[1,1]{1,0:T(1,128)S(1)}', space=vmem, size = 0x200, scoped, tag = 'scoped memory for tpu_custom_call.1']
  %s0 = inlined_call_operand.vmem [shape: f32[2,16,16,32], index: 0, kind: input, shape index: {}]
  %s1 = inlined_call_operand.vmem [shape: f32[2,16,16,1], index: 1, kind: input, shape index: {}]
  %s2 = inlined_call_operand.vmem [shape: bf16[288,32], index: 2, kind: input, shape index: {}]
  %s3 = inlined_call_operand.vmem [shape: f32[1,32], index: 3, kind: input, shape index: {}]
  %s4 = inlined_call_operand.vmem [shape: f32[1,32], index: 4, kind: input, shape index: {}]
  %s5 = inlined_call_operand.hbm [shape: bf16[288,256], index: 5, kind: input, shape index: {}]
  %s6 = inlined_call_operand.vmem [shape: f32[1,256], index: 6, kind: input, shape index: {}]
  %s7 = inlined_call_operand.vmem [shape: f32[1,256], index: 7, kind: input, shape index: {}]
  %s8 = inlined_call_operand.vmem [shape: f32[1,256], index: 8, kind: input, shape index: {}]
  %s9 = inlined_call_operand.<no memory space> [shape: f32[1,1], index: 9, kind: input, shape index: {}]
  %s10 = inlined_call_operand.hbm [shape: f32[2,256,256], index: 10, kind: output, shape index: {0}]
  %s11 = inlined_call_operand.vmem [shape: f32[2,256,1], index: 11, kind: output, shape index: {1}]
  %12 = xla_tuple %s10, %s11
  %s13 = sld [smem:[#allocation0]]
  $region85: #{tpu_custom_call.1} parent=0
    _
  %s15 = ssub.s32 1, %s13
  %s16 = scalar_select 0, %s15, %s13
  %v17 = vstv %s9
  %18 = vst [vmem:[#allocation4] sm:$0x1] %v17
  $region1: #{tpu_custom_call.1} parent=0
    #allocation5 [shape = 'u8[147456]{0}', space=vmem, size = 0x24000, scoped, tag = 'input window, operand 5, single buffered']
    #allocation6 [shape = 's32[2]{0}', space=sflag, size = 0x8, scoped, tag = 'scoped memory for tpu_custom_call.1']
    #allocation7 [shape = 's32[2]{0}', space=sflag, size = 0x8, scoped, tag = 'scoped memory for tpu_custom_call.1']
    #allocation8 [shape = 'u8[524288]{0}', space=vmem, size = 0x80000, scoped, tag = 'output window, operand 0']
    %19 = vsyncpa [#allocation6], 0
    %20 = vsyncpa [#allocation7], 0
    %s21 = scalar_lea.sflag [#allocation7], 1
    %22 = vsyncpa %s21, 0
    loop: start=0, step=1, limit=4
    $region2: #{tpu_custom_call.1} parent=1 // loop_pre_header
      _
    $region3: #{tpu_custom_call.1} parent=1 // loop_header
      %s24 = sphi 0, %s28
      %p25 = scmp.ge.s32.totalorder %s24, 4
      %s34 = sphi 0, %s36
      %s37 = sphi 0, %s34
      %s38 = sphi 0, %s37
      %s54 = sphi 0, %s38
      %s60 = sphi 0, %s62
      %s63 = sphi 0, %s60
      %s64 = sphi 0, %s63
      %s80 = sphi 0, %s64
      %s84 = sphi 0, %s84
      %s86 = sphi 0, %s84
      %s87 = sphi 0, %s86
      %s101 = sphi 0, %s87
      %s105 = sphi 0, %s105
      %s107 = sphi 0, %s105
      %s108 = sphi 0, %s107
      %s122 = sphi 0, %s108
      %s126 = sphi 0, %s126
      %s128 = sphi 0, %s126
      %s129 = sphi 0, %s128
      %s143 = sphi 0, %s129
      %s147 = sphi 0, %s147
      %s149 = sphi 0, %s147
      %s150 = sphi 0, %s149
      %s164 = sphi 0, %s150
      %s168 = sphi 0, %s168
      %s170 = sphi 0, %s168
      %s171 = sphi 0, %s170
      %s185 = sphi 0, %s171
      %s189 = sphi 0, %s189
      %s191 = sphi 0, %s189
      %s192 = sphi 0, %s191
      %s206 = sphi 0, %s192
      %s210 = sphi 0, %s210
      %s212 = sphi 0, %s210
      %s213 = sphi 0, %s212
      %s227 = sphi 0, %s213
      %s231 = sphi 0, %s231
      %s233 = sphi 0, %s231
      %s234 = sphi 0, %s233
      %s248 = sphi 0, %s234
      %s254 = sphi 0, %s256
      %s257 = sphi 0, %s254
      %s258 = sphi 0, %s257
      %s274 = sphi 0, %s258
      %s280 = sphi 0, %s282
      %s283 = sphi 0, %s280
      %s284 = sphi 0, %s283
      %s300 = sphi 0, %s284
    $region4: #{tpu_custom_call.1} parent=1 // loop_header_branch
      %27 = sbr.rel (%p25) target = $region8
    $region5: #{tpu_custom_call.1} parent=1 // loop_body
      %s29 = ssub.s32 %s24, 1
      %s30 = ssub.s32 %s24, 2
      %s31 = sadd.s32 %s24, 1
      %s32 = ssub.s32 %s24, %s31
      %p33 = scmp.eq.s32.totalorder %s32, 0
      %s35 = sadd.s32 %s34, 1
      %s36 = scalar_select %p33, %s34, %s35
      %p39 = pneg %p33
      %p40 = scmp.eq.s32.totalorder %s24, 1
      %p41 = por %p39, %p40
      %p42 = scmp.ne.s32.totalorder %s34, %s37
      %p43 = scmp.eq.s32.totalorder %s24, 0
      %p44 = por %p42, %p43
      %p45 = scmp.ne.s32.totalorder %s34, %s37
      %p46 = scmp.eq.s32.totalorder %s29, 1
      %p47 = por %p45, %p46
      %p48 = scmp.ne.s32.totalorder %s37, %s38
      %p49 = scmp.eq.s32.totalorder %s29, 0
      %p50 = por %p48, %p49
      %p51 = scmp.ne.s32.totalorder %s37, %s38
      %p52 = scmp.eq.s32.totalorder %s30, 1
      %p53 = por %p51, %p52
      %p55 = scmp.ne.s32.totalorder %s38, %s54
      %p56 = scmp.eq.s32.totalorder %s30, 0
      %p57 = por %p55, %p56
      %s58 = ssub.s32 %s24, %s31
      %p59 = scmp.eq.s32.totalorder %s58, 0
      %s61 = sadd.s32 %s60, 1
      %s62 = scalar_select %p59, %s60, %s61
      %p65 = pneg %p59
      %p66 = scmp.eq.s32.totalorder %s24, 1
      %p67 = por %p65, %p66
      %p68 = scmp.ne.s32.totalorder %s60, %s63
      %p69 = scmp.eq.s32.totalorder %s24, 0
      %p70 = por %p68, %p69
      %p71 = scmp.ne.s32.totalorder %s60, %s63
      %p72 = scmp.eq.s32.totalorder %s29, 1
      %p73 = por %p71, %p72
      %p74 = scmp.ne.s32.totalorder %s63, %s64
      %p75 = scmp.eq.s32.totalorder %s29, 0
      %p76 = por %p74, %p75
      %p77 = scmp.ne.s32.totalorder %s63, %s64
      %p78 = scmp.eq.s32.totalorder %s30, 1
      %p79 = por %p77, %p78
      %p81 = scmp.ne.s32.totalorder %s64, %s80
      %p82 = scmp.eq.s32.totalorder %s30, 0
      %p83 = por %p81, %p82
      %s85 = sadd.s32 %s84, 1
      %p88 = scmp.eq.s32.totalorder %s24, 1
      %p89 = scmp.ne.s32.totalorder %s84, %s86
      %p90 = scmp.eq.s32.totalorder %s24, 0
      %p91 = por %p89, %p90
      %p92 = scmp.ne.s32.totalorder %s84, %s86
      %p93 = scmp.eq.s32.totalorder %s29, 1
      %p94 = por %p92, %p93
      %p95 = scmp.ne.s32.totalorder %s86, %s87
      %p96 = scmp.eq.s32.totalorder %s29, 0
      %p97 = por %p95, %p96
      %p98 = scmp.ne.s32.totalorder %s86, %s87
      %p99 = scmp.eq.s32.totalorder %s30, 1
      %p100 = por %p98, %p99
      %p102 = scmp.ne.s32.totalorder %s87, %s101
      %p103 = scmp.eq.s32.totalorder %s30, 0
      %p104 = por %p102, %p103
      %s106 = sadd.s32 %s105, 1
      %p109 = scmp.eq.s32.totalorder %s24, 1
      %p110 = scmp.ne.s32.totalorder %s105, %s107
      %p111 = scmp.eq.s32.totalorder %s24, 0
      %p112 = por %p110, %p111
      %p113 = scmp.ne.s32.totalorder %s105, %s107
      %p114 = scmp.eq.s32.totalorder %s29, 1
      %p115 = por %p113, %p114
      %p116 = scmp.ne.s32.totalorder %s107, %s108
      %p117 = scmp.eq.s32.totalorder %s29, 0
      %p118 = por %p116, %p117
      %p119 = scmp.ne.s32.totalorder %s107, %s108
      %p120 = scmp.eq.s32.totalorder %s30, 1
      %p121 = por %p119, %p120
      %p123 = scmp.ne.s32.totalorder %s108, %s122
      %p124 = scmp.eq.s32.totalorder %s30, 0
      %p125 = por %p123, %p124
      %s127 = sadd.s32 %s126, 1
      %p130 = scmp.eq.s32.totalorder %s24, 1
      %p131 = scmp.ne.s32.totalorder %s126, %s128
      %p132 = scmp.eq.s32.totalorder %s24, 0
      %p133 = por %p131, %p132
      %p134 = scmp.ne.s32.totalorder %s126, %s128
      %p135 = scmp.eq.s32.totalorder %s29, 1
      %p136 = por %p134, %p135
      %p137 = scmp.ne.s32.totalorder %s128, %s129
      %p138 = scmp.eq.s32.totalorder %s29, 0
      %p139 = por %p137, %p138
      %p140 = scmp.ne.s32.totalorder %s128, %s129
      %p141 = scmp.eq.s32.totalorder %s30, 1
      %p142 = por %p140, %p141
      %p144 = scmp.ne.s32.totalorder %s129, %s143
      %p145 = scmp.eq.s32.totalorder %s30, 0
      %p146 = por %p144, %p145
      %s148 = sadd.s32 %s147, 1
      %p151 = scmp.eq.s32.totalorder %s24, 1
      %p152 = scmp.ne.s32.totalorder %s147, %s149
      %p153 = scmp.eq.s32.totalorder %s24, 0
      %p154 = por %p152, %p153
      %p155 = scmp.ne.s32.totalorder %s147, %s149
      %p156 = scmp.eq.s32.totalorder %s29, 1
      %p157 = por %p155, %p156
      %p158 = scmp.ne.s32.totalorder %s149, %s150
      %p159 = scmp.eq.s32.totalorder %s29, 0
      %p160 = por %p158, %p159
      %p161 = scmp.ne.s32.totalorder %s149, %s150
      %p162 = scmp.eq.s32.totalorder %s30, 1
      %p163 = por %p161, %p162
      %p165 = scmp.ne.s32.totalorder %s150, %s164
      %p166 = scmp.eq.s32.totalorder %s30, 0
      %p167 = por %p165, %p166
      %s169 = sadd.s32 %s168, 1
      %p172 = scmp.eq.s32.totalorder %s24, 1
      %p173 = scmp.ne.s32.totalorder %s168, %s170
      %p174 = scmp.eq.s32.totalorder %s24, 0
      %p175 = por %p173, %p174
      %p176 = scmp.ne.s32.totalorder %s168, %s170
      %p177 = scmp.eq.s32.totalorder %s29, 1
      %p178 = por %p176, %p177
      %p179 = scmp.ne.s32.totalorder %s170, %s171
      %p180 = scmp.eq.s32.totalorder %s29, 0
      %p181 = por %p179, %p180
      %p182 = scmp.ne.s32.totalorder %s170, %s171
      %p183 = scmp.eq.s32.totalorder %s30, 1
      %p184 = por %p182, %p183
      %p186 = scmp.ne.s32.totalorder %s171, %s185
      %p187 = scmp.eq.s32.totalorder %s30, 0
      %p188 = por %p186, %p187
      %s190 = sadd.s32 %s189, 1
      %p193 = scmp.eq.s32.totalorder %s24, 1
      %p194 = scmp.ne.s32.totalorder %s189, %s191
      %p195 = scmp.eq.s32.totalorder %s24, 0
      %p196 = por %p194, %p195
      %p197 = scmp.ne.s32.totalorder %s189, %s191
      %p198 = scmp.eq.s32.totalorder %s29, 1
      %p199 = por %p197, %p198
      %p200 = scmp.ne.s32.totalorder %s191, %s192
      %p201 = scmp.eq.s32.totalorder %s29, 0
      %p202 = por %p200, %p201
      %p203 = scmp.ne.s32.totalorder %s191, %s192
      %p204 = scmp.eq.s32.totalorder %s30, 1
      %p205 = por %p203, %p204
      %p207 = scmp.ne.s32.totalorder %s192, %s206
      %p208 = scmp.eq.s32.totalorder %s30, 0
      %p209 = por %p207, %p208
      %s211 = sadd.s32 %s210, 1
      %p214 = scmp.eq.s32.totalorder %s24, 1
      %p215 = scmp.ne.s32.totalorder %s210, %s212
      %p216 = scmp.eq.s32.totalorder %s24, 0
      %p217 = por %p215, %p216
      %p218 = scmp.ne.s32.totalorder %s210, %s212
      %p219 = scmp.eq.s32.totalorder %s29, 1
      %p220 = por %p218, %p219
      %p221 = scmp.ne.s32.totalorder %s212, %s213
      %p222 = scmp.eq.s32.totalorder %s29, 0
      %p223 = por %p221, %p222
      %p224 = scmp.ne.s32.totalorder %s212, %s213
      %p225 = scmp.eq.s32.totalorder %s30, 1
      %p226 = por %p224, %p225
      %p228 = scmp.ne.s32.totalorder %s213, %s227
      %p229 = scmp.eq.s32.totalorder %s30, 0
      %p230 = por %p228, %p229
      %s232 = sadd.s32 %s231, 1
      %p235 = scmp.eq.s32.totalorder %s24, 1
      %p236 = scmp.ne.s32.totalorder %s231, %s233
      %p237 = scmp.eq.s32.totalorder %s24, 0
      %p238 = por %p236, %p237
      %p239 = scmp.ne.s32.totalorder %s231, %s233
      %p240 = scmp.eq.s32.totalorder %s29, 1
      %p241 = por %p239, %p240
      %p242 = scmp.ne.s32.totalorder %s233, %s234
      %p243 = scmp.eq.s32.totalorder %s29, 0
      %p244 = por %p242, %p243
      %p245 = scmp.ne.s32.totalorder %s233, %s234
      %p246 = scmp.eq.s32.totalorder %s30, 1
      %p247 = por %p245, %p246
      %p249 = scmp.ne.s32.totalorder %s234, %s248
      %p250 = scmp.eq.s32.totalorder %s30, 0
      %p251 = por %p249, %p250
      %s252 = ssub.s32 %s24, %s31
      %p253 = scmp.eq.s32.totalorder %s252, 0
      %s255 = sadd.s32 %s254, 1
      %s256 = scalar_select %p253, %s254, %s255
      %p259 = pneg %p253
      %p260 = scmp.eq.s32.totalorder %s24, 1
      %p261 = por %p259, %p260
      %p262 = scmp.ne.s32.totalorder %s254, %s257
      %p263 = scmp.eq.s32.totalorder %s24, 0
      %p264 = por %p262, %p263
      %p265 = scmp.ne.s32.totalorder %s254, %s257
      %p266 = scmp.eq.s32.totalorder %s29, 1
      %p267 = por %p265, %p266
      %p268 = scmp.ne.s32.totalorder %s257, %s258
      %p269 = scmp.eq.s32.totalorder %s29, 0
      %p270 = por %p268, %p269
      %p271 = scmp.ne.s32.totalorder %s257, %s258
      %p272 = scmp.eq.s32.totalorder %s30, 1
      %p273 = por %p271, %p272
      %p275 = scmp.ne.s32.totalorder %s258, %s274
      %p276 = scmp.eq.s32.totalorder %s30, 0
      %p277 = por %p275, %p276
      %s278 = ssub.s32 %s24, %s31
      %p279 = scmp.eq.s32.totalorder %s278, 0
      %s281 = sadd.s32 %s280, 1
      %s282 = scalar_select %p279, %s280, %s281
      %p285 = pneg %p279
      %p286 = scmp.eq.s32.totalorder %s24, 1
      %p287 = por %p285, %p286
      %p288 = scmp.ne.s32.totalorder %s280, %s283
      %p289 = scmp.eq.s32.totalorder %s24, 0
      %p290 = por %p288, %p289
      %p291 = scmp.ne.s32.totalorder %s280, %s283
      %p292 = scmp.eq.s32.totalorder %s29, 1
      %p293 = por %p291, %p292
      %p294 = scmp.ne.s32.totalorder %s283, %s284
      %p295 = scmp.eq.s32.totalorder %s29, 0
      %p296 = por %p294, %p295
      %p297 = scmp.ne.s32.totalorder %s283, %s284
      %p298 = scmp.eq.s32.totalorder %s30, 1
      %p299 = por %p297, %p298
      %p301 = scmp.ne.s32.totalorder %s284, %s300
      %p302 = scmp.eq.s32.totalorder %s30, 0
      %p303 = por %p301, %p302
      %p304 = scmp.le.s32.totalorder 1, %s24
      %p305 = scmp.lt.s32.totalorder %s24, 3
      %p306 = pnand %p304, %p305
      %p307 = pneg %p306
      // Predicated region
      $region9: #{tpu_custom_call.1} parent=5 // pred_check
        _
      $region10: #{tpu_custom_call.1} parent=5 // pred_check_branch
        %309 = sbr.rel (%p306) target = $region12
      $region11: #{tpu_custom_call.1} parent=5 // pred_region
        %s310 = ssub.s32 %s24, 1
        // Predicated region
        $region13: #{tpu_custom_call.1} parent=11 // pred_check
          %p311 = pneg %p97
        $region14: #{tpu_custom_call.1} parent=11 // pred_check_branch
          %313 = sbr.rel (%p311) target = $region16
        $region15: #{tpu_custom_call.1} parent=11 // pred_region
          _
        $region16: #{tpu_custom_call.1} parent=11 // pred_fallthru
          _
        // Predicated region
        $region17: #{tpu_custom_call.1} parent=11 // pred_check
          %p314 = pneg %p118
        $region18: #{tpu_custom_call.1} parent=11 // pred_check_branch
          %316 = sbr.rel (%p314) target = $region20
        $region19: #{tpu_custom_call.1} parent=11 // pred_region
          _
        $region20: #{tpu_custom_call.1} parent=11 // pred_fallthru
          _
        // Predicated region
        $region21: #{tpu_custom_call.1} parent=11 // pred_check
          %p317 = pneg %p139
        $region22: #{tpu_custom_call.1} parent=11 // pred_check_branch
          %319 = sbr.rel (%p317) target = $region24
        $region23: #{tpu_custom_call.1} parent=11 // pred_region
          _
        $region24: #{tpu_custom_call.1} parent=11 // pred_fallthru
          _
        // Predicated region
        $region25: #{tpu_custom_call.1} parent=11 // pred_check
          %p320 = pneg %p160
        $region26: #{tpu_custom_call.1} parent=11 // pred_check_branch
          %322 = sbr.rel (%p320) target = $region28
        $region27: #{tpu_custom_call.1} parent=11 // pred_region
          %s324 = ssub.s32 4608, 4608
          %325 = vsyncadd [#allocation6], %s324
          %s326 = sshll.u32 [#allocation5], 4
          %s327 = int_to_ptr.vmem [resolvable:$true] %s326
          %332 = dma.hbm_to_vmem [thread:$0]  %s5, 4608, %s327, [#allocation6], 128, 128, 8
        $region28: #{tpu_custom_call.1} parent=11 // pred_fallthru
          _
        // Predicated region
        $region29: #{tpu_custom_call.1} parent=11 // pred_check
          %p333 = pneg %p181
        $region30: #{tpu_custom_call.1} parent=11 // pred_check_branch
          %335 = sbr.rel (%p333) target = $region32
        $region31: #{tpu_custom_call.1} parent=11 // pred_region
          _
        $region32: #{tpu_custom_call.1} parent=11 // pred_fallthru
          _
        // Predicated region
        $region33: #{tpu_custom_call.1} parent=11 // pred_check
          %p336 = pneg %p202
        $region34: #{tpu_custom_call.1} parent=11 // pred_check_branch
          %338 = sbr.rel (%p336) target = $region36
        $region35: #{tpu_custom_call.1} parent=11 // pred_region
          _
        $region36: #{tpu_custom_call.1} parent=11 // pred_fallthru
          _
        // Predicated region
        $region37: #{tpu_custom_call.1} parent=11 // pred_check
          %p339 = pneg %p223
        $region38: #{tpu_custom_call.1} parent=11 // pred_check_branch
          %341 = sbr.rel (%p339) target = $region40
        $region39: #{tpu_custom_call.1} parent=11 // pred_region
          _
        $region40: #{tpu_custom_call.1} parent=11 // pred_fallthru
          _
        // Predicated region
        $region41: #{tpu_custom_call.1} parent=11 // pred_check
          %p342 = pneg %p244
        $region42: #{tpu_custom_call.1} parent=11 // pred_check_branch
          %344 = sbr.rel (%p342) target = $region44
        $region43: #{tpu_custom_call.1} parent=11 // pred_region
          _
        $region44: #{tpu_custom_call.1} parent=11 // pred_fallthru
          _
      $region12: #{tpu_custom_call.1} parent=5 // pred_fallthru
        _
      %p345 = scmp.lt.s32.totalorder %s24, 2
      // Predicated region
      $region45: #{tpu_custom_call.1} parent=5 // pred_check
        %p346 = pneg %p345
      $region46: #{tpu_custom_call.1} parent=5 // pred_check_branch
        %348 = sbr.rel (%p346) target = $region48
      $region47: #{tpu_custom_call.1} parent=5 // pred_region
        // Predicated region
        $region49: #{tpu_custom_call.1} parent=47 // pred_check
          %p349 = pneg %p44
        $region50: #{tpu_custom_call.1} parent=47 // pred_check_branch
          %351 = sbr.rel (%p349) target = $region52
        $region51: #{tpu_custom_call.1} parent=47 // pred_region
          %p352 = scmp.lt.s32.totalorder %s24, 1
          %s353 = scalar_select %p352, %s24, 1
          %s354 = smul.addr %s353, 32
          %s355 = smul.addr %s354, 8
          %s356 = scalar_lea.vmem %s0, %s355
        $region52: #{tpu_custom_call.1} parent=47 // pred_fallthru
          _
        // Predicated region
        $region53: #{tpu_custom_call.1} parent=47 // pred_check
          %p357 = pneg %p70
        $region54: #{tpu_custom_call.1} parent=47 // pred_check_branch
          %359 = sbr.rel (%p357) target = $region56
        $region55: #{tpu_custom_call.1} parent=47 // pred_region
          %p360 = scmp.lt.s32.totalorder %s24, 1
          %s361 = scalar_select %p360, %s24, 1
          %s362 = smul.addr %s361, 32
          %s363 = smul.addr %s362, 8
          %s364 = scalar_lea.vmem %s1, %s363
        $region56: #{tpu_custom_call.1} parent=47 // pred_fallthru
          _
      $region48: #{tpu_custom_call.1} parent=5 // pred_fallthru
        _
      %p365 = scmp.le.s32.totalorder 1, %s24
      %p366 = scmp.lt.s32.totalorder %s24, 3
      %p367 = pnand %p365, %p366
      %p368 = pneg %p367
      // Predicated region
      $region57: #{tpu_custom_call.1} parent=5 // pred_check
        _
      $region58: #{tpu_custom_call.1} parent=5 // pred_check_branch
        %370 = sbr.rel (%p367) target = $region60
      $region59: #{tpu_custom_call.1} parent=5 // pred_region
        %s371 = ssub.s32 %s24, 1
        // Predicated region
        $region61: #{tpu_custom_call.1} parent=59 // pred_check
          %p372 = pneg %p160
        $region62: #{tpu_custom_call.1} parent=59 // pred_check_branch
          %374 = sbr.rel (%p372) target = $region64
        $region63: #{tpu_custom_call.1} parent=59 // pred_region
          %375 = dma.done [#allocation6], 4608
        $region64: #{tpu_custom_call.1} parent=59 // pred_fallthru
          _
        %p376 = scmp.lt.s32.totalorder %s29, 1
        %s377 = scalar_select %p376, %s29, 1
        %s378 = smul.addr %s377, 32
        %s379 = smul.addr %s378, 8
        %s380 = scalar_lea.vmem %s0, %s379
        %p381 = pneg %p50
        %p382 = pneg %p47
        %p383 = scmp.lt.s32.totalorder %s29, 1
        %s384 = scalar_select %p383, %s29, 1
        %s385 = smul.addr %s384, 32
        %s386 = smul.addr %s385, 8
        %s387 = scalar_lea.vmem %s1, %s386
        %p388 = pneg %p76
        %p389 = pneg %p73
        %p390 = pneg %p97
        %p391 = pneg %p94
        %p392 = pneg %p118
        %p393 = pneg %p115
        %p394 = pneg %p139
        %p395 = pneg %p136
        %p396 = pneg %p160
        %p397 = pneg %p157
        %p398 = pneg %p181
        %p399 = pneg %p178
        %p400 = pneg %p202
        %p401 = pneg %p199
        %p402 = pneg %p223
        %p403 = pneg %p220
        %p404 = pneg %p244
        %p405 = pneg %p241
        %p406 = pneg %p270
        %p407 = pneg %p267
        %s408 = sand.u32 %s257, 1
        %s409 = scalar_lea.sflag [#allocation7], %s408
        %s410 = sand.u32 %s257, 1
        %s411 = smul.addr %s410, 512
        %s412 = scalar_lea.vmem [#allocation8], %s411
        %p413 = pneg %p296
        %p414 = pneg %p293
        %p415 = scmp.lt.s32.totalorder %s29, 1
        %s416 = scalar_select %p415, %s29, 1
        %s417 = smul.addr %s416, 32
        %s418 = smul.addr %s417, 8
        %s419 = scalar_lea.vmem %s11, %s418
        %p420 = scmp.lt.s32.totalorder %s29, 1
        %s421 = scalar_select %p420, %s29, 1
        %s422 = smul.addr %s421, 32
        %s423 = smul.addr %s422, 8
        %s424 = scalar_lea.vmem %s0, %s423
        %p425 = scmp.lt.s32.totalorder %s29, 1
        %s426 = scalar_select %p425, %s29, 1
        %s427 = smul.addr %s426, 32
        %s428 = smul.addr %s427, 8
        %s429 = scalar_lea.vmem %s1, %s428
        %p430 = scmp.lt.s32.totalorder %s29, 1
        %s431 = scalar_select %p430, %s29, 1
        %s432 = smul.addr %s431, 32
        %s433 = smul.addr %s432, 8
        %s434 = scalar_lea.vmem %s11, %s433
        %v436 = vld [vmem:[%s429] sm:$0xff]
        %v437 = vld [vmem:[%s429 + $0x8] sm:$0xff]
        %v438 = vld [vmem:[%s429 + $0x10] sm:$0xff]
        %v439 = vld [vmem:[%s429 + $0x18] sm:$0xff]
        %v440 = vld [vmem:[%s429 + $0x20] sm:$0xff]
        %v441 = vld [vmem:[%s429 + $0x28] sm:$0xff]
        %v442 = vld [vmem:[%s429 + $0x30] sm:$0xff]
        %v443 = vld [vmem:[%s429 + $0x38] sm:$0xff]
        %v444 = vld [vmem:[%s429 + $0x40] sm:$0xff]
        %v445 = vld [vmem:[%s429 + $0x48] sm:$0xff]
        %v446 = vld [vmem:[%s429 + $0x50] sm:$0xff]
        %v447 = vld [vmem:[%s429 + $0x58] sm:$0xff]
        %v448 = vld [vmem:[%s429 + $0x60] sm:$0xff]
        %v449 = vld [vmem:[%s429 + $0x68] sm:$0xff]
        %v450 = vld [vmem:[%s429 + $0x70] sm:$0xff]
        %v451 = vld [vmem:[%s429 + $0x78] sm:$0xff]
        %v452 = vld [vmem:[%s429 + $0x80] sm:$0xff]
        %v453 = vld [vmem:[%s429 + $0x88] sm:$0xff]
        %v454 = vld [vmem:[%s429 + $0x90] sm:$0xff]
        %v455 = vld [vmem:[%s429 + $0x98] sm:$0xff]
        %v456 = vld [vmem:[%s429 + $0xa0] sm:$0xff]
        %v457 = vld [vmem:[%s429 + $0xa8] sm:$0xff]
        %v458 = vld [vmem:[%s429 + $0xb0] sm:$0xff]
        %v459 = vld [vmem:[%s429 + $0xb8] sm:$0xff]
        %v460 = vld [vmem:[%s429 + $0xc0] sm:$0xff]
        %v461 = vld [vmem:[%s429 + $0xc8] sm:$0xff]
        %v462 = vld [vmem:[%s429 + $0xd0] sm:$0xff]
        %v463 = vld [vmem:[%s429 + $0xd8] sm:$0xff]
        %v464 = vld [vmem:[%s429 + $0xe0] sm:$0xff]
        %v465 = vld [vmem:[%s429 + $0xe8] sm:$0xff]
        %v466 = vld [vmem:[%s429 + $0xf0] sm:$0xff]
        %v467 = vld [vmem:[%s429 + $0xf8] sm:$0xff]
        %v468 = vxor.u32 %v436, 2147483648
        %v469 = vxor.u32 %v437, 2147483648
        %v470 = vxor.u32 %v438, 2147483648
        %v471 = vxor.u32 %v439, 2147483648
        %v472 = vxor.u32 %v440, 2147483648
        %v473 = vxor.u32 %v441, 2147483648
        %v474 = vxor.u32 %v442, 2147483648
        %v475 = vxor.u32 %v443, 2147483648
        %v476 = vxor.u32 %v444, 2147483648
        %v477 = vxor.u32 %v445, 2147483648
        %v478 = vxor.u32 %v446, 2147483648
        %v479 = vxor.u32 %v447, 2147483648
        %v480 = vxor.u32 %v448, 2147483648
        %v481 = vxor.u32 %v449, 2147483648
        %v482 = vxor.u32 %v450, 2147483648
        %v483 = vxor.u32 %v451, 2147483648
        %v484 = vxor.u32 %v452, 2147483648
        %v485 = vxor.u32 %v453, 2147483648
        %v486 = vxor.u32 %v454, 2147483648
        %v487 = vxor.u32 %v455, 2147483648
        %v488 = vxor.u32 %v456, 2147483648
        %v489 = vxor.u32 %v457, 2147483648
        %v490 = vxor.u32 %v458, 2147483648
        %v491 = vxor.u32 %v459, 2147483648
        %v492 = vxor.u32 %v460, 2147483648
        %v493 = vxor.u32 %v461, 2147483648
        %v494 = vxor.u32 %v462, 2147483648
        %v495 = vxor.u32 %v463, 2147483648
        %v496 = vxor.u32 %v464, 2147483648
        %v497 = vxor.u32 %v465, 2147483648
        %v498 = vxor.u32 %v466, 2147483648
        %v499 = vxor.u32 %v467, 2147483648
        %v500 = vmul.f32 %v468, 1.442695
        %v501 = vpow.pop %v500
        %v502 = vmul.f32 %v469, 1.442695
        %v503 = vpow.pop %v502
        %v504 = vmul.f32 %v470, 1.442695
        %v505 = vpow.pop %v504
        %v506 = vmul.f32 %v471, 1.442695
        %v507 = vpow.pop %v506
        %v508 = vmul.f32 %v472, 1.442695
        %v509 = vpow.pop %v508
        %v510 = vmul.f32 %v473, 1.442695
        %v511 = vpow.pop %v510
        %v512 = vmul.f32 %v474, 1.442695
        %v513 = vpow.pop %v512
        %v514 = vmul.f32 %v475, 1.442695
        %v515 = vpow.pop %v514
        %v516 = vmul.f32 %v476, 1.442695
        %v517 = vpow.pop %v516
        %v518 = vmul.f32 %v477, 1.442695
        %v519 = vpow.pop %v518
        %v520 = vmul.f32 %v478, 1.442695
        %v521 = vpow.pop %v520
        %v522 = vmul.f32 %v479, 1.442695
        %v523 = vpow.pop %v522
        %v524 = vmul.f32 %v480, 1.442695
        %v525 = vpow.pop %v524
        %v526 = vmul.f32 %v481, 1.442695
        %v527 = vpow.pop %v526
        %v528 = vmul.f32 %v482, 1.442695
        %v529 = vpow.pop %v528
        %v530 = vmul.f32 %v483, 1.442695
        %v531 = vpow.pop %v530
        %v532 = vmul.f32 %v484, 1.442695
        %v533 = vpow.pop %v532
        %v534 = vmul.f32 %v485, 1.442695
        %v535 = vpow.pop %v534
        %v536 = vmul.f32 %v486, 1.442695
        %v537 = vpow.pop %v536
        %v538 = vmul.f32 %v487, 1.442695
        %v539 = vpow.pop %v538
        %v540 = vmul.f32 %v488, 1.442695
        %v541 = vpow.pop %v540
        %v542 = vmul.f32 %v489, 1.442695
        %v543 = vpow.pop %v542
        %v544 = vmul.f32 %v490, 1.442695
        %v545 = vpow.pop %v544
        %v546 = vmul.f32 %v491, 1.442695
        %v547 = vpow.pop %v546
        %v548 = vmul.f32 %v492, 1.442695
        %v549 = vpow.pop %v548
        %v550 = vmul.f32 %v493, 1.442695
        %v551 = vpow.pop %v550
        %v552 = vmul.f32 %v494, 1.442695
        %v553 = vpow.pop %v552
        %v554 = vmul.f32 %v495, 1.442695
        %v555 = vpow.pop %v554
        %v556 = vmul.f32 %v496, 1.442695
        %v557 = vpow.pop %v556
        %v558 = vmul.f32 %v497, 1.442695
        %v559 = vpow.pop %v558
        %v560 = vmul.f32 %v498, 1.442695
        %v561 = vpow.pop %v560
        %v562 = vmul.f32 %v499, 1.442695
        %v563 = vpow.pop %v562
        %v564 = vadd.f32 %v501, 1.0
        %v565 = vadd.f32 %v503, 1.0
        %v566 = vadd.f32 %v505, 1.0
        %v567 = vadd.f32 %v507, 1.0
        %v568 = vadd.f32 %v509, 1.0
        %v569 = vadd.f32 %v511, 1.0
        %v570 = vadd.f32 %v513, 1.0
        %v571 = vadd.f32 %v515, 1.0
        %v572 = vadd.f32 %v517, 1.0
        %v573 = vadd.f32 %v519, 1.0
        %v574 = vadd.f32 %v521, 1.0
        %v575 = vadd.f32 %v523, 1.0
        %v576 = vadd.f32 %v525, 1.0
        %v577 = vadd.f32 %v527, 1.0
        %v578 = vadd.f32 %v529, 1.0
        %v579 = vadd.f32 %v531, 1.0
        %v580 = vadd.f32 %v533, 1.0
        %v581 = vadd.f32 %v535, 1.0
        %v582 = vadd.f32 %v537, 1.0
        %v583 = vadd.f32 %v539, 1.0
        %v584 = vadd.f32 %v541, 1.0
        %v585 = vadd.f32 %v543, 1.0
        %v586 = vadd.f32 %v545, 1.0
        %v587 = vadd.f32 %v547, 1.0
        %v588 = vadd.f32 %v549, 1.0
        %v589 = vadd.f32 %v551, 1.0
        %v590 = vadd.f32 %v553, 1.0
        %v591 = vadd.f32 %v555, 1.0
        %v592 = vadd.f32 %v557, 1.0
        %v593 = vadd.f32 %v559, 1.0
        %v594 = vadd.f32 %v561, 1.0
        %v595 = vadd.f32 %v563, 1.0
        %v596 = vrcp.pop %v564
        %v597 = vmul.f32 1.0, %v596
        %v598 = vrcp.pop %v565
        %v599 = vmul.f32 1.0, %v598
        %v600 = vrcp.pop %v566
        %v601 = vmul.f32 1.0, %v600
        %v602 = vrcp.pop %v567
        %v603 = vmul.f32 1.0, %v602
        %v604 = vrcp.pop %v568
        %v605 = vmul.f32 1.0, %v604
        %v606 = vrcp.pop %v569
        %v607 = vmul.f32 1.0, %v606
        %v608 = vrcp.pop %v570
        %v609 = vmul.f32 1.0, %v608
        %v610 = vrcp.pop %v571
        %v611 = vmul.f32 1.0, %v610
        %v612 = vrcp.pop %v572
        %v613 = vmul.f32 1.0, %v612
        %v614 = vrcp.pop %v573
        %v615 = vmul.f32 1.0, %v614
        %v616 = vrcp.pop %v574
        %v617 = vmul.f32 1.0, %v616
        %v618 = vrcp.pop %v575
        %v619 = vmul.f32 1.0, %v618
        %v620 = vrcp.pop %v576
        %v621 = vmul.f32 1.0, %v620
        %v622 = vrcp.pop %v577
        %v623 = vmul.f32 1.0, %v622
        %v624 = vrcp.pop %v578
        %v625 = vmul.f32 1.0, %v624
        %v626 = vrcp.pop %v579
        %v627 = vmul.f32 1.0, %v626
        %v628 = vrcp.pop %v580
        %v629 = vmul.f32 1.0, %v628
        %v630 = vrcp.pop %v581
        %v631 = vmul.f32 1.0, %v630
        %v632 = vrcp.pop %v582
        %v633 = vmul.f32 1.0, %v632
        %v634 = vrcp.pop %v583
        %v635 = vmul.f32 1.0, %v634
        %v636 = vrcp.pop %v584
        %v637 = vmul.f32 1.0, %v636
        %v638 = vrcp.pop %v585
        %v639 = vmul.f32 1.0, %v638
        %v640 = vrcp.pop %v586
        %v641 = vmul.f32 1.0, %v640
        %v642 = vrcp.pop %v587
        %v643 = vmul.f32 1.0, %v642
        %v644 = vrcp.pop %v588
        %v645 = vmul.f32 1.0, %v644
        %v646 = vrcp.pop %v589
        %v647 = vmul.f32 1.0, %v646
        %v648 = vrcp.pop %v590
        %v649 = vmul.f32 1.0, %v648
        %v650 = vrcp.pop %v591
        %v651 = vmul.f32 1.0, %v650
        %v652 = vrcp.pop %v592
        %v653 = vmul.f32 1.0, %v652
        %v654 = vrcp.pop %v593
        %v655 = vmul.f32 1.0, %v654
        %v656 = vrcp.pop %v594
        %v657 = vmul.f32 1.0, %v656
        %v658 = vrcp.pop %v595
        %v659 = vmul.f32 1.0, %v658
        %v660 = vld [vmem:[%s424] sm:$0xff]
        %v661 = vld [vmem:[%s424 + $0x8] sm:$0xff]
        %v662 = vld [vmem:[%s424 + $0x10] sm:$0xff]
        %v663 = vld [vmem:[%s424 + $0x18] sm:$0xff]
        %v664 = vld [vmem:[%s424 + $0x20] sm:$0xff]
        %v665 = vld [vmem:[%s424 + $0x28] sm:$0xff]
        %v666 = vld [vmem:[%s424 + $0x30] sm:$0xff]
        %v667 = vld [vmem:[%s424 + $0x38] sm:$0xff]
        %v668 = vld [vmem:[%s424 + $0x40] sm:$0xff]
        %v669 = vld [vmem:[%s424 + $0x48] sm:$0xff]
        %v670 = vld [vmem:[%s424 + $0x50] sm:$0xff]
        %v671 = vld [vmem:[%s424 + $0x58] sm:$0xff]
        %v672 = vld [vmem:[%s424 + $0x60] sm:$0xff]
        %v673 = vld [vmem:[%s424 + $0x68] sm:$0xff]
        %v674 = vld [vmem:[%s424 + $0x70] sm:$0xff]
        %v675 = vld [vmem:[%s424 + $0x78] sm:$0xff]
        %v676 = vld [vmem:[%s424 + $0x80] sm:$0xff]
        %v677 = vld [vmem:[%s424 + $0x88] sm:$0xff]
        %v678 = vld [vmem:[%s424 + $0x90] sm:$0xff]
        %v679 = vld [vmem:[%s424 + $0x98] sm:$0xff]
        %v680 = vld [vmem:[%s424 + $0xa0] sm:$0xff]
        %v681 = vld [vmem:[%s424 + $0xa8] sm:$0xff]
        %v682 = vld [vmem:[%s424 + $0xb0] sm:$0xff]
        %v683 = vld [vmem:[%s424 + $0xb8] sm:$0xff]
        %v684 = vld [vmem:[%s424 + $0xc0] sm:$0xff]
        %v685 = vld [vmem:[%s424 + $0xc8] sm:$0xff]
        %v686 = vld [vmem:[%s424 + $0xd0] sm:$0xff]
        %v687 = vld [vmem:[%s424 + $0xd8] sm:$0xff]
        %v688 = vld [vmem:[%s424 + $0xe0] sm:$0xff]
        %v689 = vld [vmem:[%s424 + $0xe8] sm:$0xff]
        %v690 = vld [vmem:[%s424 + $0xf0] sm:$0xff]
        %v691 = vld [vmem:[%s424 + $0xf8] sm:$0xff]
        %v692 = vsub.f32 1.0, %v597
        %v693 = vsub.f32 1.0, %v599
        %v694 = vsub.f32 1.0, %v601
        %v695 = vsub.f32 1.0, %v603
        %v696 = vsub.f32 1.0, %v605
        %v697 = vsub.f32 1.0, %v607
        %v698 = vsub.f32 1.0, %v609
        %v699 = vsub.f32 1.0, %v611
        %v700 = vsub.f32 1.0, %v613
        %v701 = vsub.f32 1.0, %v615
        %v702 = vsub.f32 1.0, %v617
        %v703 = vsub.f32 1.0, %v619
        %v704 = vsub.f32 1.0, %v621
        %v705 = vsub.f32 1.0, %v623
        %v706 = vsub.f32 1.0, %v625
        %v707 = vsub.f32 1.0, %v627
        %v708 = vsub.f32 1.0, %v629
        %v709 = vsub.f32 1.0, %v631
        %v710 = vsub.f32 1.0, %v633
        %v711 = vsub.f32 1.0, %v635
        %v712 = vsub.f32 1.0, %v637
        %v713 = vsub.f32 1.0, %v639
        %v714 = vsub.f32 1.0, %v641
        %v715 = vsub.f32 1.0, %v643
        %v716 = vsub.f32 1.0, %v645
        %v717 = vsub.f32 1.0, %v647
        %v718 = vsub.f32 1.0, %v649
        %v719 = vsub.f32 1.0, %v651
        %v720 = vsub.f32 1.0, %v653
        %v721 = vsub.f32 1.0, %v655
        %v722 = vsub.f32 1.0, %v657
        %v723 = vsub.f32 1.0, %v659
        %725 = vset.pattern.permute.xlu0 0
        %726 = vperm.xlu0 %725, %v692
        %v727 = vpop.permute.xlu0 %726
        %730 = vset.pattern.permute.xlu0 0
        %731 = vperm.xlu0 %730, %v693
        %v732 = vpop.permute.xlu0 %731
        %735 = vset.pattern.permute.xlu0 0
        %736 = vperm.xlu0 %735, %v694
        %v737 = vpop.permute.xlu0 %736
        %740 = vset.pattern.permute.xlu0 0
        %741 = vperm.xlu0 %740, %v695
        %v742 = vpop.permute.xlu0 %741
        %745 = vset.pattern.permute.xlu0 0
        %746 = vperm.xlu0 %745, %v696
        %v747 = vpop.permute.xlu0 %746
        %750 = vset.pattern.permute.xlu0 0
        %751 = vperm.xlu0 %750, %v697
        %v752 = vpop.permute.xlu0 %751
        %755 = vset.pattern.permute.xlu0 0
        %756 = vperm.xlu0 %755, %v698
        %v757 = vpop.permute.xlu0 %756
        %760 = vset.pattern.permute.xlu0 0
        %761 = vperm.xlu0 %760, %v699
        %v762 = vpop.permute.xlu0 %761
        %765 = vset.pattern.permute.xlu0 0
        %766 = vperm.xlu0 %765, %v700
        %v767 = vpop.permute.xlu0 %766
        %770 = vset.pattern.permute.xlu0 0
        %771 = vperm.xlu0 %770, %v701
        %v772 = vpop.permute.xlu0 %771
        %775 = vset.pattern.permute.xlu0 0
        %776 = vperm.xlu0 %775, %v702
        %v777 = vpop.permute.xlu0 %776
        %780 = vset.pattern.permute.xlu0 0
        %781 = vperm.xlu0 %780, %v703
        %v782 = vpop.permute.xlu0 %781
        %785 = vset.pattern.permute.xlu0 0
        %786 = vperm.xlu0 %785, %v704
        %v787 = vpop.permute.xlu0 %786
        %790 = vset.pattern.permute.xlu0 0
        %791 = vperm.xlu0 %790, %v705
        %v792 = vpop.permute.xlu0 %791
        %795 = vset.pattern.permute.xlu0 0
        %796 = vperm.xlu0 %795, %v706
        %v797 = vpop.permute.xlu0 %796
        %800 = vset.pattern.permute.xlu0 0
        %801 = vperm.xlu0 %800, %v707
        %v802 = vpop.permute.xlu0 %801
        %805 = vset.pattern.permute.xlu0 0
        %806 = vperm.xlu0 %805, %v708
        %v807 = vpop.permute.xlu0 %806
        %810 = vset.pattern.permute.xlu0 0
        %811 = vperm.xlu0 %810, %v709
        %v812 = vpop.permute.xlu0 %811
        %815 = vset.pattern.permute.xlu0 0
        %816 = vperm.xlu0 %815, %v710
        %v817 = vpop.permute.xlu0 %816
        %820 = vset.pattern.permute.xlu0 0
        %821 = vperm.xlu0 %820, %v711
        %v822 = vpop.permute.xlu0 %821
        %825 = vset.pattern.permute.xlu0 0
        %826 = vperm.xlu0 %825, %v712
        %v827 = vpop.permute.xlu0 %826
        %830 = vset.pattern.permute.xlu0 0
        %831 = vperm.xlu0 %830, %v713
        %v832 = vpop.permute.xlu0 %831
        %835 = vset.pattern.permute.xlu0 0
        %836 = vperm.xlu0 %835, %v714
        %v837 = vpop.permute.xlu0 %836
        %840 = vset.pattern.permute.xlu0 0
        %841 = vperm.xlu0 %840, %v715
        %v842 = vpop.permute.xlu0 %841
        %845 = vset.pattern.permute.xlu0 0
        %846 = vperm.xlu0 %845, %v716
        %v847 = vpop.permute.xlu0 %846
        %850 = vset.pattern.permute.xlu0 0
        %851 = vperm.xlu0 %850, %v717
        %v852 = vpop.permute.xlu0 %851
        %855 = vset.pattern.permute.xlu0 0
        %856 = vperm.xlu0 %855, %v718
        %v857 = vpop.permute.xlu0 %856
        %860 = vset.pattern.permute.xlu0 0
        %861 = vperm.xlu0 %860, %v719
        %v862 = vpop.permute.xlu0 %861
        %865 = vset.pattern.permute.xlu0 0
        %866 = vperm.xlu0 %865, %v720
        %v867 = vpop.permute.xlu0 %866
        %870 = vset.pattern.permute.xlu0 0
        %871 = vperm.xlu0 %870, %v721
        %v872 = vpop.permute.xlu0 %871
        %875 = vset.pattern.permute.xlu0 0
        %876 = vperm.xlu0 %875, %v722
        %v877 = vpop.permute.xlu0 %876
        %880 = vset.pattern.permute.xlu0 0
        %881 = vperm.xlu0 %880, %v723
        %v882 = vpop.permute.xlu0 %881
        %v884 = vmul.f32 %v660, %v727
        %v885 = vmul.f32 %v661, %v732
        %v886 = vmul.f32 %v662, %v737
        %v887 = vmul.f32 %v663, %v742
        %v888 = vmul.f32 %v664, %v747
        %v889 = vmul.f32 %v665, %v752
        %v890 = vmul.f32 %v666, %v757
        %v891 = vmul.f32 %v667, %v762
        %v892 = vmul.f32 %v668, %v767
        %v893 = vmul.f32 %v669, %v772
        %v894 = vmul.f32 %v670, %v777
        %v895 = vmul.f32 %v671, %v782
        %v896 = vmul.f32 %v672, %v787
        %v897 = vmul.f32 %v673, %v792
        %v898 = vmul.f32 %v674, %v797
        %v899 = vmul.f32 %v675, %v802
        %v900 = vmul.f32 %v676, %v807
        %v901 = vmul.f32 %v677, %v812
        %v902 = vmul.f32 %v678, %v817
        %v903 = vmul.f32 %v679, %v822
        %v904 = vmul.f32 %v680, %v827
        %v905 = vmul.f32 %v681, %v832
        %v906 = vmul.f32 %v682, %v837
        %v907 = vmul.f32 %v683, %v842
        %v908 = vmul.f32 %v684, %v847
        %v909 = vmul.f32 %v685, %v852
        %v910 = vmul.f32 %v686, %v857
        %v911 = vmul.f32 %v687, %v862
        %v912 = vmul.f32 %v688, %v867
        %v913 = vmul.f32 %v689, %v872
        %v914 = vmul.f32 %v690, %v877
        %v915 = vmul.f32 %v691, %v882
        %vm916 = vcmask 261120
        %917 = vst.msk [vmem:[#allocation2] sm:$0xff] %vm916, 0.0
        %918 = vst.msk [vmem:[#allocation2 + $0x8] sm:$0xff] %vm916, 0.0
        %vm919 = vcmask 254976
        %920 = vst.msk [vmem:[#allocation2 + $0x10] sm:$0x3] %vm919, 0.0
        %s921 = scalar_lea.vmem [#allocation2], 408
        %922 = vst.msk [vmem:[%s921] sm:$0xff] %vm916, 0.0
        %923 = vst.msk [vmem:[%s921 + $0x8] sm:$0xff] %vm916, 0.0
        %924 = vst.msk [vmem:[%s921 + $0x10] sm:$0x3] %vm919, 0.0
        %vm925 = vcmask 253952
        %926 = vst.msk [vmem:[#allocation2] sm:$0x1] %vm925, 0.0
        %927 = vst.msk [vmem:[#allocation2 + $0x18] sm:$0x1] %vm925, 0.0
        %928 = vst.msk [vmem:[#allocation2 + $0x30] sm:$0x1] %vm925, 0.0
        %929 = vst.msk [vmem:[#allocation2 + $0x48] sm:$0x1] %vm925, 0.0
        %930 = vst.msk [vmem:[#allocation2 + $0x60] sm:$0x1] %vm925, 0.0
        %931 = vst.msk [vmem:[#allocation2 + $0x78] sm:$0x1] %vm925, 0.0
        %932 = vst.msk [vmem:[#allocation2 + $0x90] sm:$0x1] %vm925, 0.0
        %933 = vst.msk [vmem:[#allocation2 + $0xa8] sm:$0x1] %vm925, 0.0
        %934 = vst.msk [vmem:[#allocation2 + $0xc0] sm:$0x1] %vm925, 0.0
        %935 = vst.msk [vmem:[#allocation2 + $0xd8] sm:$0x1] %vm925, 0.0
        %936 = vst.msk [vmem:[#allocation2 + $0xf0] sm:$0x1] %vm925, 0.0
        %937 = vst.msk [vmem:[#allocation2 + $0x108] sm:$0x1] %vm925, 0.0
        %938 = vst.msk [vmem:[#allocation2 + $0x120] sm:$0x1] %vm925, 0.0
        %939 = vst.msk [vmem:[#allocation2 + $0x138] sm:$0x1] %vm925, 0.0
        %940 = vst.msk [vmem:[#allocation2 + $0x150] sm:$0x1] %vm925, 0.0
        %941 = vst.msk [vmem:[#allocation2 + $0x168] sm:$0x1] %vm925, 0.0
        %942 = vst.msk [vmem:[#allocation2 + $0x180] sm:$0x1] %vm925, 0.0
        %943 = vst.msk [vmem:[#allocation2 + $0x198] sm:$0x1] %vm925, 0.0
        %944 = vst.msk [vmem:[#allocation2 + $0x11] sm:$0x1] %vm925, 0.0
        %945 = vst.msk [vmem:[#allocation2 + $0x29] sm:$0x1] %vm925, 0.0
        %946 = vst.msk [vmem:[#allocation2 + $0x41] sm:$0x1] %vm925, 0.0
        %947 = vst.msk [vmem:[#allocation2 + $0x59] sm:$0x1] %vm925, 0.0
        %948 = vst.msk [vmem:[#allocation2 + $0x71] sm:$0x1] %vm925, 0.0
        %949 = vst.msk [vmem:[#allocation2 + $0x89] sm:$0x1] %vm925, 0.0
        %950 = vst.msk [vmem:[#allocation2 + $0xa1] sm:$0x1] %vm925, 0.0
        %951 = vst.msk [vmem:[#allocation2 + $0xb9] sm:$0x1] %vm925, 0.0
        %952 = vst.msk [vmem:[#allocation2 + $0xd1] sm:$0x1] %vm925, 0.0
        %953 = vst.msk [vmem:[#allocation2 + $0xe9] sm:$0x1] %vm925, 0.0
        %954 = vst.msk [vmem:[#allocation2 + $0x101] sm:$0x1] %vm925, 0.0
        %955 = vst.msk [vmem:[#allocation2 + $0x119] sm:$0x1] %vm925, 0.0
        %956 = vst.msk [vmem:[#allocation2 + $0x131] sm:$0x1] %vm925, 0.0
        %957 = vst.msk [vmem:[#allocation2 + $0x149] sm:$0x1] %vm925, 0.0
        %958 = vst.msk [vmem:[#allocation2 + $0x161] sm:$0x1] %vm925, 0.0
        %959 = vst.msk [vmem:[#allocation2 + $0x179] sm:$0x1] %vm925, 0.0
        %960 = vst.msk [vmem:[#allocation2 + $0x191] sm:$0x1] %vm925, 0.0
        %961 = vst.msk [vmem:[#allocation2 + $0x1a9] sm:$0x1] %vm925, 0.0
        %s962 = scalar_lea.vmem [#allocation2], 24
        %963 = vst.msk [vmem:[%s962 + $0x1] sm:$0xff] %vm916, %v884
        %964 = vst.msk [vmem:[%s962 + $0x9] sm:$0xff] %vm916, %v885
        %965 = vst.msk [vmem:[%s962 + $0x19] sm:$0xff] %vm916, %v886
        %966 = vst.msk [vmem:[%s962 + $0x21] sm:$0xff] %vm916, %v887
        %967 = vst.msk [vmem:[%s962 + $0x31] sm:$0xff] %vm916, %v888
        %968 = vst.msk [vmem:[%s962 + $0x39] sm:$0xff] %vm916, %v889
        %969 = vst.msk [vmem:[%s962 + $0x49] sm:$0xff] %vm916, %v890
        %970 = vst.msk [vmem:[%s962 + $0x51] sm:$0xff] %vm916, %v891
        %971 = vst.msk [vmem:[%s962 + $0x61] sm:$0xff] %vm916, %v892
        %972 = vst.msk [vmem:[%s962 + $0x69] sm:$0xff] %vm916, %v893
        %973 = vst.msk [vmem:[%s962 + $0x79] sm:$0xff] %vm916, %v894
        %974 = vst.msk [vmem:[%s962 + $0x81] sm:$0xff] %vm916, %v895
        %975 = vst.msk [vmem:[%s962 + $0x91] sm:$0xff] %vm916, %v896
        %976 = vst.msk [vmem:[%s962 + $0x99] sm:$0xff] %vm916, %v897
        %977 = vst.msk [vmem:[%s962 + $0xa9] sm:$0xff] %vm916, %v898
        %978 = vst.msk [vmem:[%s962 + $0xb1] sm:$0xff] %vm916, %v899
        %979 = vst.msk [vmem:[%s962 + $0xc1] sm:$0xff] %vm916, %v900
        %980 = vst.msk [vmem:[%s962 + $0xc9] sm:$0xff] %vm916, %v901
        %981 = vst.msk [vmem:[%s962 + $0xd9] sm:$0xff] %vm916, %v902
        %982 = vst.msk [vmem:[%s962 + $0xe1] sm:$0xff] %vm916, %v903
        %983 = vst.msk [vmem:[%s962 + $0xf1] sm:$0xff] %vm916, %v904
        %984 = vst.msk [vmem:[%s962 + $0xf9] sm:$0xff] %vm916, %v905
        %985 = vst.msk [vmem:[%s962 + $0x109] sm:$0xff] %vm916, %v906
        %986 = vst.msk [vmem:[%s962 + $0x111] sm:$0xff] %vm916, %v907
        %987 = vst.msk [vmem:[%s962 + $0x121] sm:$0xff] %vm916, %v908
        %988 = vst.msk [vmem:[%s962 + $0x129] sm:$0xff] %vm916, %v909
        %989 = vst.msk [vmem:[%s962 + $0x139] sm:$0xff] %vm916, %v910
        %990 = vst.msk [vmem:[%s962 + $0x141] sm:$0xff] %vm916, %v911
        %991 = vst.msk [vmem:[%s962 + $0x151] sm:$0xff] %vm916, %v912
        %992 = vst.msk [vmem:[%s962 + $0x159] sm:$0xff] %vm916, %v913
        %993 = vst.msk [vmem:[%s962 + $0x169] sm:$0xff] %vm916, %v914
        %994 = vst.msk [vmem:[%s962 + $0x171] sm:$0xff] %vm916, %v915
        %v995 = vld [vmem:[#allocation2] sm:$0xff]
        %v996 = vld [vmem:[#allocation2 + $0x8] sm:$0xff]
        %v997 = vld [vmem:[#allocation2 + $0x18] sm:$0xff]
        %v998 = vld [vmem:[#allocation2 + $0x20] sm:$0xff]
        %v999 = vld [vmem:[#allocation2 + $0x30] sm:$0xff]
        %v1000 = vld [vmem:[#allocation2 + $0x38] sm:$0xff]
        %v1001 = vld [vmem:[#allocation2 + $0x48] sm:$0xff]
        %v1002 = vld [vmem:[#allocation2 + $0x50] sm:$0xff]
        %v1003 = vld [vmem:[#allocation2 + $0x60] sm:$0xff]
        %v1004 = vld [vmem:[#allocation2 + $0x68] sm:$0xff]
        %v1005 = vld [vmem:[#allocation2 + $0x78] sm:$0xff]
        %v1006 = vld [vmem:[#allocation2 + $0x80] sm:$0xff]
        %v1007 = vld [vmem:[#allocation2 + $0x90] sm:$0xff]
        %v1008 = vld [vmem:[#allocation2 + $0x98] sm:$0xff]
        %v1009 = vld [vmem:[#allocation2 + $0xa8] sm:$0xff]
        %v1010 = vld [vmem:[#allocation2 + $0xb0] sm:$0xff]
        %v1011 = vld [vmem:[#allocation2 + $0xc0] sm:$0xff]
        %v1012 = vld [vmem:[#allocation2 + $0xc8] sm:$0xff]
        %v1013 = vld [vmem:[#allocation2 + $0xd8] sm:$0xff]
        %v1014 = vld [vmem:[#allocation2 + $0xe0] sm:$0xff]
        %v1015 = vld [vmem:[#allocation2 + $0xf0] sm:$0xff]
        %v1016 = vld [vmem:[#allocation2 + $0xf8] sm:$0xff]
        %v1017 = vld [vmem:[#allocation2 + $0x108] sm:$0xff]
        %v1018 = vld [vmem:[#allocation2 + $0x110] sm:$0xff]
        %v1019 = vld [vmem:[#allocation2 + $0x120] sm:$0xff]
        %v1020 = vld [vmem:[#allocation2 + $0x128] sm:$0xff]
        %v1021 = vld [vmem:[#allocation2 + $0x138] sm:$0xff]
        %v1022 = vld [vmem:[#allocation2 + $0x140] sm:$0xff]
        %v1023 = vld [vmem:[#allocation2 + $0x150] sm:$0xff]
        %v1024 = vld [vmem:[#allocation2 + $0x158] sm:$0xff]
        %v1025 = vld [vmem:[#allocation2 + $0x168] sm:$0xff]
        %v1026 = vld [vmem:[#allocation2 + $0x170] sm:$0xff]
        %v1027 = vpack.c.bf16 %v996, %v995
        %v1028 = vpack.c.bf16 %v998, %v997
        %v1029 = vpack.c.bf16 %v1000, %v999
        %v1030 = vpack.c.bf16 %v1002, %v1001
        %v1031 = vpack.c.bf16 %v1004, %v1003
        %v1032 = vpack.c.bf16 %v1006, %v1005
        %v1033 = vpack.c.bf16 %v1008, %v1007
        %v1034 = vpack.c.bf16 %v1010, %v1009
        %v1035 = vpack.c.bf16 %v1012, %v1011
        %v1036 = vpack.c.bf16 %v1014, %v1013
        %v1037 = vpack.c.bf16 %v1016, %v1015
        %v1038 = vpack.c.bf16 %v1018, %v1017
        %v1039 = vpack.c.bf16 %v1020, %v1019
        %v1040 = vpack.c.bf16 %v1022, %v1021
        %v1041 = vpack.c.bf16 %v1024, %v1023
        %v1042 = vpack.c.bf16 %v1026, %v1025
        %v1059 = vunpack.c.l.b16 %v1027
        %v1060 = vunpack.c.h.b16 %v1027
        %v1061 = vunpack.c.l.b16 %v1028
        %v1062 = vunpack.c.h.b16 %v1028
        %v1063 = vunpack.c.l.b16 %v1029
        %v1064 = vunpack.c.h.b16 %v1029
        %v1065 = vunpack.c.l.b16 %v1030
        %v1066 = vunpack.c.h.b16 %v1030
        %v1067 = vunpack.c.l.b16 %v1031
        %v1068 = vunpack.c.h.b16 %v1031
        %v1069 = vunpack.c.l.b16 %v1032
        %v1070 = vunpack.c.h.b16 %v1032
        %v1071 = vunpack.c.l.b16 %v1033
        %v1072 = vunpack.c.h.b16 %v1033
        %v1073 = vunpack.c.l.b16 %v1034
        %v1074 = vunpack.c.h.b16 %v1034
        %v1075 = vunpack.c.l.b16 %v1035
        %v1076 = vunpack.c.h.b16 %v1035
        %v1077 = vunpack.c.l.b16 %v1036
        %v1078 = vunpack.c.h.b16 %v1036
        %v1079 = vunpack.c.l.b16 %v1037
        %v1080 = vunpack.c.h.b16 %v1037
        %v1081 = vunpack.c.l.b16 %v1038
        %v1082 = vunpack.c.h.b16 %v1038
        %v1083 = vunpack.c.l.b16 %v1039
        %v1084 = vunpack.c.h.b16 %v1039
        %v1085 = vunpack.c.l.b16 %v1040
        %v1086 = vunpack.c.h.b16 %v1040
        %v1087 = vunpack.c.l.b16 %v1041
        %v1088 = vunpack.c.h.b16 %v1041
        %v1089 = vunpack.c.l.b16 %v1042
        %v1090 = vunpack.c.h.b16 %v1042
        %v1091 = vpack.c.b16 %v1059, %v1059
        %v1092 = vpack.c.b16 %v1060, %v1060
        %v1093 = vpack.c.b16 %v1061, %v1061
        %v1094 = vpack.c.b16 %v1062, %v1062
        %v1095 = vpack.c.b16 %v1063, %v1063
        %v1096 = vpack.c.b16 %v1064, %v1064
        %v1097 = vpack.c.b16 %v1065, %v1065
        %v1098 = vpack.c.b16 %v1066, %v1066
        %v1099 = vpack.c.b16 %v1067, %v1067
        %v1100 = vpack.c.b16 %v1068, %v1068
        %v1101 = vpack.c.b16 %v1069, %v1069
        %v1102 = vpack.c.b16 %v1070, %v1070
        %v1103 = vpack.c.b16 %v1071, %v1071
        %v1104 = vpack.c.b16 %v1072, %v1072
        %v1105 = vpack.c.b16 %v1073, %v1073
        %v1106 = vpack.c.b16 %v1074, %v1074
        %v1107 = vpack.c.b16 %v1075, %v1075
        %v1108 = vpack.c.b16 %v1076, %v1076
        %v1109 = vpack.c.b16 %v1077, %v1077
        %v1110 = vpack.c.b16 %v1078, %v1078
        %v1111 = vpack.c.b16 %v1079, %v1079
        %v1112 = vpack.c.b16 %v1080, %v1080
        %v1113 = vpack.c.b16 %v1081, %v1081
        %v1114 = vpack.c.b16 %v1082, %v1082
        %v1115 = vpack.c.b16 %v1083, %v1083
        %v1116 = vpack.c.b16 %v1084, %v1084
        %v1117 = vpack.c.b16 %v1085, %v1085
        %v1118 = vpack.c.b16 %v1086, %v1086
        %v1119 = vpack.c.b16 %v1087, %v1087
        %v1120 = vpack.c.b16 %v1088, %v1088
        %v1121 = vpack.c.b16 %v1089, %v1089
        %v1122 = vpack.c.b16 %v1090, %v1090
        %vm1155 = vcmask 257024
        %1156 = vst.msk [vmem:[#allocation3] sm:$0xf] %vm1155, %v1091
        %1157 = vst.msk [vmem:[#allocation3 + $0xc] sm:$0xf] %vm1155, %v1092
        %1158 = vst.msk [vmem:[#allocation3 + $0x18] sm:$0xf] %vm1155, %v1093
        %1159 = vst.msk [vmem:[#allocation3 + $0x24] sm:$0xf] %vm1155, %v1094
        %1160 = vst.msk [vmem:[#allocation3 + $0x30] sm:$0xf] %vm1155, %v1095
        %1161 = vst.msk [vmem:[#allocation3 + $0x3c] sm:$0xf] %vm1155, %v1096
        %1162 = vst.msk [vmem:[#allocation3 + $0x48] sm:$0xf] %vm1155, %v1097
        %1163 = vst.msk [vmem:[#allocation3 + $0x54] sm:$0xf] %vm1155, %v1098
        %1164 = vst.msk [vmem:[#allocation3 + $0x60] sm:$0xf] %vm1155, %v1099
        %1165 = vst.msk [vmem:[#allocation3 + $0x6c] sm:$0xf] %vm1155, %v1100
        %1166 = vst.msk [vmem:[#allocation3 + $0x78] sm:$0xf] %vm1155, %v1101
        %1167 = vst.msk [vmem:[#allocation3 + $0x84] sm:$0xf] %vm1155, %v1102
        %1168 = vst.msk [vmem:[#allocation3 + $0x90] sm:$0xf] %vm1155, %v1103
        %1169 = vst.msk [vmem:[#allocation3 + $0x9c] sm:$0xf] %vm1155, %v1104
        %1170 = vst.msk [vmem:[#allocation3 + $0xa8] sm:$0xf] %vm1155, %v1105
        %1171 = vst.msk [vmem:[#allocation3 + $0xb4] sm:$0xf] %vm1155, %v1106
        %1172 = vst.msk [vmem:[#allocation3 + $0xc0] sm:$0xf] %vm1155, %v1107
        %1173 = vst.msk [vmem:[#allocation3 + $0xcc] sm:$0xf] %vm1155, %v1108
        %1174 = vst.msk [vmem:[#allocation3 + $0xd8] sm:$0xf] %vm1155, %v1109
        %1175 = vst.msk [vmem:[#allocation3 + $0xe4] sm:$0xf] %vm1155, %v1110
        %1176 = vst.msk [vmem:[#allocation3 + $0xf0] sm:$0xf] %vm1155, %v1111
        %1177 = vst.msk [vmem:[#allocation3 + $0xfc] sm:$0xf] %vm1155, %v1112
        %1178 = vst.msk [vmem:[#allocation3 + $0x108] sm:$0xf] %vm1155, %v1113
        %1179 = vst.msk [vmem:[#allocation3 + $0x114] sm:$0xf] %vm1155, %v1114
        %1180 = vst.msk [vmem:[#allocation3 + $0x120] sm:$0xf] %vm1155, %v1115
        %1181 = vst.msk [vmem:[#allocation3 + $0x12c] sm:$0xf] %vm1155, %v1116
        %1182 = vst.msk [vmem:[#allocation3 + $0x138] sm:$0xf] %vm1155, %v1117
        %1183 = vst.msk [vmem:[#allocation3 + $0x144] sm:$0xf] %vm1155, %v1118
        %1184 = vst.msk [vmem:[#allocation3 + $0x150] sm:$0xf] %vm1155, %v1119
        %1185 = vst.msk [vmem:[#allocation3 + $0x15c] sm:$0xf] %vm1155, %v1120
        %1186 = vst.msk [vmem:[#allocation3 + $0x168] sm:$0xf] %vm1155, %v1121
        %1187 = vst.msk [vmem:[#allocation3 + $0x174] sm:$0xf] %vm1155, %v1122
        %v1188 = vld [vmem:[#allocation2 + $0x1] sm:$0xff]
        %v1189 = vld [vmem:[#allocation2 + $0x9] sm:$0xff]
        %v1190 = vld [vmem:[#allocation2 + $0x19] sm:$0xff]
        %v1191 = vld [vmem:[#allocation2 + $0x21] sm:$0xff]
        %v1192 = vld [vmem:[#allocation2 + $0x31] sm:$0xff]
        %v1193 = vld [vmem:[#allocation2 + $0x39] sm:$0xff]
        %v1194 = vld [vmem:[#allocation2 + $0x49] sm:$0xff]
        %v1195 = vld [vmem:[#allocation2 + $0x51] sm:$0xff]
        %v1196 = vld [vmem:[#allocation2 + $0x61] sm:$0xff]
        %v1197 = vld [vmem:[#allocation2 + $0x69] sm:$0xff]
        %v1198 = vld [vmem:[#allocation2 + $0x79] sm:$0xff]
        %v1199 = vld [vmem:[#allocation2 + $0x81] sm:$0xff]
        %v1200 = vld [vmem:[#allocation2 + $0x91] sm:$0xff]
        %v1201 = vld [vmem:[#allocation2 + $0x99] sm:$0xff]
        %v1202 = vld [vmem:[#allocation2 + $0xa9] sm:$0xff]
        %v1203 = vld [vmem:[#allocation2 + $0xb1] sm:$0xff]
        %v1204 = vld [vmem:[#allocation2 + $0xc1] sm:$0xff]
        %v1205 = vld [vmem:[#allocation2 + $0xc9] sm:$0xff]
        %v1206 = vld [vmem:[#allocation2 + $0xd9] sm:$0xff]
        %v1207 = vld [vmem:[#allocation2 + $0xe1] sm:$0xff]
        %v1208 = vld [vmem:[#allocation2 + $0xf1] sm:$0xff]
        %v1209 = vld [vmem:[#allocation2 + $0xf9] sm:$0xff]
        %v1210 = vld [vmem:[#allocation2 + $0x109] sm:$0xff]
        %v1211 = vld [vmem:[#allocation2 + $0x111] sm:$0xff]
        %v1212 = vld [vmem:[#allocation2 + $0x121] sm:$0xff]
        %v1213 = vld [vmem:[#allocation2 + $0x129] sm:$0xff]
        %v1214 = vld [vmem:[#allocation2 + $0x139] sm:$0xff]
        %v1215 = vld [vmem:[#allocation2 + $0x141] sm:$0xff]
        %v1216 = vld [vmem:[#allocation2 + $0x151] sm:$0xff]
        %v1217 = vld [vmem:[#allocation2 + $0x159] sm:$0xff]
        %v1218 = vld [vmem:[#allocation2 + $0x169] sm:$0xff]
        %v1219 = vld [vmem:[#allocation2 + $0x171] sm:$0xff]
        %v1220 = vpack.c.bf16 %v1189, %v1188
        %v1221 = vpack.c.bf16 %v1191, %v1190
        %v1222 = vpack.c.bf16 %v1193, %v1192
        %v1223 = vpack.c.bf16 %v1195, %v1194
        %v1224 = vpack.c.bf16 %v1197, %v1196
        %v1225 = vpack.c.bf16 %v1199, %v1198
        %v1226 = vpack.c.bf16 %v1201, %v1200
        %v1227 = vpack.c.bf16 %v1203, %v1202
        %v1228 = vpack.c.bf16 %v1205, %v1204
        %v1229 = vpack.c.bf16 %v1207, %v1206
        %v1230 = vpack.c.bf16 %v1209, %v1208
        %v1231 = vpack.c.bf16 %v1211, %v1210
        %v1232 = vpack.c.bf16 %v1213, %v1212
        %v1233 = vpack.c.bf16 %v1215, %v1214
        %v1234 = vpack.c.bf16 %v1217, %v1216
        %v1235 = vpack.c.bf16 %v1219, %v1218
        %v1252 = vunpack.c.l.b16 %v1220
        %v1253 = vunpack.c.h.b16 %v1220
        %v1254 = vunpack.c.l.b16 %v1221
        %v1255 = vunpack.c.h.b16 %v1221
        %v1256 = vunpack.c.l.b16 %v1222
        %v1257 = vunpack.c.h.b16 %v1222
        %v1258 = vunpack.c.l.b16 %v1223
        %v1259 = vunpack.c.h.b16 %v1223
        %v1260 = vunpack.c.l.b16 %v1224
        %v1261 = vunpack.c.h.b16 %v1224
        %v1262 = vunpack.c.l.b16 %v1225
        %v1263 = vunpack.c.h.b16 %v1225
        %v1264 = vunpack.c.l.b16 %v1226
        %v1265 = vunpack.c.h.b16 %v1226
        %v1266 = vunpack.c.l.b16 %v1227
        %v1267 = vunpack.c.h.b16 %v1227
        %v1268 = vunpack.c.l.b16 %v1228
        %v1269 = vunpack.c.h.b16 %v1228
        %v1270 = vunpack.c.l.b16 %v1229
        %v1271 = vunpack.c.h.b16 %v1229
        %v1272 = vunpack.c.l.b16 %v1230
        %v1273 = vunpack.c.h.b16 %v1230
        %v1274 = vunpack.c.l.b16 %v1231
        %v1275 = vunpack.c.h.b16 %v1231
        %v1276 = vunpack.c.l.b16 %v1232
        %v1277 = vunpack.c.h.b16 %v1232
        %v1278 = vunpack.c.l.b16 %v1233
        %v1279 = vunpack.c.h.b16 %v1233
        %v1280 = vunpack.c.l.b16 %v1234
        %v1281 = vunpack.c.h.b16 %v1234
        %v1282 = vunpack.c.l.b16 %v1235
        %v1283 = vunpack.c.h.b16 %v1235
        %v1284 = vpack.c.b16 %v1252, %v1252
        %v1285 = vpack.c.b16 %v1253, %v1253
        %v1286 = vpack.c.b16 %v1254, %v1254
        %v1287 = vpack.c.b16 %v1255, %v1255
        %v1288 = vpack.c.b16 %v1256, %v1256
        %v1289 = vpack.c.b16 %v1257, %v1257
        %v1290 = vpack.c.b16 %v1258, %v1258
        %v1291 = vpack.c.b16 %v1259, %v1259
        %v1292 = vpack.c.b16 %v1260, %v1260
        %v1293 = vpack.c.b16 %v1261, %v1261
        %v1294 = vpack.c.b16 %v1262, %v1262
        %v1295 = vpack.c.b16 %v1263, %v1263
        %v1296 = vpack.c.b16 %v1264, %v1264
        %v1297 = vpack.c.b16 %v1265, %v1265
        %v1298 = vpack.c.b16 %v1266, %v1266
        %v1299 = vpack.c.b16 %v1267, %v1267
        %v1300 = vpack.c.b16 %v1268, %v1268
        %v1301 = vpack.c.b16 %v1269, %v1269
        %v1302 = vpack.c.b16 %v1270, %v1270
        %v1303 = vpack.c.b16 %v1271, %v1271
        %v1304 = vpack.c.b16 %v1272, %v1272
        %v1305 = vpack.c.b16 %v1273, %v1273
        %v1306 = vpack.c.b16 %v1274, %v1274
        %v1307 = vpack.c.b16 %v1275, %v1275
        %v1308 = vpack.c.b16 %v1276, %v1276
        %v1309 = vpack.c.b16 %v1277, %v1277
        %v1310 = vpack.c.b16 %v1278, %v1278
        %v1311 = vpack.c.b16 %v1279, %v1279
        %v1312 = vpack.c.b16 %v1280, %v1280
        %v1313 = vpack.c.b16 %v1281, %v1281
        %v1314 = vpack.c.b16 %v1282, %v1282
        %v1315 = vpack.c.b16 %v1283, %v1283
        %1316 = vrot.lane.b32.xlu0 %v1284, 32
        %v1317 = vpop.permute.xlu0 %1316
        %1318 = vrot.lane.b32.xlu0 %v1285, 32
        %v1319 = vpop.permute.xlu0 %1318
        %1320 = vrot.lane.b32.xlu0 %v1286, 32
        %v1321 = vpop.permute.xlu0 %1320
        %1322 = vrot.lane.b32.xlu0 %v1287, 32
        %v1323 = vpop.permute.xlu0 %1322
        %1324 = vrot.lane.b32.xlu0 %v1288, 32
        %v1325 = vpop.permute.xlu0 %1324
        %1326 = vrot.lane.b32.xlu0 %v1289, 32
        %v1327 = vpop.permute.xlu0 %1326
        %1328 = vrot.lane.b32.xlu0 %v1290, 32
        %v1329 = vpop.permute.xlu0 %1328
        %1330 = vrot.lane.b32.xlu0 %v1291, 32
        %v1331 = vpop.permute.xlu0 %1330
        %1332 = vrot.lane.b32.xlu0 %v1292, 32
        %v1333 = vpop.permute.xlu0 %1332
        %1334 = vrot.lane.b32.xlu0 %v1293, 32
        %v1335 = vpop.permute.xlu0 %1334
        %1336 = vrot.lane.b32.xlu0 %v1294, 32
        %v1337 = vpop.permute.xlu0 %1336
        %1338 = vrot.lane.b32.xlu0 %v1295, 32
        %v1339 = vpop.permute.xlu0 %1338
        %1340 = vrot.lane.b32.xlu0 %v1296, 32
        %v1341 = vpop.permute.xlu0 %1340
        %1342 = vrot.lane.b32.xlu0 %v1297, 32
        %v1343 = vpop.permute.xlu0 %1342
        %1344 = vrot.lane.b32.xlu0 %v1298, 32
        %v1345 = vpop.permute.xlu0 %1344
        %1346 = vrot.lane.b32.xlu0 %v1299, 32
        %v1347 = vpop.permute.xlu0 %1346
        %1348 = vrot.lane.b32.xlu0 %v1300, 32
        %v1349 = vpop.permute.xlu0 %1348
        %1350 = vrot.lane.b32.xlu0 %v1301, 32
        %v1351 = vpop.permute.xlu0 %1350
        %1352 = vrot.lane.b32.xlu0 %v1302, 32
        %v1353 = vpop.permute.xlu0 %1352
        %1354 = vrot.lane.b32.xlu0 %v1303, 32
        %v1355 = vpop.permute.xlu0 %1354
        %1356 = vrot.lane.b32.xlu0 %v1304, 32
        %v1357 = vpop.permute.xlu0 %1356
        %1358 = vrot.lane.b32.xlu0 %v1305, 32
        %v1359 = vpop.permute.xlu0 %1358
        %1360 = vrot.lane.b32.xlu0 %v1306, 32
        %v1361 = vpop.permute.xlu0 %1360
        %1362 = vrot.lane.b32.xlu0 %v1307, 32
        %v1363 = vpop.permute.xlu0 %1362
        %1364 = vrot.lane.b32.xlu0 %v1308, 32
        %v1365 = vpop.permute.xlu0 %1364
        %1366 = vrot.lane.b32.xlu0 %v1309, 32
        %v1367 = vpop.permute.xlu0 %1366
        %1368 = vrot.lane.b32.xlu0 %v1310, 32
        %v1369 = vpop.permute.xlu0 %1368
        %1370 = vrot.lane.b32.xlu0 %v1311, 32
        %v1371 = vpop.permute.xlu0 %1370
        %1372 = vrot.lane.b32.xlu0 %v1312, 32
        %v1373 = vpop.permute.xlu0 %1372
        %1374 = vrot.lane.b32.xlu0 %v1313, 32
        %v1375 = vpop.permute.xlu0 %1374
        %1376 = vrot.lane.b32.xlu0 %v1314, 32
        %v1377 = vpop.permute.xlu0 %1376
        %1378 = vrot.lane.b32.xlu0 %v1315, 32
        %v1379 = vpop.permute.xlu0 %1378
        %vm1412 = vcmask 519424
        %1413 = vst.msk [vmem:[#allocation3] sm:$0xf] %vm1412, %v1317
        %1414 = vst.msk [vmem:[#allocation3 + $0xc] sm:$0xf] %vm1412, %v1319
        %1415 = vst.msk [vmem:[#allocation3 + $0x18] sm:$0xf] %vm1412, %v1321
        %1416 = vst.msk [vmem:[#allocation3 + $0x24] sm:$0xf] %vm1412, %v1323
        %1417 = vst.msk [vmem:[#allocation3 + $0x30] sm:$0xf] %vm1412, %v1325
        %1418 = vst.msk [vmem:[#allocation3 + $0x3c] sm:$0xf] %vm1412, %v1327
        %1419 = vst.msk [vmem:[#allocation3 + $0x48] sm:$0xf] %vm1412, %v1329
        %1420 = vst.msk [vmem:[#allocation3 + $0x54] sm:$0xf] %vm1412, %v1331
        %1421 = vst.msk [vmem:[#allocation3 + $0x60] sm:$0xf] %vm1412, %v1333
        %1422 = vst.msk [vmem:[#allocation3 + $0x6c] sm:$0xf] %vm1412, %v1335
        %1423 = vst.msk [vmem:[#allocation3 + $0x78] sm:$0xf] %vm1412, %v1337
        %1424 = vst.msk [vmem:[#allocation3 + $0x84] sm:$0xf] %vm1412, %v1339
        %1425 = vst.msk [vmem:[#allocation3 + $0x90] sm:$0xf] %vm1412, %v1341
        %1426 = vst.msk [vmem:[#allocation3 + $0x9c] sm:$0xf] %vm1412, %v1343
        %1427 = vst.msk [vmem:[#allocation3 + $0xa8] sm:$0xf] %vm1412, %v1345
        %1428 = vst.msk [vmem:[#allocation3 + $0xb4] sm:$0xf] %vm1412, %v1347
        %1429 = vst.msk [vmem:[#allocation3 + $0xc0] sm:$0xf] %vm1412, %v1349
        %1430 = vst.msk [vmem:[#allocation3 + $0xcc] sm:$0xf] %vm1412, %v1351
        %1431 = vst.msk [vmem:[#allocation3 + $0xd8] sm:$0xf] %vm1412, %v1353
        %1432 = vst.msk [vmem:[#allocation3 + $0xe4] sm:$0xf] %vm1412, %v1355
        %1433 = vst.msk [vmem:[#allocation3 + $0xf0] sm:$0xf] %vm1412, %v1357
        %1434 = vst.msk [vmem:[#allocation3 + $0xfc] sm:$0xf] %vm1412, %v1359
        %1435 = vst.msk [vmem:[#allocation3 + $0x108] sm:$0xf] %vm1412, %v1361
        %1436 = vst.msk [vmem:[#allocation3 + $0x114] sm:$0xf] %vm1412, %v1363
        %1437 = vst.msk [vmem:[#allocation3 + $0x120] sm:$0xf] %vm1412, %v1365
        %1438 = vst.msk [vmem:[#allocation3 + $0x12c] sm:$0xf] %vm1412, %v1367
        %1439 = vst.msk [vmem:[#allocation3 + $0x138] sm:$0xf] %vm1412, %v1369
        %1440 = vst.msk [vmem:[#allocation3 + $0x144] sm:$0xf] %vm1412, %v1371
        %1441 = vst.msk [vmem:[#allocation3 + $0x150] sm:$0xf] %vm1412, %v1373
        %1442 = vst.msk [vmem:[#allocation3 + $0x15c] sm:$0xf] %vm1412, %v1375
        %1443 = vst.msk [vmem:[#allocation3 + $0x168] sm:$0xf] %vm1412, %v1377
        %1444 = vst.msk [vmem:[#allocation3 + $0x174] sm:$0xf] %vm1412, %v1379
        %v1445 = vld [vmem:[#allocation2 + $0x2] sm:$0xff]
        %v1446 = vld [vmem:[#allocation2 + $0xa] sm:$0xff]
        %v1447 = vld [vmem:[#allocation2 + $0x1a] sm:$0xff]
        %v1448 = vld [vmem:[#allocation2 + $0x22] sm:$0xff]
        %v1449 = vld [vmem:[#allocation2 + $0x32] sm:$0xff]
        %v1450 = vld [vmem:[#allocation2 + $0x3a] sm:$0xff]
        %v1451 = vld [vmem:[#allocation2 + $0x4a] sm:$0xff]
        %v1452 = vld [vmem:[#allocation2 + $0x52] sm:$0xff]
        %v1453 = vld [vmem:[#allocation2 + $0x62] sm:$0xff]
        %v1454 = vld [vmem:[#allocation2 + $0x6a] sm:$0xff]
        %v1455 = vld [vmem:[#allocation2 + $0x7a] sm:$0xff]
        %v1456 = vld [vmem:[#allocation2 + $0x82] sm:$0xff]
        %v1457 = vld [vmem:[#allocation2 + $0x92] sm:$0xff]
        %v1458 = vld [vmem:[#allocation2 + $0x9a] sm:$0xff]
        %v1459 = vld [vmem:[#allocation2 + $0xaa] sm:$0xff]
        %v1460 = vld [vmem:[#allocation2 + $0xb2] sm:$0xff]
        %v1461 = vld [vmem:[#allocation2 + $0xc2] sm:$0xff]
        %v1462 = vld [vmem:[#allocation2 + $0xca] sm:$0xff]
        %v1463 = vld [vmem:[#allocation2 + $0xda] sm:$0xff]
        %v1464 = vld [vmem:[#allocation2 + $0xe2] sm:$0xff]
        %v1465 = vld [vmem:[#allocation2 + $0xf2] sm:$0xff]
        %v1466 = vld [vmem:[#allocation2 + $0xfa] sm:$0xff]
        %v1467 = vld [vmem:[#allocation2 + $0x10a] sm:$0xff]
        %v1468 = vld [vmem:[#allocation2 + $0x112] sm:$0xff]
        %v1469 = vld [vmem:[#allocation2 + $0x122] sm:$0xff]
        %v1470 = vld [vmem:[#allocation2 + $0x12a] sm:$0xff]
        %v1471 = vld [vmem:[#allocation2 + $0x13a] sm:$0xff]
        %v1472 = vld [vmem:[#allocation2 + $0x142] sm:$0xff]
        %v1473 = vld [vmem:[#allocation2 + $0x152] sm:$0xff]
        %v1474 = vld [vmem:[#allocation2 + $0x15a] sm:$0xff]
        %v1475 = vld [vmem:[#allocation2 + $0x16a] sm:$0xff]
        %v1476 = vld [vmem:[#allocation2 + $0x172] sm:$0xff]
        %v1477 = vpack.c.bf16 %v1446, %v1445
        %v1478 = vpack.c.bf16 %v1448, %v1447
        %v1479 = vpack.c.bf16 %v1450, %v1449
        %v1480 = vpack.c.bf16 %v1452, %v1451
        %v1481 = vpack.c.bf16 %v1454, %v1453
        %v1482 = vpack.c.bf16 %v1456, %v1455
        %v1483 = vpack.c.bf16 %v1458, %v1457
        %v1484 = vpack.c.bf16 %v1460, %v1459
        %v1485 = vpack.c.bf16 %v1462, %v1461
        %v1486 = vpack.c.bf16 %v1464, %v1463
        %v1487 = vpack.c.bf16 %v1466, %v1465
        %v1488 = vpack.c.bf16 %v1468, %v1467
        %v1489 = vpack.c.bf16 %v1470, %v1469
        %v1490 = vpack.c.bf16 %v1472, %v1471
        %v1491 = vpack.c.bf16 %v1474, %v1473
        %v1492 = vpack.c.bf16 %v1476, %v1475
        %v1509 = vunpack.c.l.b16 %v1477
        %v1510 = vunpack.c.h.b16 %v1477
        %v1511 = vunpack.c.l.b16 %v1478
        %v1512 = vunpack.c.h.b16 %v1478
        %v1513 = vunpack.c.l.b16 %v1479
        %v1514 = vunpack.c.h.b16 %v1479
        %v1515 = vunpack.c.l.b16 %v1480
        %v1516 = vunpack.c.h.b16 %v1480
        %v1517 = vunpack.c.l.b16 %v1481
        %v1518 = vunpack.c.h.b16 %v1481
        %v1519 = vunpack.c.l.b16 %v1482
        %v1520 = vunpack.c.h.b16 %v1482
        %v1521 = vunpack.c.l.b16 %v1483
        %v1522 = vunpack.c.h.b16 %v1483
        %v1523 = vunpack.c.l.b16 %v1484
        %v1524 = vunpack.c.h.b16 %v1484
        %v1525 = vunpack.c.l.b16 %v1485
        %v1526 = vunpack.c.h.b16 %v1485
        %v1527 = vunpack.c.l.b16 %v1486
        %v1528 = vunpack.c.h.b16 %v1486
        %v1529 = vunpack.c.l.b16 %v1487
        %v1530 = vunpack.c.h.b16 %v1487
        %v1531 = vunpack.c.l.b16 %v1488
        %v1532 = vunpack.c.h.b16 %v1488
        %v1533 = vunpack.c.l.b16 %v1489
        %v1534 = vunpack.c.h.b16 %v1489
        %v1535 = vunpack.c.l.b16 %v1490
        %v1536 = vunpack.c.h.b16 %v1490
        %v1537 = vunpack.c.l.b16 %v1491
        %v1538 = vunpack.c.h.b16 %v1491
        %v1539 = vunpack.c.l.b16 %v1492
        %v1540 = vunpack.c.h.b16 %v1492
        %v1541 = vpack.c.b16 %v1509, %v1509
        %v1542 = vpack.c.b16 %v1510, %v1510
        %v1543 = vpack.c.b16 %v1511, %v1511
        %v1544 = vpack.c.b16 %v1512, %v1512
        %v1545 = vpack.c.b16 %v1513, %v1513
        %v1546 = vpack.c.b16 %v1514, %v1514
        %v1547 = vpack.c.b16 %v1515, %v1515
        %v1548 = vpack.c.b16 %v1516, %v1516
        %v1549 = vpack.c.b16 %v1517, %v1517
        %v1550 = vpack.c.b16 %v1518, %v1518
        %v1551 = vpack.c.b16 %v1519, %v1519
        %v1552 = vpack.c.b16 %v1520, %v1520
        %v1553 = vpack.c.b16 %v1521, %v1521
        %v1554 = vpack.c.b16 %v1522, %v1522
        %v1555 = vpack.c.b16 %v1523, %v1523
        %v1556 = vpack.c.b16 %v1524, %v1524
        %v1557 = vpack.c.b16 %v1525, %v1525
        %v1558 = vpack.c.b16 %v1526, %v1526
        %v1559 = vpack.c.b16 %v1527, %v1527
        %v1560 = vpack.c.b16 %v1528, %v1528
        %v1561 = vpack.c.b16 %v1529, %v1529
        %v1562 = vpack.c.b16 %v1530, %v1530
        %v1563 = vpack.c.b16 %v1531, %v1531
        %v1564 = vpack.c.b16 %v1532, %v1532
        %v1565 = vpack.c.b16 %v1533, %v1533
        %v1566 = vpack.c.b16 %v1534, %v1534
        %v1567 = vpack.c.b16 %v1535, %v1535
        %v1568 = vpack.c.b16 %v1536, %v1536
        %v1569 = vpack.c.b16 %v1537, %v1537
        %v1570 = vpack.c.b16 %v1538, %v1538
        %v1571 = vpack.c.b16 %v1539, %v1539
        %v1572 = vpack.c.b16 %v1540, %v1540
        %1573 = vrot.lane.b32.xlu0 %v1541, 64
        %v1574 = vpop.permute.xlu0 %1573
        %1575 = vrot.lane.b32.xlu0 %v1542, 64
        %v1576 = vpop.permute.xlu0 %1575
        %1577 = vrot.lane.b32.xlu0 %v1543, 64
        %v1578 = vpop.permute.xlu0 %1577
        %1579 = vrot.lane.b32.xlu0 %v1544, 64
        %v1580 = vpop.permute.xlu0 %1579
        %1581 = vrot.lane.b32.xlu0 %v1545, 64
        %v1582 = vpop.permute.xlu0 %1581
        %1583 = vrot.lane.b32.xlu0 %v1546, 64
        %v1584 = vpop.permute.xlu0 %1583
        %1585 = vrot.lane.b32.xlu0 %v1547, 64
        %v1586 = vpop.permute.xlu0 %1585
        %1587 = vrot.lane.b32.xlu0 %v1548, 64
        %v1588 = vpop.permute.xlu0 %1587
        %1589 = vrot.lane.b32.xlu0 %v1549, 64
        %v1590 = vpop.permute.xlu0 %1589
        %1591 = vrot.lane.b32.xlu0 %v1550, 64
        %v1592 = vpop.permute.xlu0 %1591
        %1593 = vrot.lane.b32.xlu0 %v1551, 64
        %v1594 = vpop.permute.xlu0 %1593
        %1595 = vrot.lane.b32.xlu0 %v1552, 64
        %v1596 = vpop.permute.xlu0 %1595
        %1597 = vrot.lane.b32.xlu0 %v1553, 64
        %v1598 = vpop.permute.xlu0 %1597
        %1599 = vrot.lane.b32.xlu0 %v1554, 64
        %v1600 = vpop.permute.xlu0 %1599
        %1601 = vrot.lane.b32.xlu0 %v1555, 64
        %v1602 = vpop.permute.xlu0 %1601
        %1603 = vrot.lane.b32.xlu0 %v1556, 64
        %v1604 = vpop.permute.xlu0 %1603
        %1605 = vrot.lane.b32.xlu0 %v1557, 64
        %v1606 = vpop.permute.xlu0 %1605
        %1607 = vrot.lane.b32.xlu0 %v1558, 64
        %v1608 = vpop.permute.xlu0 %1607
        %1609 = vrot.lane.b32.xlu0 %v1559, 64
        %v1610 = vpop.permute.xlu0 %1609
        %1611 = vrot.lane.b32.xlu0 %v1560, 64
        %v1612 = vpop.permute.xlu0 %1611
        %1613 = vrot.lane.b32.xlu0 %v1561, 64
        %v1614 = vpop.permute.xlu0 %1613
        %1615 = vrot.lane.b32.xlu0 %v1562, 64
        %v1616 = vpop.permute.xlu0 %1615
        %1617 = vrot.lane.b32.xlu0 %v1563, 64
        %v1618 = vpop.permute.xlu0 %1617
        %1619 = vrot.lane.b32.xlu0 %v1564, 64
        %v1620 = vpop.permute.xlu0 %1619
        %1621 = vrot.lane.b32.xlu0 %v1565, 64
        %v1622 = vpop.permute.xlu0 %1621
        %1623 = vrot.lane.b32.xlu0 %v1566, 64
        %v1624 = vpop.permute.xlu0 %1623
        %1625 = vrot.lane.b32.xlu0 %v1567, 64
        %v1626 = vpop.permute.xlu0 %1625
        %1627 = vrot.lane.b32.xlu0 %v1568, 64
        %v1628 = vpop.permute.xlu0 %1627
        %1629 = vrot.lane.b32.xlu0 %v1569, 64
        %v1630 = vpop.permute.xlu0 %1629
        %1631 = vrot.lane.b32.xlu0 %v1570, 64
        %v1632 = vpop.permute.xlu0 %1631
        %1633 = vrot.lane.b32.xlu0 %v1571, 64
        %v1634 = vpop.permute.xlu0 %1633
        %1635 = vrot.lane.b32.xlu0 %v1572, 64
        %v1636 = vpop.permute.xlu0 %1635
        %vm1669 = vcmask 781824
        %1670 = vst.msk [vmem:[#allocation3] sm:$0xf] %vm1669, %v1574
        %1671 = vst.msk [vmem:[#allocation3 + $0xc] sm:$0xf] %vm1669, %v1576
        %1672 = vst.msk [vmem:[#allocation3 + $0x18] sm:$0xf] %vm1669, %v1578
        %1673 = vst.msk [vmem:[#allocation3 + $0x24] sm:$0xf] %vm1669, %v1580
        %1674 = vst.msk [vmem:[#allocation3 + $0x30] sm:$0xf] %vm1669, %v1582
        %1675 = vst.msk [vmem:[#allocation3 + $0x3c] sm:$0xf] %vm1669, %v1584
        %1676 = vst.msk [vmem:[#allocation3 + $0x48] sm:$0xf] %vm1669, %v1586
        %1677 = vst.msk [vmem:[#allocation3 + $0x54] sm:$0xf] %vm1669, %v1588
        %1678 = vst.msk [vmem:[#allocation3 + $0x60] sm:$0xf] %vm1669, %v1590
        %1679 = vst.msk [vmem:[#allocation3 + $0x6c] sm:$0xf] %vm1669, %v1592
        %1680 = vst.msk [vmem:[#allocation3 + $0x78] sm:$0xf] %vm1669, %v1594
        %1681 = vst.msk [vmem:[#allocation3 + $0x84] sm:$0xf] %vm1669, %v1596
        %1682 = vst.msk [vmem:[#allocation3 + $0x90] sm:$0xf] %vm1669, %v1598
        %1683 = vst.msk [vmem:[#allocation3 + $0x9c] sm:$0xf] %vm1669, %v1600
        %1684 = vst.msk [vmem:[#allocation3 + $0xa8] sm:$0xf] %vm1669, %v1602
        %1685 = vst.msk [vmem:[#allocation3 + $0xb4] sm:$0xf] %vm1669, %v1604
        %1686 = vst.msk [vmem:[#allocation3 + $0xc0] sm:$0xf] %vm1669, %v1606
        %1687 = vst.msk [vmem:[#allocation3 + $0xcc] sm:$0xf] %vm1669, %v1608
        %1688 = vst.msk [vmem:[#allocation3 + $0xd8] sm:$0xf] %vm1669, %v1610
        %1689 = vst.msk [vmem:[#allocation3 + $0xe4] sm:$0xf] %vm1669, %v1612
        %1690 = vst.msk [vmem:[#allocation3 + $0xf0] sm:$0xf] %vm1669, %v1614
        %1691 = vst.msk [vmem:[#allocation3 + $0xfc] sm:$0xf] %vm1669, %v1616
        %1692 = vst.msk [vmem:[#allocation3 + $0x108] sm:$0xf] %vm1669, %v1618
        %1693 = vst.msk [vmem:[#allocation3 + $0x114] sm:$0xf] %vm1669, %v1620
        %1694 = vst.msk [vmem:[#allocation3 + $0x120] sm:$0xf] %vm1669, %v1622
        %1695 = vst.msk [vmem:[#allocation3 + $0x12c] sm:$0xf] %vm1669, %v1624
        %1696 = vst.msk [vmem:[#allocation3 + $0x138] sm:$0xf] %vm1669, %v1626
        %1697 = vst.msk [vmem:[#allocation3 + $0x144] sm:$0xf] %vm1669, %v1628
        %1698 = vst.msk [vmem:[#allocation3 + $0x150] sm:$0xf] %vm1669, %v1630
        %1699 = vst.msk [vmem:[#allocation3 + $0x15c] sm:$0xf] %vm1669, %v1632
        %1700 = vst.msk [vmem:[#allocation3 + $0x168] sm:$0xf] %vm1669, %v1634
        %1701 = vst.msk [vmem:[#allocation3 + $0x174] sm:$0xf] %vm1669, %v1636
        %v1702 = vld [vmem:[%s962] sm:$0xff]
        %v1703 = vld [vmem:[%s962 + $0x8] sm:$0xff]
        %v1704 = vld [vmem:[%s962 + $0x18] sm:$0xff]
        %v1705 = vld [vmem:[%s962 + $0x20] sm:$0xff]
        %v1706 = vld [vmem:[%s962 + $0x30] sm:$0xff]
        %v1707 = vld [vmem:[%s962 + $0x38] sm:$0xff]
        %v1708 = vld [vmem:[%s962 + $0x48] sm:$0xff]
        %v1709 = vld [vmem:[%s962 + $0x50] sm:$0xff]
        %v1710 = vld [vmem:[%s962 + $0x60] sm:$0xff]
        %v1711 = vld [vmem:[%s962 + $0x68] sm:$0xff]
        %v1712 = vld [vmem:[%s962 + $0x78] sm:$0xff]
        %v1713 = vld [vmem:[%s962 + $0x80] sm:$0xff]
        %v1714 = vld [vmem:[%s962 + $0x90] sm:$0xff]
        %v1715 = vld [vmem:[%s962 + $0x98] sm:$0xff]
        %v1716 = vld [vmem:[%s962 + $0xa8] sm:$0xff]
        %v1717 = vld [vmem:[%s962 + $0xb0] sm:$0xff]
        %v1718 = vld [vmem:[%s962 + $0xc0] sm:$0xff]
        %v1719 = vld [vmem:[%s962 + $0xc8] sm:$0xff]
        %v1720 = vld [vmem:[%s962 + $0xd8] sm:$0xff]
        %v1721 = vld [vmem:[%s962 + $0xe0] sm:$0xff]
        %v1722 = vld [vmem:[%s962 + $0xf0] sm:$0xff]
        %v1723 = vld [vmem:[%s962 + $0xf8] sm:$0xff]
        %v1724 = vld [vmem:[%s962 + $0x108] sm:$0xff]
        %v1725 = vld [vmem:[%s962 + $0x110] sm:$0xff]
        %v1726 = vld [vmem:[%s962 + $0x120] sm:$0xff]
        %v1727 = vld [vmem:[%s962 + $0x128] sm:$0xff]
        %v1728 = vld [vmem:[%s962 + $0x138] sm:$0xff]
        %v1729 = vld [vmem:[%s962 + $0x140] sm:$0xff]
        %v1730 = vld [vmem:[%s962 + $0x150] sm:$0xff]
        %v1731 = vld [vmem:[%s962 + $0x158] sm:$0xff]
        %v1732 = vld [vmem:[%s962 + $0x168] sm:$0xff]
        %v1733 = vld [vmem:[%s962 + $0x170] sm:$0xff]
        %v1734 = vpack.c.bf16 %v1703, %v1702
        %v1735 = vpack.c.bf16 %v1705, %v1704
        %v1736 = vpack.c.bf16 %v1707, %v1706
        %v1737 = vpack.c.bf16 %v1709, %v1708
        %v1738 = vpack.c.bf16 %v1711, %v1710
        %v1739 = vpack.c.bf16 %v1713, %v1712
        %v1740 = vpack.c.bf16 %v1715, %v1714
        %v1741 = vpack.c.bf16 %v1717, %v1716
        %v1742 = vpack.c.bf16 %v1719, %v1718
        %v1743 = vpack.c.bf16 %v1721, %v1720
        %v1744 = vpack.c.bf16 %v1723, %v1722
        %v1745 = vpack.c.bf16 %v1725, %v1724
        %v1746 = vpack.c.bf16 %v1727, %v1726
        %v1747 = vpack.c.bf16 %v1729, %v1728
        %v1748 = vpack.c.bf16 %v1731, %v1730
        %v1749 = vpack.c.bf16 %v1733, %v1732
        %v1766 = vunpack.c.l.b16 %v1734
        %v1767 = vunpack.c.h.b16 %v1734
        %v1768 = vunpack.c.l.b16 %v1735
        %v1769 = vunpack.c.h.b16 %v1735
        %v1770 = vunpack.c.l.b16 %v1736
        %v1771 = vunpack.c.h.b16 %v1736
        %v1772 = vunpack.c.l.b16 %v1737
        %v1773 = vunpack.c.h.b16 %v1737
        %v1774 = vunpack.c.l.b16 %v1738
        %v1775 = vunpack.c.h.b16 %v1738
        %v1776 = vunpack.c.l.b16 %v1739
        %v1777 = vunpack.c.h.b16 %v1739
        %v1778 = vunpack.c.l.b16 %v1740
        %v1779 = vunpack.c.h.b16 %v1740
        %v1780 = vunpack.c.l.b16 %v1741
        %v1781 = vunpack.c.h.b16 %v1741
        %v1782 = vunpack.c.l.b16 %v1742
        %v1783 = vunpack.c.h.b16 %v1742
        %v1784 = vunpack.c.l.b16 %v1743
        %v1785 = vunpack.c.h.b16 %v1743
        %v1786 = vunpack.c.l.b16 %v1744
        %v1787 = vunpack.c.h.b16 %v1744
        %v1788 = vunpack.c.l.b16 %v1745
        %v1789 = vunpack.c.h.b16 %v1745
        %v1790 = vunpack.c.l.b16 %v1746
        %v1791 = vunpack.c.h.b16 %v1746
        %v1792 = vunpack.c.l.b16 %v1747
        %v1793 = vunpack.c.h.b16 %v1747
        %v1794 = vunpack.c.l.b16 %v1748
        %v1795 = vunpack.c.h.b16 %v1748
        %v1796 = vunpack.c.l.b16 %v1749
        %v1797 = vunpack.c.h.b16 %v1749
        %v1798 = vpack.c.b16 %v1766, %v1766
        %v1799 = vpack.c.b16 %v1767, %v1767
        %v1800 = vpack.c.b16 %v1768, %v1768
        %v1801 = vpack.c.b16 %v1769, %v1769
        %v1802 = vpack.c.b16 %v1770, %v1770
        %v1803 = vpack.c.b16 %v1771, %v1771
        %v1804 = vpack.c.b16 %v1772, %v1772
        %v1805 = vpack.c.b16 %v1773, %v1773
        %v1806 = vpack.c.b16 %v1774, %v1774
        %v1807 = vpack.c.b16 %v1775, %v1775
        %v1808 = vpack.c.b16 %v1776, %v1776
        %v1809 = vpack.c.b16 %v1777, %v1777
        %v1810 = vpack.c.b16 %v1778, %v1778
        %v1811 = vpack.c.b16 %v1779, %v1779
        %v1812 = vpack.c.b16 %v1780, %v1780
        %v1813 = vpack.c.b16 %v1781, %v1781
        %v1814 = vpack.c.b16 %v1782, %v1782
        %v1815 = vpack.c.b16 %v1783, %v1783
        %v1816 = vpack.c.b16 %v1784, %v1784
        %v1817 = vpack.c.b16 %v1785, %v1785
        %v1818 = vpack.c.b16 %v1786, %v1786
        %v1819 = vpack.c.b16 %v1787, %v1787
        %v1820 = vpack.c.b16 %v1788, %v1788
        %v1821 = vpack.c.b16 %v1789, %v1789
        %v1822 = vpack.c.b16 %v1790, %v1790
        %v1823 = vpack.c.b16 %v1791, %v1791
        %v1824 = vpack.c.b16 %v1792, %v1792
        %v1825 = vpack.c.b16 %v1793, %v1793
        %v1826 = vpack.c.b16 %v1794, %v1794
        %v1827 = vpack.c.b16 %v1795, %v1795
        %v1828 = vpack.c.b16 %v1796, %v1796
        %v1829 = vpack.c.b16 %v1797, %v1797
        %1830 = vrot.lane.b32.xlu0 %v1798, 96
        %v1831 = vpop.permute.xlu0 %1830
        %1832 = vrot.lane.b32.xlu0 %v1799, 96
        %v1833 = vpop.permute.xlu0 %1832
        %1834 = vrot.lane.b32.xlu0 %v1800, 96
        %v1835 = vpop.permute.xlu0 %1834
        %1836 = vrot.lane.b32.xlu0 %v1801, 96
        %v1837 = vpop.permute.xlu0 %1836
        %1838 = vrot.lane.b32.xlu0 %v1802, 96
        %v1839 = vpop.permute.xlu0 %1838
        %1840 = vrot.lane.b32.xlu0 %v1803, 96
        %v1841 = vpop.permute.xlu0 %1840
        %1842 = vrot.lane.b32.xlu0 %v1804, 96
        %v1843 = vpop.permute.xlu0 %1842
        %1844 = vrot.lane.b32.xlu0 %v1805, 96
        %v1845 = vpop.permute.xlu0 %1844
        %1846 = vrot.lane.b32.xlu0 %v1806, 96
        %v1847 = vpop.permute.xlu0 %1846
        %1848 = vrot.lane.b32.xlu0 %v1807, 96
        %v1849 = vpop.permute.xlu0 %1848
        %1850 = vrot.lane.b32.xlu0 %v1808, 96
        %v1851 = vpop.permute.xlu0 %1850
        %1852 = vrot.lane.b32.xlu0 %v1809, 96
        %v1853 = vpop.permute.xlu0 %1852
        %1854 = vrot.lane.b32.xlu0 %v1810, 96
        %v1855 = vpop.permute.xlu0 %1854
        %1856 = vrot.lane.b32.xlu0 %v1811, 96
        %v1857 = vpop.permute.xlu0 %1856
        %1858 = vrot.lane.b32.xlu0 %v1812, 96
        %v1859 = vpop.permute.xlu0 %1858
        %1860 = vrot.lane.b32.xlu0 %v1813, 96
        %v1861 = vpop.permute.xlu0 %1860
        %1862 = vrot.lane.b32.xlu0 %v1814, 96
        %v1863 = vpop.permute.xlu0 %1862
        %1864 = vrot.lane.b32.xlu0 %v1815, 96
        %v1865 = vpop.permute.xlu0 %1864
        %1866 = vrot.lane.b32.xlu0 %v1816, 96
        %v1867 = vpop.permute.xlu0 %1866
        %1868 = vrot.lane.b32.xlu0 %v1817, 96
        %v1869 = vpop.permute.xlu0 %1868
        %1870 = vrot.lane.b32.xlu0 %v1818, 96
        %v1871 = vpop.permute.xlu0 %1870
        %1872 = vrot.lane.b32.xlu0 %v1819, 96
        %v1873 = vpop.permute.xlu0 %1872
        %1874 = vrot.lane.b32.xlu0 %v1820, 96
        %v1875 = vpop.permute.xlu0 %1874
        %1876 = vrot.lane.b32.xlu0 %v1821, 96
        %v1877 = vpop.permute.xlu0 %1876
        %1878 = vrot.lane.b32.xlu0 %v1822, 96
        %v1879 = vpop.permute.xlu0 %1878
        %1880 = vrot.lane.b32.xlu0 %v1823, 96
        %v1881 = vpop.permute.xlu0 %1880
        %1882 = vrot.lane.b32.xlu0 %v1824, 96
        %v1883 = vpop.permute.xlu0 %1882
        %1884 = vrot.lane.b32.xlu0 %v1825, 96
        %v1885 = vpop.permute.xlu0 %1884
        %1886 = vrot.lane.b32.xlu0 %v1826, 96
        %v1887 = vpop.permute.xlu0 %1886
        %1888 = vrot.lane.b32.xlu0 %v1827, 96
        %v1889 = vpop.permute.xlu0 %1888
        %1890 = vrot.lane.b32.xlu0 %v1828, 96
        %v1891 = vpop.permute.xlu0 %1890
        %1892 = vrot.lane.b32.xlu0 %v1829, 96
        %v1893 = vpop.permute.xlu0 %1892
        %vm1926 = vcmask 1044224
        %1927 = vst.msk [vmem:[#allocation3] sm:$0xf] %vm1926, %v1831
        %1928 = vst.msk [vmem:[#allocation3 + $0xc] sm:$0xf] %vm1926, %v1833
        %1929 = vst.msk [vmem:[#allocation3 + $0x18] sm:$0xf] %vm1926, %v1835
        %1930 = vst.msk [vmem:[#allocation3 + $0x24] sm:$0xf] %vm1926, %v1837
        %1931 = vst.msk [vmem:[#allocation3 + $0x30] sm:$0xf] %vm1926, %v1839
        %1932 = vst.msk [vmem:[#allocation3 + $0x3c] sm:$0xf] %vm1926, %v1841
        %1933 = vst.msk [vmem:[#allocation3 + $0x48] sm:$0xf] %vm1926, %v1843
        %1934 = vst.msk [vmem:[#allocation3 + $0x54] sm:$0xf] %vm1926, %v1845
        %1935 = vst.msk [vmem:[#allocation3 + $0x60] sm:$0xf] %vm1926, %v1847
        %1936 = vst.msk [vmem:[#allocation3 + $0x6c] sm:$0xf] %vm1926, %v1849
        %1937 = vst.msk [vmem:[#allocation3 + $0x78] sm:$0xf] %vm1926, %v1851
        %1938 = vst.msk [vmem:[#allocation3 + $0x84] sm:$0xf] %vm1926, %v1853
        %1939 = vst.msk [vmem:[#allocation3 + $0x90] sm:$0xf] %vm1926, %v1855
        %1940 = vst.msk [vmem:[#allocation3 + $0x9c] sm:$0xf] %vm1926, %v1857
        %1941 = vst.msk [vmem:[#allocation3 + $0xa8] sm:$0xf] %vm1926, %v1859
        %1942 = vst.msk [vmem:[#allocation3 + $0xb4] sm:$0xf] %vm1926, %v1861
        %1943 = vst.msk [vmem:[#allocation3 + $0xc0] sm:$0xf] %vm1926, %v1863
        %1944 = vst.msk [vmem:[#allocation3 + $0xcc] sm:$0xf] %vm1926, %v1865
        %1945 = vst.msk [vmem:[#allocation3 + $0xd8] sm:$0xf] %vm1926, %v1867
        %1946 = vst.msk [vmem:[#allocation3 + $0xe4] sm:$0xf] %vm1926, %v1869
        %1947 = vst.msk [vmem:[#allocation3 + $0xf0] sm:$0xf] %vm1926, %v1871
        %1948 = vst.msk [vmem:[#allocation3 + $0xfc] sm:$0xf] %vm1926, %v1873
        %1949 = vst.msk [vmem:[#allocation3 + $0x108] sm:$0xf] %vm1926, %v1875
        %1950 = vst.msk [vmem:[#allocation3 + $0x114] sm:$0xf] %vm1926, %v1877
        %1951 = vst.msk [vmem:[#allocation3 + $0x120] sm:$0xf] %vm1926, %v1879
        %1952 = vst.msk [vmem:[#allocation3 + $0x12c] sm:$0xf] %vm1926, %v1881
        %1953 = vst.msk [vmem:[#allocation3 + $0x138] sm:$0xf] %vm1926, %v1883
        %1954 = vst.msk [vmem:[#allocation3 + $0x144] sm:$0xf] %vm1926, %v1885
        %1955 = vst.msk [vmem:[#allocation3 + $0x150] sm:$0xf] %vm1926, %v1887
        %1956 = vst.msk [vmem:[#allocation3 + $0x15c] sm:$0xf] %vm1926, %v1889
        %1957 = vst.msk [vmem:[#allocation3 + $0x168] sm:$0xf] %vm1926, %v1891
        %1958 = vst.msk [vmem:[#allocation3 + $0x174] sm:$0xf] %vm1926, %v1893
        %v1959 = vld [vmem:[%s962 + $0x1] sm:$0xff]
        %v1960 = vld [vmem:[%s962 + $0x9] sm:$0xff]
        %v1961 = vld [vmem:[%s962 + $0x19] sm:$0xff]
        %v1962 = vld [vmem:[%s962 + $0x21] sm:$0xff]
        %v1963 = vld [vmem:[%s962 + $0x31] sm:$0xff]
        %v1964 = vld [vmem:[%s962 + $0x39] sm:$0xff]
        %v1965 = vld [vmem:[%s962 + $0x49] sm:$0xff]
        %v1966 = vld [vmem:[%s962 + $0x51] sm:$0xff]
        %v1967 = vld [vmem:[%s962 + $0x61] sm:$0xff]
        %v1968 = vld [vmem:[%s962 + $0x69] sm:$0xff]
        %v1969 = vld [vmem:[%s962 + $0x79] sm:$0xff]
        %v1970 = vld [vmem:[%s962 + $0x81] sm:$0xff]
        %v1971 = vld [vmem:[%s962 + $0x91] sm:$0xff]
        %v1972 = vld [vmem:[%s962 + $0x99] sm:$0xff]
        %v1973 = vld [vmem:[%s962 + $0xa9] sm:$0xff]
        %v1974 = vld [vmem:[%s962 + $0xb1] sm:$0xff]
        %v1975 = vld [vmem:[%s962 + $0xc1] sm:$0xff]
        %v1976 = vld [vmem:[%s962 + $0xc9] sm:$0xff]
        %v1977 = vld [vmem:[%s962 + $0xd9] sm:$0xff]
        %v1978 = vld [vmem:[%s962 + $0xe1] sm:$0xff]
        %v1979 = vld [vmem:[%s962 + $0xf1] sm:$0xff]
        %v1980 = vld [vmem:[%s962 + $0xf9] sm:$0xff]
        %v1981 = vld [vmem:[%s962 + $0x109] sm:$0xff]
        %v1982 = vld [vmem:[%s962 + $0x111] sm:$0xff]
        %v1983 = vld [vmem:[%s962 + $0x121] sm:$0xff]
        %v1984 = vld [vmem:[%s962 + $0x129] sm:$0xff]
        %v1985 = vld [vmem:[%s962 + $0x139] sm:$0xff]
        %v1986 = vld [vmem:[%s962 + $0x141] sm:$0xff]
        %v1987 = vld [vmem:[%s962 + $0x151] sm:$0xff]
        %v1988 = vld [vmem:[%s962 + $0x159] sm:$0xff]
        %v1989 = vld [vmem:[%s962 + $0x169] sm:$0xff]
        %v1990 = vld [vmem:[%s962 + $0x171] sm:$0xff]
        %v1991 = vpack.c.bf16 %v1960, %v1959
        %v1992 = vpack.c.bf16 %v1962, %v1961
        %v1993 = vpack.c.bf16 %v1964, %v1963
        %v1994 = vpack.c.bf16 %v1966, %v1965
        %v1995 = vpack.c.bf16 %v1968, %v1967
        %v1996 = vpack.c.bf16 %v1970, %v1969
        %v1997 = vpack.c.bf16 %v1972, %v1971
        %v1998 = vpack.c.bf16 %v1974, %v1973
        %v1999 = vpack.c.bf16 %v1976, %v1975
        %v2000 = vpack.c.bf16 %v1978, %v1977
        %v2001 = vpack.c.bf16 %v1980, %v1979
        %v2002 = vpack.c.bf16 %v1982, %v1981
        %v2003 = vpack.c.bf16 %v1984, %v1983
        %v2004 = vpack.c.bf16 %v1986, %v1985
        %v2005 = vpack.c.bf16 %v1988, %v1987
        %v2006 = vpack.c.bf16 %v1990, %v1989
        %v2023 = vunpack.c.l.b16 %v1991
        %v2024 = vunpack.c.h.b16 %v1991
        %v2025 = vunpack.c.l.b16 %v1992
        %v2026 = vunpack.c.h.b16 %v1992
        %v2027 = vunpack.c.l.b16 %v1993
        %v2028 = vunpack.c.h.b16 %v1993
        %v2029 = vunpack.c.l.b16 %v1994
        %v2030 = vunpack.c.h.b16 %v1994
        %v2031 = vunpack.c.l.b16 %v1995
        %v2032 = vunpack.c.h.b16 %v1995
        %v2033 = vunpack.c.l.b16 %v1996
        %v2034 = vunpack.c.h.b16 %v1996
        %v2035 = vunpack.c.l.b16 %v1997
        %v2036 = vunpack.c.h.b16 %v1997
        %v2037 = vunpack.c.l.b16 %v1998
        %v2038 = vunpack.c.h.b16 %v1998
        %v2039 = vunpack.c.l.b16 %v1999
        %v2040 = vunpack.c.h.b16 %v1999
        %v2041 = vunpack.c.l.b16 %v2000
        %v2042 = vunpack.c.h.b16 %v2000
        %v2043 = vunpack.c.l.b16 %v2001
        %v2044 = vunpack.c.h.b16 %v2001
        %v2045 = vunpack.c.l.b16 %v2002
        %v2046 = vunpack.c.h.b16 %v2002
        %v2047 = vunpack.c.l.b16 %v2003
        %v2048 = vunpack.c.h.b16 %v2003
        %v2049 = vunpack.c.l.b16 %v2004
        %v2050 = vunpack.c.h.b16 %v2004
        %v2051 = vunpack.c.l.b16 %v2005
        %v2052 = vunpack.c.h.b16 %v2005
        %v2053 = vunpack.c.l.b16 %v2006
        %v2054 = vunpack.c.h.b16 %v2006
        %v2055 = vpack.c.b16 %v2023, %v2023
        %v2056 = vpack.c.b16 %v2024, %v2024
        %v2057 = vpack.c.b16 %v2025, %v2025
        %v2058 = vpack.c.b16 %v2026, %v2026
        %v2059 = vpack.c.b16 %v2027, %v2027
        %v2060 = vpack.c.b16 %v2028, %v2028
        %v2061 = vpack.c.b16 %v2029, %v2029
        %v2062 = vpack.c.b16 %v2030, %v2030
        %v2063 = vpack.c.b16 %v2031, %v2031
        %v2064 = vpack.c.b16 %v2032, %v2032
        %v2065 = vpack.c.b16 %v2033, %v2033
        %v2066 = vpack.c.b16 %v2034, %v2034
        %v2067 = vpack.c.b16 %v2035, %v2035
        %v2068 = vpack.c.b16 %v2036, %v2036
        %v2069 = vpack.c.b16 %v2037, %v2037
        %v2070 = vpack.c.b16 %v2038, %v2038
        %v2071 = vpack.c.b16 %v2039, %v2039
        %v2072 = vpack.c.b16 %v2040, %v2040
        %v2073 = vpack.c.b16 %v2041, %v2041
        %v2074 = vpack.c.b16 %v2042, %v2042
        %v2075 = vpack.c.b16 %v2043, %v2043
        %v2076 = vpack.c.b16 %v2044, %v2044
        %v2077 = vpack.c.b16 %v2045, %v2045
        %v2078 = vpack.c.b16 %v2046, %v2046
        %v2079 = vpack.c.b16 %v2047, %v2047
        %v2080 = vpack.c.b16 %v2048, %v2048
        %v2081 = vpack.c.b16 %v2049, %v2049
        %v2082 = vpack.c.b16 %v2050, %v2050
        %v2083 = vpack.c.b16 %v2051, %v2051
        %v2084 = vpack.c.b16 %v2052, %v2052
        %v2085 = vpack.c.b16 %v2053, %v2053
        %v2086 = vpack.c.b16 %v2054, %v2054
        %2119 = vst.msk [vmem:[#allocation3 + $0x4] sm:$0xf] %vm1155, %v2055
        %2120 = vst.msk [vmem:[#allocation3 + $0x10] sm:$0xf] %vm1155, %v2056
        %2121 = vst.msk [vmem:[#allocation3 + $0x1c] sm:$0xf] %vm1155, %v2057
        %2122 = vst.msk [vmem:[#allocation3 + $0x28] sm:$0xf] %vm1155, %v2058
        %2123 = vst.msk [vmem:[#allocation3 + $0x34] sm:$0xf] %vm1155, %v2059
        %2124 = vst.msk [vmem:[#allocation3 + $0x40] sm:$0xf] %vm1155, %v2060
        %2125 = vst.msk [vmem:[#allocation3 + $0x4c] sm:$0xf] %vm1155, %v2061
        %2126 = vst.msk [vmem:[#allocation3 + $0x58] sm:$0xf] %vm1155, %v2062
        %2127 = vst.msk [vmem:[#allocation3 + $0x64] sm:$0xf] %vm1155, %v2063
        %2128 = vst.msk [vmem:[#allocation3 + $0x70] sm:$0xf] %vm1155, %v2064
        %2129 = vst.msk [vmem:[#allocation3 + $0x7c] sm:$0xf] %vm1155, %v2065
        %2130 = vst.msk [vmem:[#allocation3 + $0x88] sm:$0xf] %vm1155, %v2066
        %2131 = vst.msk [vmem:[#allocation3 + $0x94] sm:$0xf] %vm1155, %v2067
        %2132 = vst.msk [vmem:[#allocation3 + $0xa0] sm:$0xf] %vm1155, %v2068
        %2133 = vst.msk [vmem:[#allocation3 + $0xac] sm:$0xf] %vm1155, %v2069
        %2134 = vst.msk [vmem:[#allocation3 + $0xb8] sm:$0xf] %vm1155, %v2070
        %2135 = vst.msk [vmem:[#allocation3 + $0xc4] sm:$0xf] %vm1155, %v2071
        %2136 = vst.msk [vmem:[#allocation3 + $0xd0] sm:$0xf] %vm1155, %v2072
        %2137 = vst.msk [vmem:[#allocation3 + $0xdc] sm:$0xf] %vm1155, %v2073
        %2138 = vst.msk [vmem:[#allocation3 + $0xe8] sm:$0xf] %vm1155, %v2074
        %2139 = vst.msk [vmem:[#allocation3 + $0xf4] sm:$0xf] %vm1155, %v2075
        %2140 = vst.msk [vmem:[#allocation3 + $0x100] sm:$0xf] %vm1155, %v2076
        %2141 = vst.msk [vmem:[#allocation3 + $0x10c] sm:$0xf] %vm1155, %v2077
        %2142 = vst.msk [vmem:[#allocation3 + $0x118] sm:$0xf] %vm1155, %v2078
        %2143 = vst.msk [vmem:[#allocation3 + $0x124] sm:$0xf] %vm1155, %v2079
        %2144 = vst.msk [vmem:[#allocation3 + $0x130] sm:$0xf] %vm1155, %v2080
        %2145 = vst.msk [vmem:[#allocation3 + $0x13c] sm:$0xf] %vm1155, %v2081
        %2146 = vst.msk [vmem:[#allocation3 + $0x148] sm:$0xf] %vm1155, %v2082
        %2147 = vst.msk [vmem:[#allocation3 + $0x154] sm:$0xf] %vm1155, %v2083
        %2148 = vst.msk [vmem:[#allocation3 + $0x160] sm:$0xf] %vm1155, %v2084
        %2149 = vst.msk [vmem:[#allocation3 + $0x16c] sm:$0xf] %vm1155, %v2085
        %2150 = vst.msk [vmem:[#allocation3 + $0x178] sm:$0xf] %vm1155, %v2086
        %v2151 = vld [vmem:[%s962 + $0x2] sm:$0xff]
        %v2152 = vld [vmem:[%s962 + $0xa] sm:$0xff]
        %v2153 = vld [vmem:[%s962 + $0x1a] sm:$0xff]
        %v2154 = vld [vmem:[%s962 + $0x22] sm:$0xff]
        %v2155 = vld [vmem:[%s962 + $0x32] sm:$0xff]
        %v2156 = vld [vmem:[%s962 + $0x3a] sm:$0xff]
        %v2157 = vld [vmem:[%s962 + $0x4a] sm:$0xff]
        %v2158 = vld [vmem:[%s962 + $0x52] sm:$0xff]
        %v2159 = vld [vmem:[%s962 + $0x62] sm:$0xff]
        %v2160 = vld [vmem:[%s962 + $0x6a] sm:$0xff]
        %v2161 = vld [vmem:[%s962 + $0x7a] sm:$0xff]
        %v2162 = vld [vmem:[%s962 + $0x82] sm:$0xff]
        %v2163 = vld [vmem:[%s962 + $0x92] sm:$0xff]
        %v2164 = vld [vmem:[%s962 + $0x9a] sm:$0xff]
        %v2165 = vld [vmem:[%s962 + $0xaa] sm:$0xff]
        %v2166 = vld [vmem:[%s962 + $0xb2] sm:$0xff]
        %v2167 = vld [vmem:[%s962 + $0xc2] sm:$0xff]
        %v2168 = vld [vmem:[%s962 + $0xca] sm:$0xff]
        %v2169 = vld [vmem:[%s962 + $0xda] sm:$0xff]
        %v2170 = vld [vmem:[%s962 + $0xe2] sm:$0xff]
        %v2171 = vld [vmem:[%s962 + $0xf2] sm:$0xff]
        %v2172 = vld [vmem:[%s962 + $0xfa] sm:$0xff]
        %v2173 = vld [vmem:[%s962 + $0x10a] sm:$0xff]
        %v2174 = vld [vmem:[%s962 + $0x112] sm:$0xff]
        %v2175 = vld [vmem:[%s962 + $0x122] sm:$0xff]
        %v2176 = vld [vmem:[%s962 + $0x12a] sm:$0xff]
        %v2177 = vld [vmem:[%s962 + $0x13a] sm:$0xff]
        %v2178 = vld [vmem:[%s962 + $0x142] sm:$0xff]
        %v2179 = vld [vmem:[%s962 + $0x152] sm:$0xff]
        %v2180 = vld [vmem:[%s962 + $0x15a] sm:$0xff]
        %v2181 = vld [vmem:[%s962 + $0x16a] sm:$0xff]
        %v2182 = vld [vmem:[%s962 + $0x172] sm:$0xff]
        %v2183 = vpack.c.bf16 %v2152, %v2151
        %v2184 = vpack.c.bf16 %v2154, %v2153
        %v2185 = vpack.c.bf16 %v2156, %v2155
        %v2186 = vpack.c.bf16 %v2158, %v2157
        %v2187 = vpack.c.bf16 %v2160, %v2159
        %v2188 = vpack.c.bf16 %v2162, %v2161
        %v2189 = vpack.c.bf16 %v2164, %v2163
        %v2190 = vpack.c.bf16 %v2166, %v2165
        %v2191 = vpack.c.bf16 %v2168, %v2167
        %v2192 = vpack.c.bf16 %v2170, %v2169
        %v2193 = vpack.c.bf16 %v2172, %v2171
        %v2194 = vpack.c.bf16 %v2174, %v2173
        %v2195 = vpack.c.bf16 %v2176, %v2175
        %v2196 = vpack.c.bf16 %v2178, %v2177
        %v2197 = vpack.c.bf16 %v2180, %v2179
        %v2198 = vpack.c.bf16 %v2182, %v2181
        %v2215 = vunpack.c.l.b16 %v2183
        %v2216 = vunpack.c.h.b16 %v2183
        %v2217 = vunpack.c.l.b16 %v2184
        %v2218 = vunpack.c.h.b16 %v2184
        %v2219 = vunpack.c.l.b16 %v2185
        %v2220 = vunpack.c.h.b16 %v2185
        %v2221 = vunpack.c.l.b16 %v2186
        %v2222 = vunpack.c.h.b16 %v2186
        %v2223 = vunpack.c.l.b16 %v2187
        %v2224 = vunpack.c.h.b16 %v2187
        %v2225 = vunpack.c.l.b16 %v2188
        %v2226 = vunpack.c.h.b16 %v2188
        %v2227 = vunpack.c.l.b16 %v2189
        %v2228 = vunpack.c.h.b16 %v2189
        %v2229 = vunpack.c.l.b16 %v2190
        %v2230 = vunpack.c.h.b16 %v2190
        %v2231 = vunpack.c.l.b16 %v2191
        %v2232 = vunpack.c.h.b16 %v2191
        %v2233 = vunpack.c.l.b16 %v2192
        %v2234 = vunpack.c.h.b16 %v2192
        %v2235 = vunpack.c.l.b16 %v2193
        %v2236 = vunpack.c.h.b16 %v2193
        %v2237 = vunpack.c.l.b16 %v2194
        %v2238 = vunpack.c.h.b16 %v2194
        %v2239 = vunpack.c.l.b16 %v2195
        %v2240 = vunpack.c.h.b16 %v2195
        %v2241 = vunpack.c.l.b16 %v2196
        %v2242 = vunpack.c.h.b16 %v2196
        %v2243 = vunpack.c.l.b16 %v2197
        %v2244 = vunpack.c.h.b16 %v2197
        %v2245 = vunpack.c.l.b16 %v2198
        %v2246 = vunpack.c.h.b16 %v2198
        %v2247 = vpack.c.b16 %v2215, %v2215
        %v2248 = vpack.c.b16 %v2216, %v2216
        %v2249 = vpack.c.b16 %v2217, %v2217
        %v2250 = vpack.c.b16 %v2218, %v2218
        %v2251 = vpack.c.b16 %v2219, %v2219
        %v2252 = vpack.c.b16 %v2220, %v2220
        %v2253 = vpack.c.b16 %v2221, %v2221
        %v2254 = vpack.c.b16 %v2222, %v2222
        %v2255 = vpack.c.b16 %v2223, %v2223
        %v2256 = vpack.c.b16 %v2224, %v2224
        %v2257 = vpack.c.b16 %v2225, %v2225
        %v2258 = vpack.c.b16 %v2226, %v2226
        %v2259 = vpack.c.b16 %v2227, %v2227
        %v2260 = vpack.c.b16 %v2228, %v2228
        %v2261 = vpack.c.b16 %v2229, %v2229
        %v2262 = vpack.c.b16 %v2230, %v2230
        %v2263 = vpack.c.b16 %v2231, %v2231
        %v2264 = vpack.c.b16 %v2232, %v2232
        %v2265 = vpack.c.b16 %v2233, %v2233
        %v2266 = vpack.c.b16 %v2234, %v2234
        %v2267 = vpack.c.b16 %v2235, %v2235
        %v2268 = vpack.c.b16 %v2236, %v2236
        %v2269 = vpack.c.b16 %v2237, %v2237
        %v2270 = vpack.c.b16 %v2238, %v2238
        %v2271 = vpack.c.b16 %v2239, %v2239
        %v2272 = vpack.c.b16 %v2240, %v2240
        %v2273 = vpack.c.b16 %v2241, %v2241
        %v2274 = vpack.c.b16 %v2242, %v2242
        %v2275 = vpack.c.b16 %v2243, %v2243
        %v2276 = vpack.c.b16 %v2244, %v2244
        %v2277 = vpack.c.b16 %v2245, %v2245
        %v2278 = vpack.c.b16 %v2246, %v2246
        %2279 = vrot.lane.b32.xlu0 %v2247, 32
        %v2280 = vpop.permute.xlu0 %2279
        %2281 = vrot.lane.b32.xlu0 %v2248, 32
        %v2282 = vpop.permute.xlu0 %2281
        %2283 = vrot.lane.b32.xlu0 %v2249, 32
        %v2284 = vpop.permute.xlu0 %2283
        %2285 = vrot.lane.b32.xlu0 %v2250, 32
        %v2286 = vpop.permute.xlu0 %2285
        %2287 = vrot.lane.b32.xlu0 %v2251, 32
        %v2288 = vpop.permute.xlu0 %2287
        %2289 = vrot.lane.b32.xlu0 %v2252, 32
        %v2290 = vpop.permute.xlu0 %2289
        %2291 = vrot.lane.b32.xlu0 %v2253, 32
        %v2292 = vpop.permute.xlu0 %2291
        %2293 = vrot.lane.b32.xlu0 %v2254, 32
        %v2294 = vpop.permute.xlu0 %2293
        %2295 = vrot.lane.b32.xlu0 %v2255, 32
        %v2296 = vpop.permute.xlu0 %2295
        %2297 = vrot.lane.b32.xlu0 %v2256, 32
        %v2298 = vpop.permute.xlu0 %2297
        %2299 = vrot.lane.b32.xlu0 %v2257, 32
        %v2300 = vpop.permute.xlu0 %2299
        %2301 = vrot.lane.b32.xlu0 %v2258, 32
        %v2302 = vpop.permute.xlu0 %2301
        %2303 = vrot.lane.b32.xlu0 %v2259, 32
        %v2304 = vpop.permute.xlu0 %2303
        %2305 = vrot.lane.b32.xlu0 %v2260, 32
        %v2306 = vpop.permute.xlu0 %2305
        %2307 = vrot.lane.b32.xlu0 %v2261, 32
        %v2308 = vpop.permute.xlu0 %2307
        %2309 = vrot.lane.b32.xlu0 %v2262, 32
        %v2310 = vpop.permute.xlu0 %2309
        %2311 = vrot.lane.b32.xlu0 %v2263, 32
        %v2312 = vpop.permute.xlu0 %2311
        %2313 = vrot.lane.b32.xlu0 %v2264, 32
        %v2314 = vpop.permute.xlu0 %2313
        %2315 = vrot.lane.b32.xlu0 %v2265, 32
        %v2316 = vpop.permute.xlu0 %2315
        %2317 = vrot.lane.b32.xlu0 %v2266, 32
        %v2318 = vpop.permute.xlu0 %2317
        %2319 = vrot.lane.b32.xlu0 %v2267, 32
        %v2320 = vpop.permute.xlu0 %2319
        %2321 = vrot.lane.b32.xlu0 %v2268, 32
        %v2322 = vpop.permute.xlu0 %2321
        %2323 = vrot.lane.b32.xlu0 %v2269, 32
        %v2324 = vpop.permute.xlu0 %2323
        %2325 = vrot.lane.b32.xlu0 %v2270, 32
        %v2326 = vpop.permute.xlu0 %2325
        %2327 = vrot.lane.b32.xlu0 %v2271, 32
        %v2328 = vpop.permute.xlu0 %2327
        %2329 = vrot.lane.b32.xlu0 %v2272, 32
        %v2330 = vpop.permute.xlu0 %2329
        %2331 = vrot.lane.b32.xlu0 %v2273, 32
        %v2332 = vpop.permute.xlu0 %2331
        %2333 = vrot.lane.b32.xlu0 %v2274, 32
        %v2334 = vpop.permute.xlu0 %2333
        %2335 = vrot.lane.b32.xlu0 %v2275, 32
        %v2336 = vpop.permute.xlu0 %2335
        %2337 = vrot.lane.b32.xlu0 %v2276, 32
        %v2338 = vpop.permute.xlu0 %2337
        %2339 = vrot.lane.b32.xlu0 %v2277, 32
        %v2340 = vpop.permute.xlu0 %2339
        %2341 = vrot.lane.b32.xlu0 %v2278, 32
        %v2342 = vpop.permute.xlu0 %2341
        %2375 = vst.msk [vmem:[#allocation3 + $0x4] sm:$0xf] %vm1412, %v2280
        %2376 = vst.msk [vmem:[#allocation3 + $0x10] sm:$0xf] %vm1412, %v2282
        %2377 = vst.msk [vmem:[#allocation3 + $0x1c] sm:$0xf] %vm1412, %v2284
        %2378 = vst.msk [vmem:[#allocation3 + $0x28] sm:$0xf] %vm1412, %v2286
        %2379 = vst.msk [vmem:[#allocation3 + $0x34] sm:$0xf] %vm1412, %v2288
        %2380 = vst.msk [vmem:[#allocation3 + $0x40] sm:$0xf] %vm1412, %v2290
        %2381 = vst.msk [vmem:[#allocation3 + $0x4c] sm:$0xf] %vm1412, %v2292
        %2382 = vst.msk [vmem:[#allocation3 + $0x58] sm:$0xf] %vm1412, %v2294
        %2383 = vst.msk [vmem:[#allocation3 + $0x64] sm:$0xf] %vm1412, %v2296
        %2384 = vst.msk [vmem:[#allocation3 + $0x70] sm:$0xf] %vm1412, %v2298
        %2385 = vst.msk [vmem:[#allocation3 + $0x7c] sm:$0xf] %vm1412, %v2300
        %2386 = vst.msk [vmem:[#allocation3 + $0x88] sm:$0xf] %vm1412, %v2302
        %2387 = vst.msk [vmem:[#allocation3 + $0x94] sm:$0xf] %vm1412, %v2304
        %2388 = vst.msk [vmem:[#allocation3 + $0xa0] sm:$0xf] %vm1412, %v2306
        %2389 = vst.msk [vmem:[#allocation3 + $0xac] sm:$0xf] %vm1412, %v2308
        %2390 = vst.msk [vmem:[#allocation3 + $0xb8] sm:$0xf] %vm1412, %v2310
        %2391 = vst.msk [vmem:[#allocation3 + $0xc4] sm:$0xf] %vm1412, %v2312
        %2392 = vst.msk [vmem:[#allocation3 + $0xd0] sm:$0xf] %vm1412, %v2314
        %2393 = vst.msk [vmem:[#allocation3 + $0xdc] sm:$0xf] %vm1412, %v2316
        %2394 = vst.msk [vmem:[#allocation3 + $0xe8] sm:$0xf] %vm1412, %v2318
        %2395 = vst.msk [vmem:[#allocation3 + $0xf4] sm:$0xf] %vm1412, %v2320
        %2396 = vst.msk [vmem:[#allocation3 + $0x100] sm:$0xf] %vm1412, %v2322
        %2397 = vst.msk [vmem:[#allocation3 + $0x10c] sm:$0xf] %vm1412, %v2324
        %2398 = vst.msk [vmem:[#allocation3 + $0x118] sm:$0xf] %vm1412, %v2326
        %2399 = vst.msk [vmem:[#allocation3 + $0x124] sm:$0xf] %vm1412, %v2328
        %2400 = vst.msk [vmem:[#allocation3 + $0x130] sm:$0xf] %vm1412, %v2330
        %2401 = vst.msk [vmem:[#allocation3 + $0x13c] sm:$0xf] %vm1412, %v2332
        %2402 = vst.msk [vmem:[#allocation3 + $0x148] sm:$0xf] %vm1412, %v2334
        %2403 = vst.msk [vmem:[#allocation3 + $0x154] sm:$0xf] %vm1412, %v2336
        %2404 = vst.msk [vmem:[#allocation3 + $0x160] sm:$0xf] %vm1412, %v2338
        %2405 = vst.msk [vmem:[#allocation3 + $0x16c] sm:$0xf] %vm1412, %v2340
        %2406 = vst.msk [vmem:[#allocation3 + $0x178] sm:$0xf] %vm1412, %v2342
        %s2407 = scalar_lea.vmem [#allocation2], 48
        %v2408 = vld [vmem:[%s2407] sm:$0xff]
        %v2409 = vld [vmem:[%s2407 + $0x8] sm:$0xff]
        %v2410 = vld [vmem:[%s2407 + $0x18] sm:$0xff]
        %v2411 = vld [vmem:[%s2407 + $0x20] sm:$0xff]
        %v2412 = vld [vmem:[%s2407 + $0x30] sm:$0xff]
        %v2413 = vld [vmem:[%s2407 + $0x38] sm:$0xff]
        %v2414 = vld [vmem:[%s2407 + $0x48] sm:$0xff]
        %v2415 = vld [vmem:[%s2407 + $0x50] sm:$0xff]
        %v2416 = vld [vmem:[%s2407 + $0x60] sm:$0xff]
        %v2417 = vld [vmem:[%s2407 + $0x68] sm:$0xff]
        %v2418 = vld [vmem:[%s2407 + $0x78] sm:$0xff]
        %v2419 = vld [vmem:[%s2407 + $0x80] sm:$0xff]
        %v2420 = vld [vmem:[%s2407 + $0x90] sm:$0xff]
        %v2421 = vld [vmem:[%s2407 + $0x98] sm:$0xff]
        %v2422 = vld [vmem:[%s2407 + $0xa8] sm:$0xff]
        %v2423 = vld [vmem:[%s2407 + $0xb0] sm:$0xff]
        %v2424 = vld [vmem:[%s2407 + $0xc0] sm:$0xff]
        %v2425 = vld [vmem:[%s2407 + $0xc8] sm:$0xff]
        %v2426 = vld [vmem:[%s2407 + $0xd8] sm:$0xff]
        %v2427 = vld [vmem:[%s2407 + $0xe0] sm:$0xff]
        %v2428 = vld [vmem:[%s2407 + $0xf0] sm:$0xff]
        %v2429 = vld [vmem:[%s2407 + $0xf8] sm:$0xff]
        %v2430 = vld [vmem:[%s2407 + $0x108] sm:$0xff]
        %v2431 = vld [vmem:[%s2407 + $0x110] sm:$0xff]
        %v2432 = vld [vmem:[%s2407 + $0x120] sm:$0xff]
        %v2433 = vld [vmem:[%s2407 + $0x128] sm:$0xff]
        %v2434 = vld [vmem:[%s2407 + $0x138] sm:$0xff]
        %v2435 = vld [vmem:[%s2407 + $0x140] sm:$0xff]
        %v2436 = vld [vmem:[%s2407 + $0x150] sm:$0xff]
        %v2437 = vld [vmem:[%s2407 + $0x158] sm:$0xff]
        %v2438 = vld [vmem:[%s2407 + $0x168] sm:$0xff]
        %v2439 = vld [vmem:[%s2407 + $0x170] sm:$0xff]
        %v2440 = vpack.c.bf16 %v2409, %v2408
        %v2441 = vpack.c.bf16 %v2411, %v2410
        %v2442 = vpack.c.bf16 %v2413, %v2412
        %v2443 = vpack.c.bf16 %v2415, %v2414
        %v2444 = vpack.c.bf16 %v2417, %v2416
        %v2445 = vpack.c.bf16 %v2419, %v2418
        %v2446 = vpack.c.bf16 %v2421, %v2420
        %v2447 = vpack.c.bf16 %v2423, %v2422
        %v2448 = vpack.c.bf16 %v2425, %v2424
        %v2449 = vpack.c.bf16 %v2427, %v2426
        %v2450 = vpack.c.bf16 %v2429, %v2428
        %v2451 = vpack.c.bf16 %v2431, %v2430
        %v2452 = vpack.c.bf16 %v2433, %v2432
        %v2453 = vpack.c.bf16 %v2435, %v2434
        %v2454 = vpack.c.bf16 %v2437, %v2436
        %v2455 = vpack.c.bf16 %v2439, %v2438
        %v2472 = vunpack.c.l.b16 %v2440
        %v2473 = vunpack.c.h.b16 %v2440
        %v2474 = vunpack.c.l.b16 %v2441
        %v2475 = vunpack.c.h.b16 %v2441
        %v2476 = vunpack.c.l.b16 %v2442
        %v2477 = vunpack.c.h.b16 %v2442
        %v2478 = vunpack.c.l.b16 %v2443
        %v2479 = vunpack.c.h.b16 %v2443
        %v2480 = vunpack.c.l.b16 %v2444
        %v2481 = vunpack.c.h.b16 %v2444
        %v2482 = vunpack.c.l.b16 %v2445
        %v2483 = vunpack.c.h.b16 %v2445
        %v2484 = vunpack.c.l.b16 %v2446
        %v2485 = vunpack.c.h.b16 %v2446
        %v2486 = vunpack.c.l.b16 %v2447
        %v2487 = vunpack.c.h.b16 %v2447
        %v2488 = vunpack.c.l.b16 %v2448
        %v2489 = vunpack.c.h.b16 %v2448
        %v2490 = vunpack.c.l.b16 %v2449
        %v2491 = vunpack.c.h.b16 %v2449
        %v2492 = vunpack.c.l.b16 %v2450
        %v2493 = vunpack.c.h.b16 %v2450
        %v2494 = vunpack.c.l.b16 %v2451
        %v2495 = vunpack.c.h.b16 %v2451
        %v2496 = vunpack.c.l.b16 %v2452
        %v2497 = vunpack.c.h.b16 %v2452
        %v2498 = vunpack.c.l.b16 %v2453
        %v2499 = vunpack.c.h.b16 %v2453
        %v2500 = vunpack.c.l.b16 %v2454
        %v2501 = vunpack.c.h.b16 %v2454
        %v2502 = vunpack.c.l.b16 %v2455
        %v2503 = vunpack.c.h.b16 %v2455
        %v2504 = vpack.c.b16 %v2472, %v2472
        %v2505 = vpack.c.b16 %v2473, %v2473
        %v2506 = vpack.c.b16 %v2474, %v2474
        %v2507 = vpack.c.b16 %v2475, %v2475
        %v2508 = vpack.c.b16 %v2476, %v2476
        %v2509 = vpack.c.b16 %v2477, %v2477
        %v2510 = vpack.c.b16 %v2478, %v2478
        %v2511 = vpack.c.b16 %v2479, %v2479
        %v2512 = vpack.c.b16 %v2480, %v2480
        %v2513 = vpack.c.b16 %v2481, %v2481
        %v2514 = vpack.c.b16 %v2482, %v2482
        %v2515 = vpack.c.b16 %v2483, %v2483
        %v2516 = vpack.c.b16 %v2484, %v2484
        %v2517 = vpack.c.b16 %v2485, %v2485
        %v2518 = vpack.c.b16 %v2486, %v2486
        %v2519 = vpack.c.b16 %v2487, %v2487
        %v2520 = vpack.c.b16 %v2488, %v2488
        %v2521 = vpack.c.b16 %v2489, %v2489
        %v2522 = vpack.c.b16 %v2490, %v2490
        %v2523 = vpack.c.b16 %v2491, %v2491
        %v2524 = vpack.c.b16 %v2492, %v2492
        %v2525 = vpack.c.b16 %v2493, %v2493
        %v2526 = vpack.c.b16 %v2494, %v2494
        %v2527 = vpack.c.b16 %v2495, %v2495
        %v2528 = vpack.c.b16 %v2496, %v2496
        %v2529 = vpack.c.b16 %v2497, %v2497
        %v2530 = vpack.c.b16 %v2498, %v2498
        %v2531 = vpack.c.b16 %v2499, %v2499
        %v2532 = vpack.c.b16 %v2500, %v2500
        %v2533 = vpack.c.b16 %v2501, %v2501
        %v2534 = vpack.c.b16 %v2502, %v2502
        %v2535 = vpack.c.b16 %v2503, %v2503
        %2536 = vrot.lane.b32.xlu0 %v2504, 64
        %v2537 = vpop.permute.xlu0 %2536
        %2538 = vrot.lane.b32.xlu0 %v2505, 64
        %v2539 = vpop.permute.xlu0 %2538
        %2540 = vrot.lane.b32.xlu0 %v2506, 64
        %v2541 = vpop.permute.xlu0 %2540
        %2542 = vrot.lane.b32.xlu0 %v2507, 64
        %v2543 = vpop.permute.xlu0 %2542
        %2544 = vrot.lane.b32.xlu0 %v2508, 64
        %v2545 = vpop.permute.xlu0 %2544
        %2546 = vrot.lane.b32.xlu0 %v2509, 64
        %v2547 = vpop.permute.xlu0 %2546
        %2548 = vrot.lane.b32.xlu0 %v2510, 64
        %v2549 = vpop.permute.xlu0 %2548
        %2550 = vrot.lane.b32.xlu0 %v2511, 64
        %v2551 = vpop.permute.xlu0 %2550
        %2552 = vrot.lane.b32.xlu0 %v2512, 64
        %v2553 = vpop.permute.xlu0 %2552
        %2554 = vrot.lane.b32.xlu0 %v2513, 64
        %v2555 = vpop.permute.xlu0 %2554
        %2556 = vrot.lane.b32.xlu0 %v2514, 64
        %v2557 = vpop.permute.xlu0 %2556
        %2558 = vrot.lane.b32.xlu0 %v2515, 64
        %v2559 = vpop.permute.xlu0 %2558
        %2560 = vrot.lane.b32.xlu0 %v2516, 64
        %v2561 = vpop.permute.xlu0 %2560
        %2562 = vrot.lane.b32.xlu0 %v2517, 64
        %v2563 = vpop.permute.xlu0 %2562
        %2564 = vrot.lane.b32.xlu0 %v2518, 64
        %v2565 = vpop.permute.xlu0 %2564
        %2566 = vrot.lane.b32.xlu0 %v2519, 64
        %v2567 = vpop.permute.xlu0 %2566
        %2568 = vrot.lane.b32.xlu0 %v2520, 64
        %v2569 = vpop.permute.xlu0 %2568
        %2570 = vrot.lane.b32.xlu0 %v2521, 64
        %v2571 = vpop.permute.xlu0 %2570
        %2572 = vrot.lane.b32.xlu0 %v2522, 64
        %v2573 = vpop.permute.xlu0 %2572
        %2574 = vrot.lane.b32.xlu0 %v2523, 64
        %v2575 = vpop.permute.xlu0 %2574
        %2576 = vrot.lane.b32.xlu0 %v2524, 64
        %v2577 = vpop.permute.xlu0 %2576
        %2578 = vrot.lane.b32.xlu0 %v2525, 64
        %v2579 = vpop.permute.xlu0 %2578
        %2580 = vrot.lane.b32.xlu0 %v2526, 64
        %v2581 = vpop.permute.xlu0 %2580
        %2582 = vrot.lane.b32.xlu0 %v2527, 64
        %v2583 = vpop.permute.xlu0 %2582
        %2584 = vrot.lane.b32.xlu0 %v2528, 64
        %v2585 = vpop.permute.xlu0 %2584
        %2586 = vrot.lane.b32.xlu0 %v2529, 64
        %v2587 = vpop.permute.xlu0 %2586
        %2588 = vrot.lane.b32.xlu0 %v2530, 64
        %v2589 = vpop.permute.xlu0 %2588
        %2590 = vrot.lane.b32.xlu0 %v2531, 64
        %v2591 = vpop.permute.xlu0 %2590
        %2592 = vrot.lane.b32.xlu0 %v2532, 64
        %v2593 = vpop.permute.xlu0 %2592
        %2594 = vrot.lane.b32.xlu0 %v2533, 64
        %v2595 = vpop.permute.xlu0 %2594
        %2596 = vrot.lane.b32.xlu0 %v2534, 64
        %v2597 = vpop.permute.xlu0 %2596
        %2598 = vrot.lane.b32.xlu0 %v2535, 64
        %v2599 = vpop.permute.xlu0 %2598
        %2632 = vst.msk [vmem:[#allocation3 + $0x4] sm:$0xf] %vm1669, %v2537
        %2633 = vst.msk [vmem:[#allocation3 + $0x10] sm:$0xf] %vm1669, %v2539
        %2634 = vst.msk [vmem:[#allocation3 + $0x1c] sm:$0xf] %vm1669, %v2541
        %2635 = vst.msk [vmem:[#allocation3 + $0x28] sm:$0xf] %vm1669, %v2543
        %2636 = vst.msk [vmem:[#allocation3 + $0x34] sm:$0xf] %vm1669, %v2545
        %2637 = vst.msk [vmem:[#allocation3 + $0x40] sm:$0xf] %vm1669, %v2547
        %2638 = vst.msk [vmem:[#allocation3 + $0x4c] sm:$0xf] %vm1669, %v2549
        %2639 = vst.msk [vmem:[#allocation3 + $0x58] sm:$0xf] %vm1669, %v2551
        %2640 = vst.msk [vmem:[#allocation3 + $0x64] sm:$0xf] %vm1669, %v2553
        %2641 = vst.msk [vmem:[#allocation3 + $0x70] sm:$0xf] %vm1669, %v2555
        %2642 = vst.msk [vmem:[#allocation3 + $0x7c] sm:$0xf] %vm1669, %v2557
        %2643 = vst.msk [vmem:[#allocation3 + $0x88] sm:$0xf] %vm1669, %v2559
        %2644 = vst.msk [vmem:[#allocation3 + $0x94] sm:$0xf] %vm1669, %v2561
        %2645 = vst.msk [vmem:[#allocation3 + $0xa0] sm:$0xf] %vm1669, %v2563
        %2646 = vst.msk [vmem:[#allocation3 + $0xac] sm:$0xf] %vm1669, %v2565
        %2647 = vst.msk [vmem:[#allocation3 + $0xb8] sm:$0xf] %vm1669, %v2567
        %2648 = vst.msk [vmem:[#allocation3 + $0xc4] sm:$0xf] %vm1669, %v2569
        %2649 = vst.msk [vmem:[#allocation3 + $0xd0] sm:$0xf] %vm1669, %v2571
        %2650 = vst.msk [vmem:[#allocation3 + $0xdc] sm:$0xf] %vm1669, %v2573
        %2651 = vst.msk [vmem:[#allocation3 + $0xe8] sm:$0xf] %vm1669, %v2575
        %2652 = vst.msk [vmem:[#allocation3 + $0xf4] sm:$0xf] %vm1669, %v2577
        %2653 = vst.msk [vmem:[#allocation3 + $0x100] sm:$0xf] %vm1669, %v2579
        %2654 = vst.msk [vmem:[#allocation3 + $0x10c] sm:$0xf] %vm1669, %v2581
        %2655 = vst.msk [vmem:[#allocation3 + $0x118] sm:$0xf] %vm1669, %v2583
        %2656 = vst.msk [vmem:[#allocation3 + $0x124] sm:$0xf] %vm1669, %v2585
        %2657 = vst.msk [vmem:[#allocation3 + $0x130] sm:$0xf] %vm1669, %v2587
        %2658 = vst.msk [vmem:[#allocation3 + $0x13c] sm:$0xf] %vm1669, %v2589
        %2659 = vst.msk [vmem:[#allocation3 + $0x148] sm:$0xf] %vm1669, %v2591
        %2660 = vst.msk [vmem:[#allocation3 + $0x154] sm:$0xf] %vm1669, %v2593
        %2661 = vst.msk [vmem:[#allocation3 + $0x160] sm:$0xf] %vm1669, %v2595
        %2662 = vst.msk [vmem:[#allocation3 + $0x16c] sm:$0xf] %vm1669, %v2597
        %2663 = vst.msk [vmem:[#allocation3 + $0x178] sm:$0xf] %vm1669, %v2599
        %v2664 = vld [vmem:[%s2407 + $0x1] sm:$0xff]
        %v2665 = vld [vmem:[%s2407 + $0x9] sm:$0xff]
        %v2666 = vld [vmem:[%s2407 + $0x19] sm:$0xff]
        %v2667 = vld [vmem:[%s2407 + $0x21] sm:$0xff]
        %v2668 = vld [vmem:[%s2407 + $0x31] sm:$0xff]
        %v2669 = vld [vmem:[%s2407 + $0x39] sm:$0xff]
        %v2670 = vld [vmem:[%s2407 + $0x49] sm:$0xff]
        %v2671 = vld [vmem:[%s2407 + $0x51] sm:$0xff]
        %v2672 = vld [vmem:[%s2407 + $0x61] sm:$0xff]
        %v2673 = vld [vmem:[%s2407 + $0x69] sm:$0xff]
        %v2674 = vld [vmem:[%s2407 + $0x79] sm:$0xff]
        %v2675 = vld [vmem:[%s2407 + $0x81] sm:$0xff]
        %v2676 = vld [vmem:[%s2407 + $0x91] sm:$0xff]
        %v2677 = vld [vmem:[%s2407 + $0x99] sm:$0xff]
        %v2678 = vld [vmem:[%s2407 + $0xa9] sm:$0xff]
        %v2679 = vld [vmem:[%s2407 + $0xb1] sm:$0xff]
        %v2680 = vld [vmem:[%s2407 + $0xc1] sm:$0xff]
        %v2681 = vld [vmem:[%s2407 + $0xc9] sm:$0xff]
        %v2682 = vld [vmem:[%s2407 + $0xd9] sm:$0xff]
        %v2683 = vld [vmem:[%s2407 + $0xe1] sm:$0xff]
        %v2684 = vld [vmem:[%s2407 + $0xf1] sm:$0xff]
        %v2685 = vld [vmem:[%s2407 + $0xf9] sm:$0xff]
        %v2686 = vld [vmem:[%s2407 + $0x109] sm:$0xff]
        %v2687 = vld [vmem:[%s2407 + $0x111] sm:$0xff]
        %v2688 = vld [vmem:[%s2407 + $0x121] sm:$0xff]
        %v2689 = vld [vmem:[%s2407 + $0x129] sm:$0xff]
        %v2690 = vld [vmem:[%s2407 + $0x139] sm:$0xff]
        %v2691 = vld [vmem:[%s2407 + $0x141] sm:$0xff]
        %v2692 = vld [vmem:[%s2407 + $0x151] sm:$0xff]
        %v2693 = vld [vmem:[%s2407 + $0x159] sm:$0xff]
        %v2694 = vld [vmem:[%s2407 + $0x169] sm:$0xff]
        %v2695 = vld [vmem:[%s2407 + $0x171] sm:$0xff]
        %v2696 = vpack.c.bf16 %v2665, %v2664
        %v2697 = vpack.c.bf16 %v2667, %v2666
        %v2698 = vpack.c.bf16 %v2669, %v2668
        %v2699 = vpack.c.bf16 %v2671, %v2670
        %v2700 = vpack.c.bf16 %v2673, %v2672
        %v2701 = vpack.c.bf16 %v2675, %v2674
        %v2702 = vpack.c.bf16 %v2677, %v2676
        %v2703 = vpack.c.bf16 %v2679, %v2678
        %v2704 = vpack.c.bf16 %v2681, %v2680
        %v2705 = vpack.c.bf16 %v2683, %v2682
        %v2706 = vpack.c.bf16 %v2685, %v2684
        %v2707 = vpack.c.bf16 %v2687, %v2686
        %v2708 = vpack.c.bf16 %v2689, %v2688
        %v2709 = vpack.c.bf16 %v2691, %v2690
        %v2710 = vpack.c.bf16 %v2693, %v2692
        %v2711 = vpack.c.bf16 %v2695, %v2694
        %v2728 = vunpack.c.l.b16 %v2696
        %v2729 = vunpack.c.h.b16 %v2696
        %v2730 = vunpack.c.l.b16 %v2697
        %v2731 = vunpack.c.h.b16 %v2697
        %v2732 = vunpack.c.l.b16 %v2698
        %v2733 = vunpack.c.h.b16 %v2698
        %v2734 = vunpack.c.l.b16 %v2699
        %v2735 = vunpack.c.h.b16 %v2699
        %v2736 = vunpack.c.l.b16 %v2700
        %v2737 = vunpack.c.h.b16 %v2700
        %v2738 = vunpack.c.l.b16 %v2701
        %v2739 = vunpack.c.h.b16 %v2701
        %v2740 = vunpack.c.l.b16 %v2702
        %v2741 = vunpack.c.h.b16 %v2702
        %v2742 = vunpack.c.l.b16 %v2703
        %v2743 = vunpack.c.h.b16 %v2703
        %v2744 = vunpack.c.l.b16 %v2704
        %v2745 = vunpack.c.h.b16 %v2704
        %v2746 = vunpack.c.l.b16 %v2705
        %v2747 = vunpack.c.h.b16 %v2705
        %v2748 = vunpack.c.l.b16 %v2706
        %v2749 = vunpack.c.h.b16 %v2706
        %v2750 = vunpack.c.l.b16 %v2707
        %v2751 = vunpack.c.h.b16 %v2707
        %v2752 = vunpack.c.l.b16 %v2708
        %v2753 = vunpack.c.h.b16 %v2708
        %v2754 = vunpack.c.l.b16 %v2709
        %v2755 = vunpack.c.h.b16 %v2709
        %v2756 = vunpack.c.l.b16 %v2710
        %v2757 = vunpack.c.h.b16 %v2710
        %v2758 = vunpack.c.l.b16 %v2711
        %v2759 = vunpack.c.h.b16 %v2711
        %v2760 = vpack.c.b16 %v2728, %v2728
        %v2761 = vpack.c.b16 %v2729, %v2729
        %v2762 = vpack.c.b16 %v2730, %v2730
        %v2763 = vpack.c.b16 %v2731, %v2731
        %v2764 = vpack.c.b16 %v2732, %v2732
        %v2765 = vpack.c.b16 %v2733, %v2733
        %v2766 = vpack.c.b16 %v2734, %v2734
        %v2767 = vpack.c.b16 %v2735, %v2735
        %v2768 = vpack.c.b16 %v2736, %v2736
        %v2769 = vpack.c.b16 %v2737, %v2737
        %v2770 = vpack.c.b16 %v2738, %v2738
        %v2771 = vpack.c.b16 %v2739, %v2739
        %v2772 = vpack.c.b16 %v2740, %v2740
        %v2773 = vpack.c.b16 %v2741, %v2741
        %v2774 = vpack.c.b16 %v2742, %v2742
        %v2775 = vpack.c.b16 %v2743, %v2743
        %v2776 = vpack.c.b16 %v2744, %v2744
        %v2777 = vpack.c.b16 %v2745, %v2745
        %v2778 = vpack.c.b16 %v2746, %v2746
        %v2779 = vpack.c.b16 %v2747, %v2747
        %v2780 = vpack.c.b16 %v2748, %v2748
        %v2781 = vpack.c.b16 %v2749, %v2749
        %v2782 = vpack.c.b16 %v2750, %v2750
        %v2783 = vpack.c.b16 %v2751, %v2751
        %v2784 = vpack.c.b16 %v2752, %v2752
        %v2785 = vpack.c.b16 %v2753, %v2753
        %v2786 = vpack.c.b16 %v2754, %v2754
        %v2787 = vpack.c.b16 %v2755, %v2755
        %v2788 = vpack.c.b16 %v2756, %v2756
        %v2789 = vpack.c.b16 %v2757, %v2757
        %v2790 = vpack.c.b16 %v2758, %v2758
        %v2791 = vpack.c.b16 %v2759, %v2759
        %2792 = vrot.lane.b32.xlu0 %v2760, 96
        %v2793 = vpop.permute.xlu0 %2792
        %2794 = vrot.lane.b32.xlu0 %v2761, 96
        %v2795 = vpop.permute.xlu0 %2794
        %2796 = vrot.lane.b32.xlu0 %v2762, 96
        %v2797 = vpop.permute.xlu0 %2796
        %2798 = vrot.lane.b32.xlu0 %v2763, 96
        %v2799 = vpop.permute.xlu0 %2798
        %2800 = vrot.lane.b32.xlu0 %v2764, 96
        %v2801 = vpop.permute.xlu0 %2800
        %2802 = vrot.lane.b32.xlu0 %v2765, 96
        %v2803 = vpop.permute.xlu0 %2802
        %2804 = vrot.lane.b32.xlu0 %v2766, 96
        %v2805 = vpop.permute.xlu0 %2804
        %2806 = vrot.lane.b32.xlu0 %v2767, 96
        %v2807 = vpop.permute.xlu0 %2806
        %2808 = vrot.lane.b32.xlu0 %v2768, 96
        %v2809 = vpop.permute.xlu0 %2808
        %2810 = vrot.lane.b32.xlu0 %v2769, 96
        %v2811 = vpop.permute.xlu0 %2810
        %2812 = vrot.lane.b32.xlu0 %v2770, 96
        %v2813 = vpop.permute.xlu0 %2812
        %2814 = vrot.lane.b32.xlu0 %v2771, 96
        %v2815 = vpop.permute.xlu0 %2814
        %2816 = vrot.lane.b32.xlu0 %v2772, 96
        %v2817 = vpop.permute.xlu0 %2816
        %2818 = vrot.lane.b32.xlu0 %v2773, 96
        %v2819 = vpop.permute.xlu0 %2818
        %2820 = vrot.lane.b32.xlu0 %v2774, 96
        %v2821 = vpop.permute.xlu0 %2820
        %2822 = vrot.lane.b32.xlu0 %v2775, 96
        %v2823 = vpop.permute.xlu0 %2822
        %2824 = vrot.lane.b32.xlu0 %v2776, 96
        %v2825 = vpop.permute.xlu0 %2824
        %2826 = vrot.lane.b32.xlu0 %v2777, 96
        %v2827 = vpop.permute.xlu0 %2826
        %2828 = vrot.lane.b32.xlu0 %v2778, 96
        %v2829 = vpop.permute.xlu0 %2828
        %2830 = vrot.lane.b32.xlu0 %v2779, 96
        %v2831 = vpop.permute.xlu0 %2830
        %2832 = vrot.lane.b32.xlu0 %v2780, 96
        %v2833 = vpop.permute.xlu0 %2832
        %2834 = vrot.lane.b32.xlu0 %v2781, 96
        %v2835 = vpop.permute.xlu0 %2834
        %2836 = vrot.lane.b32.xlu0 %v2782, 96
        %v2837 = vpop.permute.xlu0 %2836
        %2838 = vrot.lane.b32.xlu0 %v2783, 96
        %v2839 = vpop.permute.xlu0 %2838
        %2840 = vrot.lane.b32.xlu0 %v2784, 96
        %v2841 = vpop.permute.xlu0 %2840
        %2842 = vrot.lane.b32.xlu0 %v2785, 96
        %v2843 = vpop.permute.xlu0 %2842
        %2844 = vrot.lane.b32.xlu0 %v2786, 96
        %v2845 = vpop.permute.xlu0 %2844
        %2846 = vrot.lane.b32.xlu0 %v2787, 96
        %v2847 = vpop.permute.xlu0 %2846
        %2848 = vrot.lane.b32.xlu0 %v2788, 96
        %v2849 = vpop.permute.xlu0 %2848
        %2850 = vrot.lane.b32.xlu0 %v2789, 96
        %v2851 = vpop.permute.xlu0 %2850
        %2852 = vrot.lane.b32.xlu0 %v2790, 96
        %v2853 = vpop.permute.xlu0 %2852
        %2854 = vrot.lane.b32.xlu0 %v2791, 96
        %v2855 = vpop.permute.xlu0 %2854
        %2888 = vst.msk [vmem:[#allocation3 + $0x4] sm:$0xf] %vm1926, %v2793
        %2889 = vst.msk [vmem:[#allocation3 + $0x10] sm:$0xf] %vm1926, %v2795
        %2890 = vst.msk [vmem:[#allocation3 + $0x1c] sm:$0xf] %vm1926, %v2797
        %2891 = vst.msk [vmem:[#allocation3 + $0x28] sm:$0xf] %vm1926, %v2799
        %2892 = vst.msk [vmem:[#allocation3 + $0x34] sm:$0xf] %vm1926, %v2801
        %2893 = vst.msk [vmem:[#allocation3 + $0x40] sm:$0xf] %vm1926, %v2803
        %2894 = vst.msk [vmem:[#allocation3 + $0x4c] sm:$0xf] %vm1926, %v2805
        %2895 = vst.msk [vmem:[#allocation3 + $0x58] sm:$0xf] %vm1926, %v2807
        %2896 = vst.msk [vmem:[#allocation3 + $0x64] sm:$0xf] %vm1926, %v2809
        %2897 = vst.msk [vmem:[#allocation3 + $0x70] sm:$0xf] %vm1926, %v2811
        %2898 = vst.msk [vmem:[#allocation3 + $0x7c] sm:$0xf] %vm1926, %v2813
        %2899 = vst.msk [vmem:[#allocation3 + $0x88] sm:$0xf] %vm1926, %v2815
        %2900 = vst.msk [vmem:[#allocation3 + $0x94] sm:$0xf] %vm1926, %v2817
        %2901 = vst.msk [vmem:[#allocation3 + $0xa0] sm:$0xf] %vm1926, %v2819
        %2902 = vst.msk [vmem:[#allocation3 + $0xac] sm:$0xf] %vm1926, %v2821
        %2903 = vst.msk [vmem:[#allocation3 + $0xb8] sm:$0xf] %vm1926, %v2823
        %2904 = vst.msk [vmem:[#allocation3 + $0xc4] sm:$0xf] %vm1926, %v2825
        %2905 = vst.msk [vmem:[#allocation3 + $0xd0] sm:$0xf] %vm1926, %v2827
        %2906 = vst.msk [vmem:[#allocation3 + $0xdc] sm:$0xf] %vm1926, %v2829
        %2907 = vst.msk [vmem:[#allocation3 + $0xe8] sm:$0xf] %vm1926, %v2831
        %2908 = vst.msk [vmem:[#allocation3 + $0xf4] sm:$0xf] %vm1926, %v2833
        %2909 = vst.msk [vmem:[#allocation3 + $0x100] sm:$0xf] %vm1926, %v2835
        %2910 = vst.msk [vmem:[#allocation3 + $0x10c] sm:$0xf] %vm1926, %v2837
        %2911 = vst.msk [vmem:[#allocation3 + $0x118] sm:$0xf] %vm1926, %v2839
        %2912 = vst.msk [vmem:[#allocation3 + $0x124] sm:$0xf] %vm1926, %v2841
        %2913 = vst.msk [vmem:[#allocation3 + $0x130] sm:$0xf] %vm1926, %v2843
        %2914 = vst.msk [vmem:[#allocation3 + $0x13c] sm:$0xf] %vm1926, %v2845
        %2915 = vst.msk [vmem:[#allocation3 + $0x148] sm:$0xf] %vm1926, %v2847
        %2916 = vst.msk [vmem:[#allocation3 + $0x154] sm:$0xf] %vm1926, %v2849
        %2917 = vst.msk [vmem:[#allocation3 + $0x160] sm:$0xf] %vm1926, %v2851
        %2918 = vst.msk [vmem:[#allocation3 + $0x16c] sm:$0xf] %vm1926, %v2853
        %2919 = vst.msk [vmem:[#allocation3 + $0x178] sm:$0xf] %vm1926, %v2855
        %v2920 = vld [vmem:[%s2407 + $0x2] sm:$0xff]
        %v2921 = vld [vmem:[%s2407 + $0xa] sm:$0xff]
        %v2922 = vld [vmem:[%s2407 + $0x1a] sm:$0xff]
        %v2923 = vld [vmem:[%s2407 + $0x22] sm:$0xff]
        %v2924 = vld [vmem:[%s2407 + $0x32] sm:$0xff]
        %v2925 = vld [vmem:[%s2407 + $0x3a] sm:$0xff]
        %v2926 = vld [vmem:[%s2407 + $0x4a] sm:$0xff]
        %v2927 = vld [vmem:[%s2407 + $0x52] sm:$0xff]
        %v2928 = vld [vmem:[%s2407 + $0x62] sm:$0xff]
        %v2929 = vld [vmem:[%s2407 + $0x6a] sm:$0xff]
        %v2930 = vld [vmem:[%s2407 + $0x7a] sm:$0xff]
        %v2931 = vld [vmem:[%s2407 + $0x82] sm:$0xff]
        %v2932 = vld [vmem:[%s2407 + $0x92] sm:$0xff]
        %v2933 = vld [vmem:[%s2407 + $0x9a] sm:$0xff]
        %v2934 = vld [vmem:[%s2407 + $0xaa] sm:$0xff]
        %v2935 = vld [vmem:[%s2407 + $0xb2] sm:$0xff]
        %v2936 = vld [vmem:[%s2407 + $0xc2] sm:$0xff]
        %v2937 = vld [vmem:[%s2407 + $0xca] sm:$0xff]
        %v2938 = vld [vmem:[%s2407 + $0xda] sm:$0xff]
        %v2939 = vld [vmem:[%s2407 + $0xe2] sm:$0xff]
        %v2940 = vld [vmem:[%s2407 + $0xf2] sm:$0xff]
        %v2941 = vld [vmem:[%s2407 + $0xfa] sm:$0xff]
        %v2942 = vld [vmem:[%s2407 + $0x10a] sm:$0xff]
        %v2943 = vld [vmem:[%s2407 + $0x112] sm:$0xff]
        %v2944 = vld [vmem:[%s2407 + $0x122] sm:$0xff]
        %v2945 = vld [vmem:[%s2407 + $0x12a] sm:$0xff]
        %v2946 = vld [vmem:[%s2407 + $0x13a] sm:$0xff]
        %v2947 = vld [vmem:[%s2407 + $0x142] sm:$0xff]
        %v2948 = vld [vmem:[%s2407 + $0x152] sm:$0xff]
        %v2949 = vld [vmem:[%s2407 + $0x15a] sm:$0xff]
        %v2950 = vld [vmem:[%s2407 + $0x16a] sm:$0xff]
        %v2951 = vld [vmem:[%s2407 + $0x172] sm:$0xff]
        %v2952 = vpack.c.bf16 %v2921, %v2920
        %v2953 = vpack.c.bf16 %v2923, %v2922
        %v2954 = vpack.c.bf16 %v2925, %v2924
        %v2955 = vpack.c.bf16 %v2927, %v2926
        %v2956 = vpack.c.bf16 %v2929, %v2928
        %v2957 = vpack.c.bf16 %v2931, %v2930
        %v2958 = vpack.c.bf16 %v2933, %v2932
        %v2959 = vpack.c.bf16 %v2935, %v2934
        %v2960 = vpack.c.bf16 %v2937, %v2936
        %v2961 = vpack.c.bf16 %v2939, %v2938
        %v2962 = vpack.c.bf16 %v2941, %v2940
        %v2963 = vpack.c.bf16 %v2943, %v2942
        %v2964 = vpack.c.bf16 %v2945, %v2944
        %v2965 = vpack.c.bf16 %v2947, %v2946
        %v2966 = vpack.c.bf16 %v2949, %v2948
        %v2967 = vpack.c.bf16 %v2951, %v2950
        %v2984 = vunpack.c.l.b16 %v2952
        %v2985 = vunpack.c.h.b16 %v2952
        %v2986 = vunpack.c.l.b16 %v2953
        %v2987 = vunpack.c.h.b16 %v2953
        %v2988 = vunpack.c.l.b16 %v2954
        %v2989 = vunpack.c.h.b16 %v2954
        %v2990 = vunpack.c.l.b16 %v2955
        %v2991 = vunpack.c.h.b16 %v2955
        %v2992 = vunpack.c.l.b16 %v2956
        %v2993 = vunpack.c.h.b16 %v2956
        %v2994 = vunpack.c.l.b16 %v2957
        %v2995 = vunpack.c.h.b16 %v2957
        %v2996 = vunpack.c.l.b16 %v2958
        %v2997 = vunpack.c.h.b16 %v2958
        %v2998 = vunpack.c.l.b16 %v2959
        %v2999 = vunpack.c.h.b16 %v2959
        %v3000 = vunpack.c.l.b16 %v2960
        %v3001 = vunpack.c.h.b16 %v2960
        %v3002 = vunpack.c.l.b16 %v2961
        %v3003 = vunpack.c.h.b16 %v2961
        %v3004 = vunpack.c.l.b16 %v2962
        %v3005 = vunpack.c.h.b16 %v2962
        %v3006 = vunpack.c.l.b16 %v2963
        %v3007 = vunpack.c.h.b16 %v2963
        %v3008 = vunpack.c.l.b16 %v2964
        %v3009 = vunpack.c.h.b16 %v2964
        %v3010 = vunpack.c.l.b16 %v2965
        %v3011 = vunpack.c.h.b16 %v2965
        %v3012 = vunpack.c.l.b16 %v2966
        %v3013 = vunpack.c.h.b16 %v2966
        %v3014 = vunpack.c.l.b16 %v2967
        %v3015 = vunpack.c.h.b16 %v2967
        %v3016 = vpack.c.b16 %v2984, %v2984
        %v3017 = vpack.c.b16 %v2985, %v2985
        %v3018 = vpack.c.b16 %v2986, %v2986
        %v3019 = vpack.c.b16 %v2987, %v2987
        %v3020 = vpack.c.b16 %v2988, %v2988
        %v3021 = vpack.c.b16 %v2989, %v2989
        %v3022 = vpack.c.b16 %v2990, %v2990
        %v3023 = vpack.c.b16 %v2991, %v2991
        %v3024 = vpack.c.b16 %v2992, %v2992
        %v3025 = vpack.c.b16 %v2993, %v2993
        %v3026 = vpack.c.b16 %v2994, %v2994
        %v3027 = vpack.c.b16 %v2995, %v2995
        %v3028 = vpack.c.b16 %v2996, %v2996
        %v3029 = vpack.c.b16 %v2997, %v2997
        %v3030 = vpack.c.b16 %v2998, %v2998
        %v3031 = vpack.c.b16 %v2999, %v2999
        %v3032 = vpack.c.b16 %v3000, %v3000
        %v3033 = vpack.c.b16 %v3001, %v3001
        %v3034 = vpack.c.b16 %v3002, %v3002
        %v3035 = vpack.c.b16 %v3003, %v3003
        %v3036 = vpack.c.b16 %v3004, %v3004
        %v3037 = vpack.c.b16 %v3005, %v3005
        %v3038 = vpack.c.b16 %v3006, %v3006
        %v3039 = vpack.c.b16 %v3007, %v3007
        %v3040 = vpack.c.b16 %v3008, %v3008
        %v3041 = vpack.c.b16 %v3009, %v3009
        %v3042 = vpack.c.b16 %v3010, %v3010
        %v3043 = vpack.c.b16 %v3011, %v3011
        %v3044 = vpack.c.b16 %v3012, %v3012
        %v3045 = vpack.c.b16 %v3013, %v3013
        %v3046 = vpack.c.b16 %v3014, %v3014
        %v3047 = vpack.c.b16 %v3015, %v3015
        %3080 = vst.msk [vmem:[#allocation3 + $0x8] sm:$0xf] %vm1155, %v3016
        %3081 = vst.msk [vmem:[#allocation3 + $0x14] sm:$0xf] %vm1155, %v3017
        %3082 = vst.msk [vmem:[#allocation3 + $0x20] sm:$0xf] %vm1155, %v3018
        %3083 = vst.msk [vmem:[#allocation3 + $0x2c] sm:$0xf] %vm1155, %v3019
        %3084 = vst.msk [vmem:[#allocation3 + $0x38] sm:$0xf] %vm1155, %v3020
        %3085 = vst.msk [vmem:[#allocation3 + $0x44] sm:$0xf] %vm1155, %v3021
        %3086 = vst.msk [vmem:[#allocation3 + $0x50] sm:$0xf] %vm1155, %v3022
        %3087 = vst.msk [vmem:[#allocation3 + $0x5c] sm:$0xf] %vm1155, %v3023
        %3088 = vst.msk [vmem:[#allocation3 + $0x68] sm:$0xf] %vm1155, %v3024
        %3089 = vst.msk [vmem:[#allocation3 + $0x74] sm:$0xf] %vm1155, %v3025
        %3090 = vst.msk [vmem:[#allocation3 + $0x80] sm:$0xf] %vm1155, %v3026
        %3091 = vst.msk [vmem:[#allocation3 + $0x8c] sm:$0xf] %vm1155, %v3027
        %3092 = vst.msk [vmem:[#allocation3 + $0x98] sm:$0xf] %vm1155, %v3028
        %3093 = vst.msk [vmem:[#allocation3 + $0xa4] sm:$0xf] %vm1155, %v3029
        %3094 = vst.msk [vmem:[#allocation3 + $0xb0] sm:$0xf] %vm1155, %v3030
        %3095 = vst.msk [vmem:[#allocation3 + $0xbc] sm:$0xf] %vm1155, %v3031
        %3096 = vst.msk [vmem:[#allocation3 + $0xc8] sm:$0xf] %vm1155, %v3032
        %3097 = vst.msk [vmem:[#allocation3 + $0xd4] sm:$0xf] %vm1155, %v3033
        %3098 = vst.msk [vmem:[#allocation3 + $0xe0] sm:$0xf] %vm1155, %v3034
        %3099 = vst.msk [vmem:[#allocation3 + $0xec] sm:$0xf] %vm1155, %v3035
        %3100 = vst.msk [vmem:[#allocation3 + $0xf8] sm:$0xf] %vm1155, %v3036
        %3101 = vst.msk [vmem:[#allocation3 + $0x104] sm:$0xf] %vm1155, %v3037
        %3102 = vst.msk [vmem:[#allocation3 + $0x110] sm:$0xf] %vm1155, %v3038
        %3103 = vst.msk [vmem:[#allocation3 + $0x11c] sm:$0xf] %vm1155, %v3039
        %3104 = vst.msk [vmem:[#allocation3 + $0x128] sm:$0xf] %vm1155, %v3040
        %3105 = vst.msk [vmem:[#allocation3 + $0x134] sm:$0xf] %vm1155, %v3041
        %3106 = vst.msk [vmem:[#allocation3 + $0x140] sm:$0xf] %vm1155, %v3042
        %3107 = vst.msk [vmem:[#allocation3 + $0x14c] sm:$0xf] %vm1155, %v3043
        %3108 = vst.msk [vmem:[#allocation3 + $0x158] sm:$0xf] %vm1155, %v3044
        %3109 = vst.msk [vmem:[#allocation3 + $0x164] sm:$0xf] %vm1155, %v3045
        %3110 = vst.msk [vmem:[#allocation3 + $0x170] sm:$0xf] %vm1155, %v3046
        %3111 = vst.msk [vmem:[#allocation3 + $0x17c] sm:$0xf] %vm1155, %v3047
        %v3112 = vld [vmem:[#allocation3] sm:$0xff]
        %v3113 = vld [vmem:[#allocation3 + $0x8] sm:$0xf]
        %v3114 = vld [vmem:[#allocation3 + $0xc] sm:$0xff]
        %v3115 = vld [vmem:[#allocation3 + $0x14] sm:$0xf]
        %v3116 = vld [vmem:[#allocation3 + $0x18] sm:$0xff]
        %v3117 = vld [vmem:[#allocation3 + $0x20] sm:$0xf]
        %v3118 = vld [vmem:[#allocation3 + $0x24] sm:$0xff]
        %v3119 = vld [vmem:[#allocation3 + $0x2c] sm:$0xf]
        %v3120 = vld [vmem:[#allocation3 + $0x30] sm:$0xff]
        %v3121 = vld [vmem:[#allocation3 + $0x38] sm:$0xf]
        %v3122 = vld [vmem:[#allocation3 + $0x3c] sm:$0xff]
        %v3123 = vld [vmem:[#allocation3 + $0x44] sm:$0xf]
        %v3124 = vld [vmem:[#allocation3 + $0x48] sm:$0xff]
        %v3125 = vld [vmem:[#allocation3 + $0x50] sm:$0xf]
        %v3126 = vld [vmem:[#allocation3 + $0x54] sm:$0xff]
        %v3127 = vld [vmem:[#allocation3 + $0x5c] sm:$0xf]
        %v3128 = vld [vmem:[#allocation3 + $0x60] sm:$0xff]
        %v3129 = vld [vmem:[#allocation3 + $0x68] sm:$0xf]
        %v3130 = vld [vmem:[#allocation3 + $0x6c] sm:$0xff]
        %v3131 = vld [vmem:[#allocation3 + $0x74] sm:$0xf]
        %v3132 = vld [vmem:[#allocation3 + $0x78] sm:$0xff]
        %v3133 = vld [vmem:[#allocation3 + $0x80] sm:$0xf]
        %v3134 = vld [vmem:[#allocation3 + $0x84] sm:$0xff]
        %v3135 = vld [vmem:[#allocation3 + $0x8c] sm:$0xf]
        %v3136 = vld [vmem:[#allocation3 + $0x90] sm:$0xff]
        %v3137 = vld [vmem:[#allocation3 + $0x98] sm:$0xf]
        %v3138 = vld [vmem:[#allocation3 + $0x9c] sm:$0xff]
        %v3139 = vld [vmem:[#allocation3 + $0xa4] sm:$0xf]
        %v3140 = vld [vmem:[#allocation3 + $0xa8] sm:$0xff]
        %v3141 = vld [vmem:[#allocation3 + $0xb0] sm:$0xf]
        %v3142 = vld [vmem:[#allocation3 + $0xb4] sm:$0xff]
        %v3143 = vld [vmem:[#allocation3 + $0xbc] sm:$0xf]
        %v3144 = vld [vmem:[#allocation3 + $0xc0] sm:$0xff]
        %v3145 = vld [vmem:[#allocation3 + $0xc8] sm:$0xf]
        %v3146 = vld [vmem:[#allocation3 + $0xcc] sm:$0xff]
        %v3147 = vld [vmem:[#allocation3 + $0xd4] sm:$0xf]
        %v3148 = vld [vmem:[#allocation3 + $0xd8] sm:$0xff]
        %v3149 = vld [vmem:[#allocation3 + $0xe0] sm:$0xf]
        %v3150 = vld [vmem:[#allocation3 + $0xe4] sm:$0xff]
        %v3151 = vld [vmem:[#allocation3 + $0xec] sm:$0xf]
        %v3152 = vld [vmem:[#allocation3 + $0xf0] sm:$0xff]
        %v3153 = vld [vmem:[#allocation3 + $0xf8] sm:$0xf]
        %v3154 = vld [vmem:[#allocation3 + $0xfc] sm:$0xff]
        %v3155 = vld [vmem:[#allocation3 + $0x104] sm:$0xf]
        %v3156 = vld [vmem:[#allocation3 + $0x108] sm:$0xff]
        %v3157 = vld [vmem:[#allocation3 + $0x110] sm:$0xf]
        %v3158 = vld [vmem:[#allocation3 + $0x114] sm:$0xff]
        %v3159 = vld [vmem:[#allocation3 + $0x11c] sm:$0xf]
        %v3160 = vld [vmem:[#allocation3 + $0x120] sm:$0xff]
        %v3161 = vld [vmem:[#allocation3 + $0x128] sm:$0xf]
        %v3162 = vld [vmem:[#allocation3 + $0x12c] sm:$0xff]
        %v3163 = vld [vmem:[#allocation3 + $0x134] sm:$0xf]
        %v3164 = vld [vmem:[#allocation3 + $0x138] sm:$0xff]
        %v3165 = vld [vmem:[#allocation3 + $0x140] sm:$0xf]
        %v3166 = vld [vmem:[#allocation3 + $0x144] sm:$0xff]
        %v3167 = vld [vmem:[#allocation3 + $0x14c] sm:$0xf]
        %v3168 = vld [vmem:[#allocation3 + $0x150] sm:$0xff]
        %v3169 = vld [vmem:[#allocation3 + $0x158] sm:$0xf]
        %v3170 = vld [vmem:[#allocation3 + $0x15c] sm:$0xff]
        %v3171 = vld [vmem:[#allocation3 + $0x164] sm:$0xf]
        %v3172 = vld [vmem:[#allocation3 + $0x168] sm:$0xff]
        %v3173 = vld [vmem:[#allocation3 + $0x170] sm:$0xf]
        %v3174 = vld [vmem:[#allocation3 + $0x174] sm:$0xff]
        %v3175 = vld [vmem:[#allocation3 + $0x17c] sm:$0xf]
        %v3176 = vld [vmem:[%s2] sm:$0xf]
        %v3177 = vld [vmem:[%s2 + $0x4] sm:$0xf]
        %v3178 = vld [vmem:[%s2 + $0x8] sm:$0xf]
        %v3179 = vld [vmem:[%s2 + $0xc] sm:$0xf]
        %v3180 = vld [vmem:[%s2 + $0x10] sm:$0xf]
        %v3181 = vld [vmem:[%s2 + $0x14] sm:$0xf]
        %v3182 = vld [vmem:[%s2 + $0x18] sm:$0xf]
        %v3183 = vld [vmem:[%s2 + $0x1c] sm:$0xf]
        %v3184 = vld [vmem:[%s2 + $0x20] sm:$0xf]
        %v3185 = vld [vmem:[%s2 + $0x24] sm:$0xf]
        %v3186 = vld [vmem:[%s2 + $0x28] sm:$0xf]
        %v3187 = vld [vmem:[%s2 + $0x2c] sm:$0xf]
        %v3188 = vld [vmem:[%s2 + $0x30] sm:$0xf]
        %v3189 = vld [vmem:[%s2 + $0x34] sm:$0xf]
        %v3190 = vld [vmem:[%s2 + $0x38] sm:$0xf]
        %v3191 = vld [vmem:[%s2 + $0x3c] sm:$0xf]
        %v3192 = vld [vmem:[%s2 + $0x40] sm:$0xf]
        %v3193 = vld [vmem:[%s2 + $0x44] sm:$0xf]
        %v3194 = vld [vmem:[%s2 + $0x48] sm:$0xf]
        %v3195 = vld [vmem:[%s2 + $0x4c] sm:$0xf]
        %v3196 = vld [vmem:[%s2 + $0x50] sm:$0xf]
        %v3197 = vld [vmem:[%s2 + $0x54] sm:$0xf]
        %v3198 = vld [vmem:[%s2 + $0x58] sm:$0xf]
        %v3199 = vld [vmem:[%s2 + $0x5c] sm:$0xf]
        %v3200 = vld [vmem:[%s2 + $0x60] sm:$0xf]
        %v3201 = vld [vmem:[%s2 + $0x64] sm:$0xf]
        %v3202 = vld [vmem:[%s2 + $0x68] sm:$0xf]
        %v3203 = vld [vmem:[%s2 + $0x6c] sm:$0xf]
        %v3204 = vld [vmem:[%s2 + $0x70] sm:$0xf]
        %v3205 = vld [vmem:[%s2 + $0x74] sm:$0xf]
        %v3206 = vld [vmem:[%s2 + $0x78] sm:$0xf]
        %v3207 = vld [vmem:[%s2 + $0x7c] sm:$0xf]
        %v3208 = vld [vmem:[%s2 + $0x80] sm:$0xf]
        %v3209 = vld [vmem:[%s2 + $0x84] sm:$0xf]
        %v3210 = vld [vmem:[%s2 + $0x88] sm:$0xf]
        %v3211 = vld [vmem:[%s2 + $0x8c] sm:$0xf]
        %v3276 = vunpack.c.l.b16 %v3112
        %v3277 = vunpack.c.h.b16 %v3112
        %v3278 = vunpack.c.l.b16 %v3113
        %v3279 = vunpack.c.l.b16 %v3114
        %v3280 = vunpack.c.h.b16 %v3114
        %v3281 = vunpack.c.l.b16 %v3115
        %v3282 = vunpack.c.l.b16 %v3116
        %v3283 = vunpack.c.h.b16 %v3116
        %v3284 = vunpack.c.l.b16 %v3117
        %v3285 = vunpack.c.l.b16 %v3118
        %v3286 = vunpack.c.h.b16 %v3118
        %v3287 = vunpack.c.l.b16 %v3119
        %v3288 = vunpack.c.l.b16 %v3120
        %v3289 = vunpack.c.h.b16 %v3120
        %v3290 = vunpack.c.l.b16 %v3121
        %v3291 = vunpack.c.l.b16 %v3122
        %v3292 = vunpack.c.h.b16 %v3122
        %v3293 = vunpack.c.l.b16 %v3123
        %v3294 = vunpack.c.l.b16 %v3124
        %v3295 = vunpack.c.h.b16 %v3124
        %v3296 = vunpack.c.l.b16 %v3125
        %v3297 = vunpack.c.l.b16 %v3126
        %v3298 = vunpack.c.h.b16 %v3126
        %v3299 = vunpack.c.l.b16 %v3127
        %v3300 = vunpack.c.l.b16 %v3128
        %v3301 = vunpack.c.h.b16 %v3128
        %v3302 = vunpack.c.l.b16 %v3129
        %v3303 = vunpack.c.l.b16 %v3130
        %v3304 = vunpack.c.h.b16 %v3130
        %v3305 = vunpack.c.l.b16 %v3131
        %v3306 = vunpack.c.l.b16 %v3132
        %v3307 = vunpack.c.h.b16 %v3132
        %v3308 = vunpack.c.l.b16 %v3133
        %v3309 = vunpack.c.l.b16 %v3134
        %v3310 = vunpack.c.h.b16 %v3134
        %v3311 = vunpack.c.l.b16 %v3135
        %v3312 = vunpack.c.l.b16 %v3136
        %v3313 = vunpack.c.h.b16 %v3136
        %v3314 = vunpack.c.l.b16 %v3137
        %v3315 = vunpack.c.l.b16 %v3138
        %v3316 = vunpack.c.h.b16 %v3138
        %v3317 = vunpack.c.l.b16 %v3139
        %v3318 = vunpack.c.l.b16 %v3140
        %v3319 = vunpack.c.h.b16 %v3140
        %v3320 = vunpack.c.l.b16 %v3141
        %v3321 = vunpack.c.l.b16 %v3142
        %v3322 = vunpack.c.h.b16 %v3142
        %v3323 = vunpack.c.l.b16 %v3143
        %v3324 = vunpack.c.l.b16 %v3144
        %v3325 = vunpack.c.h.b16 %v3144
        %v3326 = vunpack.c.l.b16 %v3145
        %v3327 = vunpack.c.l.b16 %v3146
        %v3328 = vunpack.c.h.b16 %v3146
        %v3329 = vunpack.c.l.b16 %v3147
        %v3330 = vunpack.c.l.b16 %v3148
        %v3331 = vunpack.c.h.b16 %v3148
        %v3332 = vunpack.c.l.b16 %v3149
        %v3333 = vunpack.c.l.b16 %v3150
        %v3334 = vunpack.c.h.b16 %v3150
        %v3335 = vunpack.c.l.b16 %v3151
        %v3336 = vunpack.c.l.b16 %v3152
        %v3337 = vunpack.c.h.b16 %v3152
        %v3338 = vunpack.c.l.b16 %v3153
        %v3339 = vunpack.c.l.b16 %v3154
        %v3340 = vunpack.c.h.b16 %v3154
        %v3341 = vunpack.c.l.b16 %v3155
        %v3342 = vunpack.c.l.b16 %v3156
        %v3343 = vunpack.c.h.b16 %v3156
        %v3344 = vunpack.c.l.b16 %v3157
        %v3345 = vunpack.c.l.b16 %v3158
        %v3346 = vunpack.c.h.b16 %v3158
        %v3347 = vunpack.c.l.b16 %v3159
        %v3348 = vunpack.c.l.b16 %v3160
        %v3349 = vunpack.c.h.b16 %v3160
        %v3350 = vunpack.c.l.b16 %v3161
        %v3351 = vunpack.c.l.b16 %v3162
        %v3352 = vunpack.c.h.b16 %v3162
        %v3353 = vunpack.c.l.b16 %v3163
        %v3354 = vunpack.c.l.b16 %v3164
        %v3355 = vunpack.c.h.b16 %v3164
        %v3356 = vunpack.c.l.b16 %v3165
        %v3357 = vunpack.c.l.b16 %v3166
        %v3358 = vunpack.c.h.b16 %v3166
        %v3359 = vunpack.c.l.b16 %v3167
        %v3360 = vunpack.c.l.b16 %v3168
        %v3361 = vunpack.c.h.b16 %v3168
        %v3362 = vunpack.c.l.b16 %v3169
        %v3363 = vunpack.c.l.b16 %v3170
        %v3364 = vunpack.c.h.b16 %v3170
        %v3365 = vunpack.c.l.b16 %v3171
        %v3366 = vunpack.c.l.b16 %v3172
        %v3367 = vunpack.c.h.b16 %v3172
        %v3368 = vunpack.c.l.b16 %v3173
        %v3369 = vunpack.c.l.b16 %v3174
        %v3370 = vunpack.c.h.b16 %v3174
        %v3371 = vunpack.c.l.b16 %v3175
        %v3372 = vpack.c.b16 %v3279, %v3276
        %v3373 = vpack.c.b16 %v3280, %v3277
        %v3374 = vpack.c.b16 %v3281, %v3278
        %v3375 = vpack.c.b16 %v3285, %v3282
        %v3376 = vpack.c.b16 %v3286, %v3283
        %v3377 = vpack.c.b16 %v3287, %v3284
        %v3378 = vpack.c.b16 %v3291, %v3288
        %v3379 = vpack.c.b16 %v3292, %v3289
        %v3380 = vpack.c.b16 %v3293, %v3290
        %v3381 = vpack.c.b16 %v3297, %v3294
        %v3382 = vpack.c.b16 %v3298, %v3295
        %v3383 = vpack.c.b16 %v3299, %v3296
        %v3384 = vpack.c.b16 %v3303, %v3300
        %v3385 = vpack.c.b16 %v3304, %v3301
        %v3386 = vpack.c.b16 %v3305, %v3302
        %v3387 = vpack.c.b16 %v3309, %v3306
        %v3388 = vpack.c.b16 %v3310, %v3307
        %v3389 = vpack.c.b16 %v3311, %v3308
        %v3390 = vpack.c.b16 %v3315, %v3312
        %v3391 = vpack.c.b16 %v3316, %v3313
        %v3392 = vpack.c.b16 %v3317, %v3314
        %v3393 = vpack.c.b16 %v3321, %v3318
        %v3394 = vpack.c.b16 %v3322, %v3319
        %v3395 = vpack.c.b16 %v3323, %v3320
        %v3396 = vpack.c.b16 %v3327, %v3324
        %v3397 = vpack.c.b16 %v3328, %v3325
        %v3398 = vpack.c.b16 %v3329, %v3326
        %v3399 = vpack.c.b16 %v3333, %v3330
        %v3400 = vpack.c.b16 %v3334, %v3331
        %v3401 = vpack.c.b16 %v3335, %v3332
        %v3402 = vpack.c.b16 %v3339, %v3336
        %v3403 = vpack.c.b16 %v3340, %v3337
        %v3404 = vpack.c.b16 %v3341, %v3338
        %v3405 = vpack.c.b16 %v3345, %v3342
        %v3406 = vpack.c.b16 %v3346, %v3343
        %v3407 = vpack.c.b16 %v3347, %v3344
        %v3408 = vpack.c.b16 %v3351, %v3348
        %v3409 = vpack.c.b16 %v3352, %v3349
        %v3410 = vpack.c.b16 %v3353, %v3350
        %v3411 = vpack.c.b16 %v3357, %v3354
        %v3412 = vpack.c.b16 %v3358, %v3355
        %v3413 = vpack.c.b16 %v3359, %v3356
        %v3414 = vpack.c.b16 %v3363, %v3360
        %v3415 = vpack.c.b16 %v3364, %v3361
        %v3416 = vpack.c.b16 %v3365, %v3362
        %v3417 = vpack.c.b16 %v3369, %v3366
        %v3418 = vpack.c.b16 %v3370, %v3367
        %v3419 = vpack.c.b16 %v3371, %v3368
        %v3488 = vunpack.c.l.b16 %v3176
        %v3489 = vunpack.c.l.b16 %v3177
        %v3490 = vunpack.c.l.b16 %v3178
        %v3491 = vunpack.c.l.b16 %v3179
        %v3492 = vunpack.c.l.b16 %v3180
        %v3493 = vunpack.c.l.b16 %v3181
        %v3494 = vunpack.c.l.b16 %v3182
        %v3495 = vunpack.c.l.b16 %v3183
        %v3496 = vunpack.c.l.b16 %v3184
        %v3497 = vunpack.c.l.b16 %v3185
        %v3498 = vunpack.c.l.b16 %v3186
        %v3499 = vunpack.c.l.b16 %v3187
        %v3500 = vunpack.c.l.b16 %v3188
        %v3501 = vunpack.c.l.b16 %v3189
        %v3502 = vunpack.c.l.b16 %v3190
        %v3503 = vunpack.c.l.b16 %v3191
        %v3504 = vunpack.c.l.b16 %v3192
        %v3505 = vunpack.c.l.b16 %v3193
        %v3506 = vunpack.c.l.b16 %v3194
        %v3507 = vunpack.c.l.b16 %v3195
        %v3508 = vunpack.c.l.b16 %v3196
        %v3509 = vunpack.c.l.b16 %v3197
        %v3510 = vunpack.c.l.b16 %v3198
        %v3511 = vunpack.c.l.b16 %v3199
        %v3512 = vunpack.c.l.b16 %v3200
        %v3513 = vunpack.c.l.b16 %v3201
        %v3514 = vunpack.c.l.b16 %v3202
        %v3515 = vunpack.c.l.b16 %v3203
        %v3516 = vunpack.c.l.b16 %v3204
        %v3517 = vunpack.c.l.b16 %v3205
        %v3518 = vunpack.c.l.b16 %v3206
        %v3519 = vunpack.c.l.b16 %v3207
        %v3520 = vunpack.c.l.b16 %v3208
        %v3521 = vunpack.c.l.b16 %v3209
        %v3522 = vunpack.c.l.b16 %v3210
        %v3523 = vunpack.c.l.b16 %v3211
        %v3524 = vpack.c.b16 %v3489, %v3488
        %v3525 = vpack.c.b16 %v3491, %v3490
        %v3526 = vpack.c.b16 %v3493, %v3492
        %v3527 = vpack.c.b16 %v3495, %v3494
        %v3528 = vpack.c.b16 %v3497, %v3496
        %v3529 = vpack.c.b16 %v3499, %v3498
        %v3530 = vpack.c.b16 %v3501, %v3500
        %v3531 = vpack.c.b16 %v3503, %v3502
        %v3532 = vpack.c.b16 %v3505, %v3504
        %v3533 = vpack.c.b16 %v3507, %v3506
        %v3534 = vpack.c.b16 %v3509, %v3508
        %v3535 = vpack.c.b16 %v3511, %v3510
        %v3536 = vpack.c.b16 %v3513, %v3512
        %v3537 = vpack.c.b16 %v3515, %v3514
        %v3538 = vpack.c.b16 %v3517, %v3516
        %v3539 = vpack.c.b16 %v3519, %v3518
        %v3540 = vpack.c.b16 %v3521, %v3520
        %v3541 = vpack.c.b16 %v3523, %v3522
        %v3561 = vsel %vm916, %v3374, 0
        %v3564 = vsel %vm916, %v3377, 0
        %v3567 = vsel %vm916, %v3380, 0
        %v3570 = vsel %vm916, %v3383, 0
        %v3573 = vsel %vm916, %v3386, 0
        %v3576 = vsel %vm916, %v3389, 0
        %v3579 = vsel %vm916, %v3392, 0
        %v3582 = vsel %vm916, %v3395, 0
        %v3585 = vsel %vm916, %v3398, 0
        %v3588 = vsel %vm916, %v3401, 0
        %v3591 = vsel %vm916, %v3404, 0
        %v3594 = vsel %vm916, %v3407, 0
        %v3597 = vsel %vm916, %v3410, 0
        %v3600 = vsel %vm916, %v3413, 0
        %v3603 = vsel %vm916, %v3416, 0
        %v3606 = vsel %vm916, %v3419, 0
        %3608 = vmatprep.subr.bf16.mxu0 0
        %3609 = vmatpush1.bf16.msra.mxu0 %v3531
        %3610 = vmatprep.subr.bf16.mxu0 0
        %3611 = vmatpush1.bf16.msra.mxu0 %v3530
        %3612 = vmatprep.subr.bf16.mxu0 0
        %3613 = vmatpush1.bf16.msra.mxu0 %v3529
        %3614 = vmatprep.subr.bf16.mxu0 0
        %3615 = vmatpush1.bf16.msra.mxu0 %v3528
        %3616 = vmatprep.subr.bf16.mxu0 0
        %3617 = vmatpush1.bf16.msra.mxu0 %v3527
        %3618 = vmatprep.subr.bf16.mxu0 0
        %3619 = vmatpush1.bf16.msra.mxu0 %v3526
        %3620 = vmatprep.subr.bf16.mxu0 0
        %3621 = vmatpush1.bf16.msra.mxu0 %v3525
        %3622 = vmatprep.subr.bf16.mxu0 0
        %3623 = vmatpush1.bf16.msra.mxu0 %v3524
        %3624 = vmatprep.subr.bf16.mxu0 0
        %3625 = vmatpush2.bf16.msra.mxu0 %v3539
        %3626 = vmatprep.subr.bf16.mxu0 0
        %3627 = vmatpush2.bf16.msra.mxu0 %v3538
        %3628 = vmatprep.subr.bf16.mxu0 0
        %3629 = vmatpush2.bf16.msra.mxu0 %v3537
        %3630 = vmatprep.subr.bf16.mxu0 0
        %3631 = vmatpush2.bf16.msra.mxu0 %v3536
        %3632 = vmatprep.subr.bf16.mxu0 0
        %3633 = vmatpush2.bf16.msra.mxu0 %v3535
        %3634 = vmatprep.subr.bf16.mxu0 0
        %3635 = vmatpush2.bf16.msra.mxu0 %v3534
        %3636 = vmatprep.subr.bf16.mxu0 0
        %3637 = vmatpush2.bf16.msra.mxu0 %v3533
        %3638 = vmatprep.subr.bf16.mxu0 0
        %3639 = vmatpush2.bf16.msra.mxu0 %v3532
        %3640 = vmatprep.mubr.bf16.mxu0 %v3373
        %3641 = vmatmul.mubr.bf16.gmra.mxu0 %v3372
        %v3642 = vpop.f32.mrf.mxu0
        %v3643 = vadd.f32 0.0, %v3642
        %v3644 = vpop.f32.mrf.mxu0
        %v3645 = vpop.f32.mrf.mxu0
        %v3646 = vadd.f32 0.0, %v3645
        %v3647 = vpop.f32.mrf.mxu0
        %3648 = vmatprep.mubr.bf16.mxu0 %v3376
        %3649 = vmatmul.mubr.bf16.gmra.mxu0 %v3375
        %v3650 = vpop.f32.mrf.mxu0
        %v3651 = vadd.f32 0.0, %v3650
        %v3652 = vpop.f32.mrf.mxu0
        %v3653 = vpop.f32.mrf.mxu0
        %v3654 = vadd.f32 0.0, %v3653
        %v3655 = vpop.f32.mrf.mxu0
        %3656 = vmatprep.mubr.bf16.mxu0 %v3379
        %3657 = vmatmul.mubr.bf16.gmra.mxu0 %v3378
        %v3658 = vpop.f32.mrf.mxu0
        %v3659 = vadd.f32 0.0, %v3658
        %v3660 = vpop.f32.mrf.mxu0
        %v3661 = vpop.f32.mrf.mxu0
        %v3662 = vadd.f32 0.0, %v3661
        %v3663 = vpop.f32.mrf.mxu0
        %3664 = vmatprep.mubr.bf16.mxu0 %v3382
        %3665 = vmatmul.mubr.bf16.gmra.mxu0 %v3381
        %v3666 = vpop.f32.mrf.mxu0
        %v3667 = vadd.f32 0.0, %v3666
        %v3668 = vpop.f32.mrf.mxu0
        %v3669 = vpop.f32.mrf.mxu0
        %v3670 = vadd.f32 0.0, %v3669
        %v3671 = vpop.f32.mrf.mxu0
        %3672 = vmatprep.mubr.bf16.mxu0 %v3385
        %3673 = vmatmul.mubr.bf16.gmra.mxu0 %v3384
        %v3674 = vpop.f32.mrf.mxu0
        %v3675 = vadd.f32 0.0, %v3674
        %v3676 = vpop.f32.mrf.mxu0
        %v3677 = vpop.f32.mrf.mxu0
        %v3678 = vadd.f32 0.0, %v3677
        %v3679 = vpop.f32.mrf.mxu0
        %3680 = vmatprep.mubr.bf16.mxu0 %v3388
        %3681 = vmatmul.mubr.bf16.gmra.mxu0 %v3387
        %v3682 = vpop.f32.mrf.mxu0
        %v3683 = vadd.f32 0.0, %v3682
        %v3684 = vpop.f32.mrf.mxu0
        %v3685 = vpop.f32.mrf.mxu0
        %v3686 = vadd.f32 0.0, %v3685
        %v3687 = vpop.f32.mrf.mxu0
        %3688 = vmatprep.mubr.bf16.mxu0 %v3391
        %3689 = vmatmul.mubr.bf16.gmra.mxu0 %v3390
        %v3690 = vpop.f32.mrf.mxu0
        %v3691 = vadd.f32 0.0, %v3690
        %v3692 = vpop.f32.mrf.mxu0
        %v3693 = vpop.f32.mrf.mxu0
        %v3694 = vadd.f32 0.0, %v3693
        %v3695 = vpop.f32.mrf.mxu0
        %3696 = vmatprep.mubr.bf16.mxu0 %v3394
        %3697 = vmatmul.mubr.bf16.gmra.mxu0 %v3393
        %v3698 = vpop.f32.mrf.mxu0
        %v3699 = vadd.f32 0.0, %v3698
        %v3700 = vpop.f32.mrf.mxu0
        %v3701 = vpop.f32.mrf.mxu0
        %v3702 = vadd.f32 0.0, %v3701
        %v3703 = vpop.f32.mrf.mxu0
        %3704 = vmatprep.mubr.bf16.mxu0 %v3397
        %3705 = vmatmul.mubr.bf16.gmra.mxu0 %v3396
        %v3706 = vpop.f32.mrf.mxu0
        %v3707 = vadd.f32 0.0, %v3706
        %v3708 = vpop.f32.mrf.mxu0
        %v3709 = vpop.f32.mrf.mxu0
        %v3710 = vadd.f32 0.0, %v3709
        %v3711 = vpop.f32.mrf.mxu0
        %3712 = vmatprep.mubr.bf16.mxu0 %v3400
        %3713 = vmatmul.mubr.bf16.gmra.mxu0 %v3399
        %v3714 = vpop.f32.mrf.mxu0
        %v3715 = vadd.f32 0.0, %v3714
        %v3716 = vpop.f32.mrf.mxu0
        %v3717 = vpop.f32.mrf.mxu0
        %v3718 = vadd.f32 0.0, %v3717
        %v3719 = vpop.f32.mrf.mxu0
        %3720 = vmatprep.mubr.bf16.mxu0 %v3403
        %3721 = vmatmul.mubr.bf16.gmra.mxu0 %v3402
        %v3722 = vpop.f32.mrf.mxu0
        %v3723 = vadd.f32 0.0, %v3722
        %v3724 = vpop.f32.mrf.mxu0
        %v3725 = vpop.f32.mrf.mxu0
        %v3726 = vadd.f32 0.0, %v3725
        %v3727 = vpop.f32.mrf.mxu0
        %3728 = vmatprep.mubr.bf16.mxu0 %v3406
        %3729 = vmatmul.mubr.bf16.gmra.mxu0 %v3405
        %v3730 = vpop.f32.mrf.mxu0
        %v3731 = vadd.f32 0.0, %v3730
        %v3732 = vpop.f32.mrf.mxu0
        %v3733 = vpop.f32.mrf.mxu0
        %v3734 = vadd.f32 0.0, %v3733
        %v3735 = vpop.f32.mrf.mxu0
        %3736 = vmatprep.mubr.bf16.mxu0 %v3409
        %3737 = vmatmul.mubr.bf16.gmra.mxu0 %v3408
        %v3738 = vpop.f32.mrf.mxu0
        %v3739 = vadd.f32 0.0, %v3738
        %v3740 = vpop.f32.mrf.mxu0
        %v3741 = vpop.f32.mrf.mxu0
        %v3742 = vadd.f32 0.0, %v3741
        %v3743 = vpop.f32.mrf.mxu0
        %3744 = vmatprep.mubr.bf16.mxu0 %v3412
        %3745 = vmatmul.mubr.bf16.gmra.mxu0 %v3411
        %v3746 = vpop.f32.mrf.mxu0
        %v3747 = vadd.f32 0.0, %v3746
        %v3748 = vpop.f32.mrf.mxu0
        %v3749 = vpop.f32.mrf.mxu0
        %v3750 = vadd.f32 0.0, %v3749
        %v3751 = vpop.f32.mrf.mxu0
        %3752 = vmatprep.mubr.bf16.mxu0 %v3415
        %3753 = vmatmul.mubr.bf16.gmra.mxu0 %v3414
        %v3754 = vpop.f32.mrf.mxu0
        %v3755 = vadd.f32 0.0, %v3754
        %v3756 = vpop.f32.mrf.mxu0
        %v3757 = vpop.f32.mrf.mxu0
        %v3758 = vadd.f32 0.0, %v3757
        %v3759 = vpop.f32.mrf.mxu0
        %3760 = vmatprep.mubr.bf16.mxu0 %v3418
        %3761 = vmatmul.mubr.bf16.gmra.mxu0 %v3417
        %v3762 = vpop.f32.mrf.mxu0
        %v3763 = vadd.f32 0.0, %v3762
        %v3764 = vpop.f32.mrf.mxu0
        %v3765 = vpop.f32.mrf.mxu0
        %v3766 = vadd.f32 0.0, %v3765
        %v3767 = vpop.f32.mrf.mxu0
        %3768 = vdwg.mxu0
        %3769 = vmatprep.subr.bf16.mxu0 0
        %3770 = vmatpush1.bf16.msra.mxu0 0
        %3771 = vmatprep.subr.bf16.mxu0 0
        %3772 = vmatpush1.bf16.msra.mxu0 0
        %3773 = vmatprep.subr.bf16.mxu0 0
        %3774 = vmatpush1.bf16.msra.mxu0 0
        %3775 = vmatprep.subr.bf16.mxu0 0
        %3776 = vmatpush1.bf16.msra.mxu0 0
        %3777 = vmatprep.subr.bf16.mxu0 0
        %3778 = vmatpush1.bf16.msra.mxu0 0
        %3779 = vmatprep.subr.bf16.mxu0 0
        %3780 = vmatpush1.bf16.msra.mxu0 0
        %3781 = vmatprep.subr.bf16.mxu0 0
        %3782 = vmatpush1.bf16.msra.mxu0 %v3541
        %3783 = vmatprep.subr.bf16.mxu0 0
        %3784 = vmatpush1.bf16.msra.mxu0 %v3540
        %3785 = vmatprep.subr.bf16.mxu0 0
        %3786 = vmatpush2.bf16.msra.mxu0 0
        %3787 = vmatprep.subr.bf16.mxu0 0
        %3788 = vmatpush2.bf16.msra.mxu0 0
        %3789 = vmatprep.subr.bf16.mxu0 0
        %3790 = vmatpush2.bf16.msra.mxu0 0
        %3791 = vmatprep.subr.bf16.mxu0 0
        %3792 = vmatpush2.bf16.msra.mxu0 0
        %3793 = vmatprep.subr.bf16.mxu0 0
        %3794 = vmatpush2.bf16.msra.mxu0 0
        %3795 = vmatprep.subr.bf16.mxu0 0
        %3796 = vmatpush2.bf16.msra.mxu0 0
        %3797 = vmatprep.subr.bf16.mxu0 0
        %3798 = vmatpush2.bf16.msra.mxu0 0
        %3799 = vmatprep.subr.bf16.mxu0 0
        %3800 = vmatpush2.bf16.msra.mxu0 0
        %3801 = vmatprep.mubr.bf16.mxu0 0
        %3802 = vmatmul.mubr.bf16.gmra.mxu0 %v3561
        %v3803 = vpop.f32.mrf.mxu0
        %v3804 = vadd.f32 %v3643, %v3803
        %v3805 = vpop.f32.mrf.mxu0
        %v3806 = vpop.f32.mrf.mxu0
        %v3807 = vadd.f32 %v3646, %v3806
        %v3808 = vpop.f32.mrf.mxu0
        %3809 = vmatprep.mubr.bf16.mxu0 0
        %3810 = vmatmul.mubr.bf16.gmra.mxu0 %v3564
        %v3811 = vpop.f32.mrf.mxu0
        %v3812 = vadd.f32 %v3651, %v3811
        %v3813 = vpop.f32.mrf.mxu0
        %v3814 = vpop.f32.mrf.mxu0
        %v3815 = vadd.f32 %v3654, %v3814
        %v3816 = vpop.f32.mrf.mxu0
        %3817 = vmatprep.mubr.bf16.mxu0 0
        %3818 = vmatmul.mubr.bf16.gmra.mxu0 %v3567
        %v3819 = vpop.f32.mrf.mxu0
        %v3820 = vadd.f32 %v3659, %v3819
        %v3821 = vpop.f32.mrf.mxu0
        %v3822 = vpop.f32.mrf.mxu0
        %v3823 = vadd.f32 %v3662, %v3822
        %v3824 = vpop.f32.mrf.mxu0
        %3825 = vmatprep.mubr.bf16.mxu0 0
        %3826 = vmatmul.mubr.bf16.gmra.mxu0 %v3570
        %v3827 = vpop.f32.mrf.mxu0
        %v3828 = vadd.f32 %v3667, %v3827
        %v3829 = vpop.f32.mrf.mxu0
        %v3830 = vpop.f32.mrf.mxu0
        %v3831 = vadd.f32 %v3670, %v3830
        %v3832 = vpop.f32.mrf.mxu0
        %3833 = vmatprep.mubr.bf16.mxu0 0
        %3834 = vmatmul.mubr.bf16.gmra.mxu0 %v3573
        %v3835 = vpop.f32.mrf.mxu0
        %v3836 = vadd.f32 %v3675, %v3835
        %v3837 = vpop.f32.mrf.mxu0
        %v3838 = vpop.f32.mrf.mxu0
        %v3839 = vadd.f32 %v3678, %v3838
        %v3840 = vpop.f32.mrf.mxu0
        %3841 = vmatprep.mubr.bf16.mxu0 0
        %3842 = vmatmul.mubr.bf16.gmra.mxu0 %v3576
        %v3843 = vpop.f32.mrf.mxu0
        %v3844 = vadd.f32 %v3683, %v3843
        %v3845 = vpop.f32.mrf.mxu0
        %v3846 = vpop.f32.mrf.mxu0
        %v3847 = vadd.f32 %v3686, %v3846
        %v3848 = vpop.f32.mrf.mxu0
        %3849 = vmatprep.mubr.bf16.mxu0 0
        %3850 = vmatmul.mubr.bf16.gmra.mxu0 %v3579
        %v3851 = vpop.f32.mrf.mxu0
        %v3852 = vadd.f32 %v3691, %v3851
        %v3853 = vpop.f32.mrf.mxu0
        %v3854 = vpop.f32.mrf.mxu0
        %v3855 = vadd.f32 %v3694, %v3854
        %v3856 = vpop.f32.mrf.mxu0
        %3857 = vmatprep.mubr.bf16.mxu0 0
        %3858 = vmatmul.mubr.bf16.gmra.mxu0 %v3582
        %v3859 = vpop.f32.mrf.mxu0
        %v3860 = vadd.f32 %v3699, %v3859
        %v3861 = vpop.f32.mrf.mxu0
        %v3862 = vpop.f32.mrf.mxu0
        %v3863 = vadd.f32 %v3702, %v3862
        %v3864 = vpop.f32.mrf.mxu0
        %3865 = vmatprep.mubr.bf16.mxu0 0
        %3866 = vmatmul.mubr.bf16.gmra.mxu0 %v3585
        %v3867 = vpop.f32.mrf.mxu0
        %v3868 = vadd.f32 %v3707, %v3867
        %v3869 = vpop.f32.mrf.mxu0
        %v3870 = vpop.f32.mrf.mxu0
        %v3871 = vadd.f32 %v3710, %v3870
        %v3872 = vpop.f32.mrf.mxu0
        %3873 = vmatprep.mubr.bf16.mxu0 0
        %3874 = vmatmul.mubr.bf16.gmra.mxu0 %v3588
        %v3875 = vpop.f32.mrf.mxu0
        %v3876 = vadd.f32 %v3715, %v3875
        %v3877 = vpop.f32.mrf.mxu0
        %v3878 = vpop.f32.mrf.mxu0
        %v3879 = vadd.f32 %v3718, %v3878
        %v3880 = vpop.f32.mrf.mxu0
        %3881 = vmatprep.mubr.bf16.mxu0 0
        %3882 = vmatmul.mubr.bf16.gmra.mxu0 %v3591
        %v3883 = vpop.f32.mrf.mxu0
        %v3884 = vadd.f32 %v3723, %v3883
        %v3885 = vpop.f32.mrf.mxu0
        %v3886 = vpop.f32.mrf.mxu0
        %v3887 = vadd.f32 %v3726, %v3886
        %v3888 = vpop.f32.mrf.mxu0
        %3889 = vmatprep.mubr.bf16.mxu0 0
        %3890 = vmatmul.mubr.bf16.gmra.mxu0 %v3594
        %v3891 = vpop.f32.mrf.mxu0
        %v3892 = vadd.f32 %v3731, %v3891
        %v3893 = vpop.f32.mrf.mxu0
        %v3894 = vpop.f32.mrf.mxu0
        %v3895 = vadd.f32 %v3734, %v3894
        %v3896 = vpop.f32.mrf.mxu0
        %3897 = vmatprep.mubr.bf16.mxu0 0
        %3898 = vmatmul.mubr.bf16.gmra.mxu0 %v3597
        %v3899 = vpop.f32.mrf.mxu0
        %v3900 = vadd.f32 %v3739, %v3899
        %v3901 = vpop.f32.mrf.mxu0
        %v3902 = vpop.f32.mrf.mxu0
        %v3903 = vadd.f32 %v3742, %v3902
        %v3904 = vpop.f32.mrf.mxu0
        %3905 = vmatprep.mubr.bf16.mxu0 0
        %3906 = vmatmul.mubr.bf16.gmra.mxu0 %v3600
        %v3907 = vpop.f32.mrf.mxu0
        %v3908 = vadd.f32 %v3747, %v3907
        %v3909 = vpop.f32.mrf.mxu0
        %v3910 = vpop.f32.mrf.mxu0
        %v3911 = vadd.f32 %v3750, %v3910
        %v3912 = vpop.f32.mrf.mxu0
        %3913 = vmatprep.mubr.bf16.mxu0 0
        %3914 = vmatmul.mubr.bf16.gmra.mxu0 %v3603
        %v3915 = vpop.f32.mrf.mxu0
        %v3916 = vadd.f32 %v3755, %v3915
        %v3917 = vpop.f32.mrf.mxu0
        %v3918 = vpop.f32.mrf.mxu0
        %v3919 = vadd.f32 %v3758, %v3918
        %v3920 = vpop.f32.mrf.mxu0
        %3921 = vmatprep.mubr.bf16.mxu0 0
        %3922 = vmatmul.mubr.bf16.gmra.mxu0 %v3606
        %v3923 = vpop.f32.mrf.mxu0
        %v3924 = vadd.f32 %v3763, %v3923
        %v3925 = vpop.f32.mrf.mxu0
        %v3926 = vpop.f32.mrf.mxu0
        %v3927 = vadd.f32 %v3766, %v3926
        %v3928 = vpop.f32.mrf.mxu0
        %3929 = vdwg.mxu0
        %v3930 = vld [vmem:[%s3] sm:$0x1]
        %v3932 = vlaneseq
        %v3933 = vshrl.u32 %v3932, 7
        %v3934 = vsub.s32 0, %v3933
        %v3935 = vrot.slane %v3930, %v3934
        %v3937 = vmul.f32 %v3804, %v3935
        %v3938 = vmul.f32 %v3807, %v3935
        %v3939 = vmul.f32 %v3812, %v3935
        %v3940 = vmul.f32 %v3815, %v3935
        %v3941 = vmul.f32 %v3820, %v3935
        %v3942 = vmul.f32 %v3823, %v3935
        %v3943 = vmul.f32 %v3828, %v3935
        %v3944 = vmul.f32 %v3831, %v3935
        %v3945 = vmul.f32 %v3836, %v3935
        %v3946 = vmul.f32 %v3839, %v3935
        %v3947 = vmul.f32 %v3844, %v3935
        %v3948 = vmul.f32 %v3847, %v3935
        %v3949 = vmul.f32 %v3852, %v3935
        %v3950 = vmul.f32 %v3855, %v3935
        %v3951 = vmul.f32 %v3860, %v3935
        %v3952 = vmul.f32 %v3863, %v3935
        %v3953 = vmul.f32 %v3868, %v3935
        %v3954 = vmul.f32 %v3871, %v3935
        %v3955 = vmul.f32 %v3876, %v3935
        %v3956 = vmul.f32 %v3879, %v3935
        %v3957 = vmul.f32 %v3884, %v3935
        %v3958 = vmul.f32 %v3887, %v3935
        %v3959 = vmul.f32 %v3892, %v3935
        %v3960 = vmul.f32 %v3895, %v3935
        %v3961 = vmul.f32 %v3900, %v3935
        %v3962 = vmul.f32 %v3903, %v3935
        %v3963 = vmul.f32 %v3908, %v3935
        %v3964 = vmul.f32 %v3911, %v3935
        %v3965 = vmul.f32 %v3916, %v3935
        %v3966 = vmul.f32 %v3919, %v3935
        %v3967 = vmul.f32 %v3924, %v3935
        %v3968 = vmul.f32 %v3927, %v3935
        %v3969 = vld [vmem:[%s4] sm:$0x1]
        %v3971 = vlaneseq
        %v3972 = vshrl.u32 %v3971, 7
        %v3973 = vsub.s32 0, %v3972
        %v3974 = vrot.slane %v3969, %v3973
        %v3976 = vadd.f32 %v3937, %v3974
        %v3977 = vadd.f32 %v3938, %v3974
        %v3978 = vadd.f32 %v3939, %v3974
        %v3979 = vadd.f32 %v3940, %v3974
        %v3980 = vadd.f32 %v3941, %v3974
        %v3981 = vadd.f32 %v3942, %v3974
        %v3982 = vadd.f32 %v3943, %v3974
        %v3983 = vadd.f32 %v3944, %v3974
        %v3984 = vadd.f32 %v3945, %v3974
        %v3985 = vadd.f32 %v3946, %v3974
        %v3986 = vadd.f32 %v3947, %v3974
        %v3987 = vadd.f32 %v3948, %v3974
        %v3988 = vadd.f32 %v3949, %v3974
        %v3989 = vadd.f32 %v3950, %v3974
        %v3990 = vadd.f32 %v3951, %v3974
        %v3991 = vadd.f32 %v3952, %v3974
        %v3992 = vadd.f32 %v3953, %v3974
        %v3993 = vadd.f32 %v3954, %v3974
        %v3994 = vadd.f32 %v3955, %v3974
        %v3995 = vadd.f32 %v3956, %v3974
        %v3996 = vadd.f32 %v3957, %v3974
        %v3997 = vadd.f32 %v3958, %v3974
        %v3998 = vadd.f32 %v3959, %v3974
        %v3999 = vadd.f32 %v3960, %v3974
        %v4000 = vadd.f32 %v3961, %v3974
        %v4001 = vadd.f32 %v3962, %v3974
        %v4002 = vadd.f32 %v3963, %v3974
        %v4003 = vadd.f32 %v3964, %v3974
        %v4004 = vadd.f32 %v3965, %v3974
        %v4005 = vadd.f32 %v3966, %v3974
        %v4006 = vadd.f32 %v3967, %v3974
        %v4007 = vadd.f32 %v3968, %v3974
        %v4008 = vmax.f32 %v3976, 0.0
        %v4009 = vmax.f32 %v3977, 0.0
        %v4010 = vmax.f32 %v3978, 0.0
        %v4011 = vmax.f32 %v3979, 0.0
        %v4012 = vmax.f32 %v3980, 0.0
        %v4013 = vmax.f32 %v3981, 0.0
        %v4014 = vmax.f32 %v3982, 0.0
        %v4015 = vmax.f32 %v3983, 0.0
        %v4016 = vmax.f32 %v3984, 0.0
        %v4017 = vmax.f32 %v3985, 0.0
        %v4018 = vmax.f32 %v3986, 0.0
        %v4019 = vmax.f32 %v3987, 0.0
        %v4020 = vmax.f32 %v3988, 0.0
        %v4021 = vmax.f32 %v3989, 0.0
        %v4022 = vmax.f32 %v3990, 0.0
        %v4023 = vmax.f32 %v3991, 0.0
        %v4024 = vmax.f32 %v3992, 0.0
        %v4025 = vmax.f32 %v3993, 0.0
        %v4026 = vmax.f32 %v3994, 0.0
        %v4027 = vmax.f32 %v3995, 0.0
        %v4028 = vmax.f32 %v3996, 0.0
        %v4029 = vmax.f32 %v3997, 0.0
        %v4030 = vmax.f32 %v3998, 0.0
        %v4031 = vmax.f32 %v3999, 0.0
        %v4032 = vmax.f32 %v4000, 0.0
        %v4033 = vmax.f32 %v4001, 0.0
        %v4034 = vmax.f32 %v4002, 0.0
        %v4035 = vmax.f32 %v4003, 0.0
        %v4036 = vmax.f32 %v4004, 0.0
        %v4037 = vmax.f32 %v4005, 0.0
        %v4038 = vmax.f32 %v4006, 0.0
        %v4039 = vmax.f32 %v4007, 0.0
        %4040 = vst.msk [vmem:[%s962 + $0x1] sm:$0xff] %vm916, %v4008
        %4041 = vst.msk [vmem:[%s962 + $0x9] sm:$0xff] %vm916, %v4009
        %4042 = vst.msk [vmem:[%s962 + $0x19] sm:$0xff] %vm916, %v4010
        %4043 = vst.msk [vmem:[%s962 + $0x21] sm:$0xff] %vm916, %v4011
        %4044 = vst.msk [vmem:[%s962 + $0x31] sm:$0xff] %vm916, %v4012
        %4045 = vst.msk [vmem:[%s962 + $0x39] sm:$0xff] %vm916, %v4013
        %4046 = vst.msk [vmem:[%s962 + $0x49] sm:$0xff] %vm916, %v4014
        %4047 = vst.msk [vmem:[%s962 + $0x51] sm:$0xff] %vm916, %v4015
        %4048 = vst.msk [vmem:[%s962 + $0x61] sm:$0xff] %vm916, %v4016
        %4049 = vst.msk [vmem:[%s962 + $0x69] sm:$0xff] %vm916, %v4017
        %4050 = vst.msk [vmem:[%s962 + $0x79] sm:$0xff] %vm916, %v4018
        %4051 = vst.msk [vmem:[%s962 + $0x81] sm:$0xff] %vm916, %v4019
        %4052 = vst.msk [vmem:[%s962 + $0x91] sm:$0xff] %vm916, %v4020
        %4053 = vst.msk [vmem:[%s962 + $0x99] sm:$0xff] %vm916, %v4021
        %4054 = vst.msk [vmem:[%s962 + $0xa9] sm:$0xff] %vm916, %v4022
        %4055 = vst.msk [vmem:[%s962 + $0xb1] sm:$0xff] %vm916, %v4023
        %4056 = vst.msk [vmem:[%s962 + $0xc1] sm:$0xff] %vm916, %v4024
        %4057 = vst.msk [vmem:[%s962 + $0xc9] sm:$0xff] %vm916, %v4025
        %4058 = vst.msk [vmem:[%s962 + $0xd9] sm:$0xff] %vm916, %v4026
        %4059 = vst.msk [vmem:[%s962 + $0xe1] sm:$0xff] %vm916, %v4027
        %4060 = vst.msk [vmem:[%s962 + $0xf1] sm:$0xff] %vm916, %v4028
        %4061 = vst.msk [vmem:[%s962 + $0xf9] sm:$0xff] %vm916, %v4029
        %4062 = vst.msk [vmem:[%s962 + $0x109] sm:$0xff] %vm916, %v4030
        %4063 = vst.msk [vmem:[%s962 + $0x111] sm:$0xff] %vm916, %v4031
        %4064 = vst.msk [vmem:[%s962 + $0x121] sm:$0xff] %vm916, %v4032
        %4065 = vst.msk [vmem:[%s962 + $0x129] sm:$0xff] %vm916, %v4033
        %4066 = vst.msk [vmem:[%s962 + $0x139] sm:$0xff] %vm916, %v4034
        %4067 = vst.msk [vmem:[%s962 + $0x141] sm:$0xff] %vm916, %v4035
        %4068 = vst.msk [vmem:[%s962 + $0x151] sm:$0xff] %vm916, %v4036
        %4069 = vst.msk [vmem:[%s962 + $0x159] sm:$0xff] %vm916, %v4037
        %4070 = vst.msk [vmem:[%s962 + $0x169] sm:$0xff] %vm916, %v4038
        %4071 = vst.msk [vmem:[%s962 + $0x171] sm:$0xff] %vm916, %v4039
        %v4072 = vld [vmem:[#allocation2] sm:$0xff]
        %v4073 = vld [vmem:[#allocation2 + $0x8] sm:$0xff]
        %v4074 = vld [vmem:[#allocation2 + $0x18] sm:$0xff]
        %v4075 = vld [vmem:[#allocation2 + $0x20] sm:$0xff]
        %v4076 = vld [vmem:[#allocation2 + $0x30] sm:$0xff]
        %v4077 = vld [vmem:[#allocation2 + $0x38] sm:$0xff]
        %v4078 = vld [vmem:[#allocation2 + $0x48] sm:$0xff]
        %v4079 = vld [vmem:[#allocation2 + $0x50] sm:$0xff]
        %v4080 = vld [vmem:[#allocation2 + $0x60] sm:$0xff]
        %v4081 = vld [vmem:[#allocation2 + $0x68] sm:$0xff]
        %v4082 = vld [vmem:[#allocation2 + $0x78] sm:$0xff]
        %v4083 = vld [vmem:[#allocation2 + $0x80] sm:$0xff]
        %v4084 = vld [vmem:[#allocation2 + $0x90] sm:$0xff]
        %v4085 = vld [vmem:[#allocation2 + $0x98] sm:$0xff]
        %v4086 = vld [vmem:[#allocation2 + $0xa8] sm:$0xff]
        %v4087 = vld [vmem:[#allocation2 + $0xb0] sm:$0xff]
        %v4088 = vld [vmem:[#allocation2 + $0xc0] sm:$0xff]
        %v4089 = vld [vmem:[#allocation2 + $0xc8] sm:$0xff]
        %v4090 = vld [vmem:[#allocation2 + $0xd8] sm:$0xff]
        %v4091 = vld [vmem:[#allocation2 + $0xe0] sm:$0xff]
        %v4092 = vld [vmem:[#allocation2 + $0xf0] sm:$0xff]
        %v4093 = vld [vmem:[#allocation2 + $0xf8] sm:$0xff]
        %v4094 = vld [vmem:[#allocation2 + $0x108] sm:$0xff]
        %v4095 = vld [vmem:[#allocation2 + $0x110] sm:$0xff]
        %v4096 = vld [vmem:[#allocation2 + $0x120] sm:$0xff]
        %v4097 = vld [vmem:[#allocation2 + $0x128] sm:$0xff]
        %v4098 = vld [vmem:[#allocation2 + $0x138] sm:$0xff]
        %v4099 = vld [vmem:[#allocation2 + $0x140] sm:$0xff]
        %v4100 = vld [vmem:[#allocation2 + $0x150] sm:$0xff]
        %v4101 = vld [vmem:[#allocation2 + $0x158] sm:$0xff]
        %v4102 = vld [vmem:[#allocation2 + $0x168] sm:$0xff]
        %v4103 = vld [vmem:[#allocation2 + $0x170] sm:$0xff]
        %v4104 = vpack.c.bf16 %v4073, %v4072
        %v4105 = vpack.c.bf16 %v4075, %v4074
        %v4106 = vpack.c.bf16 %v4077, %v4076
        %v4107 = vpack.c.bf16 %v4079, %v4078
        %v4108 = vpack.c.bf16 %v4081, %v4080
        %v4109 = vpack.c.bf16 %v4083, %v4082
        %v4110 = vpack.c.bf16 %v4085, %v4084
        %v4111 = vpack.c.bf16 %v4087, %v4086
        %v4112 = vpack.c.bf16 %v4089, %v4088
        %v4113 = vpack.c.bf16 %v4091, %v4090
        %v4114 = vpack.c.bf16 %v4093, %v4092
        %v4115 = vpack.c.bf16 %v4095, %v4094
        %v4116 = vpack.c.bf16 %v4097, %v4096
        %v4117 = vpack.c.bf16 %v4099, %v4098
        %v4118 = vpack.c.bf16 %v4101, %v4100
        %v4119 = vpack.c.bf16 %v4103, %v4102
        %v4136 = vunpack.c.l.b16 %v4104
        %v4137 = vunpack.c.h.b16 %v4104
        %v4138 = vunpack.c.l.b16 %v4105
        %v4139 = vunpack.c.h.b16 %v4105
        %v4140 = vunpack.c.l.b16 %v4106
        %v4141 = vunpack.c.h.b16 %v4106
        %v4142 = vunpack.c.l.b16 %v4107
        %v4143 = vunpack.c.h.b16 %v4107
        %v4144 = vunpack.c.l.b16 %v4108
        %v4145 = vunpack.c.h.b16 %v4108
        %v4146 = vunpack.c.l.b16 %v4109
        %v4147 = vunpack.c.h.b16 %v4109
        %v4148 = vunpack.c.l.b16 %v4110
        %v4149 = vunpack.c.h.b16 %v4110
        %v4150 = vunpack.c.l.b16 %v4111
        %v4151 = vunpack.c.h.b16 %v4111
        %v4152 = vunpack.c.l.b16 %v4112
        %v4153 = vunpack.c.h.b16 %v4112
        %v4154 = vunpack.c.l.b16 %v4113
        %v4155 = vunpack.c.h.b16 %v4113
        %v4156 = vunpack.c.l.b16 %v4114
        %v4157 = vunpack.c.h.b16 %v4114
        %v4158 = vunpack.c.l.b16 %v4115
        %v4159 = vunpack.c.h.b16 %v4115
        %v4160 = vunpack.c.l.b16 %v4116
        %v4161 = vunpack.c.h.b16 %v4116
        %v4162 = vunpack.c.l.b16 %v4117
        %v4163 = vunpack.c.h.b16 %v4117
        %v4164 = vunpack.c.l.b16 %v4118
        %v4165 = vunpack.c.h.b16 %v4118
        %v4166 = vunpack.c.l.b16 %v4119
        %v4167 = vunpack.c.h.b16 %v4119
        %v4168 = vpack.c.b16 %v4136, %v4136
        %v4169 = vpack.c.b16 %v4137, %v4137
        %v4170 = vpack.c.b16 %v4138, %v4138
        %v4171 = vpack.c.b16 %v4139, %v4139
        %v4172 = vpack.c.b16 %v4140, %v4140
        %v4173 = vpack.c.b16 %v4141, %v4141
        %v4174 = vpack.c.b16 %v4142, %v4142
        %v4175 = vpack.c.b16 %v4143, %v4143
        %v4176 = vpack.c.b16 %v4144, %v4144
        %v4177 = vpack.c.b16 %v4145, %v4145
        %v4178 = vpack.c.b16 %v4146, %v4146
        %v4179 = vpack.c.b16 %v4147, %v4147
        %v4180 = vpack.c.b16 %v4148, %v4148
        %v4181 = vpack.c.b16 %v4149, %v4149
        %v4182 = vpack.c.b16 %v4150, %v4150
        %v4183 = vpack.c.b16 %v4151, %v4151
        %v4184 = vpack.c.b16 %v4152, %v4152
        %v4185 = vpack.c.b16 %v4153, %v4153
        %v4186 = vpack.c.b16 %v4154, %v4154
        %v4187 = vpack.c.b16 %v4155, %v4155
        %v4188 = vpack.c.b16 %v4156, %v4156
        %v4189 = vpack.c.b16 %v4157, %v4157
        %v4190 = vpack.c.b16 %v4158, %v4158
        %v4191 = vpack.c.b16 %v4159, %v4159
        %v4192 = vpack.c.b16 %v4160, %v4160
        %v4193 = vpack.c.b16 %v4161, %v4161
        %v4194 = vpack.c.b16 %v4162, %v4162
        %v4195 = vpack.c.b16 %v4163, %v4163
        %v4196 = vpack.c.b16 %v4164, %v4164
        %v4197 = vpack.c.b16 %v4165, %v4165
        %v4198 = vpack.c.b16 %v4166, %v4166
        %v4199 = vpack.c.b16 %v4167, %v4167
        %4232 = vst.msk [vmem:[#allocation3] sm:$0xf] %vm1155, %v4168
        %4233 = vst.msk [vmem:[#allocation3 + $0xc] sm:$0xf] %vm1155, %v4169
        %4234 = vst.msk [vmem:[#allocation3 + $0x18] sm:$0xf] %vm1155, %v4170
        %4235 = vst.msk [vmem:[#allocation3 + $0x24] sm:$0xf] %vm1155, %v4171
        %4236 = vst.msk [vmem:[#allocation3 + $0x30] sm:$0xf] %vm1155, %v4172
        %4237 = vst.msk [vmem:[#allocation3 + $0x3c] sm:$0xf] %vm1155, %v4173
        %4238 = vst.msk [vmem:[#allocation3 + $0x48] sm:$0xf] %vm1155, %v4174
        %4239 = vst.msk [vmem:[#allocation3 + $0x54] sm:$0xf] %vm1155, %v4175
        %4240 = vst.msk [vmem:[#allocation3 + $0x60] sm:$0xf] %vm1155, %v4176
        %4241 = vst.msk [vmem:[#allocation3 + $0x6c] sm:$0xf] %vm1155, %v4177
        %4242 = vst.msk [vmem:[#allocation3 + $0x78] sm:$0xf] %vm1155, %v4178
        %4243 = vst.msk [vmem:[#allocation3 + $0x84] sm:$0xf] %vm1155, %v4179
        %4244 = vst.msk [vmem:[#allocation3 + $0x90] sm:$0xf] %vm1155, %v4180
        %4245 = vst.msk [vmem:[#allocation3 + $0x9c] sm:$0xf] %vm1155, %v4181
        %4246 = vst.msk [vmem:[#allocation3 + $0xa8] sm:$0xf] %vm1155, %v4182
        %4247 = vst.msk [vmem:[#allocation3 + $0xb4] sm:$0xf] %vm1155, %v4183
        %4248 = vst.msk [vmem:[#allocation3 + $0xc0] sm:$0xf] %vm1155, %v4184
        %4249 = vst.msk [vmem:[#allocation3 + $0xcc] sm:$0xf] %vm1155, %v4185
        %4250 = vst.msk [vmem:[#allocation3 + $0xd8] sm:$0xf] %vm1155, %v4186
        %4251 = vst.msk [vmem:[#allocation3 + $0xe4] sm:$0xf] %vm1155, %v4187
        %4252 = vst.msk [vmem:[#allocation3 + $0xf0] sm:$0xf] %vm1155, %v4188
        %4253 = vst.msk [vmem:[#allocation3 + $0xfc] sm:$0xf] %vm1155, %v4189
        %4254 = vst.msk [vmem:[#allocation3 + $0x108] sm:$0xf] %vm1155, %v4190
        %4255 = vst.msk [vmem:[#allocation3 + $0x114] sm:$0xf] %vm1155, %v4191
        %4256 = vst.msk [vmem:[#allocation3 + $0x120] sm:$0xf] %vm1155, %v4192
        %4257 = vst.msk [vmem:[#allocation3 + $0x12c] sm:$0xf] %vm1155, %v4193
        %4258 = vst.msk [vmem:[#allocation3 + $0x138] sm:$0xf] %vm1155, %v4194
        %4259 = vst.msk [vmem:[#allocation3 + $0x144] sm:$0xf] %vm1155, %v4195
        %4260 = vst.msk [vmem:[#allocation3 + $0x150] sm:$0xf] %vm1155, %v4196
        %4261 = vst.msk [vmem:[#allocation3 + $0x15c] sm:$0xf] %vm1155, %v4197
        %4262 = vst.msk [vmem:[#allocation3 + $0x168] sm:$0xf] %vm1155, %v4198
        %4263 = vst.msk [vmem:[#allocation3 + $0x174] sm:$0xf] %vm1155, %v4199
        %v4264 = vld [vmem:[#allocation2 + $0x1] sm:$0xff]
        %v4265 = vld [vmem:[#allocation2 + $0x9] sm:$0xff]
        %v4266 = vld [vmem:[#allocation2 + $0x19] sm:$0xff]
        %v4267 = vld [vmem:[#allocation2 + $0x21] sm:$0xff]
        %v4268 = vld [vmem:[#allocation2 + $0x31] sm:$0xff]
        %v4269 = vld [vmem:[#allocation2 + $0x39] sm:$0xff]
        %v4270 = vld [vmem:[#allocation2 + $0x49] sm:$0xff]
        %v4271 = vld [vmem:[#allocation2 + $0x51] sm:$0xff]
        %v4272 = vld [vmem:[#allocation2 + $0x61] sm:$0xff]
        %v4273 = vld [vmem:[#allocation2 + $0x69] sm:$0xff]
        %v4274 = vld [vmem:[#allocation2 + $0x79] sm:$0xff]
        %v4275 = vld [vmem:[#allocation2 + $0x81] sm:$0xff]
        %v4276 = vld [vmem:[#allocation2 + $0x91] sm:$0xff]
        %v4277 = vld [vmem:[#allocation2 + $0x99] sm:$0xff]
        %v4278 = vld [vmem:[#allocation2 + $0xa9] sm:$0xff]
        %v4279 = vld [vmem:[#allocation2 + $0xb1] sm:$0xff]
        %v4280 = vld [vmem:[#allocation2 + $0xc1] sm:$0xff]
        %v4281 = vld [vmem:[#allocation2 + $0xc9] sm:$0xff]
        %v4282 = vld [vmem:[#allocation2 + $0xd9] sm:$0xff]
        %v4283 = vld [vmem:[#allocation2 + $0xe1] sm:$0xff]
        %v4284 = vld [vmem:[#allocation2 + $0xf1] sm:$0xff]
        %v4285 = vld [vmem:[#allocation2 + $0xf9] sm:$0xff]
        %v4286 = vld [vmem:[#allocation2 + $0x109] sm:$0xff]
        %v4287 = vld [vmem:[#allocation2 + $0x111] sm:$0xff]
        %v4288 = vld [vmem:[#allocation2 + $0x121] sm:$0xff]
        %v4289 = vld [vmem:[#allocation2 + $0x129] sm:$0xff]
        %v4290 = vld [vmem:[#allocation2 + $0x139] sm:$0xff]
        %v4291 = vld [vmem:[#allocation2 + $0x141] sm:$0xff]
        %v4292 = vld [vmem:[#allocation2 + $0x151] sm:$0xff]
        %v4293 = vld [vmem:[#allocation2 + $0x159] sm:$0xff]
        %v4294 = vld [vmem:[#allocation2 + $0x169] sm:$0xff]
        %v4295 = vld [vmem:[#allocation2 + $0x171] sm:$0xff]
        %v4296 = vpack.c.bf16 %v4265, %v4264
        %v4297 = vpack.c.bf16 %v4267, %v4266
        %v4298 = vpack.c.bf16 %v4269, %v4268
        %v4299 = vpack.c.bf16 %v4271, %v4270
        %v4300 = vpack.c.bf16 %v4273, %v4272
        %v4301 = vpack.c.bf16 %v4275, %v4274
        %v4302 = vpack.c.bf16 %v4277, %v4276
        %v4303 = vpack.c.bf16 %v4279, %v4278
        %v4304 = vpack.c.bf16 %v4281, %v4280
        %v4305 = vpack.c.bf16 %v4283, %v4282
        %v4306 = vpack.c.bf16 %v4285, %v4284
        %v4307 = vpack.c.bf16 %v4287, %v4286
        %v4308 = vpack.c.bf16 %v4289, %v4288
        %v4309 = vpack.c.bf16 %v4291, %v4290
        %v4310 = vpack.c.bf16 %v4293, %v4292
        %v4311 = vpack.c.bf16 %v4295, %v4294
        %v4328 = vunpack.c.l.b16 %v4296
        %v4329 = vunpack.c.h.b16 %v4296
        %v4330 = vunpack.c.l.b16 %v4297
        %v4331 = vunpack.c.h.b16 %v4297
        %v4332 = vunpack.c.l.b16 %v4298
        %v4333 = vunpack.c.h.b16 %v4298
        %v4334 = vunpack.c.l.b16 %v4299
        %v4335 = vunpack.c.h.b16 %v4299
        %v4336 = vunpack.c.l.b16 %v4300
        %v4337 = vunpack.c.h.b16 %v4300
        %v4338 = vunpack.c.l.b16 %v4301
        %v4339 = vunpack.c.h.b16 %v4301
        %v4340 = vunpack.c.l.b16 %v4302
        %v4341 = vunpack.c.h.b16 %v4302
        %v4342 = vunpack.c.l.b16 %v4303
        %v4343 = vunpack.c.h.b16 %v4303
        %v4344 = vunpack.c.l.b16 %v4304
        %v4345 = vunpack.c.h.b16 %v4304
        %v4346 = vunpack.c.l.b16 %v4305
        %v4347 = vunpack.c.h.b16 %v4305
        %v4348 = vunpack.c.l.b16 %v4306
        %v4349 = vunpack.c.h.b16 %v4306
        %v4350 = vunpack.c.l.b16 %v4307
        %v4351 = vunpack.c.h.b16 %v4307
        %v4352 = vunpack.c.l.b16 %v4308
        %v4353 = vunpack.c.h.b16 %v4308
        %v4354 = vunpack.c.l.b16 %v4309
        %v4355 = vunpack.c.h.b16 %v4309
        %v4356 = vunpack.c.l.b16 %v4310
        %v4357 = vunpack.c.h.b16 %v4310
        %v4358 = vunpack.c.l.b16 %v4311
        %v4359 = vunpack.c.h.b16 %v4311
        %v4360 = vpack.c.b16 %v4328, %v4328
        %v4361 = vpack.c.b16 %v4329, %v4329
        %v4362 = vpack.c.b16 %v4330, %v4330
        %v4363 = vpack.c.b16 %v4331, %v4331
        %v4364 = vpack.c.b16 %v4332, %v4332
        %v4365 = vpack.c.b16 %v4333, %v4333
        %v4366 = vpack.c.b16 %v4334, %v4334
        %v4367 = vpack.c.b16 %v4335, %v4335
        %v4368 = vpack.c.b16 %v4336, %v4336
        %v4369 = vpack.c.b16 %v4337, %v4337
        %v4370 = vpack.c.b16 %v4338, %v4338
        %v4371 = vpack.c.b16 %v4339, %v4339
        %v4372 = vpack.c.b16 %v4340, %v4340
        %v4373 = vpack.c.b16 %v4341, %v4341
        %v4374 = vpack.c.b16 %v4342, %v4342
        %v4375 = vpack.c.b16 %v4343, %v4343
        %v4376 = vpack.c.b16 %v4344, %v4344
        %v4377 = vpack.c.b16 %v4345, %v4345
        %v4378 = vpack.c.b16 %v4346, %v4346
        %v4379 = vpack.c.b16 %v4347, %v4347
        %v4380 = vpack.c.b16 %v4348, %v4348
        %v4381 = vpack.c.b16 %v4349, %v4349
        %v4382 = vpack.c.b16 %v4350, %v4350
        %v4383 = vpack.c.b16 %v4351, %v4351
        %v4384 = vpack.c.b16 %v4352, %v4352
        %v4385 = vpack.c.b16 %v4353, %v4353
        %v4386 = vpack.c.b16 %v4354, %v4354
        %v4387 = vpack.c.b16 %v4355, %v4355
        %v4388 = vpack.c.b16 %v4356, %v4356
        %v4389 = vpack.c.b16 %v4357, %v4357
        %v4390 = vpack.c.b16 %v4358, %v4358
        %v4391 = vpack.c.b16 %v4359, %v4359
        %4392 = vrot.lane.b32.xlu0 %v4360, 32
        %v4393 = vpop.permute.xlu0 %4392
        %4394 = vrot.lane.b32.xlu0 %v4361, 32
        %v4395 = vpop.permute.xlu0 %4394
        %4396 = vrot.lane.b32.xlu0 %v4362, 32
        %v4397 = vpop.permute.xlu0 %4396
        %4398 = vrot.lane.b32.xlu0 %v4363, 32
        %v4399 = vpop.permute.xlu0 %4398
        %4400 = vrot.lane.b32.xlu0 %v4364, 32
        %v4401 = vpop.permute.xlu0 %4400
        %4402 = vrot.lane.b32.xlu0 %v4365, 32
        %v4403 = vpop.permute.xlu0 %4402
        %4404 = vrot.lane.b32.xlu0 %v4366, 32
        %v4405 = vpop.permute.xlu0 %4404
        %4406 = vrot.lane.b32.xlu0 %v4367, 32
        %v4407 = vpop.permute.xlu0 %4406
        %4408 = vrot.lane.b32.xlu0 %v4368, 32
        %v4409 = vpop.permute.xlu0 %4408
        %4410 = vrot.lane.b32.xlu0 %v4369, 32
        %v4411 = vpop.permute.xlu0 %4410
        %4412 = vrot.lane.b32.xlu0 %v4370, 32
        %v4413 = vpop.permute.xlu0 %4412
        %4414 = vrot.lane.b32.xlu0 %v4371, 32
        %v4415 = vpop.permute.xlu0 %4414
        %4416 = vrot.lane.b32.xlu0 %v4372, 32
        %v4417 = vpop.permute.xlu0 %4416
        %4418 = vrot.lane.b32.xlu0 %v4373, 32
        %v4419 = vpop.permute.xlu0 %4418
        %4420 = vrot.lane.b32.xlu0 %v4374, 32
        %v4421 = vpop.permute.xlu0 %4420
        %4422 = vrot.lane.b32.xlu0 %v4375, 32
        %v4423 = vpop.permute.xlu0 %4422
        %4424 = vrot.lane.b32.xlu0 %v4376, 32
        %v4425 = vpop.permute.xlu0 %4424
        %4426 = vrot.lane.b32.xlu0 %v4377, 32
        %v4427 = vpop.permute.xlu0 %4426
        %4428 = vrot.lane.b32.xlu0 %v4378, 32
        %v4429 = vpop.permute.xlu0 %4428
        %4430 = vrot.lane.b32.xlu0 %v4379, 32
        %v4431 = vpop.permute.xlu0 %4430
        %4432 = vrot.lane.b32.xlu0 %v4380, 32
        %v4433 = vpop.permute.xlu0 %4432
        %4434 = vrot.lane.b32.xlu0 %v4381, 32
        %v4435 = vpop.permute.xlu0 %4434
        %4436 = vrot.lane.b32.xlu0 %v4382, 32
        %v4437 = vpop.permute.xlu0 %4436
        %4438 = vrot.lane.b32.xlu0 %v4383, 32
        %v4439 = vpop.permute.xlu0 %4438
        %4440 = vrot.lane.b32.xlu0 %v4384, 32
        %v4441 = vpop.permute.xlu0 %4440
        %4442 = vrot.lane.b32.xlu0 %v4385, 32
        %v4443 = vpop.permute.xlu0 %4442
        %4444 = vrot.lane.b32.xlu0 %v4386, 32
        %v4445 = vpop.permute.xlu0 %4444
        %4446 = vrot.lane.b32.xlu0 %v4387, 32
        %v4447 = vpop.permute.xlu0 %4446
        %4448 = vrot.lane.b32.xlu0 %v4388, 32
        %v4449 = vpop.permute.xlu0 %4448
        %4450 = vrot.lane.b32.xlu0 %v4389, 32
        %v4451 = vpop.permute.xlu0 %4450
        %4452 = vrot.lane.b32.xlu0 %v4390, 32
        %v4453 = vpop.permute.xlu0 %4452
        %4454 = vrot.lane.b32.xlu0 %v4391, 32
        %v4455 = vpop.permute.xlu0 %4454
        %4488 = vst.msk [vmem:[#allocation3] sm:$0xf] %vm1412, %v4393
        %4489 = vst.msk [vmem:[#allocation3 + $0xc] sm:$0xf] %vm1412, %v4395
        %4490 = vst.msk [vmem:[#allocation3 + $0x18] sm:$0xf] %vm1412, %v4397
        %4491 = vst.msk [vmem:[#allocation3 + $0x24] sm:$0xf] %vm1412, %v4399
        %4492 = vst.msk [vmem:[#allocation3 + $0x30] sm:$0xf] %vm1412, %v4401
        %4493 = vst.msk [vmem:[#allocation3 + $0x3c] sm:$0xf] %vm1412, %v4403
        %4494 = vst.msk [vmem:[#allocation3 + $0x48] sm:$0xf] %vm1412, %v4405
        %4495 = vst.msk [vmem:[#allocation3 + $0x54] sm:$0xf] %vm1412, %v4407
        %4496 = vst.msk [vmem:[#allocation3 + $0x60] sm:$0xf] %vm1412, %v4409
        %4497 = vst.msk [vmem:[#allocation3 + $0x6c] sm:$0xf] %vm1412, %v4411
        %4498 = vst.msk [vmem:[#allocation3 + $0x78] sm:$0xf] %vm1412, %v4413
        %4499 = vst.msk [vmem:[#allocation3 + $0x84] sm:$0xf] %vm1412, %v4415
        %4500 = vst.msk [vmem:[#allocation3 + $0x90] sm:$0xf] %vm1412, %v4417
        %4501 = vst.msk [vmem:[#allocation3 + $0x9c] sm:$0xf] %vm1412, %v4419
        %4502 = vst.msk [vmem:[#allocation3 + $0xa8] sm:$0xf] %vm1412, %v4421
        %4503 = vst.msk [vmem:[#allocation3 + $0xb4] sm:$0xf] %vm1412, %v4423
        %4504 = vst.msk [vmem:[#allocation3 + $0xc0] sm:$0xf] %vm1412, %v4425
        %4505 = vst.msk [vmem:[#allocation3 + $0xcc] sm:$0xf] %vm1412, %v4427
        %4506 = vst.msk [vmem:[#allocation3 + $0xd8] sm:$0xf] %vm1412, %v4429
        %4507 = vst.msk [vmem:[#allocation3 + $0xe4] sm:$0xf] %vm1412, %v4431
        %4508 = vst.msk [vmem:[#allocation3 + $0xf0] sm:$0xf] %vm1412, %v4433
        %4509 = vst.msk [vmem:[#allocation3 + $0xfc] sm:$0xf] %vm1412, %v4435
        %4510 = vst.msk [vmem:[#allocation3 + $0x108] sm:$0xf] %vm1412, %v4437
        %4511 = vst.msk [vmem:[#allocation3 + $0x114] sm:$0xf] %vm1412, %v4439
        %4512 = vst.msk [vmem:[#allocation3 + $0x120] sm:$0xf] %vm1412, %v4441
        %4513 = vst.msk [vmem:[#allocation3 + $0x12c] sm:$0xf] %vm1412, %v4443
        %4514 = vst.msk [vmem:[#allocation3 + $0x138] sm:$0xf] %vm1412, %v4445
        %4515 = vst.msk [vmem:[#allocation3 + $0x144] sm:$0xf] %vm1412, %v4447
        %4516 = vst.msk [vmem:[#allocation3 + $0x150] sm:$0xf] %vm1412, %v4449
        %4517 = vst.msk [vmem:[#allocation3 + $0x15c] sm:$0xf] %vm1412, %v4451
        %4518 = vst.msk [vmem:[#allocation3 + $0x168] sm:$0xf] %vm1412, %v4453
        %4519 = vst.msk [vmem:[#allocation3 + $0x174] sm:$0xf] %vm1412, %v4455
        %v4520 = vld [vmem:[#allocation2 + $0x2] sm:$0xff]
        %v4521 = vld [vmem:[#allocation2 + $0xa] sm:$0xff]
        %v4522 = vld [vmem:[#allocation2 + $0x1a] sm:$0xff]
        %v4523 = vld [vmem:[#allocation2 + $0x22] sm:$0xff]
        %v4524 = vld [vmem:[#allocation2 + $0x32] sm:$0xff]
        %v4525 = vld [vmem:[#allocation2 + $0x3a] sm:$0xff]
        %v4526 = vld [vmem:[#allocation2 + $0x4a] sm:$0xff]
        %v4527 = vld [vmem:[#allocation2 + $0x52] sm:$0xff]
        %v4528 = vld [vmem:[#allocation2 + $0x62] sm:$0xff]
        %v4529 = vld [vmem:[#allocation2 + $0x6a] sm:$0xff]
        %v4530 = vld [vmem:[#allocation2 + $0x7a] sm:$0xff]
        %v4531 = vld [vmem:[#allocation2 + $0x82] sm:$0xff]
        %v4532 = vld [vmem:[#allocation2 + $0x92] sm:$0xff]
        %v4533 = vld [vmem:[#allocation2 + $0x9a] sm:$0xff]
        %v4534 = vld [vmem:[#allocation2 + $0xaa] sm:$0xff]
        %v4535 = vld [vmem:[#allocation2 + $0xb2] sm:$0xff]
        %v4536 = vld [vmem:[#allocation2 + $0xc2] sm:$0xff]
        %v4537 = vld [vmem:[#allocation2 + $0xca] sm:$0xff]
        %v4538 = vld [vmem:[#allocation2 + $0xda] sm:$0xff]
        %v4539 = vld [vmem:[#allocation2 + $0xe2] sm:$0xff]
        %v4540 = vld [vmem:[#allocation2 + $0xf2] sm:$0xff]
        %v4541 = vld [vmem:[#allocation2 + $0xfa] sm:$0xff]
        %v4542 = vld [vmem:[#allocation2 + $0x10a] sm:$0xff]
        %v4543 = vld [vmem:[#allocation2 + $0x112] sm:$0xff]
        %v4544 = vld [vmem:[#allocation2 + $0x122] sm:$0xff]
        %v4545 = vld [vmem:[#allocation2 + $0x12a] sm:$0xff]
        %v4546 = vld [vmem:[#allocation2 + $0x13a] sm:$0xff]
        %v4547 = vld [vmem:[#allocation2 + $0x142] sm:$0xff]
        %v4548 = vld [vmem:[#allocation2 + $0x152] sm:$0xff]
        %v4549 = vld [vmem:[#allocation2 + $0x15a] sm:$0xff]
        %v4550 = vld [vmem:[#allocation2 + $0x16a] sm:$0xff]
        %v4551 = vld [vmem:[#allocation2 + $0x172] sm:$0xff]
        %v4552 = vpack.c.bf16 %v4521, %v4520
        %v4553 = vpack.c.bf16 %v4523, %v4522
        %v4554 = vpack.c.bf16 %v4525, %v4524
        %v4555 = vpack.c.bf16 %v4527, %v4526
        %v4556 = vpack.c.bf16 %v4529, %v4528
        %v4557 = vpack.c.bf16 %v4531, %v4530
        %v4558 = vpack.c.bf16 %v4533, %v4532
        %v4559 = vpack.c.bf16 %v4535, %v4534
        %v4560 = vpack.c.bf16 %v4537, %v4536
        %v4561 = vpack.c.bf16 %v4539, %v4538
        %v4562 = vpack.c.bf16 %v4541, %v4540
        %v4563 = vpack.c.bf16 %v4543, %v4542
        %v4564 = vpack.c.bf16 %v4545, %v4544
        %v4565 = vpack.c.bf16 %v4547, %v4546
        %v4566 = vpack.c.bf16 %v4549, %v4548
        %v4567 = vpack.c.bf16 %v4551, %v4550
        %v4584 = vunpack.c.l.b16 %v4552
        %v4585 = vunpack.c.h.b16 %v4552
        %v4586 = vunpack.c.l.b16 %v4553
        %v4587 = vunpack.c.h.b16 %v4553
        %v4588 = vunpack.c.l.b16 %v4554
        %v4589 = vunpack.c.h.b16 %v4554
        %v4590 = vunpack.c.l.b16 %v4555
        %v4591 = vunpack.c.h.b16 %v4555
        %v4592 = vunpack.c.l.b16 %v4556
        %v4593 = vunpack.c.h.b16 %v4556
        %v4594 = vunpack.c.l.b16 %v4557
        %v4595 = vunpack.c.h.b16 %v4557
        %v4596 = vunpack.c.l.b16 %v4558
        %v4597 = vunpack.c.h.b16 %v4558
        %v4598 = vunpack.c.l.b16 %v4559
        %v4599 = vunpack.c.h.b16 %v4559
        %v4600 = vunpack.c.l.b16 %v4560
        %v4601 = vunpack.c.h.b16 %v4560
        %v4602 = vunpack.c.l.b16 %v4561
        %v4603 = vunpack.c.h.b16 %v4561
        %v4604 = vunpack.c.l.b16 %v4562
        %v4605 = vunpack.c.h.b16 %v4562
        %v4606 = vunpack.c.l.b16 %v4563
        %v4607 = vunpack.c.h.b16 %v4563
        %v4608 = vunpack.c.l.b16 %v4564
        %v4609 = vunpack.c.h.b16 %v4564
        %v4610 = vunpack.c.l.b16 %v4565
        %v4611 = vunpack.c.h.b16 %v4565
        %v4612 = vunpack.c.l.b16 %v4566
        %v4613 = vunpack.c.h.b16 %v4566
        %v4614 = vunpack.c.l.b16 %v4567
        %v4615 = vunpack.c.h.b16 %v4567
        %v4616 = vpack.c.b16 %v4584, %v4584
        %v4617 = vpack.c.b16 %v4585, %v4585
        %v4618 = vpack.c.b16 %v4586, %v4586
        %v4619 = vpack.c.b16 %v4587, %v4587
        %v4620 = vpack.c.b16 %v4588, %v4588
        %v4621 = vpack.c.b16 %v4589, %v4589
        %v4622 = vpack.c.b16 %v4590, %v4590
        %v4623 = vpack.c.b16 %v4591, %v4591
        %v4624 = vpack.c.b16 %v4592, %v4592
        %v4625 = vpack.c.b16 %v4593, %v4593
        %v4626 = vpack.c.b16 %v4594, %v4594
        %v4627 = vpack.c.b16 %v4595, %v4595
        %v4628 = vpack.c.b16 %v4596, %v4596
        %v4629 = vpack.c.b16 %v4597, %v4597
        %v4630 = vpack.c.b16 %v4598, %v4598
        %v4631 = vpack.c.b16 %v4599, %v4599
        %v4632 = vpack.c.b16 %v4600, %v4600
        %v4633 = vpack.c.b16 %v4601, %v4601
        %v4634 = vpack.c.b16 %v4602, %v4602
        %v4635 = vpack.c.b16 %v4603, %v4603
        %v4636 = vpack.c.b16 %v4604, %v4604
        %v4637 = vpack.c.b16 %v4605, %v4605
        %v4638 = vpack.c.b16 %v4606, %v4606
        %v4639 = vpack.c.b16 %v4607, %v4607
        %v4640 = vpack.c.b16 %v4608, %v4608
        %v4641 = vpack.c.b16 %v4609, %v4609
        %v4642 = vpack.c.b16 %v4610, %v4610
        %v4643 = vpack.c.b16 %v4611, %v4611
        %v4644 = vpack.c.b16 %v4612, %v4612
        %v4645 = vpack.c.b16 %v4613, %v4613
        %v4646 = vpack.c.b16 %v4614, %v4614
        %v4647 = vpack.c.b16 %v4615, %v4615
        %4648 = vrot.lane.b32.xlu0 %v4616, 64
        %v4649 = vpop.permute.xlu0 %4648
        %4650 = vrot.lane.b32.xlu0 %v4617, 64
        %v4651 = vpop.permute.xlu0 %4650
        %4652 = vrot.lane.b32.xlu0 %v4618, 64
        %v4653 = vpop.permute.xlu0 %4652
        %4654 = vrot.lane.b32.xlu0 %v4619, 64
        %v4655 = vpop.permute.xlu0 %4654
        %4656 = vrot.lane.b32.xlu0 %v4620, 64
        %v4657 = vpop.permute.xlu0 %4656
        %4658 = vrot.lane.b32.xlu0 %v4621, 64
        %v4659 = vpop.permute.xlu0 %4658
        %4660 = vrot.lane.b32.xlu0 %v4622, 64
        %v4661 = vpop.permute.xlu0 %4660
        %4662 = vrot.lane.b32.xlu0 %v4623, 64
        %v4663 = vpop.permute.xlu0 %4662
        %4664 = vrot.lane.b32.xlu0 %v4624, 64
        %v4665 = vpop.permute.xlu0 %4664
        %4666 = vrot.lane.b32.xlu0 %v4625, 64
        %v4667 = vpop.permute.xlu0 %4666
        %4668 = vrot.lane.b32.xlu0 %v4626, 64
        %v4669 = vpop.permute.xlu0 %4668
        %4670 = vrot.lane.b32.xlu0 %v4627, 64
        %v4671 = vpop.permute.xlu0 %4670
        %4672 = vrot.lane.b32.xlu0 %v4628, 64
        %v4673 = vpop.permute.xlu0 %4672
        %4674 = vrot.lane.b32.xlu0 %v4629, 64
        %v4675 = vpop.permute.xlu0 %4674
        %4676 = vrot.lane.b32.xlu0 %v4630, 64
        %v4677 = vpop.permute.xlu0 %4676
        %4678 = vrot.lane.b32.xlu0 %v4631, 64
        %v4679 = vpop.permute.xlu0 %4678
        %4680 = vrot.lane.b32.xlu0 %v4632, 64
        %v4681 = vpop.permute.xlu0 %4680
        %4682 = vrot.lane.b32.xlu0 %v4633, 64
        %v4683 = vpop.permute.xlu0 %4682
        %4684 = vrot.lane.b32.xlu0 %v4634, 64
        %v4685 = vpop.permute.xlu0 %4684
        %4686 = vrot.lane.b32.xlu0 %v4635, 64
        %v4687 = vpop.permute.xlu0 %4686
        %4688 = vrot.lane.b32.xlu0 %v4636, 64
        %v4689 = vpop.permute.xlu0 %4688
        %4690 = vrot.lane.b32.xlu0 %v4637, 64
        %v4691 = vpop.permute.xlu0 %4690
        %4692 = vrot.lane.b32.xlu0 %v4638, 64
        %v4693 = vpop.permute.xlu0 %4692
        %4694 = vrot.lane.b32.xlu0 %v4639, 64
        %v4695 = vpop.permute.xlu0 %4694
        %4696 = vrot.lane.b32.xlu0 %v4640, 64
        %v4697 = vpop.permute.xlu0 %4696
        %4698 = vrot.lane.b32.xlu0 %v4641, 64
        %v4699 = vpop.permute.xlu0 %4698
        %4700 = vrot.lane.b32.xlu0 %v4642, 64
        %v4701 = vpop.permute.xlu0 %4700
        %4702 = vrot.lane.b32.xlu0 %v4643, 64
        %v4703 = vpop.permute.xlu0 %4702
        %4704 = vrot.lane.b32.xlu0 %v4644, 64
        %v4705 = vpop.permute.xlu0 %4704
        %4706 = vrot.lane.b32.xlu0 %v4645, 64
        %v4707 = vpop.permute.xlu0 %4706
        %4708 = vrot.lane.b32.xlu0 %v4646, 64
        %v4709 = vpop.permute.xlu0 %4708
        %4710 = vrot.lane.b32.xlu0 %v4647, 64
        %v4711 = vpop.permute.xlu0 %4710
        %4744 = vst.msk [vmem:[#allocation3] sm:$0xf] %vm1669, %v4649
        %4745 = vst.msk [vmem:[#allocation3 + $0xc] sm:$0xf] %vm1669, %v4651
        %4746 = vst.msk [vmem:[#allocation3 + $0x18] sm:$0xf] %vm1669, %v4653
        %4747 = vst.msk [vmem:[#allocation3 + $0x24] sm:$0xf] %vm1669, %v4655
        %4748 = vst.msk [vmem:[#allocation3 + $0x30] sm:$0xf] %vm1669, %v4657
        %4749 = vst.msk [vmem:[#allocation3 + $0x3c] sm:$0xf] %vm1669, %v4659
        %4750 = vst.msk [vmem:[#allocation3 + $0x48] sm:$0xf] %vm1669, %v4661
        %4751 = vst.msk [vmem:[#allocation3 + $0x54] sm:$0xf] %vm1669, %v4663
        %4752 = vst.msk [vmem:[#allocation3 + $0x60] sm:$0xf] %vm1669, %v4665
        %4753 = vst.msk [vmem:[#allocation3 + $0x6c] sm:$0xf] %vm1669, %v4667
        %4754 = vst.msk [vmem:[#allocation3 + $0x78] sm:$0xf] %vm1669, %v4669
        %4755 = vst.msk [vmem:[#allocation3 + $0x84] sm:$0xf] %vm1669, %v4671
        %4756 = vst.msk [vmem:[#allocation3 + $0x90] sm:$0xf] %vm1669, %v4673
        %4757 = vst.msk [vmem:[#allocation3 + $0x9c] sm:$0xf] %vm1669, %v4675
        %4758 = vst.msk [vmem:[#allocation3 + $0xa8] sm:$0xf] %vm1669, %v4677
        %4759 = vst.msk [vmem:[#allocation3 + $0xb4] sm:$0xf] %vm1669, %v4679
        %4760 = vst.msk [vmem:[#allocation3 + $0xc0] sm:$0xf] %vm1669, %v4681
        %4761 = vst.msk [vmem:[#allocation3 + $0xcc] sm:$0xf] %vm1669, %v4683
        %4762 = vst.msk [vmem:[#allocation3 + $0xd8] sm:$0xf] %vm1669, %v4685
        %4763 = vst.msk [vmem:[#allocation3 + $0xe4] sm:$0xf] %vm1669, %v4687
        %4764 = vst.msk [vmem:[#allocation3 + $0xf0] sm:$0xf] %vm1669, %v4689
        %4765 = vst.msk [vmem:[#allocation3 + $0xfc] sm:$0xf] %vm1669, %v4691
        %4766 = vst.msk [vmem:[#allocation3 + $0x108] sm:$0xf] %vm1669, %v4693
        %4767 = vst.msk [vmem:[#allocation3 + $0x114] sm:$0xf] %vm1669, %v4695
        %4768 = vst.msk [vmem:[#allocation3 + $0x120] sm:$0xf] %vm1669, %v4697
        %4769 = vst.msk [vmem:[#allocation3 + $0x12c] sm:$0xf] %vm1669, %v4699
        %4770 = vst.msk [vmem:[#allocation3 + $0x138] sm:$0xf] %vm1669, %v4701
        %4771 = vst.msk [vmem:[#allocation3 + $0x144] sm:$0xf] %vm1669, %v4703
        %4772 = vst.msk [vmem:[#allocation3 + $0x150] sm:$0xf] %vm1669, %v4705
        %4773 = vst.msk [vmem:[#allocation3 + $0x15c] sm:$0xf] %vm1669, %v4707
        %4774 = vst.msk [vmem:[#allocation3 + $0x168] sm:$0xf] %vm1669, %v4709
        %4775 = vst.msk [vmem:[#allocation3 + $0x174] sm:$0xf] %vm1669, %v4711
        %v4776 = vld [vmem:[%s962] sm:$0xff]
        %v4777 = vld [vmem:[%s962 + $0x8] sm:$0xff]
        %v4778 = vld [vmem:[%s962 + $0x18] sm:$0xff]
        %v4779 = vld [vmem:[%s962 + $0x20] sm:$0xff]
        %v4780 = vld [vmem:[%s962 + $0x30] sm:$0xff]
        %v4781 = vld [vmem:[%s962 + $0x38] sm:$0xff]
        %v4782 = vld [vmem:[%s962 + $0x48] sm:$0xff]
        %v4783 = vld [vmem:[%s962 + $0x50] sm:$0xff]
        %v4784 = vld [vmem:[%s962 + $0x60] sm:$0xff]
        %v4785 = vld [vmem:[%s962 + $0x68] sm:$0xff]
        %v4786 = vld [vmem:[%s962 + $0x78] sm:$0xff]
        %v4787 = vld [vmem:[%s962 + $0x80] sm:$0xff]
        %v4788 = vld [vmem:[%s962 + $0x90] sm:$0xff]
        %v4789 = vld [vmem:[%s962 + $0x98] sm:$0xff]
        %v4790 = vld [vmem:[%s962 + $0xa8] sm:$0xff]
        %v4791 = vld [vmem:[%s962 + $0xb0] sm:$0xff]
        %v4792 = vld [vmem:[%s962 + $0xc0] sm:$0xff]
        %v4793 = vld [vmem:[%s962 + $0xc8] sm:$0xff]
        %v4794 = vld [vmem:[%s962 + $0xd8] sm:$0xff]
        %v4795 = vld [vmem:[%s962 + $0xe0] sm:$0xff]
        %v4796 = vld [vmem:[%s962 + $0xf0] sm:$0xff]
        %v4797 = vld [vmem:[%s962 + $0xf8] sm:$0xff]
        %v4798 = vld [vmem:[%s962 + $0x108] sm:$0xff]
        %v4799 = vld [vmem:[%s962 + $0x110] sm:$0xff]
        %v4800 = vld [vmem:[%s962 + $0x120] sm:$0xff]
        %v4801 = vld [vmem:[%s962 + $0x128] sm:$0xff]
        %v4802 = vld [vmem:[%s962 + $0x138] sm:$0xff]
        %v4803 = vld [vmem:[%s962 + $0x140] sm:$0xff]
        %v4804 = vld [vmem:[%s962 + $0x150] sm:$0xff]
        %v4805 = vld [vmem:[%s962 + $0x158] sm:$0xff]
        %v4806 = vld [vmem:[%s962 + $0x168] sm:$0xff]
        %v4807 = vld [vmem:[%s962 + $0x170] sm:$0xff]
        %v4808 = vpack.c.bf16 %v4777, %v4776
        %v4809 = vpack.c.bf16 %v4779, %v4778
        %v4810 = vpack.c.bf16 %v4781, %v4780
        %v4811 = vpack.c.bf16 %v4783, %v4782
        %v4812 = vpack.c.bf16 %v4785, %v4784
        %v4813 = vpack.c.bf16 %v4787, %v4786
        %v4814 = vpack.c.bf16 %v4789, %v4788
        %v4815 = vpack.c.bf16 %v4791, %v4790
        %v4816 = vpack.c.bf16 %v4793, %v4792
        %v4817 = vpack.c.bf16 %v4795, %v4794
        %v4818 = vpack.c.bf16 %v4797, %v4796
        %v4819 = vpack.c.bf16 %v4799, %v4798
        %v4820 = vpack.c.bf16 %v4801, %v4800
        %v4821 = vpack.c.bf16 %v4803, %v4802
        %v4822 = vpack.c.bf16 %v4805, %v4804
        %v4823 = vpack.c.bf16 %v4807, %v4806
        %v4840 = vunpack.c.l.b16 %v4808
        %v4841 = vunpack.c.h.b16 %v4808
        %v4842 = vunpack.c.l.b16 %v4809
        %v4843 = vunpack.c.h.b16 %v4809
        %v4844 = vunpack.c.l.b16 %v4810
        %v4845 = vunpack.c.h.b16 %v4810
        %v4846 = vunpack.c.l.b16 %v4811
        %v4847 = vunpack.c.h.b16 %v4811
        %v4848 = vunpack.c.l.b16 %v4812
        %v4849 = vunpack.c.h.b16 %v4812
        %v4850 = vunpack.c.l.b16 %v4813
        %v4851 = vunpack.c.h.b16 %v4813
        %v4852 = vunpack.c.l.b16 %v4814
        %v4853 = vunpack.c.h.b16 %v4814
        %v4854 = vunpack.c.l.b16 %v4815
        %v4855 = vunpack.c.h.b16 %v4815
        %v4856 = vunpack.c.l.b16 %v4816
        %v4857 = vunpack.c.h.b16 %v4816
        %v4858 = vunpack.c.l.b16 %v4817
        %v4859 = vunpack.c.h.b16 %v4817
        %v4860 = vunpack.c.l.b16 %v4818
        %v4861 = vunpack.c.h.b16 %v4818
        %v4862 = vunpack.c.l.b16 %v4819
        %v4863 = vunpack.c.h.b16 %v4819
        %v4864 = vunpack.c.l.b16 %v4820
        %v4865 = vunpack.c.h.b16 %v4820
        %v4866 = vunpack.c.l.b16 %v4821
        %v4867 = vunpack.c.h.b16 %v4821
        %v4868 = vunpack.c.l.b16 %v4822
        %v4869 = vunpack.c.h.b16 %v4822
        %v4870 = vunpack.c.l.b16 %v4823
        %v4871 = vunpack.c.h.b16 %v4823
        %v4872 = vpack.c.b16 %v4840, %v4840
        %v4873 = vpack.c.b16 %v4841, %v4841
        %v4874 = vpack.c.b16 %v4842, %v4842
        %v4875 = vpack.c.b16 %v4843, %v4843
        %v4876 = vpack.c.b16 %v4844, %v4844
        %v4877 = vpack.c.b16 %v4845, %v4845
        %v4878 = vpack.c.b16 %v4846, %v4846
        %v4879 = vpack.c.b16 %v4847, %v4847
        %v4880 = vpack.c.b16 %v4848, %v4848
        %v4881 = vpack.c.b16 %v4849, %v4849
        %v4882 = vpack.c.b16 %v4850, %v4850
        %v4883 = vpack.c.b16 %v4851, %v4851
        %v4884 = vpack.c.b16 %v4852, %v4852
        %v4885 = vpack.c.b16 %v4853, %v4853
        %v4886 = vpack.c.b16 %v4854, %v4854
        %v4887 = vpack.c.b16 %v4855, %v4855
        %v4888 = vpack.c.b16 %v4856, %v4856
        %v4889 = vpack.c.b16 %v4857, %v4857
        %v4890 = vpack.c.b16 %v4858, %v4858
        %v4891 = vpack.c.b16 %v4859, %v4859
        %v4892 = vpack.c.b16 %v4860, %v4860
        %v4893 = vpack.c.b16 %v4861, %v4861
        %v4894 = vpack.c.b16 %v4862, %v4862
        %v4895 = vpack.c.b16 %v4863, %v4863
        %v4896 = vpack.c.b16 %v4864, %v4864
        %v4897 = vpack.c.b16 %v4865, %v4865
        %v4898 = vpack.c.b16 %v4866, %v4866
        %v4899 = vpack.c.b16 %v4867, %v4867
        %v4900 = vpack.c.b16 %v4868, %v4868
        %v4901 = vpack.c.b16 %v4869, %v4869
        %v4902 = vpack.c.b16 %v4870, %v4870
        %v4903 = vpack.c.b16 %v4871, %v4871
        %4904 = vrot.lane.b32.xlu0 %v4872, 96
        %v4905 = vpop.permute.xlu0 %4904
        %4906 = vrot.lane.b32.xlu0 %v4873, 96
        %v4907 = vpop.permute.xlu0 %4906
        %4908 = vrot.lane.b32.xlu0 %v4874, 96
        %v4909 = vpop.permute.xlu0 %4908
        %4910 = vrot.lane.b32.xlu0 %v4875, 96
        %v4911 = vpop.permute.xlu0 %4910
        %4912 = vrot.lane.b32.xlu0 %v4876, 96
        %v4913 = vpop.permute.xlu0 %4912
        %4914 = vrot.lane.b32.xlu0 %v4877, 96
        %v4915 = vpop.permute.xlu0 %4914
        %4916 = vrot.lane.b32.xlu0 %v4878, 96
        %v4917 = vpop.permute.xlu0 %4916
        %4918 = vrot.lane.b32.xlu0 %v4879, 96
        %v4919 = vpop.permute.xlu0 %4918
        %4920 = vrot.lane.b32.xlu0 %v4880, 96
        %v4921 = vpop.permute.xlu0 %4920
        %4922 = vrot.lane.b32.xlu0 %v4881, 96
        %v4923 = vpop.permute.xlu0 %4922
        %4924 = vrot.lane.b32.xlu0 %v4882, 96
        %v4925 = vpop.permute.xlu0 %4924
        %4926 = vrot.lane.b32.xlu0 %v4883, 96
        %v4927 = vpop.permute.xlu0 %4926
        %4928 = vrot.lane.b32.xlu0 %v4884, 96
        %v4929 = vpop.permute.xlu0 %4928
        %4930 = vrot.lane.b32.xlu0 %v4885, 96
        %v4931 = vpop.permute.xlu0 %4930
        %4932 = vrot.lane.b32.xlu0 %v4886, 96
        %v4933 = vpop.permute.xlu0 %4932
        %4934 = vrot.lane.b32.xlu0 %v4887, 96
        %v4935 = vpop.permute.xlu0 %4934
        %4936 = vrot.lane.b32.xlu0 %v4888, 96
        %v4937 = vpop.permute.xlu0 %4936
        %4938 = vrot.lane.b32.xlu0 %v4889, 96
        %v4939 = vpop.permute.xlu0 %4938
        %4940 = vrot.lane.b32.xlu0 %v4890, 96
        %v4941 = vpop.permute.xlu0 %4940
        %4942 = vrot.lane.b32.xlu0 %v4891, 96
        %v4943 = vpop.permute.xlu0 %4942
        %4944 = vrot.lane.b32.xlu0 %v4892, 96
        %v4945 = vpop.permute.xlu0 %4944
        %4946 = vrot.lane.b32.xlu0 %v4893, 96
        %v4947 = vpop.permute.xlu0 %4946
        %4948 = vrot.lane.b32.xlu0 %v4894, 96
        %v4949 = vpop.permute.xlu0 %4948
        %4950 = vrot.lane.b32.xlu0 %v4895, 96
        %v4951 = vpop.permute.xlu0 %4950
        %4952 = vrot.lane.b32.xlu0 %v4896, 96
        %v4953 = vpop.permute.xlu0 %4952
        %4954 = vrot.lane.b32.xlu0 %v4897, 96
        %v4955 = vpop.permute.xlu0 %4954
        %4956 = vrot.lane.b32.xlu0 %v4898, 96
        %v4957 = vpop.permute.xlu0 %4956
        %4958 = vrot.lane.b32.xlu0 %v4899, 96
        %v4959 = vpop.permute.xlu0 %4958
        %4960 = vrot.lane.b32.xlu0 %v4900, 96
        %v4961 = vpop.permute.xlu0 %4960
        %4962 = vrot.lane.b32.xlu0 %v4901, 96
        %v4963 = vpop.permute.xlu0 %4962
        %4964 = vrot.lane.b32.xlu0 %v4902, 96
        %v4965 = vpop.permute.xlu0 %4964
        %4966 = vrot.lane.b32.xlu0 %v4903, 96
        %v4967 = vpop.permute.xlu0 %4966
        %5000 = vst.msk [vmem:[#allocation3] sm:$0xf] %vm1926, %v4905
        %5001 = vst.msk [vmem:[#allocation3 + $0xc] sm:$0xf] %vm1926, %v4907
        %5002 = vst.msk [vmem:[#allocation3 + $0x18] sm:$0xf] %vm1926, %v4909
        %5003 = vst.msk [vmem:[#allocation3 + $0x24] sm:$0xf] %vm1926, %v4911
        %5004 = vst.msk [vmem:[#allocation3 + $0x30] sm:$0xf] %vm1926, %v4913
        %5005 = vst.msk [vmem:[#allocation3 + $0x3c] sm:$0xf] %vm1926, %v4915
        %5006 = vst.msk [vmem:[#allocation3 + $0x48] sm:$0xf] %vm1926, %v4917
        %5007 = vst.msk [vmem:[#allocation3 + $0x54] sm:$0xf] %vm1926, %v4919
        %5008 = vst.msk [vmem:[#allocation3 + $0x60] sm:$0xf] %vm1926, %v4921
        %5009 = vst.msk [vmem:[#allocation3 + $0x6c] sm:$0xf] %vm1926, %v4923
        %5010 = vst.msk [vmem:[#allocation3 + $0x78] sm:$0xf] %vm1926, %v4925
        %5011 = vst.msk [vmem:[#allocation3 + $0x84] sm:$0xf] %vm1926, %v4927
        %5012 = vst.msk [vmem:[#allocation3 + $0x90] sm:$0xf] %vm1926, %v4929
        %5013 = vst.msk [vmem:[#allocation3 + $0x9c] sm:$0xf] %vm1926, %v4931
        %5014 = vst.msk [vmem:[#allocation3 + $0xa8] sm:$0xf] %vm1926, %v4933
        %5015 = vst.msk [vmem:[#allocation3 + $0xb4] sm:$0xf] %vm1926, %v4935
        %5016 = vst.msk [vmem:[#allocation3 + $0xc0] sm:$0xf] %vm1926, %v4937
        %5017 = vst.msk [vmem:[#allocation3 + $0xcc] sm:$0xf] %vm1926, %v4939
        %5018 = vst.msk [vmem:[#allocation3 + $0xd8] sm:$0xf] %vm1926, %v4941
        %5019 = vst.msk [vmem:[#allocation3 + $0xe4] sm:$0xf] %vm1926, %v4943
        %5020 = vst.msk [vmem:[#allocation3 + $0xf0] sm:$0xf] %vm1926, %v4945
        %5021 = vst.msk [vmem:[#allocation3 + $0xfc] sm:$0xf] %vm1926, %v4947
        %5022 = vst.msk [vmem:[#allocation3 + $0x108] sm:$0xf] %vm1926, %v4949
        %5023 = vst.msk [vmem:[#allocation3 + $0x114] sm:$0xf] %vm1926, %v4951
        %5024 = vst.msk [vmem:[#allocation3 + $0x120] sm:$0xf] %vm1926, %v4953
        %5025 = vst.msk [vmem:[#allocation3 + $0x12c] sm:$0xf] %vm1926, %v4955
        %5026 = vst.msk [vmem:[#allocation3 + $0x138] sm:$0xf] %vm1926, %v4957
        %5027 = vst.msk [vmem:[#allocation3 + $0x144] sm:$0xf] %vm1926, %v4959
        %5028 = vst.msk [vmem:[#allocation3 + $0x150] sm:$0xf] %vm1926, %v4961
        %5029 = vst.msk [vmem:[#allocation3 + $0x15c] sm:$0xf] %vm1926, %v4963
        %5030 = vst.msk [vmem:[#allocation3 + $0x168] sm:$0xf] %vm1926, %v4965
        %5031 = vst.msk [vmem:[#allocation3 + $0x174] sm:$0xf] %vm1926, %v4967
        %v5032 = vld [vmem:[%s962 + $0x1] sm:$0xff]
        %v5033 = vld [vmem:[%s962 + $0x9] sm:$0xff]
        %v5034 = vld [vmem:[%s962 + $0x19] sm:$0xff]
        %v5035 = vld [vmem:[%s962 + $0x21] sm:$0xff]
        %v5036 = vld [vmem:[%s962 + $0x31] sm:$0xff]
        %v5037 = vld [vmem:[%s962 + $0x39] sm:$0xff]
        %v5038 = vld [vmem:[%s962 + $0x49] sm:$0xff]
        %v5039 = vld [vmem:[%s962 + $0x51] sm:$0xff]
        %v5040 = vld [vmem:[%s962 + $0x61] sm:$0xff]
        %v5041 = vld [vmem:[%s962 + $0x69] sm:$0xff]
        %v5042 = vld [vmem:[%s962 + $0x79] sm:$0xff]
        %v5043 = vld [vmem:[%s962 + $0x81] sm:$0xff]
        %v5044 = vld [vmem:[%s962 + $0x91] sm:$0xff]
        %v5045 = vld [vmem:[%s962 + $0x99] sm:$0xff]
        %v5046 = vld [vmem:[%s962 + $0xa9] sm:$0xff]
        %v5047 = vld [vmem:[%s962 + $0xb1] sm:$0xff]
        %v5048 = vld [vmem:[%s962 + $0xc1] sm:$0xff]
        %v5049 = vld [vmem:[%s962 + $0xc9] sm:$0xff]
        %v5050 = vld [vmem:[%s962 + $0xd9] sm:$0xff]
        %v5051 = vld [vmem:[%s962 + $0xe1] sm:$0xff]
        %v5052 = vld [vmem:[%s962 + $0xf1] sm:$0xff]
        %v5053 = vld [vmem:[%s962 + $0xf9] sm:$0xff]
        %v5054 = vld [vmem:[%s962 + $0x109] sm:$0xff]
        %v5055 = vld [vmem:[%s962 + $0x111] sm:$0xff]
        %v5056 = vld [vmem:[%s962 + $0x121] sm:$0xff]
        %v5057 = vld [vmem:[%s962 + $0x129] sm:$0xff]
        %v5058 = vld [vmem:[%s962 + $0x139] sm:$0xff]
        %v5059 = vld [vmem:[%s962 + $0x141] sm:$0xff]
        %v5060 = vld [vmem:[%s962 + $0x151] sm:$0xff]
        %v5061 = vld [vmem:[%s962 + $0x159] sm:$0xff]
        %v5062 = vld [vmem:[%s962 + $0x169] sm:$0xff]
        %v5063 = vld [vmem:[%s962 + $0x171] sm:$0xff]
        %v5064 = vpack.c.bf16 %v5033, %v5032
        %v5065 = vpack.c.bf16 %v5035, %v5034
        %v5066 = vpack.c.bf16 %v5037, %v5036
        %v5067 = vpack.c.bf16 %v5039, %v5038
        %v5068 = vpack.c.bf16 %v5041, %v5040
        %v5069 = vpack.c.bf16 %v5043, %v5042
        %v5070 = vpack.c.bf16 %v5045, %v5044
        %v5071 = vpack.c.bf16 %v5047, %v5046
        %v5072 = vpack.c.bf16 %v5049, %v5048
        %v5073 = vpack.c.bf16 %v5051, %v5050
        %v5074 = vpack.c.bf16 %v5053, %v5052
        %v5075 = vpack.c.bf16 %v5055, %v5054
        %v5076 = vpack.c.bf16 %v5057, %v5056
        %v5077 = vpack.c.bf16 %v5059, %v5058
        %v5078 = vpack.c.bf16 %v5061, %v5060
        %v5079 = vpack.c.bf16 %v5063, %v5062
        %v5096 = vunpack.c.l.b16 %v5064
        %v5097 = vunpack.c.h.b16 %v5064
        %v5098 = vunpack.c.l.b16 %v5065
        %v5099 = vunpack.c.h.b16 %v5065
        %v5100 = vunpack.c.l.b16 %v5066
        %v5101 = vunpack.c.h.b16 %v5066
        %v5102 = vunpack.c.l.b16 %v5067
        %v5103 = vunpack.c.h.b16 %v5067
        %v5104 = vunpack.c.l.b16 %v5068
        %v5105 = vunpack.c.h.b16 %v5068
        %v5106 = vunpack.c.l.b16 %v5069
        %v5107 = vunpack.c.h.b16 %v5069
        %v5108 = vunpack.c.l.b16 %v5070
        %v5109 = vunpack.c.h.b16 %v5070
        %v5110 = vunpack.c.l.b16 %v5071
        %v5111 = vunpack.c.h.b16 %v5071
        %v5112 = vunpack.c.l.b16 %v5072
        %v5113 = vunpack.c.h.b16 %v5072
        %v5114 = vunpack.c.l.b16 %v5073
        %v5115 = vunpack.c.h.b16 %v5073
        %v5116 = vunpack.c.l.b16 %v5074
        %v5117 = vunpack.c.h.b16 %v5074
        %v5118 = vunpack.c.l.b16 %v5075
        %v5119 = vunpack.c.h.b16 %v5075
        %v5120 = vunpack.c.l.b16 %v5076
        %v5121 = vunpack.c.h.b16 %v5076
        %v5122 = vunpack.c.l.b16 %v5077
        %v5123 = vunpack.c.h.b16 %v5077
        %v5124 = vunpack.c.l.b16 %v5078
        %v5125 = vunpack.c.h.b16 %v5078
        %v5126 = vunpack.c.l.b16 %v5079
        %v5127 = vunpack.c.h.b16 %v5079
        %v5128 = vpack.c.b16 %v5096, %v5096
        %v5129 = vpack.c.b16 %v5097, %v5097
        %v5130 = vpack.c.b16 %v5098, %v5098
        %v5131 = vpack.c.b16 %v5099, %v5099
        %v5132 = vpack.c.b16 %v5100, %v5100
        %v5133 = vpack.c.b16 %v5101, %v5101
        %v5134 = vpack.c.b16 %v5102, %v5102
        %v5135 = vpack.c.b16 %v5103, %v5103
        %v5136 = vpack.c.b16 %v5104, %v5104
        %v5137 = vpack.c.b16 %v5105, %v5105
        %v5138 = vpack.c.b16 %v5106, %v5106
        %v5139 = vpack.c.b16 %v5107, %v5107
        %v5140 = vpack.c.b16 %v5108, %v5108
        %v5141 = vpack.c.b16 %v5109, %v5109
        %v5142 = vpack.c.b16 %v5110, %v5110
        %v5143 = vpack.c.b16 %v5111, %v5111
        %v5144 = vpack.c.b16 %v5112, %v5112
        %v5145 = vpack.c.b16 %v5113, %v5113
        %v5146 = vpack.c.b16 %v5114, %v5114
        %v5147 = vpack.c.b16 %v5115, %v5115
        %v5148 = vpack.c.b16 %v5116, %v5116
        %v5149 = vpack.c.b16 %v5117, %v5117
        %v5150 = vpack.c.b16 %v5118, %v5118
        %v5151 = vpack.c.b16 %v5119, %v5119
        %v5152 = vpack.c.b16 %v5120, %v5120
        %v5153 = vpack.c.b16 %v5121, %v5121
        %v5154 = vpack.c.b16 %v5122, %v5122
        %v5155 = vpack.c.b16 %v5123, %v5123
        %v5156 = vpack.c.b16 %v5124, %v5124
        %v5157 = vpack.c.b16 %v5125, %v5125
        %v5158 = vpack.c.b16 %v5126, %v5126
        %v5159 = vpack.c.b16 %v5127, %v5127
        %5192 = vst.msk [vmem:[#allocation3 + $0x4] sm:$0xf] %vm1155, %v5128
        %5193 = vst.msk [vmem:[#allocation3 + $0x10] sm:$0xf] %vm1155, %v5129
        %5194 = vst.msk [vmem:[#allocation3 + $0x1c] sm:$0xf] %vm1155, %v5130
        %5195 = vst.msk [vmem:[#allocation3 + $0x28] sm:$0xf] %vm1155, %v5131
        %5196 = vst.msk [vmem:[#allocation3 + $0x34] sm:$0xf] %vm1155, %v5132
        %5197 = vst.msk [vmem:[#allocation3 + $0x40] sm:$0xf] %vm1155, %v5133
        %5198 = vst.msk [vmem:[#allocation3 + $0x4c] sm:$0xf] %vm1155, %v5134
        %5199 = vst.msk [vmem:[#allocation3 + $0x58] sm:$0xf] %vm1155, %v5135
        %5200 = vst.msk [vmem:[#allocation3 + $0x64] sm:$0xf] %vm1155, %v5136
        %5201 = vst.msk [vmem:[#allocation3 + $0x70] sm:$0xf] %vm1155, %v5137
        %5202 = vst.msk [vmem:[#allocation3 + $0x7c] sm:$0xf] %vm1155, %v5138
        %5203 = vst.msk [vmem:[#allocation3 + $0x88] sm:$0xf] %vm1155, %v5139
        %5204 = vst.msk [vmem:[#allocation3 + $0x94] sm:$0xf] %vm1155, %v5140
        %5205 = vst.msk [vmem:[#allocation3 + $0xa0] sm:$0xf] %vm1155, %v5141
        %5206 = vst.msk [vmem:[#allocation3 + $0xac] sm:$0xf] %vm1155, %v5142
        %5207 = vst.msk [vmem:[#allocation3 + $0xb8] sm:$0xf] %vm1155, %v5143
        %5208 = vst.msk [vmem:[#allocation3 + $0xc4] sm:$0xf] %vm1155, %v5144
        %5209 = vst.msk [vmem:[#allocation3 + $0xd0] sm:$0xf] %vm1155, %v5145
        %5210 = vst.msk [vmem:[#allocation3 + $0xdc] sm:$0xf] %vm1155, %v5146
        %5211 = vst.msk [vmem:[#allocation3 + $0xe8] sm:$0xf] %vm1155, %v5147
        %5212 = vst.msk [vmem:[#allocation3 + $0xf4] sm:$0xf] %vm1155, %v5148
        %5213 = vst.msk [vmem:[#allocation3 + $0x100] sm:$0xf] %vm1155, %v5149
        %5214 = vst.msk [vmem:[#allocation3 + $0x10c] sm:$0xf] %vm1155, %v5150
        %5215 = vst.msk [vmem:[#allocation3 + $0x118] sm:$0xf] %vm1155, %v5151
        %5216 = vst.msk [vmem:[#allocation3 + $0x124] sm:$0xf] %vm1155, %v5152
        %5217 = vst.msk [vmem:[#allocation3 + $0x130] sm:$0xf] %vm1155, %v5153
        %5218 = vst.msk [vmem:[#allocation3 + $0x13c] sm:$0xf] %vm1155, %v5154
        %5219 = vst.msk [vmem:[#allocation3 + $0x148] sm:$0xf] %vm1155, %v5155
        %5220 = vst.msk [vmem:[#allocation3 + $0x154] sm:$0xf] %vm1155, %v5156
        %5221 = vst.msk [vmem:[#allocation3 + $0x160] sm:$0xf] %vm1155, %v5157
        %5222 = vst.msk [vmem:[#allocation3 + $0x16c] sm:$0xf] %vm1155, %v5158
        %5223 = vst.msk [vmem:[#allocation3 + $0x178] sm:$0xf] %vm1155, %v5159
        %v5224 = vld [vmem:[%s962 + $0x2] sm:$0xff]
        %v5225 = vld [vmem:[%s962 + $0xa] sm:$0xff]
        %v5226 = vld [vmem:[%s962 + $0x1a] sm:$0xff]
        %v5227 = vld [vmem:[%s962 + $0x22] sm:$0xff]
        %v5228 = vld [vmem:[%s962 + $0x32] sm:$0xff]
        %v5229 = vld [vmem:[%s962 + $0x3a] sm:$0xff]
        %v5230 = vld [vmem:[%s962 + $0x4a] sm:$0xff]
        %v5231 = vld [vmem:[%s962 + $0x52] sm:$0xff]
        %v5232 = vld [vmem:[%s962 + $0x62] sm:$0xff]
        %v5233 = vld [vmem:[%s962 + $0x6a] sm:$0xff]
        %v5234 = vld [vmem:[%s962 + $0x7a] sm:$0xff]
        %v5235 = vld [vmem:[%s962 + $0x82] sm:$0xff]
        %v5236 = vld [vmem:[%s962 + $0x92] sm:$0xff]
        %v5237 = vld [vmem:[%s962 + $0x9a] sm:$0xff]
        %v5238 = vld [vmem:[%s962 + $0xaa] sm:$0xff]
        %v5239 = vld [vmem:[%s962 + $0xb2] sm:$0xff]
        %v5240 = vld [vmem:[%s962 + $0xc2] sm:$0xff]
        %v5241 = vld [vmem:[%s962 + $0xca] sm:$0xff]
        %v5242 = vld [vmem:[%s962 + $0xda] sm:$0xff]
        %v5243 = vld [vmem:[%s962 + $0xe2] sm:$0xff]
        %v5244 = vld [vmem:[%s962 + $0xf2] sm:$0xff]
        %v5245 = vld [vmem:[%s962 + $0xfa] sm:$0xff]
        %v5246 = vld [vmem:[%s962 + $0x10a] sm:$0xff]
        %v5247 = vld [vmem:[%s962 + $0x112] sm:$0xff]
        %v5248 = vld [vmem:[%s962 + $0x122] sm:$0xff]
        %v5249 = vld [vmem:[%s962 + $0x12a] sm:$0xff]
        %v5250 = vld [vmem:[%s962 + $0x13a] sm:$0xff]
        %v5251 = vld [vmem:[%s962 + $0x142] sm:$0xff]
        %v5252 = vld [vmem:[%s962 + $0x152] sm:$0xff]
        %v5253 = vld [vmem:[%s962 + $0x15a] sm:$0xff]
        %v5254 = vld [vmem:[%s962 + $0x16a] sm:$0xff]
        %v5255 = vld [vmem:[%s962 + $0x172] sm:$0xff]
        %v5256 = vpack.c.bf16 %v5225, %v5224
        %v5257 = vpack.c.bf16 %v5227, %v5226
        %v5258 = vpack.c.bf16 %v5229, %v5228
        %v5259 = vpack.c.bf16 %v5231, %v5230
        %v5260 = vpack.c.bf16 %v5233, %v5232
        %v5261 = vpack.c.bf16 %v5235, %v5234
        %v5262 = vpack.c.bf16 %v5237, %v5236
        %v5263 = vpack.c.bf16 %v5239, %v5238
        %v5264 = vpack.c.bf16 %v5241, %v5240
        %v5265 = vpack.c.bf16 %v5243, %v5242
        %v5266 = vpack.c.bf16 %v5245, %v5244
        %v5267 = vpack.c.bf16 %v5247, %v5246
        %v5268 = vpack.c.bf16 %v5249, %v5248
        %v5269 = vpack.c.bf16 %v5251, %v5250
        %v5270 = vpack.c.bf16 %v5253, %v5252
        %v5271 = vpack.c.bf16 %v5255, %v5254
        %v5288 = vunpack.c.l.b16 %v5256
        %v5289 = vunpack.c.h.b16 %v5256
        %v5290 = vunpack.c.l.b16 %v5257
        %v5291 = vunpack.c.h.b16 %v5257
        %v5292 = vunpack.c.l.b16 %v5258
        %v5293 = vunpack.c.h.b16 %v5258
        %v5294 = vunpack.c.l.b16 %v5259
        %v5295 = vunpack.c.h.b16 %v5259
        %v5296 = vunpack.c.l.b16 %v5260
        %v5297 = vunpack.c.h.b16 %v5260
        %v5298 = vunpack.c.l.b16 %v5261
        %v5299 = vunpack.c.h.b16 %v5261
        %v5300 = vunpack.c.l.b16 %v5262
        %v5301 = vunpack.c.h.b16 %v5262
        %v5302 = vunpack.c.l.b16 %v5263
        %v5303 = vunpack.c.h.b16 %v5263
        %v5304 = vunpack.c.l.b16 %v5264
        %v5305 = vunpack.c.h.b16 %v5264
        %v5306 = vunpack.c.l.b16 %v5265
        %v5307 = vunpack.c.h.b16 %v5265
        %v5308 = vunpack.c.l.b16 %v5266
        %v5309 = vunpack.c.h.b16 %v5266
        %v5310 = vunpack.c.l.b16 %v5267
        %v5311 = vunpack.c.h.b16 %v5267
        %v5312 = vunpack.c.l.b16 %v5268
        %v5313 = vunpack.c.h.b16 %v5268
        %v5314 = vunpack.c.l.b16 %v5269
        %v5315 = vunpack.c.h.b16 %v5269
        %v5316 = vunpack.c.l.b16 %v5270
        %v5317 = vunpack.c.h.b16 %v5270
        %v5318 = vunpack.c.l.b16 %v5271
        %v5319 = vunpack.c.h.b16 %v5271
        %v5320 = vpack.c.b16 %v5288, %v5288
        %v5321 = vpack.c.b16 %v5289, %v5289
        %v5322 = vpack.c.b16 %v5290, %v5290
        %v5323 = vpack.c.b16 %v5291, %v5291
        %v5324 = vpack.c.b16 %v5292, %v5292
        %v5325 = vpack.c.b16 %v5293, %v5293
        %v5326 = vpack.c.b16 %v5294, %v5294
        %v5327 = vpack.c.b16 %v5295, %v5295
        %v5328 = vpack.c.b16 %v5296, %v5296
        %v5329 = vpack.c.b16 %v5297, %v5297
        %v5330 = vpack.c.b16 %v5298, %v5298
        %v5331 = vpack.c.b16 %v5299, %v5299
        %v5332 = vpack.c.b16 %v5300, %v5300
        %v5333 = vpack.c.b16 %v5301, %v5301
        %v5334 = vpack.c.b16 %v5302, %v5302
        %v5335 = vpack.c.b16 %v5303, %v5303
        %v5336 = vpack.c.b16 %v5304, %v5304
        %v5337 = vpack.c.b16 %v5305, %v5305
        %v5338 = vpack.c.b16 %v5306, %v5306
        %v5339 = vpack.c.b16 %v5307, %v5307
        %v5340 = vpack.c.b16 %v5308, %v5308
        %v5341 = vpack.c.b16 %v5309, %v5309
        %v5342 = vpack.c.b16 %v5310, %v5310
        %v5343 = vpack.c.b16 %v5311, %v5311
        %v5344 = vpack.c.b16 %v5312, %v5312
        %v5345 = vpack.c.b16 %v5313, %v5313
        %v5346 = vpack.c.b16 %v5314, %v5314
        %v5347 = vpack.c.b16 %v5315, %v5315
        %v5348 = vpack.c.b16 %v5316, %v5316
        %v5349 = vpack.c.b16 %v5317, %v5317
        %v5350 = vpack.c.b16 %v5318, %v5318
        %v5351 = vpack.c.b16 %v5319, %v5319
        %5352 = vrot.lane.b32.xlu0 %v5320, 32
        %v5353 = vpop.permute.xlu0 %5352
        %5354 = vrot.lane.b32.xlu0 %v5321, 32
        %v5355 = vpop.permute.xlu0 %5354
        %5356 = vrot.lane.b32.xlu0 %v5322, 32
        %v5357 = vpop.permute.xlu0 %5356
        %5358 = vrot.lane.b32.xlu0 %v5323, 32
        %v5359 = vpop.permute.xlu0 %5358
        %5360 = vrot.lane.b32.xlu0 %v5324, 32
        %v5361 = vpop.permute.xlu0 %5360
        %5362 = vrot.lane.b32.xlu0 %v5325, 32
        %v5363 = vpop.permute.xlu0 %5362
        %5364 = vrot.lane.b32.xlu0 %v5326, 32
        %v5365 = vpop.permute.xlu0 %5364
        %5366 = vrot.lane.b32.xlu0 %v5327, 32
        %v5367 = vpop.permute.xlu0 %5366
        %5368 = vrot.lane.b32.xlu0 %v5328, 32
        %v5369 = vpop.permute.xlu0 %5368
        %5370 = vrot.lane.b32.xlu0 %v5329, 32
        %v5371 = vpop.permute.xlu0 %5370
        %5372 = vrot.lane.b32.xlu0 %v5330, 32
        %v5373 = vpop.permute.xlu0 %5372
        %5374 = vrot.lane.b32.xlu0 %v5331, 32
        %v5375 = vpop.permute.xlu0 %5374
        %5376 = vrot.lane.b32.xlu0 %v5332, 32
        %v5377 = vpop.permute.xlu0 %5376
        %5378 = vrot.lane.b32.xlu0 %v5333, 32
        %v5379 = vpop.permute.xlu0 %5378
        %5380 = vrot.lane.b32.xlu0 %v5334, 32
        %v5381 = vpop.permute.xlu0 %5380
        %5382 = vrot.lane.b32.xlu0 %v5335, 32
        %v5383 = vpop.permute.xlu0 %5382
        %5384 = vrot.lane.b32.xlu0 %v5336, 32
        %v5385 = vpop.permute.xlu0 %5384
        %5386 = vrot.lane.b32.xlu0 %v5337, 32
        %v5387 = vpop.permute.xlu0 %5386
        %5388 = vrot.lane.b32.xlu0 %v5338, 32
        %v5389 = vpop.permute.xlu0 %5388
        %5390 = vrot.lane.b32.xlu0 %v5339, 32
        %v5391 = vpop.permute.xlu0 %5390
        %5392 = vrot.lane.b32.xlu0 %v5340, 32
        %v5393 = vpop.permute.xlu0 %5392
        %5394 = vrot.lane.b32.xlu0 %v5341, 32
        %v5395 = vpop.permute.xlu0 %5394
        %5396 = vrot.lane.b32.xlu0 %v5342, 32
        %v5397 = vpop.permute.xlu0 %5396
        %5398 = vrot.lane.b32.xlu0 %v5343, 32
        %v5399 = vpop.permute.xlu0 %5398
        %5400 = vrot.lane.b32.xlu0 %v5344, 32
        %v5401 = vpop.permute.xlu0 %5400
        %5402 = vrot.lane.b32.xlu0 %v5345, 32
        %v5403 = vpop.permute.xlu0 %5402
        %5404 = vrot.lane.b32.xlu0 %v5346, 32
        %v5405 = vpop.permute.xlu0 %5404
        %5406 = vrot.lane.b32.xlu0 %v5347, 32
        %v5407 = vpop.permute.xlu0 %5406
        %5408 = vrot.lane.b32.xlu0 %v5348, 32
        %v5409 = vpop.permute.xlu0 %5408
        %5410 = vrot.lane.b32.xlu0 %v5349, 32
        %v5411 = vpop.permute.xlu0 %5410
        %5412 = vrot.lane.b32.xlu0 %v5350, 32
        %v5413 = vpop.permute.xlu0 %5412
        %5414 = vrot.lane.b32.xlu0 %v5351, 32
        %v5415 = vpop.permute.xlu0 %5414
        %5448 = vst.msk [vmem:[#allocation3 + $0x4] sm:$0xf] %vm1412, %v5353
        %5449 = vst.msk [vmem:[#allocation3 + $0x10] sm:$0xf] %vm1412, %v5355
        %5450 = vst.msk [vmem:[#allocation3 + $0x1c] sm:$0xf] %vm1412, %v5357
        %5451 = vst.msk [vmem:[#allocation3 + $0x28] sm:$0xf] %vm1412, %v5359
        %5452 = vst.msk [vmem:[#allocation3 + $0x34] sm:$0xf] %vm1412, %v5361
        %5453 = vst.msk [vmem:[#allocation3 + $0x40] sm:$0xf] %vm1412, %v5363
        %5454 = vst.msk [vmem:[#allocation3 + $0x4c] sm:$0xf] %vm1412, %v5365
        %5455 = vst.msk [vmem:[#allocation3 + $0x58] sm:$0xf] %vm1412, %v5367
        %5456 = vst.msk [vmem:[#allocation3 + $0x64] sm:$0xf] %vm1412, %v5369
        %5457 = vst.msk [vmem:[#allocation3 + $0x70] sm:$0xf] %vm1412, %v5371
        %5458 = vst.msk [vmem:[#allocation3 + $0x7c] sm:$0xf] %vm1412, %v5373
        %5459 = vst.msk [vmem:[#allocation3 + $0x88] sm:$0xf] %vm1412, %v5375
        %5460 = vst.msk [vmem:[#allocation3 + $0x94] sm:$0xf] %vm1412, %v5377
        %5461 = vst.msk [vmem:[#allocation3 + $0xa0] sm:$0xf] %vm1412, %v5379
        %5462 = vst.msk [vmem:[#allocation3 + $0xac] sm:$0xf] %vm1412, %v5381
        %5463 = vst.msk [vmem:[#allocation3 + $0xb8] sm:$0xf] %vm1412, %v5383
        %5464 = vst.msk [vmem:[#allocation3 + $0xc4] sm:$0xf] %vm1412, %v5385
        %5465 = vst.msk [vmem:[#allocation3 + $0xd0] sm:$0xf] %vm1412, %v5387
        %5466 = vst.msk [vmem:[#allocation3 + $0xdc] sm:$0xf] %vm1412, %v5389
        %5467 = vst.msk [vmem:[#allocation3 + $0xe8] sm:$0xf] %vm1412, %v5391
        %5468 = vst.msk [vmem:[#allocation3 + $0xf4] sm:$0xf] %vm1412, %v5393
        %5469 = vst.msk [vmem:[#allocation3 + $0x100] sm:$0xf] %vm1412, %v5395
        %5470 = vst.msk [vmem:[#allocation3 + $0x10c] sm:$0xf] %vm1412, %v5397
        %5471 = vst.msk [vmem:[#allocation3 + $0x118] sm:$0xf] %vm1412, %v5399
        %5472 = vst.msk [vmem:[#allocation3 + $0x124] sm:$0xf] %vm1412, %v5401
        %5473 = vst.msk [vmem:[#allocation3 + $0x130] sm:$0xf] %vm1412, %v5403
        %5474 = vst.msk [vmem:[#allocation3 + $0x13c] sm:$0xf] %vm1412, %v5405
        %5475 = vst.msk [vmem:[#allocation3 + $0x148] sm:$0xf] %vm1412, %v5407
        %5476 = vst.msk [vmem:[#allocation3 + $0x154] sm:$0xf] %vm1412, %v5409
        %5477 = vst.msk [vmem:[#allocation3 + $0x160] sm:$0xf] %vm1412, %v5411
        %5478 = vst.msk [vmem:[#allocation3 + $0x16c] sm:$0xf] %vm1412, %v5413
        %5479 = vst.msk [vmem:[#allocation3 + $0x178] sm:$0xf] %vm1412, %v5415
        %v5480 = vld [vmem:[%s2407] sm:$0xff]
        %v5481 = vld [vmem:[%s2407 + $0x8] sm:$0xff]
        %v5482 = vld [vmem:[%s2407 + $0x18] sm:$0xff]
        %v5483 = vld [vmem:[%s2407 + $0x20] sm:$0xff]
        %v5484 = vld [vmem:[%s2407 + $0x30] sm:$0xff]
        %v5485 = vld [vmem:[%s2407 + $0x38] sm:$0xff]
        %v5486 = vld [vmem:[%s2407 + $0x48] sm:$0xff]
        %v5487 = vld [vmem:[%s2407 + $0x50] sm:$0xff]
        %v5488 = vld [vmem:[%s2407 + $0x60] sm:$0xff]
        %v5489 = vld [vmem:[%s2407 + $0x68] sm:$0xff]
        %v5490 = vld [vmem:[%s2407 + $0x78] sm:$0xff]
        %v5491 = vld [vmem:[%s2407 + $0x80] sm:$0xff]
        %v5492 = vld [vmem:[%s2407 + $0x90] sm:$0xff]
        %v5493 = vld [vmem:[%s2407 + $0x98] sm:$0xff]
        %v5494 = vld [vmem:[%s2407 + $0xa8] sm:$0xff]
        %v5495 = vld [vmem:[%s2407 + $0xb0] sm:$0xff]
        %v5496 = vld [vmem:[%s2407 + $0xc0] sm:$0xff]
        %v5497 = vld [vmem:[%s2407 + $0xc8] sm:$0xff]
        %v5498 = vld [vmem:[%s2407 + $0xd8] sm:$0xff]
        %v5499 = vld [vmem:[%s2407 + $0xe0] sm:$0xff]
        %v5500 = vld [vmem:[%s2407 + $0xf0] sm:$0xff]
        %v5501 = vld [vmem:[%s2407 + $0xf8] sm:$0xff]
        %v5502 = vld [vmem:[%s2407 + $0x108] sm:$0xff]
        %v5503 = vld [vmem:[%s2407 + $0x110] sm:$0xff]
        %v5504 = vld [vmem:[%s2407 + $0x120] sm:$0xff]
        %v5505 = vld [vmem:[%s2407 + $0x128] sm:$0xff]
        %v5506 = vld [vmem:[%s2407 + $0x138] sm:$0xff]
        %v5507 = vld [vmem:[%s2407 + $0x140] sm:$0xff]
        %v5508 = vld [vmem:[%s2407 + $0x150] sm:$0xff]
        %v5509 = vld [vmem:[%s2407 + $0x158] sm:$0xff]
        %v5510 = vld [vmem:[%s2407 + $0x168] sm:$0xff]
        %v5511 = vld [vmem:[%s2407 + $0x170] sm:$0xff]
        %v5512 = vpack.c.bf16 %v5481, %v5480
        %v5513 = vpack.c.bf16 %v5483, %v5482
        %v5514 = vpack.c.bf16 %v5485, %v5484
        %v5515 = vpack.c.bf16 %v5487, %v5486
        %v5516 = vpack.c.bf16 %v5489, %v5488
        %v5517 = vpack.c.bf16 %v5491, %v5490
        %v5518 = vpack.c.bf16 %v5493, %v5492
        %v5519 = vpack.c.bf16 %v5495, %v5494
        %v5520 = vpack.c.bf16 %v5497, %v5496
        %v5521 = vpack.c.bf16 %v5499, %v5498
        %v5522 = vpack.c.bf16 %v5501, %v5500
        %v5523 = vpack.c.bf16 %v5503, %v5502
        %v5524 = vpack.c.bf16 %v5505, %v5504
        %v5525 = vpack.c.bf16 %v5507, %v5506
        %v5526 = vpack.c.bf16 %v5509, %v5508
        %v5527 = vpack.c.bf16 %v5511, %v5510
        %v5544 = vunpack.c.l.b16 %v5512
        %v5545 = vunpack.c.h.b16 %v5512
        %v5546 = vunpack.c.l.b16 %v5513
        %v5547 = vunpack.c.h.b16 %v5513
        %v5548 = vunpack.c.l.b16 %v5514
        %v5549 = vunpack.c.h.b16 %v5514
        %v5550 = vunpack.c.l.b16 %v5515
        %v5551 = vunpack.c.h.b16 %v5515
        %v5552 = vunpack.c.l.b16 %v5516
        %v5553 = vunpack.c.h.b16 %v5516
        %v5554 = vunpack.c.l.b16 %v5517
        %v5555 = vunpack.c.h.b16 %v5517
        %v5556 = vunpack.c.l.b16 %v5518
        %v5557 = vunpack.c.h.b16 %v5518
        %v5558 = vunpack.c.l.b16 %v5519
        %v5559 = vunpack.c.h.b16 %v5519
        %v5560 = vunpack.c.l.b16 %v5520
        %v5561 = vunpack.c.h.b16 %v5520
        %v5562 = vunpack.c.l.b16 %v5521
        %v5563 = vunpack.c.h.b16 %v5521
        %v5564 = vunpack.c.l.b16 %v5522
        %v5565 = vunpack.c.h.b16 %v5522
        %v5566 = vunpack.c.l.b16 %v5523
        %v5567 = vunpack.c.h.b16 %v5523
        %v5568 = vunpack.c.l.b16 %v5524
        %v5569 = vunpack.c.h.b16 %v5524
        %v5570 = vunpack.c.l.b16 %v5525
        %v5571 = vunpack.c.h.b16 %v5525
        %v5572 = vunpack.c.l.b16 %v5526
        %v5573 = vunpack.c.h.b16 %v5526
        %v5574 = vunpack.c.l.b16 %v5527
        %v5575 = vunpack.c.h.b16 %v5527
        %v5576 = vpack.c.b16 %v5544, %v5544
        %v5577 = vpack.c.b16 %v5545, %v5545
        %v5578 = vpack.c.b16 %v5546, %v5546
        %v5579 = vpack.c.b16 %v5547, %v5547
        %v5580 = vpack.c.b16 %v5548, %v5548
        %v5581 = vpack.c.b16 %v5549, %v5549
        %v5582 = vpack.c.b16 %v5550, %v5550
        %v5583 = vpack.c.b16 %v5551, %v5551
        %v5584 = vpack.c.b16 %v5552, %v5552
        %v5585 = vpack.c.b16 %v5553, %v5553
        %v5586 = vpack.c.b16 %v5554, %v5554
        %v5587 = vpack.c.b16 %v5555, %v5555
        %v5588 = vpack.c.b16 %v5556, %v5556
        %v5589 = vpack.c.b16 %v5557, %v5557
        %v5590 = vpack.c.b16 %v5558, %v5558
        %v5591 = vpack.c.b16 %v5559, %v5559
        %v5592 = vpack.c.b16 %v5560, %v5560
        %v5593 = vpack.c.b16 %v5561, %v5561
        %v5594 = vpack.c.b16 %v5562, %v5562
        %v5595 = vpack.c.b16 %v5563, %v5563
        %v5596 = vpack.c.b16 %v5564, %v5564
        %v5597 = vpack.c.b16 %v5565, %v5565
        %v5598 = vpack.c.b16 %v5566, %v5566
        %v5599 = vpack.c.b16 %v5567, %v5567
        %v5600 = vpack.c.b16 %v5568, %v5568
        %v5601 = vpack.c.b16 %v5569, %v5569
        %v5602 = vpack.c.b16 %v5570, %v5570
        %v5603 = vpack.c.b16 %v5571, %v5571
        %v5604 = vpack.c.b16 %v5572, %v5572
        %v5605 = vpack.c.b16 %v5573, %v5573
        %v5606 = vpack.c.b16 %v5574, %v5574
        %v5607 = vpack.c.b16 %v5575, %v5575
        %5608 = vrot.lane.b32.xlu0 %v5576, 64
        %v5609 = vpop.permute.xlu0 %5608
        %5610 = vrot.lane.b32.xlu0 %v5577, 64
        %v5611 = vpop.permute.xlu0 %5610
        %5612 = vrot.lane.b32.xlu0 %v5578, 64
        %v5613 = vpop.permute.xlu0 %5612
        %5614 = vrot.lane.b32.xlu0 %v5579, 64
        %v5615 = vpop.permute.xlu0 %5614
        %5616 = vrot.lane.b32.xlu0 %v5580, 64
        %v5617 = vpop.permute.xlu0 %5616
        %5618 = vrot.lane.b32.xlu0 %v5581, 64
        %v5619 = vpop.permute.xlu0 %5618
        %5620 = vrot.lane.b32.xlu0 %v5582, 64
        %v5621 = vpop.permute.xlu0 %5620
        %5622 = vrot.lane.b32.xlu0 %v5583, 64
        %v5623 = vpop.permute.xlu0 %5622
        %5624 = vrot.lane.b32.xlu0 %v5584, 64
        %v5625 = vpop.permute.xlu0 %5624
        %5626 = vrot.lane.b32.xlu0 %v5585, 64
        %v5627 = vpop.permute.xlu0 %5626
        %5628 = vrot.lane.b32.xlu0 %v5586, 64
        %v5629 = vpop.permute.xlu0 %5628
        %5630 = vrot.lane.b32.xlu0 %v5587, 64
        %v5631 = vpop.permute.xlu0 %5630
        %5632 = vrot.lane.b32.xlu0 %v5588, 64
        %v5633 = vpop.permute.xlu0 %5632
        %5634 = vrot.lane.b32.xlu0 %v5589, 64
        %v5635 = vpop.permute.xlu0 %5634
        %5636 = vrot.lane.b32.xlu0 %v5590, 64
        %v5637 = vpop.permute.xlu0 %5636
        %5638 = vrot.lane.b32.xlu0 %v5591, 64
        %v5639 = vpop.permute.xlu0 %5638
        %5640 = vrot.lane.b32.xlu0 %v5592, 64
        %v5641 = vpop.permute.xlu0 %5640
        %5642 = vrot.lane.b32.xlu0 %v5593, 64
        %v5643 = vpop.permute.xlu0 %5642
        %5644 = vrot.lane.b32.xlu0 %v5594, 64
        %v5645 = vpop.permute.xlu0 %5644
        %5646 = vrot.lane.b32.xlu0 %v5595, 64
        %v5647 = vpop.permute.xlu0 %5646
        %5648 = vrot.lane.b32.xlu0 %v5596, 64
        %v5649 = vpop.permute.xlu0 %5648
        %5650 = vrot.lane.b32.xlu0 %v5597, 64
        %v5651 = vpop.permute.xlu0 %5650
        %5652 = vrot.lane.b32.xlu0 %v5598, 64
        %v5653 = vpop.permute.xlu0 %5652
        %5654 = vrot.lane.b32.xlu0 %v5599, 64
        %v5655 = vpop.permute.xlu0 %5654
        %5656 = vrot.lane.b32.xlu0 %v5600, 64
        %v5657 = vpop.permute.xlu0 %5656
        %5658 = vrot.lane.b32.xlu0 %v5601, 64
        %v5659 = vpop.permute.xlu0 %5658
        %5660 = vrot.lane.b32.xlu0 %v5602, 64
        %v5661 = vpop.permute.xlu0 %5660
        %5662 = vrot.lane.b32.xlu0 %v5603, 64
        %v5663 = vpop.permute.xlu0 %5662
        %5664 = vrot.lane.b32.xlu0 %v5604, 64
        %v5665 = vpop.permute.xlu0 %5664
        %5666 = vrot.lane.b32.xlu0 %v5605, 64
        %v5667 = vpop.permute.xlu0 %5666
        %5668 = vrot.lane.b32.xlu0 %v5606, 64
        %v5669 = vpop.permute.xlu0 %5668
        %5670 = vrot.lane.b32.xlu0 %v5607, 64
        %v5671 = vpop.permute.xlu0 %5670
        %5704 = vst.msk [vmem:[#allocation3 + $0x4] sm:$0xf] %vm1669, %v5609
        %5705 = vst.msk [vmem:[#allocation3 + $0x10] sm:$0xf] %vm1669, %v5611
        %5706 = vst.msk [vmem:[#allocation3 + $0x1c] sm:$0xf] %vm1669, %v5613
        %5707 = vst.msk [vmem:[#allocation3 + $0x28] sm:$0xf] %vm1669, %v5615
        %5708 = vst.msk [vmem:[#allocation3 + $0x34] sm:$0xf] %vm1669, %v5617
        %5709 = vst.msk [vmem:[#allocation3 + $0x40] sm:$0xf] %vm1669, %v5619
        %5710 = vst.msk [vmem:[#allocation3 + $0x4c] sm:$0xf] %vm1669, %v5621
        %5711 = vst.msk [vmem:[#allocation3 + $0x58] sm:$0xf] %vm1669, %v5623
        %5712 = vst.msk [vmem:[#allocation3 + $0x64] sm:$0xf] %vm1669, %v5625
        %5713 = vst.msk [vmem:[#allocation3 + $0x70] sm:$0xf] %vm1669, %v5627
        %5714 = vst.msk [vmem:[#allocation3 + $0x7c] sm:$0xf] %vm1669, %v5629
        %5715 = vst.msk [vmem:[#allocation3 + $0x88] sm:$0xf] %vm1669, %v5631
        %5716 = vst.msk [vmem:[#allocation3 + $0x94] sm:$0xf] %vm1669, %v5633
        %5717 = vst.msk [vmem:[#allocation3 + $0xa0] sm:$0xf] %vm1669, %v5635
        %5718 = vst.msk [vmem:[#allocation3 + $0xac] sm:$0xf] %vm1669, %v5637
        %5719 = vst.msk [vmem:[#allocation3 + $0xb8] sm:$0xf] %vm1669, %v5639
        %5720 = vst.msk [vmem:[#allocation3 + $0xc4] sm:$0xf] %vm1669, %v5641
        %5721 = vst.msk [vmem:[#allocation3 + $0xd0] sm:$0xf] %vm1669, %v5643
        %5722 = vst.msk [vmem:[#allocation3 + $0xdc] sm:$0xf] %vm1669, %v5645
        %5723 = vst.msk [vmem:[#allocation3 + $0xe8] sm:$0xf] %vm1669, %v5647
        %5724 = vst.msk [vmem:[#allocation3 + $0xf4] sm:$0xf] %vm1669, %v5649
        %5725 = vst.msk [vmem:[#allocation3 + $0x100] sm:$0xf] %vm1669, %v5651
        %5726 = vst.msk [vmem:[#allocation3 + $0x10c] sm:$0xf] %vm1669, %v5653
        %5727 = vst.msk [vmem:[#allocation3 + $0x118] sm:$0xf] %vm1669, %v5655
        %5728 = vst.msk [vmem:[#allocation3 + $0x124] sm:$0xf] %vm1669, %v5657
        %5729 = vst.msk [vmem:[#allocation3 + $0x130] sm:$0xf] %vm1669, %v5659
        %5730 = vst.msk [vmem:[#allocation3 + $0x13c] sm:$0xf] %vm1669, %v5661
        %5731 = vst.msk [vmem:[#allocation3 + $0x148] sm:$0xf] %vm1669, %v5663
        %5732 = vst.msk [vmem:[#allocation3 + $0x154] sm:$0xf] %vm1669, %v5665
        %5733 = vst.msk [vmem:[#allocation3 + $0x160] sm:$0xf] %vm1669, %v5667
        %5734 = vst.msk [vmem:[#allocation3 + $0x16c] sm:$0xf] %vm1669, %v5669
        %5735 = vst.msk [vmem:[#allocation3 + $0x178] sm:$0xf] %vm1669, %v5671
        %v5736 = vld [vmem:[%s2407 + $0x1] sm:$0xff]
        %v5737 = vld [vmem:[%s2407 + $0x9] sm:$0xff]
        %v5738 = vld [vmem:[%s2407 + $0x19] sm:$0xff]
        %v5739 = vld [vmem:[%s2407 + $0x21] sm:$0xff]
        %v5740 = vld [vmem:[%s2407 + $0x31] sm:$0xff]
        %v5741 = vld [vmem:[%s2407 + $0x39] sm:$0xff]
        %v5742 = vld [vmem:[%s2407 + $0x49] sm:$0xff]
        %v5743 = vld [vmem:[%s2407 + $0x51] sm:$0xff]
        %v5744 = vld [vmem:[%s2407 + $0x61] sm:$0xff]
        %v5745 = vld [vmem:[%s2407 + $0x69] sm:$0xff]
        %v5746 = vld [vmem:[%s2407 + $0x79] sm:$0xff]
        %v5747 = vld [vmem:[%s2407 + $0x81] sm:$0xff]
        %v5748 = vld [vmem:[%s2407 + $0x91] sm:$0xff]
        %v5749 = vld [vmem:[%s2407 + $0x99] sm:$0xff]
        %v5750 = vld [vmem:[%s2407 + $0xa9] sm:$0xff]
        %v5751 = vld [vmem:[%s2407 + $0xb1] sm:$0xff]
        %v5752 = vld [vmem:[%s2407 + $0xc1] sm:$0xff]
        %v5753 = vld [vmem:[%s2407 + $0xc9] sm:$0xff]
        %v5754 = vld [vmem:[%s2407 + $0xd9] sm:$0xff]
        %v5755 = vld [vmem:[%s2407 + $0xe1] sm:$0xff]
        %v5756 = vld [vmem:[%s2407 + $0xf1] sm:$0xff]
        %v5757 = vld [vmem:[%s2407 + $0xf9] sm:$0xff]
        %v5758 = vld [vmem:[%s2407 + $0x109] sm:$0xff]
        %v5759 = vld [vmem:[%s2407 + $0x111] sm:$0xff]
        %v5760 = vld [vmem:[%s2407 + $0x121] sm:$0xff]
        %v5761 = vld [vmem:[%s2407 + $0x129] sm:$0xff]
        %v5762 = vld [vmem:[%s2407 + $0x139] sm:$0xff]
        %v5763 = vld [vmem:[%s2407 + $0x141] sm:$0xff]
        %v5764 = vld [vmem:[%s2407 + $0x151] sm:$0xff]
        %v5765 = vld [vmem:[%s2407 + $0x159] sm:$0xff]
        %v5766 = vld [vmem:[%s2407 + $0x169] sm:$0xff]
        %v5767 = vld [vmem:[%s2407 + $0x171] sm:$0xff]
        %v5768 = vpack.c.bf16 %v5737, %v5736
        %v5769 = vpack.c.bf16 %v5739, %v5738
        %v5770 = vpack.c.bf16 %v5741, %v5740
        %v5771 = vpack.c.bf16 %v5743, %v5742
        %v5772 = vpack.c.bf16 %v5745, %v5744
        %v5773 = vpack.c.bf16 %v5747, %v5746
        %v5774 = vpack.c.bf16 %v5749, %v5748
        %v5775 = vpack.c.bf16 %v5751, %v5750
        %v5776 = vpack.c.bf16 %v5753, %v5752
        %v5777 = vpack.c.bf16 %v5755, %v5754
        %v5778 = vpack.c.bf16 %v5757, %v5756
        %v5779 = vpack.c.bf16 %v5759, %v5758
        %v5780 = vpack.c.bf16 %v5761, %v5760
        %v5781 = vpack.c.bf16 %v5763, %v5762
        %v5782 = vpack.c.bf16 %v5765, %v5764
        %v5783 = vpack.c.bf16 %v5767, %v5766
        %v5800 = vunpack.c.l.b16 %v5768
        %v5801 = vunpack.c.h.b16 %v5768
        %v5802 = vunpack.c.l.b16 %v5769
        %v5803 = vunpack.c.h.b16 %v5769
        %v5804 = vunpack.c.l.b16 %v5770
        %v5805 = vunpack.c.h.b16 %v5770
        %v5806 = vunpack.c.l.b16 %v5771
        %v5807 = vunpack.c.h.b16 %v5771
        %v5808 = vunpack.c.l.b16 %v5772
        %v5809 = vunpack.c.h.b16 %v5772
        %v5810 = vunpack.c.l.b16 %v5773
        %v5811 = vunpack.c.h.b16 %v5773
        %v5812 = vunpack.c.l.b16 %v5774
        %v5813 = vunpack.c.h.b16 %v5774
        %v5814 = vunpack.c.l.b16 %v5775
        %v5815 = vunpack.c.h.b16 %v5775
        %v5816 = vunpack.c.l.b16 %v5776
        %v5817 = vunpack.c.h.b16 %v5776
        %v5818 = vunpack.c.l.b16 %v5777
        %v5819 = vunpack.c.h.b16 %v5777
        %v5820 = vunpack.c.l.b16 %v5778
        %v5821 = vunpack.c.h.b16 %v5778
        %v5822 = vunpack.c.l.b16 %v5779
        %v5823 = vunpack.c.h.b16 %v5779
        %v5824 = vunpack.c.l.b16 %v5780
        %v5825 = vunpack.c.h.b16 %v5780
        %v5826 = vunpack.c.l.b16 %v5781
        %v5827 = vunpack.c.h.b16 %v5781
        %v5828 = vunpack.c.l.b16 %v5782
        %v5829 = vunpack.c.h.b16 %v5782
        %v5830 = vunpack.c.l.b16 %v5783
        %v5831 = vunpack.c.h.b16 %v5783
        %v5832 = vpack.c.b16 %v5800, %v5800
        %v5833 = vpack.c.b16 %v5801, %v5801
        %v5834 = vpack.c.b16 %v5802, %v5802
        %v5835 = vpack.c.b16 %v5803, %v5803
        %v5836 = vpack.c.b16 %v5804, %v5804
        %v5837 = vpack.c.b16 %v5805, %v5805
        %v5838 = vpack.c.b16 %v5806, %v5806
        %v5839 = vpack.c.b16 %v5807, %v5807
        %v5840 = vpack.c.b16 %v5808, %v5808
        %v5841 = vpack.c.b16 %v5809, %v5809
        %v5842 = vpack.c.b16 %v5810, %v5810
        %v5843 = vpack.c.b16 %v5811, %v5811
        %v5844 = vpack.c.b16 %v5812, %v5812
        %v5845 = vpack.c.b16 %v5813, %v5813
        %v5846 = vpack.c.b16 %v5814, %v5814
        %v5847 = vpack.c.b16 %v5815, %v5815
        %v5848 = vpack.c.b16 %v5816, %v5816
        %v5849 = vpack.c.b16 %v5817, %v5817
        %v5850 = vpack.c.b16 %v5818, %v5818
        %v5851 = vpack.c.b16 %v5819, %v5819
        %v5852 = vpack.c.b16 %v5820, %v5820
        %v5853 = vpack.c.b16 %v5821, %v5821
        %v5854 = vpack.c.b16 %v5822, %v5822
        %v5855 = vpack.c.b16 %v5823, %v5823
        %v5856 = vpack.c.b16 %v5824, %v5824
        %v5857 = vpack.c.b16 %v5825, %v5825
        %v5858 = vpack.c.b16 %v5826, %v5826
        %v5859 = vpack.c.b16 %v5827, %v5827
        %v5860 = vpack.c.b16 %v5828, %v5828
        %v5861 = vpack.c.b16 %v5829, %v5829
        %v5862 = vpack.c.b16 %v5830, %v5830
        %v5863 = vpack.c.b16 %v5831, %v5831
        %5864 = vrot.lane.b32.xlu0 %v5832, 96
        %v5865 = vpop.permute.xlu0 %5864
        %5866 = vrot.lane.b32.xlu0 %v5833, 96
        %v5867 = vpop.permute.xlu0 %5866
        %5868 = vrot.lane.b32.xlu0 %v5834, 96
        %v5869 = vpop.permute.xlu0 %5868
        %5870 = vrot.lane.b32.xlu0 %v5835, 96
        %v5871 = vpop.permute.xlu0 %5870
        %5872 = vrot.lane.b32.xlu0 %v5836, 96
        %v5873 = vpop.permute.xlu0 %5872
        %5874 = vrot.lane.b32.xlu0 %v5837, 96
        %v5875 = vpop.permute.xlu0 %5874
        %5876 = vrot.lane.b32.xlu0 %v5838, 96
        %v5877 = vpop.permute.xlu0 %5876
        %5878 = vrot.lane.b32.xlu0 %v5839, 96
        %v5879 = vpop.permute.xlu0 %5878
        %5880 = vrot.lane.b32.xlu0 %v5840, 96
        %v5881 = vpop.permute.xlu0 %5880
        %5882 = vrot.lane.b32.xlu0 %v5841, 96
        %v5883 = vpop.permute.xlu0 %5882
        %5884 = vrot.lane.b32.xlu0 %v5842, 96
        %v5885 = vpop.permute.xlu0 %5884
        %5886 = vrot.lane.b32.xlu0 %v5843, 96
        %v5887 = vpop.permute.xlu0 %5886
        %5888 = vrot.lane.b32.xlu0 %v5844, 96
        %v5889 = vpop.permute.xlu0 %5888
        %5890 = vrot.lane.b32.xlu0 %v5845, 96
        %v5891 = vpop.permute.xlu0 %5890
        %5892 = vrot.lane.b32.xlu0 %v5846, 96
        %v5893 = vpop.permute.xlu0 %5892
        %5894 = vrot.lane.b32.xlu0 %v5847, 96
        %v5895 = vpop.permute.xlu0 %5894
        %5896 = vrot.lane.b32.xlu0 %v5848, 96
        %v5897 = vpop.permute.xlu0 %5896
        %5898 = vrot.lane.b32.xlu0 %v5849, 96
        %v5899 = vpop.permute.xlu0 %5898
        %5900 = vrot.lane.b32.xlu0 %v5850, 96
        %v5901 = vpop.permute.xlu0 %5900
        %5902 = vrot.lane.b32.xlu0 %v5851, 96
        %v5903 = vpop.permute.xlu0 %5902
        %5904 = vrot.lane.b32.xlu0 %v5852, 96
        %v5905 = vpop.permute.xlu0 %5904
        %5906 = vrot.lane.b32.xlu0 %v5853, 96
        %v5907 = vpop.permute.xlu0 %5906
        %5908 = vrot.lane.b32.xlu0 %v5854, 96
        %v5909 = vpop.permute.xlu0 %5908
        %5910 = vrot.lane.b32.xlu0 %v5855, 96
        %v5911 = vpop.permute.xlu0 %5910
        %5912 = vrot.lane.b32.xlu0 %v5856, 96
        %v5913 = vpop.permute.xlu0 %5912
        %5914 = vrot.lane.b32.xlu0 %v5857, 96
        %v5915 = vpop.permute.xlu0 %5914
        %5916 = vrot.lane.b32.xlu0 %v5858, 96
        %v5917 = vpop.permute.xlu0 %5916
        %5918 = vrot.lane.b32.xlu0 %v5859, 96
        %v5919 = vpop.permute.xlu0 %5918
        %5920 = vrot.lane.b32.xlu0 %v5860, 96
        %v5921 = vpop.permute.xlu0 %5920
        %5922 = vrot.lane.b32.xlu0 %v5861, 96
        %v5923 = vpop.permute.xlu0 %5922
        %5924 = vrot.lane.b32.xlu0 %v5862, 96
        %v5925 = vpop.permute.xlu0 %5924
        %5926 = vrot.lane.b32.xlu0 %v5863, 96
        %v5927 = vpop.permute.xlu0 %5926
        %5960 = vst.msk [vmem:[#allocation3 + $0x4] sm:$0xf] %vm1926, %v5865
        %5961 = vst.msk [vmem:[#allocation3 + $0x10] sm:$0xf] %vm1926, %v5867
        %5962 = vst.msk [vmem:[#allocation3 + $0x1c] sm:$0xf] %vm1926, %v5869
        %5963 = vst.msk [vmem:[#allocation3 + $0x28] sm:$0xf] %vm1926, %v5871
        %5964 = vst.msk [vmem:[#allocation3 + $0x34] sm:$0xf] %vm1926, %v5873
        %5965 = vst.msk [vmem:[#allocation3 + $0x40] sm:$0xf] %vm1926, %v5875
        %5966 = vst.msk [vmem:[#allocation3 + $0x4c] sm:$0xf] %vm1926, %v5877
        %5967 = vst.msk [vmem:[#allocation3 + $0x58] sm:$0xf] %vm1926, %v5879
        %5968 = vst.msk [vmem:[#allocation3 + $0x64] sm:$0xf] %vm1926, %v5881
        %5969 = vst.msk [vmem:[#allocation3 + $0x70] sm:$0xf] %vm1926, %v5883
        %5970 = vst.msk [vmem:[#allocation3 + $0x7c] sm:$0xf] %vm1926, %v5885
        %5971 = vst.msk [vmem:[#allocation3 + $0x88] sm:$0xf] %vm1926, %v5887
        %5972 = vst.msk [vmem:[#allocation3 + $0x94] sm:$0xf] %vm1926, %v5889
        %5973 = vst.msk [vmem:[#allocation3 + $0xa0] sm:$0xf] %vm1926, %v5891
        %5974 = vst.msk [vmem:[#allocation3 + $0xac] sm:$0xf] %vm1926, %v5893
        %5975 = vst.msk [vmem:[#allocation3 + $0xb8] sm:$0xf] %vm1926, %v5895
        %5976 = vst.msk [vmem:[#allocation3 + $0xc4] sm:$0xf] %vm1926, %v5897
        %5977 = vst.msk [vmem:[#allocation3 + $0xd0] sm:$0xf] %vm1926, %v5899
        %5978 = vst.msk [vmem:[#allocation3 + $0xdc] sm:$0xf] %vm1926, %v5901
        %5979 = vst.msk [vmem:[#allocation3 + $0xe8] sm:$0xf] %vm1926, %v5903
        %5980 = vst.msk [vmem:[#allocation3 + $0xf4] sm:$0xf] %vm1926, %v5905
        %5981 = vst.msk [vmem:[#allocation3 + $0x100] sm:$0xf] %vm1926, %v5907
        %5982 = vst.msk [vmem:[#allocation3 + $0x10c] sm:$0xf] %vm1926, %v5909
        %5983 = vst.msk [vmem:[#allocation3 + $0x118] sm:$0xf] %vm1926, %v5911
        %5984 = vst.msk [vmem:[#allocation3 + $0x124] sm:$0xf] %vm1926, %v5913
        %5985 = vst.msk [vmem:[#allocation3 + $0x130] sm:$0xf] %vm1926, %v5915
        %5986 = vst.msk [vmem:[#allocation3 + $0x13c] sm:$0xf] %vm1926, %v5917
        %5987 = vst.msk [vmem:[#allocation3 + $0x148] sm:$0xf] %vm1926, %v5919
        %5988 = vst.msk [vmem:[#allocation3 + $0x154] sm:$0xf] %vm1926, %v5921
        %5989 = vst.msk [vmem:[#allocation3 + $0x160] sm:$0xf] %vm1926, %v5923
        %5990 = vst.msk [vmem:[#allocation3 + $0x16c] sm:$0xf] %vm1926, %v5925
        %5991 = vst.msk [vmem:[#allocation3 + $0x178] sm:$0xf] %vm1926, %v5927
        %v5992 = vld [vmem:[%s2407 + $0x2] sm:$0xff]
        %v5993 = vld [vmem:[%s2407 + $0xa] sm:$0xff]
        %v5994 = vld [vmem:[%s2407 + $0x1a] sm:$0xff]
        %v5995 = vld [vmem:[%s2407 + $0x22] sm:$0xff]
        %v5996 = vld [vmem:[%s2407 + $0x32] sm:$0xff]
        %v5997 = vld [vmem:[%s2407 + $0x3a] sm:$0xff]
        %v5998 = vld [vmem:[%s2407 + $0x4a] sm:$0xff]
        %v5999 = vld [vmem:[%s2407 + $0x52] sm:$0xff]
        %v6000 = vld [vmem:[%s2407 + $0x62] sm:$0xff]
        %v6001 = vld [vmem:[%s2407 + $0x6a] sm:$0xff]
        %v6002 = vld [vmem:[%s2407 + $0x7a] sm:$0xff]
        %v6003 = vld [vmem:[%s2407 + $0x82] sm:$0xff]
        %v6004 = vld [vmem:[%s2407 + $0x92] sm:$0xff]
        %v6005 = vld [vmem:[%s2407 + $0x9a] sm:$0xff]
        %v6006 = vld [vmem:[%s2407 + $0xaa] sm:$0xff]
        %v6007 = vld [vmem:[%s2407 + $0xb2] sm:$0xff]
        %v6008 = vld [vmem:[%s2407 + $0xc2] sm:$0xff]
        %v6009 = vld [vmem:[%s2407 + $0xca] sm:$0xff]
        %v6010 = vld [vmem:[%s2407 + $0xda] sm:$0xff]
        %v6011 = vld [vmem:[%s2407 + $0xe2] sm:$0xff]
        %v6012 = vld [vmem:[%s2407 + $0xf2] sm:$0xff]
        %v6013 = vld [vmem:[%s2407 + $0xfa] sm:$0xff]
        %v6014 = vld [vmem:[%s2407 + $0x10a] sm:$0xff]
        %v6015 = vld [vmem:[%s2407 + $0x112] sm:$0xff]
        %v6016 = vld [vmem:[%s2407 + $0x122] sm:$0xff]
        %v6017 = vld [vmem:[%s2407 + $0x12a] sm:$0xff]
        %v6018 = vld [vmem:[%s2407 + $0x13a] sm:$0xff]
        %v6019 = vld [vmem:[%s2407 + $0x142] sm:$0xff]
        %v6020 = vld [vmem:[%s2407 + $0x152] sm:$0xff]
        %v6021 = vld [vmem:[%s2407 + $0x15a] sm:$0xff]
        %v6022 = vld [vmem:[%s2407 + $0x16a] sm:$0xff]
        %v6023 = vld [vmem:[%s2407 + $0x172] sm:$0xff]
        %v6024 = vpack.c.bf16 %v5993, %v5992
        %v6025 = vpack.c.bf16 %v5995, %v5994
        %v6026 = vpack.c.bf16 %v5997, %v5996
        %v6027 = vpack.c.bf16 %v5999, %v5998
        %v6028 = vpack.c.bf16 %v6001, %v6000
        %v6029 = vpack.c.bf16 %v6003, %v6002
        %v6030 = vpack.c.bf16 %v6005, %v6004
        %v6031 = vpack.c.bf16 %v6007, %v6006
        %v6032 = vpack.c.bf16 %v6009, %v6008
        %v6033 = vpack.c.bf16 %v6011, %v6010
        %v6034 = vpack.c.bf16 %v6013, %v6012
        %v6035 = vpack.c.bf16 %v6015, %v6014
        %v6036 = vpack.c.bf16 %v6017, %v6016
        %v6037 = vpack.c.bf16 %v6019, %v6018
        %v6038 = vpack.c.bf16 %v6021, %v6020
        %v6039 = vpack.c.bf16 %v6023, %v6022
        %v6056 = vunpack.c.l.b16 %v6024
        %v6057 = vunpack.c.h.b16 %v6024
        %v6058 = vunpack.c.l.b16 %v6025
        %v6059 = vunpack.c.h.b16 %v6025
        %v6060 = vunpack.c.l.b16 %v6026
        %v6061 = vunpack.c.h.b16 %v6026
        %v6062 = vunpack.c.l.b16 %v6027
        %v6063 = vunpack.c.h.b16 %v6027
        %v6064 = vunpack.c.l.b16 %v6028
        %v6065 = vunpack.c.h.b16 %v6028
        %v6066 = vunpack.c.l.b16 %v6029
        %v6067 = vunpack.c.h.b16 %v6029
        %v6068 = vunpack.c.l.b16 %v6030
        %v6069 = vunpack.c.h.b16 %v6030
        %v6070 = vunpack.c.l.b16 %v6031
        %v6071 = vunpack.c.h.b16 %v6031
        %v6072 = vunpack.c.l.b16 %v6032
        %v6073 = vunpack.c.h.b16 %v6032
        %v6074 = vunpack.c.l.b16 %v6033
        %v6075 = vunpack.c.h.b16 %v6033
        %v6076 = vunpack.c.l.b16 %v6034
        %v6077 = vunpack.c.h.b16 %v6034
        %v6078 = vunpack.c.l.b16 %v6035
        %v6079 = vunpack.c.h.b16 %v6035
        %v6080 = vunpack.c.l.b16 %v6036
        %v6081 = vunpack.c.h.b16 %v6036
        %v6082 = vunpack.c.l.b16 %v6037
        %v6083 = vunpack.c.h.b16 %v6037
        %v6084 = vunpack.c.l.b16 %v6038
        %v6085 = vunpack.c.h.b16 %v6038
        %v6086 = vunpack.c.l.b16 %v6039
        %v6087 = vunpack.c.h.b16 %v6039
        %v6088 = vpack.c.b16 %v6056, %v6056
        %v6089 = vpack.c.b16 %v6057, %v6057
        %v6090 = vpack.c.b16 %v6058, %v6058
        %v6091 = vpack.c.b16 %v6059, %v6059
        %v6092 = vpack.c.b16 %v6060, %v6060
        %v6093 = vpack.c.b16 %v6061, %v6061
        %v6094 = vpack.c.b16 %v6062, %v6062
        %v6095 = vpack.c.b16 %v6063, %v6063
        %v6096 = vpack.c.b16 %v6064, %v6064
        %v6097 = vpack.c.b16 %v6065, %v6065
        %v6098 = vpack.c.b16 %v6066, %v6066
        %v6099 = vpack.c.b16 %v6067, %v6067
        %v6100 = vpack.c.b16 %v6068, %v6068
        %v6101 = vpack.c.b16 %v6069, %v6069
        %v6102 = vpack.c.b16 %v6070, %v6070
        %v6103 = vpack.c.b16 %v6071, %v6071
        %v6104 = vpack.c.b16 %v6072, %v6072
        %v6105 = vpack.c.b16 %v6073, %v6073
        %v6106 = vpack.c.b16 %v6074, %v6074
        %v6107 = vpack.c.b16 %v6075, %v6075
        %v6108 = vpack.c.b16 %v6076, %v6076
        %v6109 = vpack.c.b16 %v6077, %v6077
        %v6110 = vpack.c.b16 %v6078, %v6078
        %v6111 = vpack.c.b16 %v6079, %v6079
        %v6112 = vpack.c.b16 %v6080, %v6080
        %v6113 = vpack.c.b16 %v6081, %v6081
        %v6114 = vpack.c.b16 %v6082, %v6082
        %v6115 = vpack.c.b16 %v6083, %v6083
        %v6116 = vpack.c.b16 %v6084, %v6084
        %v6117 = vpack.c.b16 %v6085, %v6085
        %v6118 = vpack.c.b16 %v6086, %v6086
        %v6119 = vpack.c.b16 %v6087, %v6087
        %6152 = vst.msk [vmem:[#allocation3 + $0x8] sm:$0xf] %vm1155, %v6088
        %6153 = vst.msk [vmem:[#allocation3 + $0x14] sm:$0xf] %vm1155, %v6089
        %6154 = vst.msk [vmem:[#allocation3 + $0x20] sm:$0xf] %vm1155, %v6090
        %6155 = vst.msk [vmem:[#allocation3 + $0x2c] sm:$0xf] %vm1155, %v6091
        %6156 = vst.msk [vmem:[#allocation3 + $0x38] sm:$0xf] %vm1155, %v6092
        %6157 = vst.msk [vmem:[#allocation3 + $0x44] sm:$0xf] %vm1155, %v6093
        %6158 = vst.msk [vmem:[#allocation3 + $0x50] sm:$0xf] %vm1155, %v6094
        %6159 = vst.msk [vmem:[#allocation3 + $0x5c] sm:$0xf] %vm1155, %v6095
        %6160 = vst.msk [vmem:[#allocation3 + $0x68] sm:$0xf] %vm1155, %v6096
        %6161 = vst.msk [vmem:[#allocation3 + $0x74] sm:$0xf] %vm1155, %v6097
        %6162 = vst.msk [vmem:[#allocation3 + $0x80] sm:$0xf] %vm1155, %v6098
        %6163 = vst.msk [vmem:[#allocation3 + $0x8c] sm:$0xf] %vm1155, %v6099
        %6164 = vst.msk [vmem:[#allocation3 + $0x98] sm:$0xf] %vm1155, %v6100
        %6165 = vst.msk [vmem:[#allocation3 + $0xa4] sm:$0xf] %vm1155, %v6101
        %6166 = vst.msk [vmem:[#allocation3 + $0xb0] sm:$0xf] %vm1155, %v6102
        %6167 = vst.msk [vmem:[#allocation3 + $0xbc] sm:$0xf] %vm1155, %v6103
        %6168 = vst.msk [vmem:[#allocation3 + $0xc8] sm:$0xf] %vm1155, %v6104
        %6169 = vst.msk [vmem:[#allocation3 + $0xd4] sm:$0xf] %vm1155, %v6105
        %6170 = vst.msk [vmem:[#allocation3 + $0xe0] sm:$0xf] %vm1155, %v6106
        %6171 = vst.msk [vmem:[#allocation3 + $0xec] sm:$0xf] %vm1155, %v6107
        %6172 = vst.msk [vmem:[#allocation3 + $0xf8] sm:$0xf] %vm1155, %v6108
        %6173 = vst.msk [vmem:[#allocation3 + $0x104] sm:$0xf] %vm1155, %v6109
        %6174 = vst.msk [vmem:[#allocation3 + $0x110] sm:$0xf] %vm1155, %v6110
        %6175 = vst.msk [vmem:[#allocation3 + $0x11c] sm:$0xf] %vm1155, %v6111
        %6176 = vst.msk [vmem:[#allocation3 + $0x128] sm:$0xf] %vm1155, %v6112
        %6177 = vst.msk [vmem:[#allocation3 + $0x134] sm:$0xf] %vm1155, %v6113
        %6178 = vst.msk [vmem:[#allocation3 + $0x140] sm:$0xf] %vm1155, %v6114
        %6179 = vst.msk [vmem:[#allocation3 + $0x14c] sm:$0xf] %vm1155, %v6115
        %6180 = vst.msk [vmem:[#allocation3 + $0x158] sm:$0xf] %vm1155, %v6116
        %6181 = vst.msk [vmem:[#allocation3 + $0x164] sm:$0xf] %vm1155, %v6117
        %6182 = vst.msk [vmem:[#allocation3 + $0x170] sm:$0xf] %vm1155, %v6118
        %6183 = vst.msk [vmem:[#allocation3 + $0x17c] sm:$0xf] %vm1155, %v6119
        %v6184 = vld [vmem:[%s8] sm:$0x3]
        %v6185 = vld [vmem:[#allocation4] sm:$0x1]
        %s6186 = vtos %v6185
        %v6187 = vld [vmem:[#allocation3] sm:$0xff]
        %v6188 = vld [vmem:[#allocation3 + $0x8] sm:$0xf]
        %v6189 = vld [vmem:[#allocation3 + $0xc] sm:$0xff]
        %v6190 = vld [vmem:[#allocation3 + $0x14] sm:$0xf]
        %v6191 = vld [vmem:[#allocation3 + $0x18] sm:$0xff]
        %v6192 = vld [vmem:[#allocation3 + $0x20] sm:$0xf]
        %v6193 = vld [vmem:[#allocation3 + $0x24] sm:$0xff]
        %v6194 = vld [vmem:[#allocation3 + $0x2c] sm:$0xf]
        %v6195 = vld [vmem:[#allocation3 + $0x30] sm:$0xff]
        %v6196 = vld [vmem:[#allocation3 + $0x38] sm:$0xf]
        %v6197 = vld [vmem:[#allocation3 + $0x3c] sm:$0xff]
        %v6198 = vld [vmem:[#allocation3 + $0x44] sm:$0xf]
        %v6199 = vld [vmem:[#allocation3 + $0x48] sm:$0xff]
        %v6200 = vld [vmem:[#allocation3 + $0x50] sm:$0xf]
        %v6201 = vld [vmem:[#allocation3 + $0x54] sm:$0xff]
        %v6202 = vld [vmem:[#allocation3 + $0x5c] sm:$0xf]
        %v6203 = vld [vmem:[#allocation3 + $0x60] sm:$0xff]
        %v6204 = vld [vmem:[#allocation3 + $0x68] sm:$0xf]
        %v6205 = vld [vmem:[#allocation3 + $0x6c] sm:$0xff]
        %v6206 = vld [vmem:[#allocation3 + $0x74] sm:$0xf]
        %v6207 = vld [vmem:[#allocation3 + $0x78] sm:$0xff]
        %v6208 = vld [vmem:[#allocation3 + $0x80] sm:$0xf]
        %v6209 = vld [vmem:[#allocation3 + $0x84] sm:$0xff]
        %v6210 = vld [vmem:[#allocation3 + $0x8c] sm:$0xf]
        %v6211 = vld [vmem:[#allocation3 + $0x90] sm:$0xff]
        %v6212 = vld [vmem:[#allocation3 + $0x98] sm:$0xf]
        %v6213 = vld [vmem:[#allocation3 + $0x9c] sm:$0xff]
        %v6214 = vld [vmem:[#allocation3 + $0xa4] sm:$0xf]
        %v6215 = vld [vmem:[#allocation3 + $0xa8] sm:$0xff]
        %v6216 = vld [vmem:[#allocation3 + $0xb0] sm:$0xf]
        %v6217 = vld [vmem:[#allocation3 + $0xb4] sm:$0xff]
        %v6218 = vld [vmem:[#allocation3 + $0xbc] sm:$0xf]
        %v6219 = vld [vmem:[#allocation5] sm:$0xff]
        %v6220 = vld [vmem:[#allocation5 + $0x8] sm:$0xff]
        %v6221 = vld [vmem:[#allocation5 + $0x10] sm:$0xff]
        %v6222 = vld [vmem:[#allocation5 + $0x18] sm:$0xff]
        %v6223 = vld [vmem:[#allocation5 + $0x20] sm:$0xff]
        %v6224 = vld [vmem:[#allocation5 + $0x28] sm:$0xff]
        %v6225 = vld [vmem:[#allocation5 + $0x30] sm:$0xff]
        %v6226 = vld [vmem:[#allocation5 + $0x38] sm:$0xff]
        %v6227 = vld [vmem:[#allocation5 + $0x40] sm:$0xff]
        %v6228 = vld [vmem:[#allocation5 + $0x48] sm:$0xff]
        %v6229 = vld [vmem:[#allocation5 + $0x50] sm:$0xff]
        %v6230 = vld [vmem:[#allocation5 + $0x58] sm:$0xff]
        %v6231 = vld [vmem:[#allocation5 + $0x60] sm:$0xff]
        %v6232 = vld [vmem:[#allocation5 + $0x68] sm:$0xff]
        %v6233 = vld [vmem:[#allocation5 + $0x70] sm:$0xff]
        %v6234 = vld [vmem:[#allocation5 + $0x78] sm:$0xff]
        %v6235 = vld [vmem:[#allocation5 + $0x80] sm:$0xff]
        %v6236 = vld [vmem:[#allocation5 + $0x88] sm:$0xff]
        %v6237 = vld [vmem:[#allocation5 + $0x90] sm:$0xff]
        %v6238 = vld [vmem:[#allocation5 + $0x98] sm:$0xff]
        %v6239 = vld [vmem:[#allocation5 + $0xa0] sm:$0xff]
        %v6240 = vld [vmem:[#allocation5 + $0xa8] sm:$0xff]
        %v6241 = vld [vmem:[#allocation5 + $0xb0] sm:$0xff]
        %v6242 = vld [vmem:[#allocation5 + $0xb8] sm:$0xff]
        %v6243 = vld [vmem:[#allocation5 + $0xc0] sm:$0xff]
        %v6244 = vld [vmem:[#allocation5 + $0xc8] sm:$0xff]
        %v6245 = vld [vmem:[#allocation5 + $0xd0] sm:$0xff]
        %v6246 = vld [vmem:[#allocation5 + $0xd8] sm:$0xff]
        %v6247 = vld [vmem:[#allocation5 + $0xe0] sm:$0xff]
        %v6248 = vld [vmem:[#allocation5 + $0xe8] sm:$0xff]
        %v6249 = vld [vmem:[#allocation5 + $0xf0] sm:$0xff]
        %v6250 = vld [vmem:[#allocation5 + $0xf8] sm:$0xff]
        %v6251 = vld [vmem:[#allocation5 + $0x100] sm:$0xff]
        %v6252 = vld [vmem:[#allocation5 + $0x108] sm:$0xff]
        %v6253 = vld [vmem:[#allocation5 + $0x110] sm:$0xff]
        %v6254 = vld [vmem:[#allocation5 + $0x118] sm:$0xff]
        %v6287 = vunpack.c.l.b16 %v6187
        %v6288 = vunpack.c.h.b16 %v6187
        %v6289 = vunpack.c.l.b16 %v6188
        %v6290 = vunpack.c.l.b16 %v6189
        %v6291 = vunpack.c.h.b16 %v6189
        %v6292 = vunpack.c.l.b16 %v6190
        %v6293 = vunpack.c.l.b16 %v6191
        %v6294 = vunpack.c.h.b16 %v6191
        %v6295 = vunpack.c.l.b16 %v6192
        %v6296 = vunpack.c.l.b16 %v6193
        %v6297 = vunpack.c.h.b16 %v6193
        %v6298 = vunpack.c.l.b16 %v6194
        %v6299 = vunpack.c.l.b16 %v6195
        %v6300 = vunpack.c.h.b16 %v6195
        %v6301 = vunpack.c.l.b16 %v6196
        %v6302 = vunpack.c.l.b16 %v6197
        %v6303 = vunpack.c.h.b16 %v6197
        %v6304 = vunpack.c.l.b16 %v6198
        %v6305 = vunpack.c.l.b16 %v6199
        %v6306 = vunpack.c.h.b16 %v6199
        %v6307 = vunpack.c.l.b16 %v6200
        %v6308 = vunpack.c.l.b16 %v6201
        %v6309 = vunpack.c.h.b16 %v6201
        %v6310 = vunpack.c.l.b16 %v6202
        %v6311 = vunpack.c.l.b16 %v6203
        %v6312 = vunpack.c.h.b16 %v6203
        %v6313 = vunpack.c.l.b16 %v6204
        %v6314 = vunpack.c.l.b16 %v6205
        %v6315 = vunpack.c.h.b16 %v6205
        %v6316 = vunpack.c.l.b16 %v6206
        %v6317 = vunpack.c.l.b16 %v6207
        %v6318 = vunpack.c.h.b16 %v6207
        %v6319 = vunpack.c.l.b16 %v6208
        %v6320 = vunpack.c.l.b16 %v6209
        %v6321 = vunpack.c.h.b16 %v6209
        %v6322 = vunpack.c.l.b16 %v6210
        %v6323 = vunpack.c.l.b16 %v6211
        %v6324 = vunpack.c.h.b16 %v6211
        %v6325 = vunpack.c.l.b16 %v6212
        %v6326 = vunpack.c.l.b16 %v6213
        %v6327 = vunpack.c.h.b16 %v6213
        %v6328 = vunpack.c.l.b16 %v6214
        %v6329 = vunpack.c.l.b16 %v6215
        %v6330 = vunpack.c.h.b16 %v6215
        %v6331 = vunpack.c.l.b16 %v6216
        %v6332 = vunpack.c.l.b16 %v6217
        %v6333 = vunpack.c.h.b16 %v6217
        %v6334 = vunpack.c.l.b16 %v6218
        %v6335 = vpack.c.b16 %v6290, %v6287
        %v6336 = vpack.c.b16 %v6291, %v6288
        %v6337 = vpack.c.b16 %v6292, %v6289
        %v6338 = vpack.c.b16 %v6296, %v6293
        %v6339 = vpack.c.b16 %v6297, %v6294
        %v6340 = vpack.c.b16 %v6298, %v6295
        %v6341 = vpack.c.b16 %v6302, %v6299
        %v6342 = vpack.c.b16 %v6303, %v6300
        %v6343 = vpack.c.b16 %v6304, %v6301
        %v6344 = vpack.c.b16 %v6308, %v6305
        %v6345 = vpack.c.b16 %v6309, %v6306
        %v6346 = vpack.c.b16 %v6310, %v6307
        %v6347 = vpack.c.b16 %v6314, %v6311
        %v6348 = vpack.c.b16 %v6315, %v6312
        %v6349 = vpack.c.b16 %v6316, %v6313
        %v6350 = vpack.c.b16 %v6320, %v6317
        %v6351 = vpack.c.b16 %v6321, %v6318
        %v6352 = vpack.c.b16 %v6322, %v6319
        %v6353 = vpack.c.b16 %v6326, %v6323
        %v6354 = vpack.c.b16 %v6327, %v6324
        %v6355 = vpack.c.b16 %v6328, %v6325
        %v6356 = vpack.c.b16 %v6332, %v6329
        %v6357 = vpack.c.b16 %v6333, %v6330
        %v6358 = vpack.c.b16 %v6334, %v6331
        %v6411 = vunpack.c.l.b16 %v6219
        %v6412 = vunpack.c.h.b16 %v6219
        %v6413 = vunpack.c.l.b16 %v6220
        %v6414 = vunpack.c.h.b16 %v6220
        %v6415 = vunpack.c.l.b16 %v6221
        %v6416 = vunpack.c.h.b16 %v6221
        %v6417 = vunpack.c.l.b16 %v6222
        %v6418 = vunpack.c.h.b16 %v6222
        %v6419 = vunpack.c.l.b16 %v6223
        %v6420 = vunpack.c.h.b16 %v6223
        %v6421 = vunpack.c.l.b16 %v6224
        %v6422 = vunpack.c.h.b16 %v6224
        %v6423 = vunpack.c.l.b16 %v6225
        %v6424 = vunpack.c.h.b16 %v6225
        %v6425 = vunpack.c.l.b16 %v6226
        %v6426 = vunpack.c.h.b16 %v6226
        %v6427 = vunpack.c.l.b16 %v6227
        %v6428 = vunpack.c.h.b16 %v6227
        %v6429 = vunpack.c.l.b16 %v6228
        %v6430 = vunpack.c.h.b16 %v6228
        %v6431 = vunpack.c.l.b16 %v6229
        %v6432 = vunpack.c.h.b16 %v6229
        %v6433 = vunpack.c.l.b16 %v6230
        %v6434 = vunpack.c.h.b16 %v6230
        %v6435 = vunpack.c.l.b16 %v6231
        %v6436 = vunpack.c.h.b16 %v6231
        %v6437 = vunpack.c.l.b16 %v6232
        %v6438 = vunpack.c.h.b16 %v6232
        %v6439 = vunpack.c.l.b16 %v6233
        %v6440 = vunpack.c.h.b16 %v6233
        %v6441 = vunpack.c.l.b16 %v6234
        %v6442 = vunpack.c.h.b16 %v6234
        %v6443 = vunpack.c.l.b16 %v6235
        %v6444 = vunpack.c.h.b16 %v6235
        %v6445 = vunpack.c.l.b16 %v6236
        %v6446 = vunpack.c.h.b16 %v6236
        %v6447 = vunpack.c.l.b16 %v6237
        %v6448 = vunpack.c.h.b16 %v6237
        %v6449 = vunpack.c.l.b16 %v6238
        %v6450 = vunpack.c.h.b16 %v6238
        %v6451 = vunpack.c.l.b16 %v6239
        %v6452 = vunpack.c.h.b16 %v6239
        %v6453 = vunpack.c.l.b16 %v6240
        %v6454 = vunpack.c.h.b16 %v6240
        %v6455 = vunpack.c.l.b16 %v6241
        %v6456 = vunpack.c.h.b16 %v6241
        %v6457 = vunpack.c.l.b16 %v6242
        %v6458 = vunpack.c.h.b16 %v6242
        %v6459 = vunpack.c.l.b16 %v6243
        %v6460 = vunpack.c.h.b16 %v6243
        %v6461 = vunpack.c.l.b16 %v6244
        %v6462 = vunpack.c.h.b16 %v6244
        %v6463 = vunpack.c.l.b16 %v6245
        %v6464 = vunpack.c.h.b16 %v6245
        %v6465 = vunpack.c.l.b16 %v6246
        %v6466 = vunpack.c.h.b16 %v6246
        %v6467 = vunpack.c.l.b16 %v6247
        %v6468 = vunpack.c.h.b16 %v6247
        %v6469 = vunpack.c.l.b16 %v6248
        %v6470 = vunpack.c.h.b16 %v6248
        %v6471 = vunpack.c.l.b16 %v6249
        %v6472 = vunpack.c.h.b16 %v6249
        %v6473 = vunpack.c.l.b16 %v6250
        %v6474 = vunpack.c.h.b16 %v6250
        %v6475 = vunpack.c.l.b16 %v6251
        %v6476 = vunpack.c.h.b16 %v6251
        %v6477 = vunpack.c.l.b16 %v6252
        %v6478 = vunpack.c.h.b16 %v6252
        %v6479 = vunpack.c.l.b16 %v6253
        %v6480 = vunpack.c.h.b16 %v6253
        %v6481 = vunpack.c.l.b16 %v6254
        %v6482 = vunpack.c.h.b16 %v6254
        %v6483 = vpack.c.b16 %v6413, %v6411
        %v6484 = vpack.c.b16 %v6414, %v6412
        %v6485 = vpack.c.b16 %v6417, %v6415
        %v6486 = vpack.c.b16 %v6418, %v6416
        %v6487 = vpack.c.b16 %v6421, %v6419
        %v6488 = vpack.c.b16 %v6422, %v6420
        %v6489 = vpack.c.b16 %v6425, %v6423
        %v6490 = vpack.c.b16 %v6426, %v6424
        %v6491 = vpack.c.b16 %v6429, %v6427
        %v6492 = vpack.c.b16 %v6430, %v6428
        %v6493 = vpack.c.b16 %v6433, %v6431
        %v6494 = vpack.c.b16 %v6434, %v6432
        %v6495 = vpack.c.b16 %v6437, %v6435
        %v6496 = vpack.c.b16 %v6438, %v6436
        %v6497 = vpack.c.b16 %v6441, %v6439
        %v6498 = vpack.c.b16 %v6442, %v6440
        %v6499 = vpack.c.b16 %v6445, %v6443
        %v6500 = vpack.c.b16 %v6446, %v6444
        %v6501 = vpack.c.b16 %v6449, %v6447
        %v6502 = vpack.c.b16 %v6450, %v6448
        %v6503 = vpack.c.b16 %v6453, %v6451
        %v6504 = vpack.c.b16 %v6454, %v6452
        %v6505 = vpack.c.b16 %v6457, %v6455
        %v6506 = vpack.c.b16 %v6458, %v6456
        %v6507 = vpack.c.b16 %v6461, %v6459
        %v6508 = vpack.c.b16 %v6462, %v6460
        %v6509 = vpack.c.b16 %v6465, %v6463
        %v6510 = vpack.c.b16 %v6466, %v6464
        %v6511 = vpack.c.b16 %v6469, %v6467
        %v6512 = vpack.c.b16 %v6470, %v6468
        %v6513 = vpack.c.b16 %v6473, %v6471
        %v6514 = vpack.c.b16 %v6474, %v6472
        %v6515 = vpack.c.b16 %v6477, %v6475
        %v6516 = vpack.c.b16 %v6478, %v6476
        %v6517 = vpack.c.b16 %v6481, %v6479
        %v6518 = vpack.c.b16 %v6482, %v6480
        %v6556 = vsel %vm916, %v6337, 0
        %v6559 = vsel %vm916, %v6340, 0
        %v6562 = vsel %vm916, %v6343, 0
        %v6565 = vsel %vm916, %v6346, 0
        %v6568 = vsel %vm916, %v6349, 0
        %v6571 = vsel %vm916, %v6352, 0
        %v6574 = vsel %vm916, %v6355, 0
        %v6577 = vsel %vm916, %v6358, 0
        %6579 = vmatprep.subr.bf16.mxu0 %v6498
        %6580 = vmatpush1.bf16.msra.mxu0 %v6497
        %6581 = vmatprep.subr.bf16.mxu0 %v6496
        %6582 = vmatpush1.bf16.msra.mxu0 %v6495
        %6583 = vmatprep.subr.bf16.mxu0 %v6494
        %6584 = vmatpush1.bf16.msra.mxu0 %v6493
        %6585 = vmatprep.subr.bf16.mxu0 %v6492
        %6586 = vmatpush1.bf16.msra.mxu0 %v6491
        %6587 = vmatprep.subr.bf16.mxu0 %v6490
        %6588 = vmatpush1.bf16.msra.mxu0 %v6489
        %6589 = vmatprep.subr.bf16.mxu0 %v6488
        %6590 = vmatpush1.bf16.msra.mxu0 %v6487
        %6591 = vmatprep.subr.bf16.mxu0 %v6486
        %6592 = vmatpush1.bf16.msra.mxu0 %v6485
        %6593 = vmatprep.subr.bf16.mxu0 %v6484
        %6594 = vmatpush1.bf16.msra.mxu0 %v6483
        %6595 = vmatprep.subr.bf16.mxu0 %v6514
        %6596 = vmatpush2.bf16.msra.mxu0 %v6513
        %6597 = vmatprep.subr.bf16.mxu0 %v6512
        %6598 = vmatpush2.bf16.msra.mxu0 %v6511
        %6599 = vmatprep.subr.bf16.mxu0 %v6510
        %6600 = vmatpush2.bf16.msra.mxu0 %v6509
        %6601 = vmatprep.subr.bf16.mxu0 %v6508
        %6602 = vmatpush2.bf16.msra.mxu0 %v6507
        %6603 = vmatprep.subr.bf16.mxu0 %v6506
        %6604 = vmatpush2.bf16.msra.mxu0 %v6505
        %6605 = vmatprep.subr.bf16.mxu0 %v6504
        %6606 = vmatpush2.bf16.msra.mxu0 %v6503
        %6607 = vmatprep.subr.bf16.mxu0 %v6502
        %6608 = vmatpush2.bf16.msra.mxu0 %v6501
        %6609 = vmatprep.subr.bf16.mxu0 %v6500
        %6610 = vmatpush2.bf16.msra.mxu0 %v6499
        %6611 = vmatprep.mubr.bf16.mxu0 %v6336
        %6612 = vmatmul.mubr.bf16.gmra.mxu0 %v6335
        %v6613 = vpop.f32.mrf.mxu0
        %v6614 = vadd.f32 0.0, %v6613
        %v6615 = vpop.f32.mrf.mxu0
        %v6616 = vadd.f32 0.0, %v6615
        %v6617 = vpop.f32.mrf.mxu0
        %v6618 = vadd.f32 0.0, %v6617
        %v6619 = vpop.f32.mrf.mxu0
        %v6620 = vadd.f32 0.0, %v6619
        %6621 = vmatprep.mubr.bf16.mxu0 %v6339
        %6622 = vmatmul.mubr.bf16.gmra.mxu0 %v6338
        %v6623 = vpop.f32.mrf.mxu0
        %v6624 = vadd.f32 0.0, %v6623
        %v6625 = vpop.f32.mrf.mxu0
        %v6626 = vadd.f32 0.0, %v6625
        %v6627 = vpop.f32.mrf.mxu0
        %v6628 = vadd.f32 0.0, %v6627
        %v6629 = vpop.f32.mrf.mxu0
        %v6630 = vadd.f32 0.0, %v6629
        %6631 = vmatprep.mubr.bf16.mxu0 %v6342
        %6632 = vmatmul.mubr.bf16.gmra.mxu0 %v6341
        %v6633 = vpop.f32.mrf.mxu0
        %v6634 = vadd.f32 0.0, %v6633
        %v6635 = vpop.f32.mrf.mxu0
        %v6636 = vadd.f32 0.0, %v6635
        %v6637 = vpop.f32.mrf.mxu0
        %v6638 = vadd.f32 0.0, %v6637
        %v6639 = vpop.f32.mrf.mxu0
        %v6640 = vadd.f32 0.0, %v6639
        %6641 = vmatprep.mubr.bf16.mxu0 %v6345
        %6642 = vmatmul.mubr.bf16.gmra.mxu0 %v6344
        %v6643 = vpop.f32.mrf.mxu0
        %v6644 = vadd.f32 0.0, %v6643
        %v6645 = vpop.f32.mrf.mxu0
        %v6646 = vadd.f32 0.0, %v6645
        %v6647 = vpop.f32.mrf.mxu0
        %v6648 = vadd.f32 0.0, %v6647
        %v6649 = vpop.f32.mrf.mxu0
        %v6650 = vadd.f32 0.0, %v6649
        %6651 = vmatprep.mubr.bf16.mxu0 %v6348
        %6652 = vmatmul.mubr.bf16.gmra.mxu0 %v6347
        %v6653 = vpop.f32.mrf.mxu0
        %v6654 = vadd.f32 0.0, %v6653
        %v6655 = vpop.f32.mrf.mxu0
        %v6656 = vadd.f32 0.0, %v6655
        %v6657 = vpop.f32.mrf.mxu0
        %v6658 = vadd.f32 0.0, %v6657
        %v6659 = vpop.f32.mrf.mxu0
        %v6660 = vadd.f32 0.0, %v6659
        %6661 = vmatprep.mubr.bf16.mxu0 %v6351
        %6662 = vmatmul.mubr.bf16.gmra.mxu0 %v6350
        %v6663 = vpop.f32.mrf.mxu0
        %v6664 = vadd.f32 0.0, %v6663
        %v6665 = vpop.f32.mrf.mxu0
        %v6666 = vadd.f32 0.0, %v6665
        %v6667 = vpop.f32.mrf.mxu0
        %v6668 = vadd.f32 0.0, %v6667
        %v6669 = vpop.f32.mrf.mxu0
        %v6670 = vadd.f32 0.0, %v6669
        %6671 = vmatprep.mubr.bf16.mxu0 %v6354
        %6672 = vmatmul.mubr.bf16.gmra.mxu0 %v6353
        %v6673 = vpop.f32.mrf.mxu0
        %v6674 = vadd.f32 0.0, %v6673
        %v6675 = vpop.f32.mrf.mxu0
        %v6676 = vadd.f32 0.0, %v6675
        %v6677 = vpop.f32.mrf.mxu0
        %v6678 = vadd.f32 0.0, %v6677
        %v6679 = vpop.f32.mrf.mxu0
        %v6680 = vadd.f32 0.0, %v6679
        %6681 = vmatprep.mubr.bf16.mxu0 %v6357
        %6682 = vmatmul.mubr.bf16.gmra.mxu0 %v6356
        %v6683 = vpop.f32.mrf.mxu0
        %v6684 = vadd.f32 0.0, %v6683
        %v6685 = vpop.f32.mrf.mxu0
        %v6686 = vadd.f32 0.0, %v6685
        %v6687 = vpop.f32.mrf.mxu0
        %v6688 = vadd.f32 0.0, %v6687
        %v6689 = vpop.f32.mrf.mxu0
        %v6690 = vadd.f32 0.0, %v6689
        %6691 = vdwg.mxu0
        %6692 = vmatprep.subr.bf16.mxu0 0
        %6693 = vmatpush1.bf16.msra.mxu0 0
        %6694 = vmatprep.subr.bf16.mxu0 0
        %6695 = vmatpush1.bf16.msra.mxu0 0
        %6696 = vmatprep.subr.bf16.mxu0 0
        %6697 = vmatpush1.bf16.msra.mxu0 0
        %6698 = vmatprep.subr.bf16.mxu0 0
        %6699 = vmatpush1.bf16.msra.mxu0 0
        %6700 = vmatprep.subr.bf16.mxu0 0
        %6701 = vmatpush1.bf16.msra.mxu0 0
        %6702 = vmatprep.subr.bf16.mxu0 0
        %6703 = vmatpush1.bf16.msra.mxu0 0
        %6704 = vmatprep.subr.bf16.mxu0 %v6518
        %6705 = vmatpush1.bf16.msra.mxu0 %v6517
        %6706 = vmatprep.subr.bf16.mxu0 %v6516
        %6707 = vmatpush1.bf16.msra.mxu0 %v6515
        %6708 = vmatprep.subr.bf16.mxu0 0
        %6709 = vmatpush2.bf16.msra.mxu0 0
        %6710 = vmatprep.subr.bf16.mxu0 0
        %6711 = vmatpush2.bf16.msra.mxu0 0
        %6712 = vmatprep.subr.bf16.mxu0 0
        %6713 = vmatpush2.bf16.msra.mxu0 0
        %6714 = vmatprep.subr.bf16.mxu0 0
        %6715 = vmatpush2.bf16.msra.mxu0 0
        %6716 = vmatprep.subr.bf16.mxu0 0
        %6717 = vmatpush2.bf16.msra.mxu0 0
        %6718 = vmatprep.subr.bf16.mxu0 0
        %6719 = vmatpush2.bf16.msra.mxu0 0
        %6720 = vmatprep.subr.bf16.mxu0 0
        %6721 = vmatpush2.bf16.msra.mxu0 0
        %6722 = vmatprep.subr.bf16.mxu0 0
        %6723 = vmatpush2.bf16.msra.mxu0 0
        %6724 = vmatprep.mubr.bf16.mxu0 0
        %6725 = vmatmul.mubr.bf16.gmra.mxu0 %v6556
        %v6726 = vpop.f32.mrf.mxu0
        %v6727 = vadd.f32 %v6614, %v6726
        %v6728 = vpop.f32.mrf.mxu0
        %v6729 = vadd.f32 %v6616, %v6728
        %v6730 = vpop.f32.mrf.mxu0
        %v6731 = vadd.f32 %v6618, %v6730
        %v6732 = vpop.f32.mrf.mxu0
        %v6733 = vadd.f32 %v6620, %v6732
        %6734 = vmatprep.mubr.bf16.mxu0 0
        %6735 = vmatmul.mubr.bf16.gmra.mxu0 %v6559
        %v6736 = vpop.f32.mrf.mxu0
        %v6737 = vadd.f32 %v6624, %v6736
        %v6738 = vpop.f32.mrf.mxu0
        %v6739 = vadd.f32 %v6626, %v6738
        %v6740 = vpop.f32.mrf.mxu0
        %v6741 = vadd.f32 %v6628, %v6740
        %v6742 = vpop.f32.mrf.mxu0
        %v6743 = vadd.f32 %v6630, %v6742
        %6744 = vmatprep.mubr.bf16.mxu0 0
        %6745 = vmatmul.mubr.bf16.gmra.mxu0 %v6562
        %v6746 = vpop.f32.mrf.mxu0
        %v6747 = vadd.f32 %v6634, %v6746
        %v6748 = vpop.f32.mrf.mxu0
        %v6749 = vadd.f32 %v6636, %v6748
        %v6750 = vpop.f32.mrf.mxu0
        %v6751 = vadd.f32 %v6638, %v6750
        %v6752 = vpop.f32.mrf.mxu0
        %v6753 = vadd.f32 %v6640, %v6752
        %6754 = vmatprep.mubr.bf16.mxu0 0
        %6755 = vmatmul.mubr.bf16.gmra.mxu0 %v6565
        %v6756 = vpop.f32.mrf.mxu0
        %v6757 = vadd.f32 %v6644, %v6756
        %v6758 = vpop.f32.mrf.mxu0
        %v6759 = vadd.f32 %v6646, %v6758
        %v6760 = vpop.f32.mrf.mxu0
        %v6761 = vadd.f32 %v6648, %v6760
        %v6762 = vpop.f32.mrf.mxu0
        %v6763 = vadd.f32 %v6650, %v6762
        %6764 = vmatprep.mubr.bf16.mxu0 0
        %6765 = vmatmul.mubr.bf16.gmra.mxu0 %v6568
        %v6766 = vpop.f32.mrf.mxu0
        %v6767 = vadd.f32 %v6654, %v6766
        %v6768 = vpop.f32.mrf.mxu0
        %v6769 = vadd.f32 %v6656, %v6768
        %v6770 = vpop.f32.mrf.mxu0
        %v6771 = vadd.f32 %v6658, %v6770
        %v6772 = vpop.f32.mrf.mxu0
        %v6773 = vadd.f32 %v6660, %v6772
        %6774 = vmatprep.mubr.bf16.mxu0 0
        %6775 = vmatmul.mubr.bf16.gmra.mxu0 %v6571
        %v6776 = vpop.f32.mrf.mxu0
        %v6777 = vadd.f32 %v6664, %v6776
        %v6778 = vpop.f32.mrf.mxu0
        %v6779 = vadd.f32 %v6666, %v6778
        %v6780 = vpop.f32.mrf.mxu0
        %v6781 = vadd.f32 %v6668, %v6780
        %v6782 = vpop.f32.mrf.mxu0
        %v6783 = vadd.f32 %v6670, %v6782
        %6784 = vmatprep.mubr.bf16.mxu0 0
        %6785 = vmatmul.mubr.bf16.gmra.mxu0 %v6574
        %v6786 = vpop.f32.mrf.mxu0
        %v6787 = vadd.f32 %v6674, %v6786
        %v6788 = vpop.f32.mrf.mxu0
        %v6789 = vadd.f32 %v6676, %v6788
        %v6790 = vpop.f32.mrf.mxu0
        %v6791 = vadd.f32 %v6678, %v6790
        %v6792 = vpop.f32.mrf.mxu0
        %v6793 = vadd.f32 %v6680, %v6792
        %6794 = vmatprep.mubr.bf16.mxu0 0
        %6795 = vmatmul.mubr.bf16.gmra.mxu0 %v6577
        %v6796 = vpop.f32.mrf.mxu0
        %v6797 = vadd.f32 %v6684, %v6796
        %v6798 = vpop.f32.mrf.mxu0
        %v6799 = vadd.f32 %v6686, %v6798
        %v6800 = vpop.f32.mrf.mxu0
        %v6801 = vadd.f32 %v6688, %v6800
        %v6802 = vpop.f32.mrf.mxu0
        %v6803 = vadd.f32 %v6690, %v6802
        %6804 = vdwg.mxu0
        %v6805 = vld [vmem:[%s6] sm:$0x3]
        %v6807 = vlaneseq
        %v6808 = vshrl.u32 %v6807, 7
        %v6809 = vsub.s32 0, %v6808
        %v6810 = vrot.slane %v6805, %v6809
        %v6811 = vlaneseq
        %v6812 = vshrl.u32 %v6811, 7
        %v6813 = vsub.s32 1, %v6812
        %v6814 = vrot.slane %v6805, %v6813
        %v6817 = vmul.f32 %v6727, %v6810
        %v6818 = vmul.f32 %v6729, %v6814
        %v6819 = vmul.f32 %v6731, %v6810
        %v6820 = vmul.f32 %v6733, %v6814
        %v6821 = vmul.f32 %v6737, %v6810
        %v6822 = vmul.f32 %v6739, %v6814
        %v6823 = vmul.f32 %v6741, %v6810
        %v6824 = vmul.f32 %v6743, %v6814
        %v6825 = vmul.f32 %v6747, %v6810
        %v6826 = vmul.f32 %v6749, %v6814
        %v6827 = vmul.f32 %v6751, %v6810
        %v6828 = vmul.f32 %v6753, %v6814
        %v6829 = vmul.f32 %v6757, %v6810
        %v6830 = vmul.f32 %v6759, %v6814
        %v6831 = vmul.f32 %v6761, %v6810
        %v6832 = vmul.f32 %v6763, %v6814
        %v6833 = vmul.f32 %v6767, %v6810
        %v6834 = vmul.f32 %v6769, %v6814
        %v6835 = vmul.f32 %v6771, %v6810
        %v6836 = vmul.f32 %v6773, %v6814
        %v6837 = vmul.f32 %v6777, %v6810
        %v6838 = vmul.f32 %v6779, %v6814
        %v6839 = vmul.f32 %v6781, %v6810
        %v6840 = vmul.f32 %v6783, %v6814
        %v6841 = vmul.f32 %v6787, %v6810
        %v6842 = vmul.f32 %v6789, %v6814
        %v6843 = vmul.f32 %v6791, %v6810
        %v6844 = vmul.f32 %v6793, %v6814
        %v6845 = vmul.f32 %v6797, %v6810
        %v6846 = vmul.f32 %v6799, %v6814
        %v6847 = vmul.f32 %v6801, %v6810
        %v6848 = vmul.f32 %v6803, %v6814
        %v6849 = vld [vmem:[%s7] sm:$0x3]
        %v6851 = vlaneseq
        %v6852 = vshrl.u32 %v6851, 7
        %v6853 = vsub.s32 0, %v6852
        %v6854 = vrot.slane %v6849, %v6853
        %v6855 = vlaneseq
        %v6856 = vshrl.u32 %v6855, 7
        %v6857 = vsub.s32 1, %v6856
        %v6858 = vrot.slane %v6849, %v6857
        %v6861 = vadd.f32 %v6817, %v6854
        %v6862 = vadd.f32 %v6818, %v6858
        %v6863 = vadd.f32 %v6819, %v6854
        %v6864 = vadd.f32 %v6820, %v6858
        %v6865 = vadd.f32 %v6821, %v6854
        %v6866 = vadd.f32 %v6822, %v6858
        %v6867 = vadd.f32 %v6823, %v6854
        %v6868 = vadd.f32 %v6824, %v6858
        %v6869 = vadd.f32 %v6825, %v6854
        %v6870 = vadd.f32 %v6826, %v6858
        %v6871 = vadd.f32 %v6827, %v6854
        %v6872 = vadd.f32 %v6828, %v6858
        %v6873 = vadd.f32 %v6829, %v6854
        %v6874 = vadd.f32 %v6830, %v6858
        %v6875 = vadd.f32 %v6831, %v6854
        %v6876 = vadd.f32 %v6832, %v6858
        %v6877 = vadd.f32 %v6833, %v6854
        %v6878 = vadd.f32 %v6834, %v6858
        %v6879 = vadd.f32 %v6835, %v6854
        %v6880 = vadd.f32 %v6836, %v6858
        %v6881 = vadd.f32 %v6837, %v6854
        %v6882 = vadd.f32 %v6838, %v6858
        %v6883 = vadd.f32 %v6839, %v6854
        %v6884 = vadd.f32 %v6840, %v6858
        %v6885 = vadd.f32 %v6841, %v6854
        %v6886 = vadd.f32 %v6842, %v6858
        %v6887 = vadd.f32 %v6843, %v6854
        %v6888 = vadd.f32 %v6844, %v6858
        %v6889 = vadd.f32 %v6845, %v6854
        %v6890 = vadd.f32 %v6846, %v6858
        %v6891 = vadd.f32 %v6847, %v6854
        %v6892 = vadd.f32 %v6848, %v6858
        %v6893 = vmax.f32 %v6861, 0.0
        %v6894 = vmax.f32 %v6862, 0.0
        %v6895 = vmax.f32 %v6863, 0.0
        %v6896 = vmax.f32 %v6864, 0.0
        %v6897 = vmax.f32 %v6865, 0.0
        %v6898 = vmax.f32 %v6866, 0.0
        %v6899 = vmax.f32 %v6867, 0.0
        %v6900 = vmax.f32 %v6868, 0.0
        %v6901 = vmax.f32 %v6869, 0.0
        %v6902 = vmax.f32 %v6870, 0.0
        %v6903 = vmax.f32 %v6871, 0.0
        %v6904 = vmax.f32 %v6872, 0.0
        %v6905 = vmax.f32 %v6873, 0.0
        %v6906 = vmax.f32 %v6874, 0.0
        %v6907 = vmax.f32 %v6875, 0.0
        %v6908 = vmax.f32 %v6876, 0.0
        %v6909 = vmax.f32 %v6877, 0.0
        %v6910 = vmax.f32 %v6878, 0.0
        %v6911 = vmax.f32 %v6879, 0.0
        %v6912 = vmax.f32 %v6880, 0.0
        %v6913 = vmax.f32 %v6881, 0.0
        %v6914 = vmax.f32 %v6882, 0.0
        %v6915 = vmax.f32 %v6883, 0.0
        %v6916 = vmax.f32 %v6884, 0.0
        %v6917 = vmax.f32 %v6885, 0.0
        %v6918 = vmax.f32 %v6886, 0.0
        %v6919 = vmax.f32 %v6887, 0.0
        %v6920 = vmax.f32 %v6888, 0.0
        %v6921 = vmax.f32 %v6889, 0.0
        %v6922 = vmax.f32 %v6890, 0.0
        %v6923 = vmax.f32 %v6891, 0.0
        %v6924 = vmax.f32 %v6892, 0.0
        %6925 = vst [vmem:[%s412] sm:$0xff] %v6893
        %6926 = vst [vmem:[%s412 + $0x8] sm:$0xff] %v6894
        %6927 = vst [vmem:[%s412 + $0x10] sm:$0xff] %v6895
        %6928 = vst [vmem:[%s412 + $0x18] sm:$0xff] %v6896
        %6929 = vst [vmem:[%s412 + $0x20] sm:$0xff] %v6897
        %6930 = vst [vmem:[%s412 + $0x28] sm:$0xff] %v6898
        %6931 = vst [vmem:[%s412 + $0x30] sm:$0xff] %v6899
        %6932 = vst [vmem:[%s412 + $0x38] sm:$0xff] %v6900
        %6933 = vst [vmem:[%s412 + $0x40] sm:$0xff] %v6901
        %6934 = vst [vmem:[%s412 + $0x48] sm:$0xff] %v6902
        %6935 = vst [vmem:[%s412 + $0x50] sm:$0xff] %v6903
        %6936 = vst [vmem:[%s412 + $0x58] sm:$0xff] %v6904
        %6937 = vst [vmem:[%s412 + $0x60] sm:$0xff] %v6905
        %6938 = vst [vmem:[%s412 + $0x68] sm:$0xff] %v6906
        %6939 = vst [vmem:[%s412 + $0x70] sm:$0xff] %v6907
        %6940 = vst [vmem:[%s412 + $0x78] sm:$0xff] %v6908
        %6941 = vst [vmem:[%s412 + $0x80] sm:$0xff] %v6909
        %6942 = vst [vmem:[%s412 + $0x88] sm:$0xff] %v6910
        %6943 = vst [vmem:[%s412 + $0x90] sm:$0xff] %v6911
        %6944 = vst [vmem:[%s412 + $0x98] sm:$0xff] %v6912
        %6945 = vst [vmem:[%s412 + $0xa0] sm:$0xff] %v6913
        %6946 = vst [vmem:[%s412 + $0xa8] sm:$0xff] %v6914
        %6947 = vst [vmem:[%s412 + $0xb0] sm:$0xff] %v6915
        %6948 = vst [vmem:[%s412 + $0xb8] sm:$0xff] %v6916
        %6949 = vst [vmem:[%s412 + $0xc0] sm:$0xff] %v6917
        %6950 = vst [vmem:[%s412 + $0xc8] sm:$0xff] %v6918
        %6951 = vst [vmem:[%s412 + $0xd0] sm:$0xff] %v6919
        %6952 = vst [vmem:[%s412 + $0xd8] sm:$0xff] %v6920
        %6953 = vst [vmem:[%s412 + $0xe0] sm:$0xff] %v6921
        %6954 = vst [vmem:[%s412 + $0xe8] sm:$0xff] %v6922
        %6955 = vst [vmem:[%s412 + $0xf0] sm:$0xff] %v6923
        %6956 = vst [vmem:[%s412 + $0xf8] sm:$0xff] %v6924
        %v6958 = vlaneseq
        %v6959 = vshrl.u32 %v6958, 7
        %v6960 = vsub.s32 0, %v6959
        %v6961 = vrot.slane %v6184, %v6960
        %v6962 = vlaneseq
        %v6963 = vshrl.u32 %v6962, 7
        %v6964 = vsub.s32 1, %v6963
        %v6965 = vrot.slane %v6184, %v6964
        %v6968 = vmul.f32 %v6893, %v6961
        %v6969 = vmul.f32 %v6894, %v6965
        %v6970 = vmul.f32 %v6895, %v6961
        %v6971 = vmul.f32 %v6896, %v6965
        %v6972 = vmul.f32 %v6897, %v6961
        %v6973 = vmul.f32 %v6898, %v6965
        %v6974 = vmul.f32 %v6899, %v6961
        %v6975 = vmul.f32 %v6900, %v6965
        %v6976 = vmul.f32 %v6901, %v6961
        %v6977 = vmul.f32 %v6902, %v6965
        %v6978 = vmul.f32 %v6903, %v6961
        %v6979 = vmul.f32 %v6904, %v6965
        %v6980 = vmul.f32 %v6905, %v6961
        %v6981 = vmul.f32 %v6906, %v6965
        %v6982 = vmul.f32 %v6907, %v6961
        %v6983 = vmul.f32 %v6908, %v6965
        %v6984 = vmul.f32 %v6909, %v6961
        %v6985 = vmul.f32 %v6910, %v6965
        %v6986 = vmul.f32 %v6911, %v6961
        %v6987 = vmul.f32 %v6912, %v6965
        %v6988 = vmul.f32 %v6913, %v6961
        %v6989 = vmul.f32 %v6914, %v6965
        %v6990 = vmul.f32 %v6915, %v6961
        %v6991 = vmul.f32 %v6916, %v6965
        %v6992 = vmul.f32 %v6917, %v6961
        %v6993 = vmul.f32 %v6918, %v6965
        %v6994 = vmul.f32 %v6919, %v6961
        %v6995 = vmul.f32 %v6920, %v6965
        %v6996 = vmul.f32 %v6921, %v6961
        %v6997 = vmul.f32 %v6922, %v6965
        %v6998 = vmul.f32 %v6923, %v6961
        %v6999 = vmul.f32 %v6924, %v6965
        %v7000 = vadd.f32 %v6968, %v6969
        %7001 = vadd.xlane.f32.xlu0 %v7000
        %v7002 = vpop.xlane.xlu0 %7001
        %v7003 = vadd.f32 %v6970, %v6971
        %7004 = vadd.xlane.f32.xlu0 %v7003
        %v7005 = vpop.xlane.xlu0 %7004
        %v7006 = vadd.f32 %v6972, %v6973
        %7007 = vadd.xlane.f32.xlu0 %v7006
        %v7008 = vpop.xlane.xlu0 %7007
        %v7009 = vadd.f32 %v6974, %v6975
        %7010 = vadd.xlane.f32.xlu0 %v7009
        %v7011 = vpop.xlane.xlu0 %7010
        %v7012 = vadd.f32 %v6976, %v6977
        %7013 = vadd.xlane.f32.xlu0 %v7012
        %v7014 = vpop.xlane.xlu0 %7013
        %v7015 = vadd.f32 %v6978, %v6979
        %7016 = vadd.xlane.f32.xlu0 %v7015
        %v7017 = vpop.xlane.xlu0 %7016
        %v7018 = vadd.f32 %v6980, %v6981
        %7019 = vadd.xlane.f32.xlu0 %v7018
        %v7020 = vpop.xlane.xlu0 %7019
        %v7021 = vadd.f32 %v6982, %v6983
        %7022 = vadd.xlane.f32.xlu0 %v7021
        %v7023 = vpop.xlane.xlu0 %7022
        %v7024 = vadd.f32 %v6984, %v6985
        %7025 = vadd.xlane.f32.xlu0 %v7024
        %v7026 = vpop.xlane.xlu0 %7025
        %v7027 = vadd.f32 %v6986, %v6987
        %7028 = vadd.xlane.f32.xlu0 %v7027
        %v7029 = vpop.xlane.xlu0 %7028
        %v7030 = vadd.f32 %v6988, %v6989
        %7031 = vadd.xlane.f32.xlu0 %v7030
        %v7032 = vpop.xlane.xlu0 %7031
        %v7033 = vadd.f32 %v6990, %v6991
        %7034 = vadd.xlane.f32.xlu0 %v7033
        %v7035 = vpop.xlane.xlu0 %7034
        %v7036 = vadd.f32 %v6992, %v6993
        %7037 = vadd.xlane.f32.xlu0 %v7036
        %v7038 = vpop.xlane.xlu0 %7037
        %v7039 = vadd.f32 %v6994, %v6995
        %7040 = vadd.xlane.f32.xlu0 %v7039
        %v7041 = vpop.xlane.xlu0 %7040
        %v7042 = vadd.f32 %v6996, %v6997
        %7043 = vadd.xlane.f32.xlu0 %v7042
        %v7044 = vpop.xlane.xlu0 %7043
        %v7045 = vadd.f32 %v6998, %v6999
        %7046 = vadd.xlane.f32.xlu0 %v7045
        %v7047 = vpop.xlane.xlu0 %7046
        %v7048 = vstv %s6186
        %v7049 = vadd.f32 %v7002, %v7048
        %v7050 = vadd.f32 %v7005, %v7048
        %v7051 = vadd.f32 %v7008, %v7048
        %v7052 = vadd.f32 %v7011, %v7048
        %v7053 = vadd.f32 %v7014, %v7048
        %v7054 = vadd.f32 %v7017, %v7048
        %v7055 = vadd.f32 %v7020, %v7048
        %v7056 = vadd.f32 %v7023, %v7048
        %v7057 = vadd.f32 %v7026, %v7048
        %v7058 = vadd.f32 %v7029, %v7048
        %v7059 = vadd.f32 %v7032, %v7048
        %v7060 = vadd.f32 %v7035, %v7048
        %v7061 = vadd.f32 %v7038, %v7048
        %v7062 = vadd.f32 %v7041, %v7048
        %v7063 = vadd.f32 %v7044, %v7048
        %v7064 = vadd.f32 %v7047, %v7048
        %vm7065 = vcmask 7168
        %7066 = vst.msk [vmem:[%s434] sm:$0xff] %vm7065, %v7049
        %7067 = vst.msk [vmem:[%s434 + $0x8] sm:$0xff] %vm7065, %v7050
        %7068 = vst.msk [vmem:[%s434 + $0x10] sm:$0xff] %vm7065, %v7051
        %7069 = vst.msk [vmem:[%s434 + $0x18] sm:$0xff] %vm7065, %v7052
        %7070 = vst.msk [vmem:[%s434 + $0x20] sm:$0xff] %vm7065, %v7053
        %7071 = vst.msk [vmem:[%s434 + $0x28] sm:$0xff] %vm7065, %v7054
        %7072 = vst.msk [vmem:[%s434 + $0x30] sm:$0xff] %vm7065, %v7055
        %7073 = vst.msk [vmem:[%s434 + $0x38] sm:$0xff] %vm7065, %v7056
        %7074 = vst.msk [vmem:[%s434 + $0x40] sm:$0xff] %vm7065, %v7057
        %7075 = vst.msk [vmem:[%s434 + $0x48] sm:$0xff] %vm7065, %v7058
        %7076 = vst.msk [vmem:[%s434 + $0x50] sm:$0xff] %vm7065, %v7059
        %7077 = vst.msk [vmem:[%s434 + $0x58] sm:$0xff] %vm7065, %v7060
        %7078 = vst.msk [vmem:[%s434 + $0x60] sm:$0xff] %vm7065, %v7061
        %7079 = vst.msk [vmem:[%s434 + $0x68] sm:$0xff] %vm7065, %v7062
        %7080 = vst.msk [vmem:[%s434 + $0x70] sm:$0xff] %vm7065, %v7063
        %7081 = vst.msk [vmem:[%s434 + $0x78] sm:$0xff] %vm7065, %v7064
        %v7082 = vld [vmem:[#allocation3 + $0xc0] sm:$0xff]
        %v7083 = vld [vmem:[#allocation3 + $0xc8] sm:$0xf]
        %v7084 = vld [vmem:[#allocation3 + $0xcc] sm:$0xff]
        %v7085 = vld [vmem:[#allocation3 + $0xd4] sm:$0xf]
        %v7086 = vld [vmem:[#allocation3 + $0xd8] sm:$0xff]
        %v7087 = vld [vmem:[#allocation3 + $0xe0] sm:$0xf]
        %v7088 = vld [vmem:[#allocation3 + $0xe4] sm:$0xff]
        %v7089 = vld [vmem:[#allocation3 + $0xec] sm:$0xf]
        %v7090 = vld [vmem:[#allocation3 + $0xf0] sm:$0xff]
        %v7091 = vld [vmem:[#allocation3 + $0xf8] sm:$0xf]
        %v7092 = vld [vmem:[#allocation3 + $0xfc] sm:$0xff]
        %v7093 = vld [vmem:[#allocation3 + $0x104] sm:$0xf]
        %v7094 = vld [vmem:[#allocation3 + $0x108] sm:$0xff]
        %v7095 = vld [vmem:[#allocation3 + $0x110] sm:$0xf]
        %v7096 = vld [vmem:[#allocation3 + $0x114] sm:$0xff]
        %v7097 = vld [vmem:[#allocation3 + $0x11c] sm:$0xf]
        %v7098 = vld [vmem:[#allocation3 + $0x120] sm:$0xff]
        %v7099 = vld [vmem:[#allocation3 + $0x128] sm:$0xf]
        %v7100 = vld [vmem:[#allocation3 + $0x12c] sm:$0xff]
        %v7101 = vld [vmem:[#allocation3 + $0x134] sm:$0xf]
        %v7102 = vld [vmem:[#allocation3 + $0x138] sm:$0xff]
        %v7103 = vld [vmem:[#allocation3 + $0x140] sm:$0xf]
        %v7104 = vld [vmem:[#allocation3 + $0x144] sm:$0xff]
        %v7105 = vld [vmem:[#allocation3 + $0x14c] sm:$0xf]
        %v7106 = vld [vmem:[#allocation3 + $0x150] sm:$0xff]
        %v7107 = vld [vmem:[#allocation3 + $0x158] sm:$0xf]
        %v7108 = vld [vmem:[#allocation3 + $0x15c] sm:$0xff]
        %v7109 = vld [vmem:[#allocation3 + $0x164] sm:$0xf]
        %v7110 = vld [vmem:[#allocation3 + $0x168] sm:$0xff]
        %v7111 = vld [vmem:[#allocation3 + $0x170] sm:$0xf]
        %v7112 = vld [vmem:[#allocation3 + $0x174] sm:$0xff]
        %v7113 = vld [vmem:[#allocation3 + $0x17c] sm:$0xf]
        %v7114 = vld [vmem:[#allocation5] sm:$0xff]
        %v7115 = vld [vmem:[#allocation5 + $0x8] sm:$0xff]
        %v7116 = vld [vmem:[#allocation5 + $0x10] sm:$0xff]
        %v7117 = vld [vmem:[#allocation5 + $0x18] sm:$0xff]
        %v7118 = vld [vmem:[#allocation5 + $0x20] sm:$0xff]
        %v7119 = vld [vmem:[#allocation5 + $0x28] sm:$0xff]
        %v7120 = vld [vmem:[#allocation5 + $0x30] sm:$0xff]
        %v7121 = vld [vmem:[#allocation5 + $0x38] sm:$0xff]
        %v7122 = vld [vmem:[#allocation5 + $0x40] sm:$0xff]
        %v7123 = vld [vmem:[#allocation5 + $0x48] sm:$0xff]
        %v7124 = vld [vmem:[#allocation5 + $0x50] sm:$0xff]
        %v7125 = vld [vmem:[#allocation5 + $0x58] sm:$0xff]
        %v7126 = vld [vmem:[#allocation5 + $0x60] sm:$0xff]
        %v7127 = vld [vmem:[#allocation5 + $0x68] sm:$0xff]
        %v7128 = vld [vmem:[#allocation5 + $0x70] sm:$0xff]
        %v7129 = vld [vmem:[#allocation5 + $0x78] sm:$0xff]
        %v7130 = vld [vmem:[#allocation5 + $0x80] sm:$0xff]
        %v7131 = vld [vmem:[#allocation5 + $0x88] sm:$0xff]
        %v7132 = vld [vmem:[#allocation5 + $0x90] sm:$0xff]
        %v7133 = vld [vmem:[#allocation5 + $0x98] sm:$0xff]
        %v7134 = vld [vmem:[#allocation5 + $0xa0] sm:$0xff]
        %v7135 = vld [vmem:[#allocation5 + $0xa8] sm:$0xff]
        %v7136 = vld [vmem:[#allocation5 + $0xb0] sm:$0xff]
        %v7137 = vld [vmem:[#allocation5 + $0xb8] sm:$0xff]
        %v7138 = vld [vmem:[#allocation5 + $0xc0] sm:$0xff]
        %v7139 = vld [vmem:[#allocation5 + $0xc8] sm:$0xff]
        %v7140 = vld [vmem:[#allocation5 + $0xd0] sm:$0xff]
        %v7141 = vld [vmem:[#allocation5 + $0xd8] sm:$0xff]
        %v7142 = vld [vmem:[#allocation5 + $0xe0] sm:$0xff]
        %v7143 = vld [vmem:[#allocation5 + $0xe8] sm:$0xff]
        %v7144 = vld [vmem:[#allocation5 + $0xf0] sm:$0xff]
        %v7145 = vld [vmem:[#allocation5 + $0xf8] sm:$0xff]
        %v7146 = vld [vmem:[#allocation5 + $0x100] sm:$0xff]
        %v7147 = vld [vmem:[#allocation5 + $0x108] sm:$0xff]
        %v7148 = vld [vmem:[#allocation5 + $0x110] sm:$0xff]
        %v7149 = vld [vmem:[#allocation5 + $0x118] sm:$0xff]
        %v7182 = vunpack.c.l.b16 %v7082
        %v7183 = vunpack.c.h.b16 %v7082
        %v7184 = vunpack.c.l.b16 %v7083
        %v7185 = vunpack.c.l.b16 %v7084
        %v7186 = vunpack.c.h.b16 %v7084
        %v7187 = vunpack.c.l.b16 %v7085
        %v7188 = vunpack.c.l.b16 %v7086
        %v7189 = vunpack.c.h.b16 %v7086
        %v7190 = vunpack.c.l.b16 %v7087
        %v7191 = vunpack.c.l.b16 %v7088
        %v7192 = vunpack.c.h.b16 %v7088
        %v7193 = vunpack.c.l.b16 %v7089
        %v7194 = vunpack.c.l.b16 %v7090
        %v7195 = vunpack.c.h.b16 %v7090
        %v7196 = vunpack.c.l.b16 %v7091
        %v7197 = vunpack.c.l.b16 %v7092
        %v7198 = vunpack.c.h.b16 %v7092
        %v7199 = vunpack.c.l.b16 %v7093
        %v7200 = vunpack.c.l.b16 %v7094
        %v7201 = vunpack.c.h.b16 %v7094
        %v7202 = vunpack.c.l.b16 %v7095
        %v7203 = vunpack.c.l.b16 %v7096
        %v7204 = vunpack.c.h.b16 %v7096
        %v7205 = vunpack.c.l.b16 %v7097
        %v7206 = vunpack.c.l.b16 %v7098
        %v7207 = vunpack.c.h.b16 %v7098
        %v7208 = vunpack.c.l.b16 %v7099
        %v7209 = vunpack.c.l.b16 %v7100
        %v7210 = vunpack.c.h.b16 %v7100
        %v7211 = vunpack.c.l.b16 %v7101
        %v7212 = vunpack.c.l.b16 %v7102
        %v7213 = vunpack.c.h.b16 %v7102
        %v7214 = vunpack.c.l.b16 %v7103
        %v7215 = vunpack.c.l.b16 %v7104
        %v7216 = vunpack.c.h.b16 %v7104
        %v7217 = vunpack.c.l.b16 %v7105
        %v7218 = vunpack.c.l.b16 %v7106
        %v7219 = vunpack.c.h.b16 %v7106
        %v7220 = vunpack.c.l.b16 %v7107
        %v7221 = vunpack.c.l.b16 %v7108
        %v7222 = vunpack.c.h.b16 %v7108
        %v7223 = vunpack.c.l.b16 %v7109
        %v7224 = vunpack.c.l.b16 %v7110
        %v7225 = vunpack.c.h.b16 %v7110
        %v7226 = vunpack.c.l.b16 %v7111
        %v7227 = vunpack.c.l.b16 %v7112
        %v7228 = vunpack.c.h.b16 %v7112
        %v7229 = vunpack.c.l.b16 %v7113
        %v7230 = vpack.c.b16 %v7185, %v7182
        %v7231 = vpack.c.b16 %v7186, %v7183
        %v7232 = vpack.c.b16 %v7187, %v7184
        %v7233 = vpack.c.b16 %v7191, %v7188
        %v7234 = vpack.c.b16 %v7192, %v7189
        %v7235 = vpack.c.b16 %v7193, %v7190
        %v7236 = vpack.c.b16 %v7197, %v7194
        %v7237 = vpack.c.b16 %v7198, %v7195
        %v7238 = vpack.c.b16 %v7199, %v7196
        %v7239 = vpack.c.b16 %v7203, %v7200
        %v7240 = vpack.c.b16 %v7204, %v7201
        %v7241 = vpack.c.b16 %v7205, %v7202
        %v7242 = vpack.c.b16 %v7209, %v7206
        %v7243 = vpack.c.b16 %v7210, %v7207
        %v7244 = vpack.c.b16 %v7211, %v7208
        %v7245 = vpack.c.b16 %v7215, %v7212
        %v7246 = vpack.c.b16 %v7216, %v7213
        %v7247 = vpack.c.b16 %v7217, %v7214
        %v7248 = vpack.c.b16 %v7221, %v7218
        %v7249 = vpack.c.b16 %v7222, %v7219
        %v7250 = vpack.c.b16 %v7223, %v7220
        %v7251 = vpack.c.b16 %v7227, %v7224
        %v7252 = vpack.c.b16 %v7228, %v7225
        %v7253 = vpack.c.b16 %v7229, %v7226
        %v7306 = vunpack.c.l.b16 %v7114
        %v7307 = vunpack.c.h.b16 %v7114
        %v7308 = vunpack.c.l.b16 %v7115
        %v7309 = vunpack.c.h.b16 %v7115
        %v7310 = vunpack.c.l.b16 %v7116
        %v7311 = vunpack.c.h.b16 %v7116
        %v7312 = vunpack.c.l.b16 %v7117
        %v7313 = vunpack.c.h.b16 %v7117
        %v7314 = vunpack.c.l.b16 %v7118
        %v7315 = vunpack.c.h.b16 %v7118
        %v7316 = vunpack.c.l.b16 %v7119
        %v7317 = vunpack.c.h.b16 %v7119
        %v7318 = vunpack.c.l.b16 %v7120
        %v7319 = vunpack.c.h.b16 %v7120
        %v7320 = vunpack.c.l.b16 %v7121
        %v7321 = vunpack.c.h.b16 %v7121
        %v7322 = vunpack.c.l.b16 %v7122
        %v7323 = vunpack.c.h.b16 %v7122
        %v7324 = vunpack.c.l.b16 %v7123
        %v7325 = vunpack.c.h.b16 %v7123
        %v7326 = vunpack.c.l.b16 %v7124
        %v7327 = vunpack.c.h.b16 %v7124
        %v7328 = vunpack.c.l.b16 %v7125
        %v7329 = vunpack.c.h.b16 %v7125
        %v7330 = vunpack.c.l.b16 %v7126
        %v7331 = vunpack.c.h.b16 %v7126
        %v7332 = vunpack.c.l.b16 %v7127
        %v7333 = vunpack.c.h.b16 %v7127
        %v7334 = vunpack.c.l.b16 %v7128
        %v7335 = vunpack.c.h.b16 %v7128
        %v7336 = vunpack.c.l.b16 %v7129
        %v7337 = vunpack.c.h.b16 %v7129
        %v7338 = vunpack.c.l.b16 %v7130
        %v7339 = vunpack.c.h.b16 %v7130
        %v7340 = vunpack.c.l.b16 %v7131
        %v7341 = vunpack.c.h.b16 %v7131
        %v7342 = vunpack.c.l.b16 %v7132
        %v7343 = vunpack.c.h.b16 %v7132
        %v7344 = vunpack.c.l.b16 %v7133
        %v7345 = vunpack.c.h.b16 %v7133
        %v7346 = vunpack.c.l.b16 %v7134
        %v7347 = vunpack.c.h.b16 %v7134
        %v7348 = vunpack.c.l.b16 %v7135
        %v7349 = vunpack.c.h.b16 %v7135
        %v7350 = vunpack.c.l.b16 %v7136
        %v7351 = vunpack.c.h.b16 %v7136
        %v7352 = vunpack.c.l.b16 %v7137
        %v7353 = vunpack.c.h.b16 %v7137
        %v7354 = vunpack.c.l.b16 %v7138
        %v7355 = vunpack.c.h.b16 %v7138
        %v7356 = vunpack.c.l.b16 %v7139
        %v7357 = vunpack.c.h.b16 %v7139
        %v7358 = vunpack.c.l.b16 %v7140
        %v7359 = vunpack.c.h.b16 %v7140
        %v7360 = vunpack.c.l.b16 %v7141
        %v7361 = vunpack.c.h.b16 %v7141
        %v7362 = vunpack.c.l.b16 %v7142
        %v7363 = vunpack.c.h.b16 %v7142
        %v7364 = vunpack.c.l.b16 %v7143
        %v7365 = vunpack.c.h.b16 %v7143
        %v7366 = vunpack.c.l.b16 %v7144
        %v7367 = vunpack.c.h.b16 %v7144
        %v7368 = vunpack.c.l.b16 %v7145
        %v7369 = vunpack.c.h.b16 %v7145
        %v7370 = vunpack.c.l.b16 %v7146
        %v7371 = vunpack.c.h.b16 %v7146
        %v7372 = vunpack.c.l.b16 %v7147
        %v7373 = vunpack.c.h.b16 %v7147
        %v7374 = vunpack.c.l.b16 %v7148
        %v7375 = vunpack.c.h.b16 %v7148
        %v7376 = vunpack.c.l.b16 %v7149
        %v7377 = vunpack.c.h.b16 %v7149
        %v7378 = vpack.c.b16 %v7308, %v7306
        %v7379 = vpack.c.b16 %v7309, %v7307
        %v7380 = vpack.c.b16 %v7312, %v7310
        %v7381 = vpack.c.b16 %v7313, %v7311
        %v7382 = vpack.c.b16 %v7316, %v7314
        %v7383 = vpack.c.b16 %v7317, %v7315
        %v7384 = vpack.c.b16 %v7320, %v7318
        %v7385 = vpack.c.b16 %v7321, %v7319
        %v7386 = vpack.c.b16 %v7324, %v7322
        %v7387 = vpack.c.b16 %v7325, %v7323
        %v7388 = vpack.c.b16 %v7328, %v7326
        %v7389 = vpack.c.b16 %v7329, %v7327
        %v7390 = vpack.c.b16 %v7332, %v7330
        %v7391 = vpack.c.b16 %v7333, %v7331
        %v7392 = vpack.c.b16 %v7336, %v7334
        %v7393 = vpack.c.b16 %v7337, %v7335
        %v7394 = vpack.c.b16 %v7340, %v7338
        %v7395 = vpack.c.b16 %v7341, %v7339
        %v7396 = vpack.c.b16 %v7344, %v7342
        %v7397 = vpack.c.b16 %v7345, %v7343
        %v7398 = vpack.c.b16 %v7348, %v7346
        %v7399 = vpack.c.b16 %v7349, %v7347
        %v7400 = vpack.c.b16 %v7352, %v7350
        %v7401 = vpack.c.b16 %v7353, %v7351
        %v7402 = vpack.c.b16 %v7356, %v7354
        %v7403 = vpack.c.b16 %v7357, %v7355
        %v7404 = vpack.c.b16 %v7360, %v7358
        %v7405 = vpack.c.b16 %v7361, %v7359
        %v7406 = vpack.c.b16 %v7364, %v7362
        %v7407 = vpack.c.b16 %v7365, %v7363
        %v7408 = vpack.c.b16 %v7368, %v7366
        %v7409 = vpack.c.b16 %v7369, %v7367
        %v7410 = vpack.c.b16 %v7372, %v7370
        %v7411 = vpack.c.b16 %v7373, %v7371
        %v7412 = vpack.c.b16 %v7376, %v7374
        %v7413 = vpack.c.b16 %v7377, %v7375
        %v7451 = vsel %vm916, %v7232, 0
        %v7454 = vsel %vm916, %v7235, 0
        %v7457 = vsel %vm916, %v7238, 0
        %v7460 = vsel %vm916, %v7241, 0
        %v7463 = vsel %vm916, %v7244, 0
        %v7466 = vsel %vm916, %v7247, 0
        %v7469 = vsel %vm916, %v7250, 0
        %v7472 = vsel %vm916, %v7253, 0
        %7474 = vmatprep.subr.bf16.mxu0 %v7393
        %7475 = vmatpush1.bf16.msra.mxu0 %v7392
        %7476 = vmatprep.subr.bf16.mxu0 %v7391
        %7477 = vmatpush1.bf16.msra.mxu0 %v7390
        %7478 = vmatprep.subr.bf16.mxu0 %v7389
        %7479 = vmatpush1.bf16.msra.mxu0 %v7388
        %7480 = vmatprep.subr.bf16.mxu0 %v7387
        %7481 = vmatpush1.bf16.msra.mxu0 %v7386
        %7482 = vmatprep.subr.bf16.mxu0 %v7385
        %7483 = vmatpush1.bf16.msra.mxu0 %v7384
        %7484 = vmatprep.subr.bf16.mxu0 %v7383
        %7485 = vmatpush1.bf16.msra.mxu0 %v7382
        %7486 = vmatprep.subr.bf16.mxu0 %v7381
        %7487 = vmatpush1.bf16.msra.mxu0 %v7380
        %7488 = vmatprep.subr.bf16.mxu0 %v7379
        %7489 = vmatpush1.bf16.msra.mxu0 %v7378
        %7490 = vmatprep.subr.bf16.mxu0 %v7409
        %7491 = vmatpush2.bf16.msra.mxu0 %v7408
        %7492 = vmatprep.subr.bf16.mxu0 %v7407
        %7493 = vmatpush2.bf16.msra.mxu0 %v7406
        %7494 = vmatprep.subr.bf16.mxu0 %v7405
        %7495 = vmatpush2.bf16.msra.mxu0 %v7404
        %7496 = vmatprep.subr.bf16.mxu0 %v7403
        %7497 = vmatpush2.bf16.msra.mxu0 %v7402
        %7498 = vmatprep.subr.bf16.mxu0 %v7401
        %7499 = vmatpush2.bf16.msra.mxu0 %v7400
        %7500 = vmatprep.subr.bf16.mxu0 %v7399
        %7501 = vmatpush2.bf16.msra.mxu0 %v7398
        %7502 = vmatprep.subr.bf16.mxu0 %v7397
        %7503 = vmatpush2.bf16.msra.mxu0 %v7396
        %7504 = vmatprep.subr.bf16.mxu0 %v7395
        %7505 = vmatpush2.bf16.msra.mxu0 %v7394
        %7506 = vmatprep.mubr.bf16.mxu0 %v7231
        %7507 = vmatmul.mubr.bf16.gmra.mxu0 %v7230
        %v7508 = vpop.f32.mrf.mxu0
        %v7509 = vadd.f32 0.0, %v7508
        %v7510 = vpop.f32.mrf.mxu0
        %v7511 = vadd.f32 0.0, %v7510
        %v7512 = vpop.f32.mrf.mxu0
        %v7513 = vadd.f32 0.0, %v7512
        %v7514 = vpop.f32.mrf.mxu0
        %v7515 = vadd.f32 0.0, %v7514
        %7516 = vmatprep.mubr.bf16.mxu0 %v7234
        %7517 = vmatmul.mubr.bf16.gmra.mxu0 %v7233
        %v7518 = vpop.f32.mrf.mxu0
        %v7519 = vadd.f32 0.0, %v7518
        %v7520 = vpop.f32.mrf.mxu0
        %v7521 = vadd.f32 0.0, %v7520
        %v7522 = vpop.f32.mrf.mxu0
        %v7523 = vadd.f32 0.0, %v7522
        %v7524 = vpop.f32.mrf.mxu0
        %v7525 = vadd.f32 0.0, %v7524
        %7526 = vmatprep.mubr.bf16.mxu0 %v7237
        %7527 = vmatmul.mubr.bf16.gmra.mxu0 %v7236
        %v7528 = vpop.f32.mrf.mxu0
        %v7529 = vadd.f32 0.0, %v7528
        %v7530 = vpop.f32.mrf.mxu0
        %v7531 = vadd.f32 0.0, %v7530
        %v7532 = vpop.f32.mrf.mxu0
        %v7533 = vadd.f32 0.0, %v7532
        %v7534 = vpop.f32.mrf.mxu0
        %v7535 = vadd.f32 0.0, %v7534
        %7536 = vmatprep.mubr.bf16.mxu0 %v7240
        %7537 = vmatmul.mubr.bf16.gmra.mxu0 %v7239
        %v7538 = vpop.f32.mrf.mxu0
        %v7539 = vadd.f32 0.0, %v7538
        %v7540 = vpop.f32.mrf.mxu0
        %v7541 = vadd.f32 0.0, %v7540
        %v7542 = vpop.f32.mrf.mxu0
        %v7543 = vadd.f32 0.0, %v7542
        %v7544 = vpop.f32.mrf.mxu0
        %v7545 = vadd.f32 0.0, %v7544
        %7546 = vmatprep.mubr.bf16.mxu0 %v7243
        %7547 = vmatmul.mubr.bf16.gmra.mxu0 %v7242
        %v7548 = vpop.f32.mrf.mxu0
        %v7549 = vadd.f32 0.0, %v7548
        %v7550 = vpop.f32.mrf.mxu0
        %v7551 = vadd.f32 0.0, %v7550
        %v7552 = vpop.f32.mrf.mxu0
        %v7553 = vadd.f32 0.0, %v7552
        %v7554 = vpop.f32.mrf.mxu0
        %v7555 = vadd.f32 0.0, %v7554
        %7556 = vmatprep.mubr.bf16.mxu0 %v7246
        %7557 = vmatmul.mubr.bf16.gmra.mxu0 %v7245
        %v7558 = vpop.f32.mrf.mxu0
        %v7559 = vadd.f32 0.0, %v7558
        %v7560 = vpop.f32.mrf.mxu0
        %v7561 = vadd.f32 0.0, %v7560
        %v7562 = vpop.f32.mrf.mxu0
        %v7563 = vadd.f32 0.0, %v7562
        %v7564 = vpop.f32.mrf.mxu0
        %v7565 = vadd.f32 0.0, %v7564
        %7566 = vmatprep.mubr.bf16.mxu0 %v7249
        %7567 = vmatmul.mubr.bf16.gmra.mxu0 %v7248
        %v7568 = vpop.f32.mrf.mxu0
        %v7569 = vadd.f32 0.0, %v7568
        %v7570 = vpop.f32.mrf.mxu0
        %v7571 = vadd.f32 0.0, %v7570
        %v7572 = vpop.f32.mrf.mxu0
        %v7573 = vadd.f32 0.0, %v7572
        %v7574 = vpop.f32.mrf.mxu0
        %v7575 = vadd.f32 0.0, %v7574
        %7576 = vmatprep.mubr.bf16.mxu0 %v7252
        %7577 = vmatmul.mubr.bf16.gmra.mxu0 %v7251
        %v7578 = vpop.f32.mrf.mxu0
        %v7579 = vadd.f32 0.0, %v7578
        %v7580 = vpop.f32.mrf.mxu0
        %v7581 = vadd.f32 0.0, %v7580
        %v7582 = vpop.f32.mrf.mxu0
        %v7583 = vadd.f32 0.0, %v7582
        %v7584 = vpop.f32.mrf.mxu0
        %v7585 = vadd.f32 0.0, %v7584
        %7586 = vdwg.mxu0
        %7587 = vmatprep.subr.bf16.mxu0 0
        %7588 = vmatpush1.bf16.msra.mxu0 0
        %7589 = vmatprep.subr.bf16.mxu0 0
        %7590 = vmatpush1.bf16.msra.mxu0 0
        %7591 = vmatprep.subr.bf16.mxu0 0
        %7592 = vmatpush1.bf16.msra.mxu0 0
        %7593 = vmatprep.subr.bf16.mxu0 0
        %7594 = vmatpush1.bf16.msra.mxu0 0
        %7595 = vmatprep.subr.bf16.mxu0 0
        %7596 = vmatpush1.bf16.msra.mxu0 0
        %7597 = vmatprep.subr.bf16.mxu0 0
        %7598 = vmatpush1.bf16.msra.mxu0 0
        %7599 = vmatprep.subr.bf16.mxu0 %v7413
        %7600 = vmatpush1.bf16.msra.mxu0 %v7412
        %7601 = vmatprep.subr.bf16.mxu0 %v7411
        %7602 = vmatpush1.bf16.msra.mxu0 %v7410
        %7603 = vmatprep.subr.bf16.mxu0 0
        %7604 = vmatpush2.bf16.msra.mxu0 0
        %7605 = vmatprep.subr.bf16.mxu0 0
        %7606 = vmatpush2.bf16.msra.mxu0 0
        %7607 = vmatprep.subr.bf16.mxu0 0
        %7608 = vmatpush2.bf16.msra.mxu0 0
        %7609 = vmatprep.subr.bf16.mxu0 0
        %7610 = vmatpush2.bf16.msra.mxu0 0
        %7611 = vmatprep.subr.bf16.mxu0 0
        %7612 = vmatpush2.bf16.msra.mxu0 0
        %7613 = vmatprep.subr.bf16.mxu0 0
        %7614 = vmatpush2.bf16.msra.mxu0 0
        %7615 = vmatprep.subr.bf16.mxu0 0
        %7616 = vmatpush2.bf16.msra.mxu0 0
        %7617 = vmatprep.subr.bf16.mxu0 0
        %7618 = vmatpush2.bf16.msra.mxu0 0
        %7619 = vmatprep.mubr.bf16.mxu0 0
        %7620 = vmatmul.mubr.bf16.gmra.mxu0 %v7451
        %v7621 = vpop.f32.mrf.mxu0
        %v7622 = vadd.f32 %v7509, %v7621
        %v7623 = vpop.f32.mrf.mxu0
        %v7624 = vadd.f32 %v7511, %v7623
        %v7625 = vpop.f32.mrf.mxu0
        %v7626 = vadd.f32 %v7513, %v7625
        %v7627 = vpop.f32.mrf.mxu0
        %v7628 = vadd.f32 %v7515, %v7627
        %7629 = vmatprep.mubr.bf16.mxu0 0
        %7630 = vmatmul.mubr.bf16.gmra.mxu0 %v7454
        %v7631 = vpop.f32.mrf.mxu0
        %v7632 = vadd.f32 %v7519, %v7631
        %v7633 = vpop.f32.mrf.mxu0
        %v7634 = vadd.f32 %v7521, %v7633
        %v7635 = vpop.f32.mrf.mxu0
        %v7636 = vadd.f32 %v7523, %v7635
        %v7637 = vpop.f32.mrf.mxu0
        %v7638 = vadd.f32 %v7525, %v7637
        %7639 = vmatprep.mubr.bf16.mxu0 0
        %7640 = vmatmul.mubr.bf16.gmra.mxu0 %v7457
        %v7641 = vpop.f32.mrf.mxu0
        %v7642 = vadd.f32 %v7529, %v7641
        %v7643 = vpop.f32.mrf.mxu0
        %v7644 = vadd.f32 %v7531, %v7643
        %v7645 = vpop.f32.mrf.mxu0
        %v7646 = vadd.f32 %v7533, %v7645
        %v7647 = vpop.f32.mrf.mxu0
        %v7648 = vadd.f32 %v7535, %v7647
        %7649 = vmatprep.mubr.bf16.mxu0 0
        %7650 = vmatmul.mubr.bf16.gmra.mxu0 %v7460
        %v7651 = vpop.f32.mrf.mxu0
        %v7652 = vadd.f32 %v7539, %v7651
        %v7653 = vpop.f32.mrf.mxu0
        %v7654 = vadd.f32 %v7541, %v7653
        %v7655 = vpop.f32.mrf.mxu0
        %v7656 = vadd.f32 %v7543, %v7655
        %v7657 = vpop.f32.mrf.mxu0
        %v7658 = vadd.f32 %v7545, %v7657
        %7659 = vmatprep.mubr.bf16.mxu0 0
        %7660 = vmatmul.mubr.bf16.gmra.mxu0 %v7463
        %v7661 = vpop.f32.mrf.mxu0
        %v7662 = vadd.f32 %v7549, %v7661
        %v7663 = vpop.f32.mrf.mxu0
        %v7664 = vadd.f32 %v7551, %v7663
        %v7665 = vpop.f32.mrf.mxu0
        %v7666 = vadd.f32 %v7553, %v7665
        %v7667 = vpop.f32.mrf.mxu0
        %v7668 = vadd.f32 %v7555, %v7667
        %7669 = vmatprep.mubr.bf16.mxu0 0
        %7670 = vmatmul.mubr.bf16.gmra.mxu0 %v7466
        %v7671 = vpop.f32.mrf.mxu0
        %v7672 = vadd.f32 %v7559, %v7671
        %v7673 = vpop.f32.mrf.mxu0
        %v7674 = vadd.f32 %v7561, %v7673
        %v7675 = vpop.f32.mrf.mxu0
        %v7676 = vadd.f32 %v7563, %v7675
        %v7677 = vpop.f32.mrf.mxu0
        %v7678 = vadd.f32 %v7565, %v7677
        %7679 = vmatprep.mubr.bf16.mxu0 0
        %7680 = vmatmul.mubr.bf16.gmra.mxu0 %v7469
        %v7681 = vpop.f32.mrf.mxu0
        %v7682 = vadd.f32 %v7569, %v7681
        %v7683 = vpop.f32.mrf.mxu0
        %v7684 = vadd.f32 %v7571, %v7683
        %v7685 = vpop.f32.mrf.mxu0
        %v7686 = vadd.f32 %v7573, %v7685
        %v7687 = vpop.f32.mrf.mxu0
        %v7688 = vadd.f32 %v7575, %v7687
        %7689 = vmatprep.mubr.bf16.mxu0 0
        %7690 = vmatmul.mubr.bf16.gmra.mxu0 %v7472
        %v7691 = vpop.f32.mrf.mxu0
        %v7692 = vadd.f32 %v7579, %v7691
        %v7693 = vpop.f32.mrf.mxu0
        %v7694 = vadd.f32 %v7581, %v7693
        %v7695 = vpop.f32.mrf.mxu0
        %v7696 = vadd.f32 %v7583, %v7695
        %v7697 = vpop.f32.mrf.mxu0
        %v7698 = vadd.f32 %v7585, %v7697
        %7699 = vdwg.mxu0
        %v7700 = vld [vmem:[%s6] sm:$0x3]
        %v7702 = vlaneseq
        %v7703 = vshrl.u32 %v7702, 7
        %v7704 = vsub.s32 0, %v7703
        %v7705 = vrot.slane %v7700, %v7704
        %v7706 = vlaneseq
        %v7707 = vshrl.u32 %v7706, 7
        %v7708 = vsub.s32 1, %v7707
        %v7709 = vrot.slane %v7700, %v7708
        %v7712 = vmul.f32 %v7622, %v7705
        %v7713 = vmul.f32 %v7624, %v7709
        %v7714 = vmul.f32 %v7626, %v7705
        %v7715 = vmul.f32 %v7628, %v7709
        %v7716 = vmul.f32 %v7632, %v7705
        %v7717 = vmul.f32 %v7634, %v7709
        %v7718 = vmul.f32 %v7636, %v7705
        %v7719 = vmul.f32 %v7638, %v7709
        %v7720 = vmul.f32 %v7642, %v7705
        %v7721 = vmul.f32 %v7644, %v7709
        %v7722 = vmul.f32 %v7646, %v7705
        %v7723 = vmul.f32 %v7648, %v7709
        %v7724 = vmul.f32 %v7652, %v7705
        %v7725 = vmul.f32 %v7654, %v7709
        %v7726 = vmul.f32 %v7656, %v7705
        %v7727 = vmul.f32 %v7658, %v7709
        %v7728 = vmul.f32 %v7662, %v7705
        %v7729 = vmul.f32 %v7664, %v7709
        %v7730 = vmul.f32 %v7666, %v7705
        %v7731 = vmul.f32 %v7668, %v7709
        %v7732 = vmul.f32 %v7672, %v7705
        %v7733 = vmul.f32 %v7674, %v7709
        %v7734 = vmul.f32 %v7676, %v7705
        %v7735 = vmul.f32 %v7678, %v7709
        %v7736 = vmul.f32 %v7682, %v7705
        %v7737 = vmul.f32 %v7684, %v7709
        %v7738 = vmul.f32 %v7686, %v7705
        %v7739 = vmul.f32 %v7688, %v7709
        %v7740 = vmul.f32 %v7692, %v7705
        %v7741 = vmul.f32 %v7694, %v7709
        %v7742 = vmul.f32 %v7696, %v7705
        %v7743 = vmul.f32 %v7698, %v7709
        %v7744 = vld [vmem:[%s7] sm:$0x3]
        %v7746 = vlaneseq
        %v7747 = vshrl.u32 %v7746, 7
        %v7748 = vsub.s32 0, %v7747
        %v7749 = vrot.slane %v7744, %v7748
        %v7750 = vlaneseq
        %v7751 = vshrl.u32 %v7750, 7
        %v7752 = vsub.s32 1, %v7751
        %v7753 = vrot.slane %v7744, %v7752
        %v7756 = vadd.f32 %v7712, %v7749
        %v7757 = vadd.f32 %v7713, %v7753
        %v7758 = vadd.f32 %v7714, %v7749
        %v7759 = vadd.f32 %v7715, %v7753
        %v7760 = vadd.f32 %v7716, %v7749
        %v7761 = vadd.f32 %v7717, %v7753
        %v7762 = vadd.f32 %v7718, %v7749
        %v7763 = vadd.f32 %v7719, %v7753
        %v7764 = vadd.f32 %v7720, %v7749
        %v7765 = vadd.f32 %v7721, %v7753
        %v7766 = vadd.f32 %v7722, %v7749
        %v7767 = vadd.f32 %v7723, %v7753
        %v7768 = vadd.f32 %v7724, %v7749
        %v7769 = vadd.f32 %v7725, %v7753
        %v7770 = vadd.f32 %v7726, %v7749
        %v7771 = vadd.f32 %v7727, %v7753
        %v7772 = vadd.f32 %v7728, %v7749
        %v7773 = vadd.f32 %v7729, %v7753
        %v7774 = vadd.f32 %v7730, %v7749
        %v7775 = vadd.f32 %v7731, %v7753
        %v7776 = vadd.f32 %v7732, %v7749
        %v7777 = vadd.f32 %v7733, %v7753
        %v7778 = vadd.f32 %v7734, %v7749
        %v7779 = vadd.f32 %v7735, %v7753
        %v7780 = vadd.f32 %v7736, %v7749
        %v7781 = vadd.f32 %v7737, %v7753
        %v7782 = vadd.f32 %v7738, %v7749
        %v7783 = vadd.f32 %v7739, %v7753
        %v7784 = vadd.f32 %v7740, %v7749
        %v7785 = vadd.f32 %v7741, %v7753
        %v7786 = vadd.f32 %v7742, %v7749
        %v7787 = vadd.f32 %v7743, %v7753
        %v7788 = vmax.f32 %v7756, 0.0
        %v7789 = vmax.f32 %v7757, 0.0
        %v7790 = vmax.f32 %v7758, 0.0
        %v7791 = vmax.f32 %v7759, 0.0
        %v7792 = vmax.f32 %v7760, 0.0
        %v7793 = vmax.f32 %v7761, 0.0
        %v7794 = vmax.f32 %v7762, 0.0
        %v7795 = vmax.f32 %v7763, 0.0
        %v7796 = vmax.f32 %v7764, 0.0
        %v7797 = vmax.f32 %v7765, 0.0
        %v7798 = vmax.f32 %v7766, 0.0
        %v7799 = vmax.f32 %v7767, 0.0
        %v7800 = vmax.f32 %v7768, 0.0
        %v7801 = vmax.f32 %v7769, 0.0
        %v7802 = vmax.f32 %v7770, 0.0
        %v7803 = vmax.f32 %v7771, 0.0
        %v7804 = vmax.f32 %v7772, 0.0
        %v7805 = vmax.f32 %v7773, 0.0
        %v7806 = vmax.f32 %v7774, 0.0
        %v7807 = vmax.f32 %v7775, 0.0
        %v7808 = vmax.f32 %v7776, 0.0
        %v7809 = vmax.f32 %v7777, 0.0
        %v7810 = vmax.f32 %v7778, 0.0
        %v7811 = vmax.f32 %v7779, 0.0
        %v7812 = vmax.f32 %v7780, 0.0
        %v7813 = vmax.f32 %v7781, 0.0
        %v7814 = vmax.f32 %v7782, 0.0
        %v7815 = vmax.f32 %v7783, 0.0
        %v7816 = vmax.f32 %v7784, 0.0
        %v7817 = vmax.f32 %v7785, 0.0
        %v7818 = vmax.f32 %v7786, 0.0
        %v7819 = vmax.f32 %v7787, 0.0
        %7820 = vst [vmem:[%s412 + $0x100] sm:$0xff] %v7788
        %7821 = vst [vmem:[%s412 + $0x108] sm:$0xff] %v7789
        %7822 = vst [vmem:[%s412 + $0x110] sm:$0xff] %v7790
        %7823 = vst [vmem:[%s412 + $0x118] sm:$0xff] %v7791
        %7824 = vst [vmem:[%s412 + $0x120] sm:$0xff] %v7792
        %7825 = vst [vmem:[%s412 + $0x128] sm:$0xff] %v7793
        %7826 = vst [vmem:[%s412 + $0x130] sm:$0xff] %v7794
        %7827 = vst [vmem:[%s412 + $0x138] sm:$0xff] %v7795
        %7828 = vst [vmem:[%s412 + $0x140] sm:$0xff] %v7796
        %7829 = vst [vmem:[%s412 + $0x148] sm:$0xff] %v7797
        %7830 = vst [vmem:[%s412 + $0x150] sm:$0xff] %v7798
        %7831 = vst [vmem:[%s412 + $0x158] sm:$0xff] %v7799
        %7832 = vst [vmem:[%s412 + $0x160] sm:$0xff] %v7800
        %7833 = vst [vmem:[%s412 + $0x168] sm:$0xff] %v7801
        %7834 = vst [vmem:[%s412 + $0x170] sm:$0xff] %v7802
        %7835 = vst [vmem:[%s412 + $0x178] sm:$0xff] %v7803
        %7836 = vst [vmem:[%s412 + $0x180] sm:$0xff] %v7804
        %7837 = vst [vmem:[%s412 + $0x188] sm:$0xff] %v7805
        %7838 = vst [vmem:[%s412 + $0x190] sm:$0xff] %v7806
        %7839 = vst [vmem:[%s412 + $0x198] sm:$0xff] %v7807
        %7840 = vst [vmem:[%s412 + $0x1a0] sm:$0xff] %v7808
        %7841 = vst [vmem:[%s412 + $0x1a8] sm:$0xff] %v7809
        %7842 = vst [vmem:[%s412 + $0x1b0] sm:$0xff] %v7810
        %7843 = vst [vmem:[%s412 + $0x1b8] sm:$0xff] %v7811
        %7844 = vst [vmem:[%s412 + $0x1c0] sm:$0xff] %v7812
        %7845 = vst [vmem:[%s412 + $0x1c8] sm:$0xff] %v7813
        %7846 = vst [vmem:[%s412 + $0x1d0] sm:$0xff] %v7814
        %7847 = vst [vmem:[%s412 + $0x1d8] sm:$0xff] %v7815
        %7848 = vst [vmem:[%s412 + $0x1e0] sm:$0xff] %v7816
        %7849 = vst [vmem:[%s412 + $0x1e8] sm:$0xff] %v7817
        %7850 = vst [vmem:[%s412 + $0x1f0] sm:$0xff] %v7818
        %7851 = vst [vmem:[%s412 + $0x1f8] sm:$0xff] %v7819
        %v7852 = vmul.f32 %v7788, %v6961
        %v7853 = vmul.f32 %v7789, %v6965
        %v7854 = vmul.f32 %v7790, %v6961
        %v7855 = vmul.f32 %v7791, %v6965
        %v7856 = vmul.f32 %v7792, %v6961
        %v7857 = vmul.f32 %v7793, %v6965
        %v7858 = vmul.f32 %v7794, %v6961
        %v7859 = vmul.f32 %v7795, %v6965
        %v7860 = vmul.f32 %v7796, %v6961
        %v7861 = vmul.f32 %v7797, %v6965
        %v7862 = vmul.f32 %v7798, %v6961
        %v7863 = vmul.f32 %v7799, %v6965
        %v7864 = vmul.f32 %v7800, %v6961
        %v7865 = vmul.f32 %v7801, %v6965
        %v7866 = vmul.f32 %v7802, %v6961
        %v7867 = vmul.f32 %v7803, %v6965
        %v7868 = vmul.f32 %v7804, %v6961
        %v7869 = vmul.f32 %v7805, %v6965
        %v7870 = vmul.f32 %v7806, %v6961
        %v7871 = vmul.f32 %v7807, %v6965
        %v7872 = vmul.f32 %v7808, %v6961
        %v7873 = vmul.f32 %v7809, %v6965
        %v7874 = vmul.f32 %v7810, %v6961
        %v7875 = vmul.f32 %v7811, %v6965
        %v7876 = vmul.f32 %v7812, %v6961
        %v7877 = vmul.f32 %v7813, %v6965
        %v7878 = vmul.f32 %v7814, %v6961
        %v7879 = vmul.f32 %v7815, %v6965
        %v7880 = vmul.f32 %v7816, %v6961
        %v7881 = vmul.f32 %v7817, %v6965
        %v7882 = vmul.f32 %v7818, %v6961
        %v7883 = vmul.f32 %v7819, %v6965
        %v7884 = vadd.f32 %v7852, %v7853
        %7885 = vadd.xlane.f32.xlu0 %v7884
        %v7886 = vpop.xlane.xlu0 %7885
        %v7887 = vadd.f32 %v7854, %v7855
        %7888 = vadd.xlane.f32.xlu0 %v7887
        %v7889 = vpop.xlane.xlu0 %7888
        %v7890 = vadd.f32 %v7856, %v7857
        %7891 = vadd.xlane.f32.xlu0 %v7890
        %v7892 = vpop.xlane.xlu0 %7891
        %v7893 = vadd.f32 %v7858, %v7859
        %7894 = vadd.xlane.f32.xlu0 %v7893
        %v7895 = vpop.xlane.xlu0 %7894
        %v7896 = vadd.f32 %v7860, %v7861
        %7897 = vadd.xlane.f32.xlu0 %v7896
        %v7898 = vpop.xlane.xlu0 %7897
        %v7899 = vadd.f32 %v7862, %v7863
        %7900 = vadd.xlane.f32.xlu0 %v7899
        %v7901 = vpop.xlane.xlu0 %7900
        %v7902 = vadd.f32 %v7864, %v7865
        %7903 = vadd.xlane.f32.xlu0 %v7902
        %v7904 = vpop.xlane.xlu0 %7903
        %v7905 = vadd.f32 %v7866, %v7867
        %7906 = vadd.xlane.f32.xlu0 %v7905
        %v7907 = vpop.xlane.xlu0 %7906
        %v7908 = vadd.f32 %v7868, %v7869
        %7909 = vadd.xlane.f32.xlu0 %v7908
        %v7910 = vpop.xlane.xlu0 %7909
        %v7911 = vadd.f32 %v7870, %v7871
        %7912 = vadd.xlane.f32.xlu0 %v7911
        %v7913 = vpop.xlane.xlu0 %7912
        %v7914 = vadd.f32 %v7872, %v7873
        %7915 = vadd.xlane.f32.xlu0 %v7914
        %v7916 = vpop.xlane.xlu0 %7915
        %v7917 = vadd.f32 %v7874, %v7875
        %7918 = vadd.xlane.f32.xlu0 %v7917
        %v7919 = vpop.xlane.xlu0 %7918
        %v7920 = vadd.f32 %v7876, %v7877
        %7921 = vadd.xlane.f32.xlu0 %v7920
        %v7922 = vpop.xlane.xlu0 %7921
        %v7923 = vadd.f32 %v7878, %v7879
        %7924 = vadd.xlane.f32.xlu0 %v7923
        %v7925 = vpop.xlane.xlu0 %7924
        %v7926 = vadd.f32 %v7880, %v7881
        %7927 = vadd.xlane.f32.xlu0 %v7926
        %v7928 = vpop.xlane.xlu0 %7927
        %v7929 = vadd.f32 %v7882, %v7883
        %7930 = vadd.xlane.f32.xlu0 %v7929
        %v7931 = vpop.xlane.xlu0 %7930
        %v7932 = vadd.f32 %v7886, %v7048
        %v7933 = vadd.f32 %v7889, %v7048
        %v7934 = vadd.f32 %v7892, %v7048
        %v7935 = vadd.f32 %v7895, %v7048
        %v7936 = vadd.f32 %v7898, %v7048
        %v7937 = vadd.f32 %v7901, %v7048
        %v7938 = vadd.f32 %v7904, %v7048
        %v7939 = vadd.f32 %v7907, %v7048
        %v7940 = vadd.f32 %v7910, %v7048
        %v7941 = vadd.f32 %v7913, %v7048
        %v7942 = vadd.f32 %v7916, %v7048
        %v7943 = vadd.f32 %v7919, %v7048
        %v7944 = vadd.f32 %v7922, %v7048
        %v7945 = vadd.f32 %v7925, %v7048
        %v7946 = vadd.f32 %v7928, %v7048
        %v7947 = vadd.f32 %v7931, %v7048
        %7948 = vst.msk [vmem:[%s434 + $0x80] sm:$0xff] %vm7065, %v7932
        %7949 = vst.msk [vmem:[%s434 + $0x88] sm:$0xff] %vm7065, %v7933
        %7950 = vst.msk [vmem:[%s434 + $0x90] sm:$0xff] %vm7065, %v7934
        %7951 = vst.msk [vmem:[%s434 + $0x98] sm:$0xff] %vm7065, %v7935
        %7952 = vst.msk [vmem:[%s434 + $0xa0] sm:$0xff] %vm7065, %v7936
        %7953 = vst.msk [vmem:[%s434 + $0xa8] sm:$0xff] %vm7065, %v7937
        %7954 = vst.msk [vmem:[%s434 + $0xb0] sm:$0xff] %vm7065, %v7938
        %7955 = vst.msk [vmem:[%s434 + $0xb8] sm:$0xff] %vm7065, %v7939
        %7956 = vst.msk [vmem:[%s434 + $0xc0] sm:$0xff] %vm7065, %v7940
        %7957 = vst.msk [vmem:[%s434 + $0xc8] sm:$0xff] %vm7065, %v7941
        %7958 = vst.msk [vmem:[%s434 + $0xd0] sm:$0xff] %vm7065, %v7942
        %7959 = vst.msk [vmem:[%s434 + $0xd8] sm:$0xff] %vm7065, %v7943
        %7960 = vst.msk [vmem:[%s434 + $0xe0] sm:$0xff] %vm7065, %v7944
        %7961 = vst.msk [vmem:[%s434 + $0xe8] sm:$0xff] %vm7065, %v7945
        %7962 = vst.msk [vmem:[%s434 + $0xf0] sm:$0xff] %vm7065, %v7946
        %7963 = vst.msk [vmem:[%s434 + $0xf8] sm:$0xff] %vm7065, %v7947
        %s7964 = sand.u32 %s257, 1
        %s7965 = scalar_lea.sflag [#allocation7], %s7964
        %s7966 = sand.u32 %s257, 1
        %s7967 = smul.addr %s7966, 512
        %s7968 = scalar_lea.vmem [#allocation8], %s7967
        %p7969 = scmp.lt.s32.totalorder %s29, 1
        %s7970 = scalar_select %p7969, %s29, 1
        %s7971 = smul.addr %s7970, 32
        %s7972 = smul.addr %s7971, 8
        %s7973 = scalar_lea.vmem %s11, %s7972
        // Predicated region
        $region65: #{tpu_custom_call.1} parent=59 // pred_check
          %p7974 = pneg %p267
        $region66: #{tpu_custom_call.1} parent=59 // pred_check_branch
          %7976 = sbr.rel (%p7974) target = $region68
        $region67: #{tpu_custom_call.1} parent=59 // pred_region
          %s7978 = ssub.s32 8192, 8192
          %7979 = vsyncadd %s7965, %s7978
          %s7980 = smul.addr %s29, 64
          %s7981 = smul.addr %s7980, 128
          %s7982 = scalar_lea.hbm %s10, %s7981
          %s7983 = sshll.u32 %s7968, 4
          %s7984 = int_to_ptr.vmem [resolvable:$true] %s7983
          %7989 = dma.vmem_to_hbm [thread:$0]  %s7984, 8192, %s7982, %s7965, 256, 256, 16
        $region68: #{tpu_custom_call.1} parent=59 // pred_fallthru
          _
        // Predicated region
        $region69: #{tpu_custom_call.1} parent=59 // pred_check
          %p7990 = pneg %p293
        $region70: #{tpu_custom_call.1} parent=59 // pred_check_branch
          %7992 = sbr.rel (%p7990) target = $region72
        $region71: #{tpu_custom_call.1} parent=59 // pred_region
          _
        $region72: #{tpu_custom_call.1} parent=59 // pred_fallthru
          _
      $region60: #{tpu_custom_call.1} parent=5 // pred_fallthru
        _
      %p7993 = scmp.le.s32.totalorder 2, %s24
      // Predicated region
      $region73: #{tpu_custom_call.1} parent=5 // pred_check
        %p7994 = pneg %p7993
      $region74: #{tpu_custom_call.1} parent=5 // pred_check_branch
        %7996 = sbr.rel (%p7994) target = $region76
      $region75: #{tpu_custom_call.1} parent=5 // pred_region
        %s7997 = ssub.s32 %s24, 2
        // Predicated region
        $region77: #{tpu_custom_call.1} parent=75 // pred_check
          %p7998 = pneg %p273
        $region78: #{tpu_custom_call.1} parent=75 // pred_check_branch
          %8000 = sbr.rel (%p7998) target = $region80
        $region79: #{tpu_custom_call.1} parent=75 // pred_region
          %s8001 = sand.u32 %s258, 1
          %s8002 = scalar_lea.sflag [#allocation7], %s8001
          %s8003 = sand.u32 %s258, 1
          %s8004 = smul.addr %s8003, 512
          %s8005 = scalar_lea.vmem [#allocation8], %s8004
          %8006 = dma.done %s8002, 8192
        $region80: #{tpu_custom_call.1} parent=75 // pred_fallthru
          _
        // Predicated region
        $region81: #{tpu_custom_call.1} parent=75 // pred_check
          %p8007 = pneg %p299
        $region82: #{tpu_custom_call.1} parent=75 // pred_check_branch
          %8009 = sbr.rel (%p8007) target = $region84
        $region83: #{tpu_custom_call.1} parent=75 // pred_region
          %p8010 = scmp.lt.s32.totalorder %s30, 1
          %s8011 = scalar_select %p8010, %s30, 1
          %s8012 = smul.addr %s8011, 32
          %s8013 = smul.addr %s8012, 8
          %s8014 = scalar_lea.vmem %s11, %s8013
        $region84: #{tpu_custom_call.1} parent=75 // pred_fallthru
          _
      $region76: #{tpu_custom_call.1} parent=5 // pred_fallthru
        _
    $region6: #{tpu_custom_call.1} parent=1 // loop_footer
      %s28 = sadd.s32 1, %s24
    $region7: #{tpu_custom_call.1} parent=1 // loop_footer_branch
      %23 = sbr.rel target = $region3
    $region8: #{tpu_custom_call.1} parent=1 // loop_exit
      _
    %8015 = vsyncpa [#allocation6], 1
    %s8016 = scalar_lea.sflag [#allocation6], 1
    %8017 = vsyncpa %s8016, 1
    %8018 = vsyncpa [#allocation7], 1
    %s8019 = scalar_lea.sflag [#allocation7], 1
    %8020 = vsyncpa %s8019, 1

</llo_original>
